<compile_context>
chip_gen: v6e
topology: v6e:2x2x1
jax: 0.10.0
libtpu: 0.0.40
codegen_flags: <defaults>
</compile_context>

<pallas_src>
import functools

import jax
import jax.numpy as jnp
from jax import lax
from jax.experimental import pallas as pl
from jax.experimental.pallas import tpu as pltpu


# ----------------------------------------------------------------------------
# In-kernel math helpers
# ----------------------------------------------------------------------------
_SQRT_HALF = 0.7071067811865476


def _erf_approx(x):
    # Abramowitz & Stegun 7.1.26 polynomial, max abs error ~1.5e-7.  The divide
    # could be pl.reciprocal(..., approx=True) to push it to the EUP, but these
    # kernels are HBM-bound and we keep the exact form for parity with
    # torch.nn.GELU(approximate='none').
    a1, a2, a3, a4, a5 = 0.254829592, -0.284496736, 1.421413741, -1.453152027, 1.061405429
    p = 0.3275911
    z = jnp.abs(x)
    t = 1.0 / (1.0 + p * z)
    poly = ((((a5 * t + a4) * t + a3) * t + a2) * t + a1) * t
    y = 1.0 - poly * jnp.exp(-z * z)
    return jnp.where(x >= 0, y, -y)


def _gelu_exact(x):
    # torch.nn.GELU() default: 0.5 * x * (1 + erf(x/sqrt(2)))
    return 0.5 * x * (1.0 + _erf_approx(x * _SQRT_HALF))


# ----------------------------------------------------------------------------
# Kernel 1: fused conv1 (im2col matmul, normalize folded) + bias + GELU +
#           MaxPool2d(k=3, s=2, p=1).  One image per grid step.
# ----------------------------------------------------------------------------
def _conv1_pool_kernel(p_ref, w_ref, b_ref, o_ref, rm_ref, *, oh, ow, hid):
    # p_ref: (oh*ow, k*k*cin) im2col rows for ONE image, rows ordered (oh, ow)
    # w_ref: (k*k*cin, hid) conv1 weights with Normalize folded in
    # b_ref: (1, hid)       conv1 bias with Normalize folded in
    # o_ref: (oh//2, ow//2, hid)  pooled output for this image
    # rm_ref: VMEM scratch (oh//2, ow, hid) holding the row-pooled maxima
    ph_out = oh // 2
    pw_out = ow // 2

    acc = jnp.dot(p_ref[...], w_ref[...], preferred_element_type=jnp.float32)
    h1 = _gelu_exact(acc + b_ref[...])                       # (oh*ow, hid)

    # Row (height) direction of the 3x2-strided pool.  Reshape is layout-safe:
    # it only regroups leading rows (new sublane dim `ow` is a multiple of 8).
    h1 = h1.reshape(ph_out, 2, ow, hid)                      # (q, parity, ow, c)
    even = h1[:, 0]                                          # rows oh = 2q
    odd = h1[:, 1]                                           # rows oh = 2q+1
    prev = jnp.concatenate(                                  # rows oh = 2q-1 (-inf pad at q=0)
        [jnp.full((1, ow, hid), -jnp.inf, jnp.float32), odd[:-1]], axis=0)
    rm_ref[...] = jnp.maximum(jnp.maximum(even, odd), prev)  # (ph_out, ow, hid)

    # Column (width) direction: stride-2 window max, unrolled with static
    # sublane slices of the VMEM scratch (no strided / gather ops needed).
    for j in range(pw_out):
        c0 = 2 * j
        v = jnp.maximum(rm_ref[:, c0:c0 + 1, :], rm_ref[:, c0 + 1:c0 + 2, :])
        if j > 0:                                            # column 2j-1 (pad at j=0 ignored)
            v = jnp.maximum(v, rm_ref[:, c0 - 1:c0, :])
        o_ref[:, j:j + 1, :] = v


def _conv1_pool_call(patches, w, b, n, oh, ow, hid):
    assert oh % 2 == 0 and ow % 2 == 0 and ow % 8 == 0
    m_img = oh * ow
    kdim = patches.shape[1]
    ph_out, pw_out = oh // 2, ow // 2
    kernel = functools.partial(_conv1_pool_kernel, oh=oh, ow=ow, hid=hid)
    return pl.pallas_call(
        kernel,
        out_shape=jax.ShapeDtypeStruct((n, ph_out, pw_out, hid), jnp.float32),
        grid=(n,),
        in_specs=[
            pl.BlockSpec((m_img, kdim), lambda i: (i, 0)),
            pl.BlockSpec((kdim, hid), lambda i: (0, 0)),
            pl.BlockSpec((1, hid), lambda i: (0, 0)),
        ],
        out_specs=pl.BlockSpec((None, ph_out, pw_out, hid), lambda i: (i, 0, 0, 0)),
        scratch_shapes=[pltpu.VMEM((ph_out, ow, hid), jnp.float32)],
        compiler_params=pltpu.CompilerParams(dimension_semantics=("parallel",)),
    )(patches, w, b)


# ----------------------------------------------------------------------------
# Kernel 2/3: M-tiled matmul (+ bias, optional GELU).  Used for conv2 (as an
# im2col matmul) and for the output Linear.
# ----------------------------------------------------------------------------
def _mm_kernel(x_ref, w_ref, b_ref, o_ref, *, activation):
    acc = jnp.dot(x_ref[...], w_ref[...], preferred_element_type=jnp.float32)
    acc = acc + b_ref[...]
    if activation:
        acc = _gelu_exact(acc)
    o_ref[...] = acc.astype(o_ref.dtype)


def _mm_call(x, w, b, *, activation=False, tm=512):
    m, k = x.shape
    _, n = w.shape
    tm = min(tm, m)
    return pl.pallas_call(
        functools.partial(_mm_kernel, activation=activation),
        out_shape=jax.ShapeDtypeStruct((m, n), jnp.float32),
        grid=(pl.cdiv(m, tm),),
        in_specs=[
            pl.BlockSpec((tm, k), lambda i: (i, 0)),
            pl.BlockSpec((k, n), lambda i: (0, 0)),
            pl.BlockSpec((1, n), lambda i: (0, 0)),
        ],
        out_specs=pl.BlockSpec((tm, n), lambda i: (i, 0)),
        compiler_params=pltpu.CompilerParams(dimension_semantics=("parallel",)),
    )(x, w, b)


# ----------------------------------------------------------------------------
# Glue: bilinear resize (PyTorch align_corners=False semantics) and im2col.
# Pure data movement / index arithmetic done in XLA.
# ----------------------------------------------------------------------------
def _resize_indices(in_size, out_size):
    scale = in_size / out_size
    dst = jnp.arange(out_size, dtype=jnp.float32)
    src = jnp.maximum((dst + 0.5) * scale - 0.5, 0.0)
    i0 = jnp.floor(src).astype(jnp.int32)
    i0 = jnp.minimum(i0, in_size - 1)
    i1 = jnp.minimum(i0 + 1, in_size - 1)
    lam = src - i0.astype(jnp.float32)
    return i0, i1, lam


def _bilinear_resize(x, out_h, out_w):
    # x: (N, H, W, C) -> (N, out_h, out_w, C); matches F.interpolate(bilinear,
    # align_corners=False).
    _, h, w, _ = x.shape
    h0, h1, lh = _resize_indices(h, out_h)
    w0, w1, lw = _resize_indices(w, out_w)
    xh = x[:, h0, :, :] * (1.0 - lh)[None, :, None, None] + x[:, h1, :, :] * lh[None, :, None, None]
    out = xh[:, :, w0, :] * (1.0 - lw)[None, None, :, None] + xh[:, :, w1, :] * lw[None, None, :, None]
    return out


def _strided_windows(xp, k, stride, oh, ow):
    n, _, _, c = xp.shape
    wins = []
    for kh in range(k):
        for kw in range(k):
            wins.append(
                lax.slice(
                    xp,
                    (0, kh, kw, 0),
                    (n, kh + stride * (oh - 1) + 1, kw + stride * (ow - 1) + 1, c),
                    (1, stride, stride, 1),
                )
            )
    return wins  # list of (N, OH, OW, C), ordered (kh, kw)


def _im2col(x, k, stride, pad, pad_value):
    n, h, w, c = x.shape
    oh = (h + 2 * pad - k) // stride + 1
    ow = (w + 2 * pad - k) // stride + 1
    xp = jnp.pad(x, ((0, 0), (pad, pad), (pad, pad), (0, 0)), constant_values=pad_value)
    wins = _strided_windows(xp, k, stride, oh, ow)
    col = jnp.stack(wins, axis=3)                     # (N, OH, OW, k*k, C)
    return col.reshape(n * oh * ow, k * k * c), (n, oh, ow)


# ----------------------------------------------------------------------------
# Forward pass (4-D input path of VideoEncoderCNN.forward)
# ----------------------------------------------------------------------------
def video_encoder_cnn_forward(params, x, resized_size=(64, 64), hidden_dim=16):
    if x.ndim != 4:
        # TODO(synk): 3-D single-image path not wired up (same math on batch=1;
        # the affine Normalize and bilinear resize commute).
        raise RuntimeError("The image input tensor must be 4D (N, H, W, C)")
    n, _, _, c = x.shape
    rh, rw = resized_size

    xr = _bilinear_resize(x.astype(jnp.float32), rh, rw)            # (N, 64, 64, C)

    # --- conv1 (k=7, s=2, p=3) + GELU + maxpool(3, s=2, p=1), fused kernel.
    # Normalize(0.1, 255) is folded into the weights/bias; padding the RAW
    # image with 0.1 is exactly torch's zero padding after normalization.
    patches1, (_, oh1, ow1) = _im2col(xr, k=7, stride=2, pad=3, pad_value=0.1)
    w1m = jnp.transpose(params["w1"], (2, 3, 1, 0)).reshape(7 * 7 * c, hidden_dim)
    w1m = w1m * (1.0 / 255.0)
    b1f = params["b1"] - 0.1 * jnp.sum(w1m, axis=0)
    p1 = _conv1_pool_call(patches1, w1m, b1f.reshape(1, -1), n, oh1, ow1, hidden_dim)
    # p1: (N, 16, 16, hidden)

    # --- conv2 (k=3, s=2, p=1) + GELU, M-tiled matmul kernel.
    patches2, (_, oh2, ow2) = _im2col(p1, k=3, stride=2, pad=1, pad_value=0.0)
    w2m = jnp.transpose(params["w2"], (2, 3, 1, 0)).reshape(3 * 3 * hidden_dim, hidden_dim)
    h2 = _mm_call(patches2, w2m, params["b2"].reshape(1, -1), activation=True)   # (N*64, 16)
    feats = h2.reshape(n, oh2 * ow2 * hidden_dim)                   # NHWC flatten (free reshape)

    # --- output Linear.  PyTorch flattens NCHW (idx = c*H*W + h*W + w); permute
    # the Linear weight columns so the NHWC flatten above yields identical output.
    wl = params["w_lin"].reshape(-1, hidden_dim, oh2, ow2)          # (out, c, h, w)
    wl = jnp.transpose(wl, (0, 2, 3, 1)).reshape(-1, oh2 * ow2 * hidden_dim)
    y = _mm_call(feats, wl.T, params["b_lin"].reshape(1, -1), activation=False)
    return y                                                        # (N, output_dim)


# ----------------------------------------------------------------------------
# Deterministic parameter construction + smoke test
# ----------------------------------------------------------------------------
def make_params(key, in_channels, output_dim, hidden_dim=16, resized_size=(64, 64)):
    flat = resized_size[0] * resized_size[1] // 64 * hidden_dim
    k1, k2, k3, k4, k5, k6 = jax.random.split(key, 6)
    return {
        "w1": 0.05 * jax.random.normal(k1, (hidden_dim, in_channels, 7, 7), jnp.float32),
        "b1": 0.05 * jax.random.normal(k2, (hidden_dim,), jnp.float32),
        "w2": 0.05 * jax.random.normal(k3, (hidden_dim, hidden_dim, 3, 3), jnp.float32),
        "b2": 0.05 * jax.random.normal(k4, (hidden_dim,), jnp.float32),
        "w_lin": 0.02 * jax.random.normal(k5, (output_dim, flat), jnp.float32),
        "b_lin": 0.02 * jax.random.normal(k6, (output_dim,), jnp.float32),
    }


if __name__ == "__main__":
    key = jax.random.PRNGKey(0)
    kp, kx = jax.random.split(key)

    N, H, W, C = 2, 16, 16, 4          # video_dim = (16, 16, 4); input is NHWC
    OUTPUT_DIM = 32
    HIDDEN = 16

    params = make_params(kp, in_channels=C, output_dim=OUTPUT_DIM, hidden_dim=HIDDEN)
    x = jax.random.uniform(kx, (N, H, W, C), jnp.float32, 0.0, 255.0)

    fwd = jax.jit(functools.partial(video_encoder_cnn_forward,
                                    resized_size=(64, 64), hidden_dim=HIDDEN))
    y = fwd(params, x)
    jax.block_until_ready(y)
    assert y.shape == (N, OUTPUT_DIM) and y.dtype == jnp.float32
    assert bool(jnp.all(jnp.isfinite(y)))
    print("KERNEL_OK")
</pallas_src>

<mosaic_0001>
module attributes {stable_mosaic.version = 11 : i64} {
  func.func @_conv1_pool_kernel(%arg0: i32, %arg1: memref<1024x196xf32, #tpu.memory_space<vmem>>, %arg2: memref<196x16xf32, #tpu.memory_space<vmem>>, %arg3: memref<1x16xf32, #tpu.memory_space<vmem>>, %arg4: memref<1x16x16x16xf32, #tpu.memory_space<vmem>>, %arg5: memref<16x32x16xf32, #tpu.memory_space<vmem>>) attributes {dimension_semantics = [#tpu.dimension_semantics<parallel>], iteration_bounds = array<i64: 2>, scalar_prefetch = 0 : i64, scratch_operands = 1 : i64, tpu.core_type = #tpu.core_type<tc>, window_params = [{transform_indices = @transform_0, window_bounds = array<i64: 1024, 196>}, {pipeline_mode = #tpu.pipeline_mode<synchronous>, transform_indices = @transform_1, window_bounds = array<i64: 196, 16>}, {pipeline_mode = #tpu.pipeline_mode<synchronous>, transform_indices = @transform_2, window_bounds = array<i64: 1, 16>}, {transform_indices = @transform_3, window_bounds = array<i64: 1, 16, 16, 16>}]} {
    %c0 = arith.constant 0 : index
    %c0_0 = arith.constant 0 : index
    %0 = vector.load %arg1[%c0, %c0_0] : memref<1024x196xf32, #tpu.memory_space<vmem>>, vector<1024x196xf32>
    %c0_1 = arith.constant 0 : index
    %c0_2 = arith.constant 0 : index
    %1 = vector.load %arg2[%c0_1, %c0_2] : memref<196x16xf32, #tpu.memory_space<vmem>>, vector<196x16xf32>
    %cst = arith.constant dense<0.000000e+00> : vector<1024x16xf32>
    %2 = tpu.matmul %0, %1, %cst {dimension_numbers = #tpu.dot_dimension_numbers<[1], [0], [0], [1], [0, 0, 1, 1], [], []>} : vector<1024x196xf32>, vector<196x16xf32>, vector<1024x16xf32> -> vector<1024x16xf32>
    %c0_3 = arith.constant 0 : index
    %c0_4 = arith.constant 0 : index
    %3 = vector.load %arg3[%c0_3, %c0_4] : memref<1x16xf32, #tpu.memory_space<vmem>>, vector<1x16xf32>
    %4 = vector.broadcast %3 : vector<1x16xf32> to vector<1024x16xf32>
    %5 = arith.addf %2, %4 : vector<1024x16xf32>
    %cst_5 = arith.constant 5.000000e-01 : f32
    %6 = vector.broadcast %cst_5 : f32 to vector<1024x16xf32>
    %7 = arith.mulf %6, %5 : vector<1024x16xf32>
    %cst_6 = arith.constant 0.707106769 : f32
    %8 = vector.broadcast %cst_6 : f32 to vector<1024x16xf32>
    %9 = arith.mulf %5, %8 : vector<1024x16xf32>
    %10 = math.absf %9 : vector<1024x16xf32>
    %cst_7 = arith.constant 0.327591091 : f32
    %11 = vector.broadcast %cst_7 : f32 to vector<1024x16xf32>
    %12 = arith.mulf %11, %10 : vector<1024x16xf32>
    %cst_8 = arith.constant 1.000000e+00 : f32
    %13 = vector.broadcast %cst_8 : f32 to vector<1024x16xf32>
    %14 = arith.addf %13, %12 : vector<1024x16xf32>
    %cst_9 = arith.constant 1.000000e+00 : f32
    %15 = vector.broadcast %cst_9 : f32 to vector<1024x16xf32>
    %16 = arith.divf %15, %14 : vector<1024x16xf32>
    %cst_10 = arith.constant 1.06140542 : f32
    %17 = vector.broadcast %cst_10 : f32 to vector<1024x16xf32>
    %18 = arith.mulf %17, %16 : vector<1024x16xf32>
    %cst_11 = arith.constant -1.45315206 : f32
    %19 = vector.broadcast %cst_11 : f32 to vector<1024x16xf32>
    %20 = arith.addf %18, %19 : vector<1024x16xf32>
    %21 = arith.mulf %20, %16 : vector<1024x16xf32>
    %cst_12 = arith.constant 1.42141378 : f32
    %22 = vector.broadcast %cst_12 : f32 to vector<1024x16xf32>
    %23 = arith.addf %21, %22 : vector<1024x16xf32>
    %24 = arith.mulf %23, %16 : vector<1024x16xf32>
    %cst_13 = arith.constant -0.284496725 : f32
    %25 = vector.broadcast %cst_13 : f32 to vector<1024x16xf32>
    %26 = arith.addf %24, %25 : vector<1024x16xf32>
    %27 = arith.mulf %26, %16 : vector<1024x16xf32>
    %cst_14 = arith.constant 0.254829586 : f32
    %28 = vector.broadcast %cst_14 : f32 to vector<1024x16xf32>
    %29 = arith.addf %27, %28 : vector<1024x16xf32>
    %30 = arith.mulf %29, %16 : vector<1024x16xf32>
    %cst_15 = arith.constant 0.000000e+00 : f32
    %31 = vector.broadcast %cst_15 : f32 to vector<1024x16xf32>
    %32 = arith.subf %31, %10 : vector<1024x16xf32>
    %33 = arith.mulf %32, %10 : vector<1024x16xf32>
    %34 = math.exp %33 : vector<1024x16xf32>
    %35 = arith.mulf %30, %34 : vector<1024x16xf32>
    %cst_16 = arith.constant 1.000000e+00 : f32
    %36 = vector.broadcast %cst_16 : f32 to vector<1024x16xf32>
    %37 = arith.subf %36, %35 : vector<1024x16xf32>
    %cst_17 = arith.constant 0.000000e+00 : f32
    %38 = vector.broadcast %cst_17 : f32 to vector<1024x16xf32>
    %39 = arith.cmpf oge, %9, %38 : vector<1024x16xf32>
    %cst_18 = arith.constant 0.000000e+00 : f32
    %40 = vector.broadcast %cst_18 : f32 to vector<1024x16xf32>
    %41 = arith.subf %40, %37 : vector<1024x16xf32>
    %42 = arith.select %39, %37, %41 : vector<1024x16xi1>, vector<1024x16xf32>
    %cst_19 = arith.constant 1.000000e+00 : f32
    %43 = vector.broadcast %cst_19 : f32 to vector<1024x16xf32>
    %44 = arith.addf %43, %42 : vector<1024x16xf32>
    %45 = arith.mulf %7, %44 : vector<1024x16xf32>
    %46 = vector.shape_cast %45 : vector<1024x16xf32> to vector<16x2x32x16xf32>
    %47 = vector.extract_strided_slice %46 {offsets = [0, 0, 0, 0], sizes = [16, 1, 32, 16], strides = [1, 1, 1, 1]} : vector<16x2x32x16xf32> to vector<16x1x32x16xf32>
    %48 = vector.shape_cast %47 : vector<16x1x32x16xf32> to vector<16x32x16xf32>
    %49 = vector.extract_strided_slice %46 {offsets = [0, 1, 0, 0], sizes = [16, 1, 32, 16], strides = [1, 1, 1, 1]} : vector<16x2x32x16xf32> to vector<16x1x32x16xf32>
    %50 = vector.shape_cast %49 : vector<16x1x32x16xf32> to vector<16x32x16xf32>
    %cst_20 = arith.constant 0xFF800000 : f32
    %51 = vector.broadcast %cst_20 : f32 to vector<1x32x16xf32>
    %52 = vector.extract_strided_slice %50 {offsets = [0, 0, 0], sizes = [15, 32, 16], strides = [1, 1, 1]} : vector<16x32x16xf32> to vector<15x32x16xf32>
    %53 = tpu.concatenate %51, %52 in 0 : vector<1x32x16xf32>, vector<15x32x16xf32> -> vector<16x32x16xf32>
    %54 = arith.maximumf %48, %50 : vector<16x32x16xf32>
    %55 = arith.maximumf %54, %53 : vector<16x32x16xf32>
    %c0_21 = arith.constant 0 : index
    %c0_22 = arith.constant 0 : index
    %c0_23 = arith.constant 0 : index
    %56 = vector.load %arg5[%c0_21, %c0_22, %c0_23] : memref<16x32x16xf32, #tpu.memory_space<vmem>>, vector<16x32x16xf32>
    tpu.vector_store %arg5[%c0_21, %c0_22, %c0_23], %55 {strides = array<i32>} : memref<16x32x16xf32, #tpu.memory_space<vmem>>, vector<16x32x16xf32>,
    %c0_24 = arith.constant 0 : index
    %c0_25 = arith.constant 0 : index
    %c0_26 = arith.constant 0 : index
    %57 = vector.load %arg5[%c0_24, %c0_25, %c0_26] : memref<16x32x16xf32, #tpu.memory_space<vmem>>, vector<16x1x16xf32>
    %c0_27 = arith.constant 0 : index
    %c1 = arith.constant 1 : index
    %c0_28 = arith.constant 0 : index
    %58 = vector.load %arg5[%c0_27, %c1, %c0_28] : memref<16x32x16xf32, #tpu.memory_space<vmem>>, vector<16x1x16xf32>
    %59 = arith.maximumf %57, %58 : vector<16x1x16xf32>
    %c0_29 = arith.constant 0 : index
    %c0_30 = arith.constant 0 : index
    %c0_31 = arith.constant 0 : index
    %c0_32 = arith.constant 0 : index
    %60 = vector.load %arg4[%c0_29, %c0_30, %c0_31, %c0_32] : memref<1x16x16x16xf32, #tpu.memory_space<vmem>>, vector<1x16x1x16xf32>
    %61 = vector.shape_cast %60 : vector<1x16x1x16xf32> to vector<16x1x16xf32>
    %62 = vector.shape_cast %59 : vector<16x1x16xf32> to vector<1x16x1x16xf32>
    tpu.vector_store %arg4[%c0_29, %c0_30, %c0_31, %c0_32], %62 {strides = array<i32>} : memref<1x16x16x16xf32, #tpu.memory_space<vmem>>, vector<1x16x1x16xf32>,
    %c0_33 = arith.constant 0 : index
    %c2 = arith.constant 2 : index
    %c0_34 = arith.constant 0 : index
    %63 = vector.load %arg5[%c0_33, %c2, %c0_34] : memref<16x32x16xf32, #tpu.memory_space<vmem>>, vector<16x1x16xf32>
    %c0_35 = arith.constant 0 : index
    %c3 = arith.constant 3 : index
    %c0_36 = arith.constant 0 : index
    %64 = vector.load %arg5[%c0_35, %c3, %c0_36] : memref<16x32x16xf32, #tpu.memory_space<vmem>>, vector<16x1x16xf32>
    %65 = arith.maximumf %63, %64 : vector<16x1x16xf32>
    %c0_37 = arith.constant 0 : index
    %c1_38 = arith.constant 1 : index
    %c0_39 = arith.constant 0 : index
    %66 = vector.load %arg5[%c0_37, %c1_38, %c0_39] : memref<16x32x16xf32, #tpu.memory_space<vmem>>, vector<16x1x16xf32>
    %67 = arith.maximumf %65, %66 : vector<16x1x16xf32>
    %c0_40 = arith.constant 0 : index
    %c0_41 = arith.constant 0 : index
    %c1_42 = arith.constant 1 : index
    %c0_43 = arith.constant 0 : index
    %68 = vector.load %arg4[%c0_40, %c0_41, %c1_42, %c0_43] : memref<1x16x16x16xf32, #tpu.memory_space<vmem>>, vector<1x16x1x16xf32>
    %69 = vector.shape_cast %68 : vector<1x16x1x16xf32> to vector<16x1x16xf32>
    %70 = vector.shape_cast %67 : vector<16x1x16xf32> to vector<1x16x1x16xf32>
    tpu.vector_store %arg4[%c0_40, %c0_41, %c1_42, %c0_43], %70 {strides = array<i32>} : memref<1x16x16x16xf32, #tpu.memory_space<vmem>>, vector<1x16x1x16xf32>,
    %c0_44 = arith.constant 0 : index
    %c4 = arith.constant 4 : index
    %c0_45 = arith.constant 0 : index
    %71 = vector.load %arg5[%c0_44, %c4, %c0_45] : memref<16x32x16xf32, #tpu.memory_space<vmem>>, vector<16x1x16xf32>
    %c0_46 = arith.constant 0 : index
    %c5 = arith.constant 5 : index
    %c0_47 = arith.constant 0 : index
    %72 = vector.load %arg5[%c0_46, %c5, %c0_47] : memref<16x32x16xf32, #tpu.memory_space<vmem>>, vector<16x1x16xf32>
    %73 = arith.maximumf %71, %72 : vector<16x1x16xf32>
    %c0_48 = arith.constant 0 : index
    %c3_49 = arith.constant 3 : index
    %c0_50 = arith.constant 0 : index
    %74 = vector.load %arg5[%c0_48, %c3_49, %c0_50] : memref<16x32x16xf32, #tpu.memory_space<vmem>>, vector<16x1x16xf32>
    %75 = arith.maximumf %73, %74 : vector<16x1x16xf32>
    %c0_51 = arith.constant 0 : index
    %c0_52 = arith.constant 0 : index
    %c2_53 = arith.constant 2 : index
    %c0_54 = arith.constant 0 : index
    %76 = vector.load %arg4[%c0_51, %c0_52, %c2_53, %c0_54] : memref<1x16x16x16xf32, #tpu.memory_space<vmem>>, vector<1x16x1x16xf32>
    %77 = vector.shape_cast %76 : vector<1x16x1x16xf32> to vector<16x1x16xf32>
    %78 = vector.shape_cast %75 : vector<16x1x16xf32> to vector<1x16x1x16xf32>
    tpu.vector_store %arg4[%c0_51, %c0_52, %c2_53, %c0_54], %78 {strides = array<i32>} : memref<1x16x16x16xf32, #tpu.memory_space<vmem>>, vector<1x16x1x16xf32>,
    %c0_55 = arith.constant 0 : index
    %c6 = arith.constant 6 : index
    %c0_56 = arith.constant 0 : index
    %79 = vector.load %arg5[%c0_55, %c6, %c0_56] : memref<16x32x16xf32, #tpu.memory_space<vmem>>, vector<16x1x16xf32>
    %c0_57 = arith.constant 0 : index
    %c7 = arith.constant 7 : index
    %c0_58 = arith.constant 0 : index
    %80 = vector.load %arg5[%c0_57, %c7, %c0_58] : memref<16x32x16xf32, #tpu.memory_space<vmem>>, vector<16x1x16xf32>
    %81 = arith.maximumf %79, %80 : vector<16x1x16xf32>
    %c0_59 = arith.constant 0 : index
    %c5_60 = arith.constant 5 : index
    %c0_61 = arith.constant 0 : index
    %82 = vector.load %arg5[%c0_59, %c5_60, %c0_61] : memref<16x32x16xf32, #tpu.memory_space<vmem>>, vector<16x1x16xf32>
    %83 = arith.maximumf %81, %82 : vector<16x1x16xf32>
    %c0_62 = arith.constant 0 : index
    %c0_63 = arith.constant 0 : index
    %c3_64 = arith.constant 3 : index
    %c0_65 = arith.constant 0 : index
    %84 = vector.load %arg4[%c0_62, %c0_63, %c3_64, %c0_65] : memref<1x16x16x16xf32, #tpu.memory_space<vmem>>, vector<1x16x1x16xf32>
    %85 = vector.shape_cast %84 : vector<1x16x1x16xf32> to vector<16x1x16xf32>
    %86 = vector.shape_cast %83 : vector<16x1x16xf32> to vector<1x16x1x16xf32>
    tpu.vector_store %arg4[%c0_62, %c0_63, %c3_64, %c0_65], %86 {strides = array<i32>} : memref<1x16x16x16xf32, #tpu.memory_space<vmem>>, vector<1x16x1x16xf32>,
    %c0_66 = arith.constant 0 : index
    %c8 = arith.constant 8 : index
    %c0_67 = arith.constant 0 : index
    %87 = vector.load %arg5[%c0_66, %c8, %c0_67] : memref<16x32x16xf32, #tpu.memory_space<vmem>>, vector<16x1x16xf32>
    %c0_68 = arith.constant 0 : index
    %c9 = arith.constant 9 : index
    %c0_69 = arith.constant 0 : index
    %88 = vector.load %arg5[%c0_68, %c9, %c0_69] : memref<16x32x16xf32, #tpu.memory_space<vmem>>, vector<16x1x16xf32>
    %89 = arith.maximumf %87, %88 : vector<16x1x16xf32>
    %c0_70 = arith.constant 0 : index
    %c7_71 = arith.constant 7 : index
    %c0_72 = arith.constant 0 : index
    %90 = vector.load %arg5[%c0_70, %c7_71, %c0_72] : memref<16x32x16xf32, #tpu.memory_space<vmem>>, vector<16x1x16xf32>
    %91 = arith.maximumf %89, %90 : vector<16x1x16xf32>
    %c0_73 = arith.constant 0 : index
    %c0_74 = arith.constant 0 : index
    %c4_75 = arith.constant 4 : index
    %c0_76 = arith.constant 0 : index
    %92 = vector.load %arg4[%c0_73, %c0_74, %c4_75, %c0_76] : memref<1x16x16x16xf32, #tpu.memory_space<vmem>>, vector<1x16x1x16xf32>
    %93 = vector.shape_cast %92 : vector<1x16x1x16xf32> to vector<16x1x16xf32>
    %94 = vector.shape_cast %91 : vector<16x1x16xf32> to vector<1x16x1x16xf32>
    tpu.vector_store %arg4[%c0_73, %c0_74, %c4_75, %c0_76], %94 {strides = array<i32>} : memref<1x16x16x16xf32, #tpu.memory_space<vmem>>, vector<1x16x1x16xf32>,
    %c0_77 = arith.constant 0 : index
    %c10 = arith.constant 10 : index
    %c0_78 = arith.constant 0 : index
    %95 = vector.load %arg5[%c0_77, %c10, %c0_78] : memref<16x32x16xf32, #tpu.memory_space<vmem>>, vector<16x1x16xf32>
    %c0_79 = arith.constant 0 : index
    %c11 = arith.constant 11 : index
    %c0_80 = arith.constant 0 : index
    %96 = vector.load %arg5[%c0_79, %c11, %c0_80] : memref<16x32x16xf32, #tpu.memory_space<vmem>>, vector<16x1x16xf32>
    %97 = arith.maximumf %95, %96 : vector<16x1x16xf32>
    %c0_81 = arith.constant 0 : index
    %c9_82 = arith.constant 9 : index
    %c0_83 = arith.constant 0 : index
    %98 = vector.load %arg5[%c0_81, %c9_82, %c0_83] : memref<16x32x16xf32, #tpu.memory_space<vmem>>, vector<16x1x16xf32>
    %99 = arith.maximumf %97, %98 : vector<16x1x16xf32>
    %c0_84 = arith.constant 0 : index
    %c0_85 = arith.constant 0 : index
    %c5_86 = arith.constant 5 : index
    %c0_87 = arith.constant 0 : index
    %100 = vector.load %arg4[%c0_84, %c0_85, %c5_86, %c0_87] : memref<1x16x16x16xf32, #tpu.memory_space<vmem>>, vector<1x16x1x16xf32>
    %101 = vector.shape_cast %100 : vector<1x16x1x16xf32> to vector<16x1x16xf32>
    %102 = vector.shape_cast %99 : vector<16x1x16xf32> to vector<1x16x1x16xf32>
    tpu.vector_store %arg4[%c0_84, %c0_85, %c5_86, %c0_87], %102 {strides = array<i32>} : memref<1x16x16x16xf32, #tpu.memory_space<vmem>>, vector<1x16x1x16xf32>,
    %c0_88 = arith.constant 0 : index
    %c12 = arith.constant 12 : index
    %c0_89 = arith.constant 0 : index
    %103 = vector.load %arg5[%c0_88, %c12, %c0_89] : memref<16x32x16xf32, #tpu.memory_space<vmem>>, vector<16x1x16xf32>
    %c0_90 = arith.constant 0 : index
    %c13 = arith.constant 13 : index
    %c0_91 = arith.constant 0 : index
    %104 = vector.load %arg5[%c0_90, %c13, %c0_91] : memref<16x32x16xf32, #tpu.memory_space<vmem>>, vector<16x1x16xf32>
    %105 = arith.maximumf %103, %104 : vector<16x1x16xf32>
    %c0_92 = arith.constant 0 : index
    %c11_93 = arith.constant 11 : index
    %c0_94 = arith.constant 0 : index
    %106 = vector.load %arg5[%c0_92, %c11_93, %c0_94] : memref<16x32x16xf32, #tpu.memory_space<vmem>>, vector<16x1x16xf32>
    %107 = arith.maximumf %105, %106 : vector<16x1x16xf32>
    %c0_95 = arith.constant 0 : index
    %c0_96 = arith.constant 0 : index
    %c6_97 = arith.constant 6 : index
    %c0_98 = arith.constant 0 : index
    %108 = vector.load %arg4[%c0_95, %c0_96, %c6_97, %c0_98] : memref<1x16x16x16xf32, #tpu.memory_space<vmem>>, vector<1x16x1x16xf32>
    %109 = vector.shape_cast %108 : vector<1x16x1x16xf32> to vector<16x1x16xf32>
    %110 = vector.shape_cast %107 : vector<16x1x16xf32> to vector<1x16x1x16xf32>
    tpu.vector_store %arg4[%c0_95, %c0_96, %c6_97, %c0_98], %110 {strides = array<i32>} : memref<1x16x16x16xf32, #tpu.memory_space<vmem>>, vector<1x16x1x16xf32>,
    %c0_99 = arith.constant 0 : index
    %c14 = arith.constant 14 : index
    %c0_100 = arith.constant 0 : index
    %111 = vector.load %arg5[%c0_99, %c14, %c0_100] : memref<16x32x16xf32, #tpu.memory_space<vmem>>, vector<16x1x16xf32>
    %c0_101 = arith.constant 0 : index
    %c15 = arith.constant 15 : index
    %c0_102 = arith.constant 0 : index
    %112 = vector.load %arg5[%c0_101, %c15, %c0_102] : memref<16x32x16xf32, #tpu.memory_space<vmem>>, vector<16x1x16xf32>
    %113 = arith.maximumf %111, %112 : vector<16x1x16xf32>
    %c0_103 = arith.constant 0 : index
    %c13_104 = arith.constant 13 : index
    %c0_105 = arith.constant 0 : index
    %114 = vector.load %arg5[%c0_103, %c13_104, %c0_105] : memref<16x32x16xf32, #tpu.memory_space<vmem>>, vector<16x1x16xf32>
    %115 = arith.maximumf %113, %114 : vector<16x1x16xf32>
    %c0_106 = arith.constant 0 : index
    %c0_107 = arith.constant 0 : index
    %c7_108 = arith.constant 7 : index
    %c0_109 = arith.constant 0 : index
    %116 = vector.load %arg4[%c0_106, %c0_107, %c7_108, %c0_109] : memref<1x16x16x16xf32, #tpu.memory_space<vmem>>, vector<1x16x1x16xf32>
    %117 = vector.shape_cast %116 : vector<1x16x1x16xf32> to vector<16x1x16xf32>
    %118 = vector.shape_cast %115 : vector<16x1x16xf32> to vector<1x16x1x16xf32>
    tpu.vector_store %arg4[%c0_106, %c0_107, %c7_108, %c0_109], %118 {strides = array<i32>} : memref<1x16x16x16xf32, #tpu.memory_space<vmem>>, vector<1x16x1x16xf32>,
    %c0_110 = arith.constant 0 : index
    %c16 = arith.constant 16 : index
    %c0_111 = arith.constant 0 : index
    %119 = vector.load %arg5[%c0_110, %c16, %c0_111] : memref<16x32x16xf32, #tpu.memory_space<vmem>>, vector<16x1x16xf32>
    %c0_112 = arith.constant 0 : index
    %c17 = arith.constant 17 : index
    %c0_113 = arith.constant 0 : index
    %120 = vector.load %arg5[%c0_112, %c17, %c0_113] : memref<16x32x16xf32, #tpu.memory_space<vmem>>, vector<16x1x16xf32>
    %121 = arith.maximumf %119, %120 : vector<16x1x16xf32>
    %c0_114 = arith.constant 0 : index
    %c15_115 = arith.constant 15 : index
    %c0_116 = arith.constant 0 : index
    %122 = vector.load %arg5[%c0_114, %c15_115, %c0_116] : memref<16x32x16xf32, #tpu.memory_space<vmem>>, vector<16x1x16xf32>
    %123 = arith.maximumf %121, %122 : vector<16x1x16xf32>
    %c0_117 = arith.constant 0 : index
    %c0_118 = arith.constant 0 : index
    %c8_119 = arith.constant 8 : index
    %c0_120 = arith.constant 0 : index
    %124 = vector.load %arg4[%c0_117, %c0_118, %c8_119, %c0_120] : memref<1x16x16x16xf32, #tpu.memory_space<vmem>>, vector<1x16x1x16xf32>
    %125 = vector.shape_cast %124 : vector<1x16x1x16xf32> to vector<16x1x16xf32>
    %126 = vector.shape_cast %123 : vector<16x1x16xf32> to vector<1x16x1x16xf32>
    tpu.vector_store %arg4[%c0_117, %c0_118, %c8_119, %c0_120], %126 {strides = array<i32>} : memref<1x16x16x16xf32, #tpu.memory_space<vmem>>, vector<1x16x1x16xf32>,
    %c0_121 = arith.constant 0 : index
    %c18 = arith.constant 18 : index
    %c0_122 = arith.constant 0 : index
    %127 = vector.load %arg5[%c0_121, %c18, %c0_122] : memref<16x32x16xf32, #tpu.memory_space<vmem>>, vector<16x1x16xf32>
    %c0_123 = arith.constant 0 : index
    %c19 = arith.constant 19 : index
    %c0_124 = arith.constant 0 : index
    %128 = vector.load %arg5[%c0_123, %c19, %c0_124] : memref<16x32x16xf32, #tpu.memory_space<vmem>>, vector<16x1x16xf32>
    %129 = arith.maximumf %127, %128 : vector<16x1x16xf32>
    %c0_125 = arith.constant 0 : index
    %c17_126 = arith.constant 17 : index
    %c0_127 = arith.constant 0 : index
    %130 = vector.load %arg5[%c0_125, %c17_126, %c0_127] : memref<16x32x16xf32, #tpu.memory_space<vmem>>, vector<16x1x16xf32>
    %131 = arith.maximumf %129, %130 : vector<16x1x16xf32>
    %c0_128 = arith.constant 0 : index
    %c0_129 = arith.constant 0 : index
    %c9_130 = arith.constant 9 : index
    %c0_131 = arith.constant 0 : index
    %132 = vector.load %arg4[%c0_128, %c0_129, %c9_130, %c0_131] : memref<1x16x16x16xf32, #tpu.memory_space<vmem>>, vector<1x16x1x16xf32>
    %133 = vector.shape_cast %132 : vector<1x16x1x16xf32> to vector<16x1x16xf32>
    %134 = vector.shape_cast %131 : vector<16x1x16xf32> to vector<1x16x1x16xf32>
    tpu.vector_store %arg4[%c0_128, %c0_129, %c9_130, %c0_131], %134 {strides = array<i32>} : memref<1x16x16x16xf32, #tpu.memory_space<vmem>>, vector<1x16x1x16xf32>,
    %c0_132 = arith.constant 0 : index
    %c20 = arith.constant 20 : index
    %c0_133 = arith.constant 0 : index
    %135 = vector.load %arg5[%c0_132, %c20, %c0_133] : memref<16x32x16xf32, #tpu.memory_space<vmem>>, vector<16x1x16xf32>
    %c0_134 = arith.constant 0 : index
    %c21 = arith.constant 21 : index
    %c0_135 = arith.constant 0 : index
    %136 = vector.load %arg5[%c0_134, %c21, %c0_135] : memref<16x32x16xf32, #tpu.memory_space<vmem>>, vector<16x1x16xf32>
    %137 = arith.maximumf %135, %136 : vector<16x1x16xf32>
    %c0_136 = arith.constant 0 : index
    %c19_137 = arith.constant 19 : index
    %c0_138 = arith.constant 0 : index
    %138 = vector.load %arg5[%c0_136, %c19_137, %c0_138] : memref<16x32x16xf32, #tpu.memory_space<vmem>>, vector<16x1x16xf32>
    %139 = arith.maximumf %137, %138 : vector<16x1x16xf32>
    %c0_139 = arith.constant 0 : index
    %c0_140 = arith.constant 0 : index
    %c10_141 = arith.constant 10 : index
    %c0_142 = arith.constant 0 : index
    %140 = vector.load %arg4[%c0_139, %c0_140, %c10_141, %c0_142] : memref<1x16x16x16xf32, #tpu.memory_space<vmem>>, vector<1x16x1x16xf32>
    %141 = vector.shape_cast %140 : vector<1x16x1x16xf32> to vector<16x1x16xf32>
    %142 = vector.shape_cast %139 : vector<16x1x16xf32> to vector<1x16x1x16xf32>
    tpu.vector_store %arg4[%c0_139, %c0_140, %c10_141, %c0_142], %142 {strides = array<i32>} : memref<1x16x16x16xf32, #tpu.memory_space<vmem>>, vector<1x16x1x16xf32>,
    %c0_143 = arith.constant 0 : index
    %c22 = arith.constant 22 : index
    %c0_144 = arith.constant 0 : index
    %143 = vector.load %arg5[%c0_143, %c22, %c0_144] : memref<16x32x16xf32, #tpu.memory_space<vmem>>, vector<16x1x16xf32>
    %c0_145 = arith.constant 0 : index
    %c23 = arith.constant 23 : index
    %c0_146 = arith.constant 0 : index
    %144 = vector.load %arg5[%c0_145, %c23, %c0_146] : memref<16x32x16xf32, #tpu.memory_space<vmem>>, vector<16x1x16xf32>
    %145 = arith.maximumf %143, %144 : vector<16x1x16xf32>
    %c0_147 = arith.constant 0 : index
    %c21_148 = arith.constant 21 : index
    %c0_149 = arith.constant 0 : index
    %146 = vector.load %arg5[%c0_147, %c21_148, %c0_149] : memref<16x32x16xf32, #tpu.memory_space<vmem>>, vector<16x1x16xf32>
    %147 = arith.maximumf %145, %146 : vector<16x1x16xf32>
    %c0_150 = arith.constant 0 : index
    %c0_151 = arith.constant 0 : index
    %c11_152 = arith.constant 11 : index
    %c0_153 = arith.constant 0 : index
    %148 = vector.load %arg4[%c0_150, %c0_151, %c11_152, %c0_153] : memref<1x16x16x16xf32, #tpu.memory_space<vmem>>, vector<1x16x1x16xf32>
    %149 = vector.shape_cast %148 : vector<1x16x1x16xf32> to vector<16x1x16xf32>
    %150 = vector.shape_cast %147 : vector<16x1x16xf32> to vector<1x16x1x16xf32>
    tpu.vector_store %arg4[%c0_150, %c0_151, %c11_152, %c0_153], %150 {strides = array<i32>} : memref<1x16x16x16xf32, #tpu.memory_space<vmem>>, vector<1x16x1x16xf32>,
    %c0_154 = arith.constant 0 : index
    %c24 = arith.constant 24 : index
    %c0_155 = arith.constant 0 : index
    %151 = vector.load %arg5[%c0_154, %c24, %c0_155] : memref<16x32x16xf32, #tpu.memory_space<vmem>>, vector<16x1x16xf32>
    %c0_156 = arith.constant 0 : index
    %c25 = arith.constant 25 : index
    %c0_157 = arith.constant 0 : index
    %152 = vector.load %arg5[%c0_156, %c25, %c0_157] : memref<16x32x16xf32, #tpu.memory_space<vmem>>, vector<16x1x16xf32>
    %153 = arith.maximumf %151, %152 : vector<16x1x16xf32>
    %c0_158 = arith.constant 0 : index
    %c23_159 = arith.constant 23 : index
    %c0_160 = arith.constant 0 : index
    %154 = vector.load %arg5[%c0_158, %c23_159, %c0_160] : memref<16x32x16xf32, #tpu.memory_space<vmem>>, vector<16x1x16xf32>
    %155 = arith.maximumf %153, %154 : vector<16x1x16xf32>
    %c0_161 = arith.constant 0 : index
    %c0_162 = arith.constant 0 : index
    %c12_163 = arith.constant 12 : index
    %c0_164 = arith.constant 0 : index
    %156 = vector.load %arg4[%c0_161, %c0_162, %c12_163, %c0_164] : memref<1x16x16x16xf32, #tpu.memory_space<vmem>>, vector<1x16x1x16xf32>
    %157 = vector.shape_cast %156 : vector<1x16x1x16xf32> to vector<16x1x16xf32>
    %158 = vector.shape_cast %155 : vector<16x1x16xf32> to vector<1x16x1x16xf32>
    tpu.vector_store %arg4[%c0_161, %c0_162, %c12_163, %c0_164], %158 {strides = array<i32>} : memref<1x16x16x16xf32, #tpu.memory_space<vmem>>, vector<1x16x1x16xf32>,
    %c0_165 = arith.constant 0 : index
    %c26 = arith.constant 26 : index
    %c0_166 = arith.constant 0 : index
    %159 = vector.load %arg5[%c0_165, %c26, %c0_166] : memref<16x32x16xf32, #tpu.memory_space<vmem>>, vector<16x1x16xf32>
    %c0_167 = arith.constant 0 : index
    %c27 = arith.constant 27 : index
    %c0_168 = arith.constant 0 : index
    %160 = vector.load %arg5[%c0_167, %c27, %c0_168] : memref<16x32x16xf32, #tpu.memory_space<vmem>>, vector<16x1x16xf32>
    %161 = arith.maximumf %159, %160 : vector<16x1x16xf32>
    %c0_169 = arith.constant 0 : index
    %c25_170 = arith.constant 25 : index
    %c0_171 = arith.constant 0 : index
    %162 = vector.load %arg5[%c0_169, %c25_170, %c0_171] : memref<16x32x16xf32, #tpu.memory_space<vmem>>, vector<16x1x16xf32>
    %163 = arith.maximumf %161, %162 : vector<16x1x16xf32>
    %c0_172 = arith.constant 0 : index
    %c0_173 = arith.constant 0 : index
    %c13_174 = arith.constant 13 : index
    %c0_175 = arith.constant 0 : index
    %164 = vector.load %arg4[%c0_172, %c0_173, %c13_174, %c0_175] : memref<1x16x16x16xf32, #tpu.memory_space<vmem>>, vector<1x16x1x16xf32>
    %165 = vector.shape_cast %164 : vector<1x16x1x16xf32> to vector<16x1x16xf32>
    %166 = vector.shape_cast %163 : vector<16x1x16xf32> to vector<1x16x1x16xf32>
    tpu.vector_store %arg4[%c0_172, %c0_173, %c13_174, %c0_175], %166 {strides = array<i32>} : memref<1x16x16x16xf32, #tpu.memory_space<vmem>>, vector<1x16x1x16xf32>,
    %c0_176 = arith.constant 0 : index
    %c28 = arith.constant 28 : index
    %c0_177 = arith.constant 0 : index
    %167 = vector.load %arg5[%c0_176, %c28, %c0_177] : memref<16x32x16xf32, #tpu.memory_space<vmem>>, vector<16x1x16xf32>
    %c0_178 = arith.constant 0 : index
    %c29 = arith.constant 29 : index
    %c0_179 = arith.constant 0 : index
    %168 = vector.load %arg5[%c0_178, %c29, %c0_179] : memref<16x32x16xf32, #tpu.memory_space<vmem>>, vector<16x1x16xf32>
    %169 = arith.maximumf %167, %168 : vector<16x1x16xf32>
    %c0_180 = arith.constant 0 : index
    %c27_181 = arith.constant 27 : index
    %c0_182 = arith.constant 0 : index
    %170 = vector.load %arg5[%c0_180, %c27_181, %c0_182] : memref<16x32x16xf32, #tpu.memory_space<vmem>>, vector<16x1x16xf32>
    %171 = arith.maximumf %169, %170 : vector<16x1x16xf32>
    %c0_183 = arith.constant 0 : index
    %c0_184 = arith.constant 0 : index
    %c14_185 = arith.constant 14 : index
    %c0_186 = arith.constant 0 : index
    %172 = vector.load %arg4[%c0_183, %c0_184, %c14_185, %c0_186] : memref<1x16x16x16xf32, #tpu.memory_space<vmem>>, vector<1x16x1x16xf32>
    %173 = vector.shape_cast %172 : vector<1x16x1x16xf32> to vector<16x1x16xf32>
    %174 = vector.shape_cast %171 : vector<16x1x16xf32> to vector<1x16x1x16xf32>
    tpu.vector_store %arg4[%c0_183, %c0_184, %c14_185, %c0_186], %174 {strides = array<i32>} : memref<1x16x16x16xf32, #tpu.memory_space<vmem>>, vector<1x16x1x16xf32>,
    %c0_187 = arith.constant 0 : index
    %c30 = arith.constant 30 : index
    %c0_188 = arith.constant 0 : index
    %175 = vector.load %arg5[%c0_187, %c30, %c0_188] : memref<16x32x16xf32, #tpu.memory_space<vmem>>, vector<16x1x16xf32>
    %c0_189 = arith.constant 0 : index
    %c31 = arith.constant 31 : index
    %c0_190 = arith.constant 0 : index
    %176 = vector.load %arg5[%c0_189, %c31, %c0_190] : memref<16x32x16xf32, #tpu.memory_space<vmem>>, vector<16x1x16xf32>
    %177 = arith.maximumf %175, %176 : vector<16x1x16xf32>
    %c0_191 = arith.constant 0 : index
    %c29_192 = arith.constant 29 : index
    %c0_193 = arith.constant 0 : index
    %178 = vector.load %arg5[%c0_191, %c29_192, %c0_193] : memref<16x32x16xf32, #tpu.memory_space<vmem>>, vector<16x1x16xf32>
    %179 = arith.maximumf %177, %178 : vector<16x1x16xf32>
    %c0_194 = arith.constant 0 : index
    %c0_195 = arith.constant 0 : index
    %c15_196 = arith.constant 15 : index
    %c0_197 = arith.constant 0 : index
    %180 = vector.load %arg4[%c0_194, %c0_195, %c15_196, %c0_197] : memref<1x16x16x16xf32, #tpu.memory_space<vmem>>, vector<1x16x1x16xf32>
    %181 = vector.shape_cast %180 : vector<1x16x1x16xf32> to vector<16x1x16xf32>
    %182 = vector.shape_cast %179 : vector<16x1x16xf32> to vector<1x16x1x16xf32>
    tpu.vector_store %arg4[%c0_194, %c0_195, %c15_196, %c0_197], %182 {strides = array<i32>} : memref<1x16x16x16xf32, #tpu.memory_space<vmem>>, vector<1x16x1x16xf32>,
    return
  }
  func.func @transform_0(%arg0: i32) -> (i32, i32) {
    %c0_i32 = arith.constant 0 : i32
    %c0_i32_0 = arith.constant 0 : i32
    return %arg0, %c0_i32 : i32, i32
  }
  func.func @transform_1(%arg0: i32) -> (i32, i32) {
    %c0_i32 = arith.constant 0 : i32
    %c0_i32_0 = arith.constant 0 : i32
    %c0_i32_1 = arith.constant 0 : i32
    return %c0_i32, %c0_i32_0 : i32, i32
  }
  func.func @transform_2(%arg0: i32) -> (i32, i32) {
    %c0_i32 = arith.constant 0 : i32
    %c0_i32_0 = arith.constant 0 : i32
    %c0_i32_1 = arith.constant 0 : i32
    return %c0_i32, %c0_i32_0 : i32, i32
  }
  func.func @transform_3(%arg0: i32) -> (i32, i32, i32, i32) {
    %c0_i32 = arith.constant 0 : i32
    %c0_i32_0 = arith.constant 0 : i32
    %c0_i32_1 = arith.constant 0 : i32
    %c0_i32_2 = arith.constant 0 : i32
    return %arg0, %c0_i32, %c0_i32_0, %c0_i32_1 : i32, i32, i32, i32
  }
}

module attributes {stable_mosaic.version = 11 : i64} {
  func.func @_mm_kernel(%arg0: i32, %arg1: memref<128x144xf32, #tpu.memory_space<vmem>>, %arg2: memref<144x16xf32, #tpu.memory_space<vmem>>, %arg3: memref<1x16xf32, #tpu.memory_space<vmem>>, %arg4: memref<128x16xf32, #tpu.memory_space<vmem>>) attributes {dimension_semantics = [#tpu.dimension_semantics<parallel>], iteration_bounds = array<i64: 1>, scalar_prefetch = 0 : i64, scratch_operands = 0 : i64, tpu.core_type = #tpu.core_type<tc>, window_params = [{transform_indices = @transform_0, window_bounds = array<i64: 128, 144>}, {pipeline_mode = #tpu.pipeline_mode<synchronous>, transform_indices = @transform_1, window_bounds = array<i64: 144, 16>}, {pipeline_mode = #tpu.pipeline_mode<synchronous>, transform_indices = @transform_2, window_bounds = array<i64: 1, 16>}, {transform_indices = @transform_3, window_bounds = array<i64: 128, 16>}]} {
    %c0 = arith.constant 0 : index
    %c0_0 = arith.constant 0 : index
    %0 = vector.load %arg1[%c0, %c0_0] : memref<128x144xf32, #tpu.memory_space<vmem>>, vector<128x144xf32>
    %c0_1 = arith.constant 0 : index
    %c0_2 = arith.constant 0 : index
    %1 = vector.load %arg2[%c0_1, %c0_2] : memref<144x16xf32, #tpu.memory_space<vmem>>, vector<144x16xf32>
    %cst = arith.constant dense<0.000000e+00> : vector<128x16xf32>
    %2 = tpu.matmul %0, %1, %cst {dimension_numbers = #tpu.dot_dimension_numbers<[1], [0], [0], [1], [0, 0, 1, 1], [], []>} : vector<128x144xf32>, vector<144x16xf32>, vector<128x16xf32> -> vector<128x16xf32>
    %c0_3 = arith.constant 0 : index
    %c0_4 = arith.constant 0 : index
    %3 = vector.load %arg3[%c0_3, %c0_4] : memref<1x16xf32, #tpu.memory_space<vmem>>, vector<1x16xf32>
    %4 = vector.broadcast %3 : vector<1x16xf32> to vector<128x16xf32>
    %5 = arith.addf %2, %4 : vector<128x16xf32>
    %cst_5 = arith.constant 5.000000e-01 : f32
    %6 = vector.broadcast %cst_5 : f32 to vector<128x16xf32>
    %7 = arith.mulf %6, %5 : vector<128x16xf32>
    %cst_6 = arith.constant 0.707106769 : f32
    %8 = vector.broadcast %cst_6 : f32 to vector<128x16xf32>
    %9 = arith.mulf %5, %8 : vector<128x16xf32>
    %10 = math.absf %9 : vector<128x16xf32>
    %cst_7 = arith.constant 0.327591091 : f32
    %11 = vector.broadcast %cst_7 : f32 to vector<128x16xf32>
    %12 = arith.mulf %11, %10 : vector<128x16xf32>
    %cst_8 = arith.constant 1.000000e+00 : f32
    %13 = vector.broadcast %cst_8 : f32 to vector<128x16xf32>
    %14 = arith.addf %13, %12 : vector<128x16xf32>
    %cst_9 = arith.constant 1.000000e+00 : f32
    %15 = vector.broadcast %cst_9 : f32 to vector<128x16xf32>
    %16 = arith.divf %15, %14 : vector<128x16xf32>
    %cst_10 = arith.constant 1.06140542 : f32
    %17 = vector.broadcast %cst_10 : f32 to vector<128x16xf32>
    %18 = arith.mulf %17, %16 : vector<128x16xf32>
    %cst_11 = arith.constant -1.45315206 : f32
    %19 = vector.broadcast %cst_11 : f32 to vector<128x16xf32>
    %20 = arith.addf %18, %19 : vector<128x16xf32>
    %21 = arith.mulf %20, %16 : vector<128x16xf32>
    %cst_12 = arith.constant 1.42141378 : f32
    %22 = vector.broadcast %cst_12 : f32 to vector<128x16xf32>
    %23 = arith.addf %21, %22 : vector<128x16xf32>
    %24 = arith.mulf %23, %16 : vector<128x16xf32>
    %cst_13 = arith.constant -0.284496725 : f32
    %25 = vector.broadcast %cst_13 : f32 to vector<128x16xf32>
    %26 = arith.addf %24, %25 : vector<128x16xf32>
    %27 = arith.mulf %26, %16 : vector<128x16xf32>
    %cst_14 = arith.constant 0.254829586 : f32
    %28 = vector.broadcast %cst_14 : f32 to vector<128x16xf32>
    %29 = arith.addf %27, %28 : vector<128x16xf32>
    %30 = arith.mulf %29, %16 : vector<128x16xf32>
    %cst_15 = arith.constant 0.000000e+00 : f32
    %31 = vector.broadcast %cst_15 : f32 to vector<128x16xf32>
    %32 = arith.subf %31, %10 : vector<128x16xf32>
    %33 = arith.mulf %32, %10 : vector<128x16xf32>
    %34 = math.exp %33 : vector<128x16xf32>
    %35 = arith.mulf %30, %34 : vector<128x16xf32>
    %cst_16 = arith.constant 1.000000e+00 : f32
    %36 = vector.broadcast %cst_16 : f32 to vector<128x16xf32>
    %37 = arith.subf %36, %35 : vector<128x16xf32>
    %cst_17 = arith.constant 0.000000e+00 : f32
    %38 = vector.broadcast %cst_17 : f32 to vector<128x16xf32>
    %39 = arith.cmpf oge, %9, %38 : vector<128x16xf32>
    %cst_18 = arith.constant 0.000000e+00 : f32
    %40 = vector.broadcast %cst_18 : f32 to vector<128x16xf32>
    %41 = arith.subf %40, %37 : vector<128x16xf32>
    %42 = arith.select %39, %37, %41 : vector<128x16xi1>, vector<128x16xf32>
    %cst_19 = arith.constant 1.000000e+00 : f32
    %43 = vector.broadcast %cst_19 : f32 to vector<128x16xf32>
    %44 = arith.addf %43, %42 : vector<128x16xf32>
    %45 = arith.mulf %7, %44 : vector<128x16xf32>
    %c0_20 = arith.constant 0 : index
    %c0_21 = arith.constant 0 : index
    %46 = vector.load %arg4[%c0_20, %c0_21] : memref<128x16xf32, #tpu.memory_space<vmem>>, vector<128x16xf32>
    tpu.vector_store %arg4[%c0_20, %c0_21], %45 {strides = array<i32>} : memref<128x16xf32, #tpu.memory_space<vmem>>, vector<128x16xf32>,
    return
  }
  func.func @transform_0(%arg0: i32) -> (i32, i32) {
    %c0_i32 = arith.constant 0 : i32
    %c0_i32_0 = arith.constant 0 : i32
    return %arg0, %c0_i32 : i32, i32
  }
  func.func @transform_1(%arg0: i32) -> (i32, i32) {
    %c0_i32 = arith.constant 0 : i32
    %c0_i32_0 = arith.constant 0 : i32
    %c0_i32_1 = arith.constant 0 : i32
    return %c0_i32, %c0_i32_0 : i32, i32
  }
  func.func @transform_2(%arg0: i32) -> (i32, i32) {
    %c0_i32 = arith.constant 0 : i32
    %c0_i32_0 = arith.constant 0 : i32
    %c0_i32_1 = arith.constant 0 : i32
    return %c0_i32, %c0_i32_0 : i32, i32
  }
  func.func @transform_3(%arg0: i32) -> (i32, i32) {
    %c0_i32 = arith.constant 0 : i32
    %c0_i32_0 = arith.constant 0 : i32
    return %arg0, %c0_i32 : i32, i32
  }
}

module attributes {stable_mosaic.version = 11 : i64} {
  func.func @_mm_kernel(%arg0: i32, %arg1: memref<2x1024xf32, #tpu.memory_space<vmem>>, %arg2: memref<1024x32xf32, #tpu.memory_space<vmem>>, %arg3: memref<1x32xf32, #tpu.memory_space<vmem>>, %arg4: memref<2x32xf32, #tpu.memory_space<vmem>>) attributes {dimension_semantics = [#tpu.dimension_semantics<parallel>], iteration_bounds = array<i64: 1>, scalar_prefetch = 0 : i64, scratch_operands = 0 : i64, tpu.core_type = #tpu.core_type<tc>, window_params = [{transform_indices = @transform_0, window_bounds = array<i64: 2, 1024>}, {pipeline_mode = #tpu.pipeline_mode<synchronous>, transform_indices = @transform_1, window_bounds = array<i64: 1024, 32>}, {pipeline_mode = #tpu.pipeline_mode<synchronous>, transform_indices = @transform_2, window_bounds = array<i64: 1, 32>}, {transform_indices = @transform_3, window_bounds = array<i64: 2, 32>}]} {
    %c0 = arith.constant 0 : index
    %c0_0 = arith.constant 0 : index
    %0 = vector.load %arg1[%c0, %c0_0] : memref<2x1024xf32, #tpu.memory_space<vmem>>, vector<2x1024xf32>
    %c0_1 = arith.constant 0 : index
    %c0_2 = arith.constant 0 : index
    %1 = vector.load %arg2[%c0_1, %c0_2] : memref<1024x32xf32, #tpu.memory_space<vmem>>, vector<1024x32xf32>
    %cst = arith.constant dense<0.000000e+00> : vector<2x32xf32>
    %2 = tpu.matmul %0, %1, %cst {dimension_numbers = #tpu.dot_dimension_numbers<[1], [0], [0], [1], [0, 0, 1, 1], [], []>} : vector<2x1024xf32>, vector<1024x32xf32>, vector<2x32xf32> -> vector<2x32xf32>
    %c0_3 = arith.constant 0 : index
    %c0_4 = arith.constant 0 : index
    %3 = vector.load %arg3[%c0_3, %c0_4] : memref<1x32xf32, #tpu.memory_space<vmem>>, vector<1x32xf32>
    %4 = vector.broadcast %3 : vector<1x32xf32> to vector<2x32xf32>
    %5 = arith.addf %2, %4 : vector<2x32xf32>
    %c0_5 = arith.constant 0 : index
    %c0_6 = arith.constant 0 : index
    %6 = vector.load %arg4[%c0_5, %c0_6] : memref<2x32xf32, #tpu.memory_space<vmem>>, vector<2x32xf32>
    tpu.vector_store %arg4[%c0_5, %c0_6], %5 {strides = array<i32>} : memref<2x32xf32, #tpu.memory_space<vmem>>, vector<2x32xf32>,
    return
  }
  func.func @transform_0(%arg0: i32) -> (i32, i32) {
    %c0_i32 = arith.constant 0 : i32
    %c0_i32_0 = arith.constant 0 : i32
    return %arg0, %c0_i32 : i32, i32
  }
  func.func @transform_1(%arg0: i32) -> (i32, i32) {
    %c0_i32 = arith.constant 0 : i32
    %c0_i32_0 = arith.constant 0 : i32
    %c0_i32_1 = arith.constant 0 : i32
    return %c0_i32, %c0_i32_0 : i32, i32
  }
  func.func @transform_2(%arg0: i32) -> (i32, i32) {
    %c0_i32 = arith.constant 0 : i32
    %c0_i32_0 = arith.constant 0 : i32
    %c0_i32_1 = arith.constant 0 : i32
    return %c0_i32, %c0_i32_0 : i32, i32
  }
  func.func @transform_3(%arg0: i32) -> (i32, i32) {
    %c0_i32 = arith.constant 0 : i32
    %c0_i32_0 = arith.constant 0 : i32
    return %arg0, %c0_i32 : i32, i32
  }
}

</mosaic_0001>

<llo_original>
// kernel: video_encoder_cnn_forward.4
$region0: #{video_encoder_cnn_forward.4}
  #allocation0 [shape = 'u32[]', space=smem, size = 0x4, offset = 0x4, fixed_abs, tag = 'smem constant byte address 0x4 - core index']
  #allocation1 [shape = 'u32[144,128]{1,0:T(1,128)}', space=vmem, size = 0x12000, scoped, tag = 'internal scratch']
  %s0 = inlined_call_operand.vmem [shape: f32[128,144], index: 0, kind: input, shape index: {}]
  %s1 = inlined_call_operand.vmem [shape: f32[144,16], index: 1, kind: input, shape index: {}]
  %s2 = inlined_call_operand.vmem [shape: f32[1,16], index: 2, kind: input, shape index: {}]
  %s3 = inlined_call_operand.vmem [shape: f32[128,16], index: 3, kind: output, shape index: {}]
  %s4 = sld [smem:[#allocation0]]
  $region22: #{video_encoder_cnn_forward.4} parent=0
    _
  %s6 = ssub.s32 1, %s4
  %s7 = scalar_select 0, %s6, %s4
  // Predicated region
  $region2: #{video_encoder_cnn_forward.4} parent=0 // pred_check
    _
  $region3: #{video_encoder_cnn_forward.4} parent=0 // pred_check_branch
    %9 = sbr.rel (0) target = $region5
  $region4: #{video_encoder_cnn_forward.4} parent=0 // pred_region
    _
  $region5: #{video_encoder_cnn_forward.4} parent=0 // pred_fallthru
    _
  // Predicated region
  $region6: #{video_encoder_cnn_forward.4} parent=0 // pred_check
    _
  $region7: #{video_encoder_cnn_forward.4} parent=0 // pred_check_branch
    %11 = sbr.rel (0) target = $region9
  $region8: #{video_encoder_cnn_forward.4} parent=0 // pred_region
    _
  $region9: #{video_encoder_cnn_forward.4} parent=0 // pred_fallthru
    _
  // Predicated region
  $region10: #{video_encoder_cnn_forward.4} parent=0 // pred_check
    _
  $region11: #{video_encoder_cnn_forward.4} parent=0 // pred_check_branch
    %13 = sbr.rel (0) target = $region13
  $region12: #{video_encoder_cnn_forward.4} parent=0 // pred_region
    _
  $region13: #{video_encoder_cnn_forward.4} parent=0 // pred_fallthru
    _
  %v14 = vld [vmem:[%s0] sm:$0xff]
  %v15 = vld [vmem:[%s0 + $0x8] sm:$0xff]
  %v16 = vld [vmem:[%s0 + $0x10] sm:$0xff]
  %v17 = vld [vmem:[%s0 + $0x18] sm:$0xff]
  %v18 = vld [vmem:[%s0 + $0x20] sm:$0xff]
  %v19 = vld [vmem:[%s0 + $0x28] sm:$0xff]
  %v20 = vld [vmem:[%s0 + $0x30] sm:$0xff]
  %v21 = vld [vmem:[%s0 + $0x38] sm:$0xff]
  %v22 = vld [vmem:[%s0 + $0x40] sm:$0xff]
  %v23 = vld [vmem:[%s0 + $0x48] sm:$0xff]
  %v24 = vld [vmem:[%s0 + $0x50] sm:$0xff]
  %v25 = vld [vmem:[%s0 + $0x58] sm:$0xff]
  %v26 = vld [vmem:[%s0 + $0x60] sm:$0xff]
  %v27 = vld [vmem:[%s0 + $0x68] sm:$0xff]
  %v28 = vld [vmem:[%s0 + $0x70] sm:$0xff]
  %v29 = vld [vmem:[%s0 + $0x78] sm:$0xff]
  %v30 = vld [vmem:[%s0 + $0x80] sm:$0xff]
  %v31 = vld [vmem:[%s0 + $0x88] sm:$0xff]
  %v32 = vld [vmem:[%s0 + $0x90] sm:$0xff]
  %v33 = vld [vmem:[%s0 + $0x98] sm:$0xff]
  %v34 = vld [vmem:[%s0 + $0xa0] sm:$0xff]
  %v35 = vld [vmem:[%s0 + $0xa8] sm:$0xff]
  %v36 = vld [vmem:[%s0 + $0xb0] sm:$0xff]
  %v37 = vld [vmem:[%s0 + $0xb8] sm:$0xff]
  %v38 = vld [vmem:[%s0 + $0xc0] sm:$0xff]
  %v39 = vld [vmem:[%s0 + $0xc8] sm:$0xff]
  %v40 = vld [vmem:[%s0 + $0xd0] sm:$0xff]
  %v41 = vld [vmem:[%s0 + $0xd8] sm:$0xff]
  %v42 = vld [vmem:[%s0 + $0xe0] sm:$0xff]
  %v43 = vld [vmem:[%s0 + $0xe8] sm:$0xff]
  %v44 = vld [vmem:[%s0 + $0xf0] sm:$0xff]
  %v45 = vld [vmem:[%s0 + $0xf8] sm:$0xff]
  %v46 = vld [vmem:[%s1] sm:$0xff]
  %v47 = vld [vmem:[%s1 + $0x8] sm:$0xff]
  %v48 = vld [vmem:[%s1 + $0x10] sm:$0xff]
  %v49 = vld [vmem:[%s1 + $0x18] sm:$0xff]
  %v50 = vld [vmem:[%s1 + $0x20] sm:$0xff]
  %v51 = vld [vmem:[%s1 + $0x28] sm:$0xff]
  %v52 = vld [vmem:[%s1 + $0x30] sm:$0xff]
  %v53 = vld [vmem:[%s1 + $0x38] sm:$0xff]
  %v54 = vld [vmem:[%s1 + $0x40] sm:$0xff]
  %v55 = vld [vmem:[%s1 + $0x48] sm:$0xff]
  %v56 = vld [vmem:[%s1 + $0x50] sm:$0xff]
  %v57 = vld [vmem:[%s1 + $0x58] sm:$0xff]
  %v58 = vld [vmem:[%s1 + $0x60] sm:$0xff]
  %v59 = vld [vmem:[%s1 + $0x68] sm:$0xff]
  %v60 = vld [vmem:[%s1 + $0x70] sm:$0xff]
  %v61 = vld [vmem:[%s1 + $0x78] sm:$0xff]
  %v62 = vld [vmem:[%s1 + $0x80] sm:$0xff]
  %v63 = vld [vmem:[%s1 + $0x88] sm:$0xff]
  %v64 = vld [vmem:[%s2] sm:$0x1]
  %v66 = vlaneseq
  %v67 = vshrl.u32 %v66, 7
  %v68 = vsub.s32 0, %v67
  %v69 = vrot.slane %v64, %v68
  %vm71 = vcmask 130048
  %v73 = vsel %vm71, %v15, 0
  %v76 = vsel %vm71, %v17, 0
  %v79 = vsel %vm71, %v19, 0
  %v82 = vsel %vm71, %v21, 0
  %v85 = vsel %vm71, %v23, 0
  %v88 = vsel %vm71, %v25, 0
  %v91 = vsel %vm71, %v27, 0
  %v94 = vsel %vm71, %v29, 0
  %v97 = vsel %vm71, %v31, 0
  %v100 = vsel %vm71, %v33, 0
  %v103 = vsel %vm71, %v35, 0
  %v106 = vsel %vm71, %v37, 0
  %v109 = vsel %vm71, %v39, 0
  %v112 = vsel %vm71, %v41, 0
  %v115 = vsel %vm71, %v43, 0
  %v118 = vsel %vm71, %v45, 0
  %120 = vmatprep.subr.mxu0 0.0
  %121 = vmatpush1.msra.mxu0 %v61
  %122 = vmatprep.subr.mxu0 0.0
  %123 = vmatpush1.msra.mxu0 %v60
  %124 = vmatprep.subr.mxu0 0.0
  %125 = vmatpush1.msra.mxu0 %v59
  %126 = vmatprep.subr.mxu0 0.0
  %127 = vmatpush1.msra.mxu0 %v58
  %128 = vmatprep.subr.mxu0 0.0
  %129 = vmatpush1.msra.mxu0 %v57
  %130 = vmatprep.subr.mxu0 0.0
  %131 = vmatpush1.msra.mxu0 %v56
  %132 = vmatprep.subr.mxu0 0.0
  %133 = vmatpush1.msra.mxu0 %v55
  %134 = vmatprep.subr.mxu0 0.0
  %135 = vmatpush1.msra.mxu0 %v54
  %136 = vmatprep.subr.mxu0 0.0
  %137 = vmatpush1.msra.mxu0 %v53
  %138 = vmatprep.subr.mxu0 0.0
  %139 = vmatpush1.msra.mxu0 %v52
  %140 = vmatprep.subr.mxu0 0.0
  %141 = vmatpush1.msra.mxu0 %v51
  %142 = vmatprep.subr.mxu0 0.0
  %143 = vmatpush1.msra.mxu0 %v50
  %144 = vmatprep.subr.mxu0 0.0
  %145 = vmatpush1.msra.mxu0 %v49
  %146 = vmatprep.subr.mxu0 0.0
  %147 = vmatpush1.msra.mxu0 %v48
  %148 = vmatprep.subr.mxu0 0.0
  %149 = vmatpush1.msra.mxu0 %v47
  %150 = vmatprep.subr.mxu0 0.0
  %151 = vmatpush1.msra.mxu0 %v46
  %152 = vmatprep.subr.mxu0 0.0
  %153 = vmatpush2.msra.mxu0 0.0
  %154 = vmatprep.subr.mxu0 0.0
  %155 = vmatpush2.msra.mxu0 0.0
  %156 = vmatprep.subr.mxu0 0.0
  %157 = vmatpush2.msra.mxu0 0.0
  %158 = vmatprep.subr.mxu0 0.0
  %159 = vmatpush2.msra.mxu0 0.0
  %160 = vmatprep.subr.mxu0 0.0
  %161 = vmatpush2.msra.mxu0 0.0
  %162 = vmatprep.subr.mxu0 0.0
  %163 = vmatpush2.msra.mxu0 0.0
  %164 = vmatprep.subr.mxu0 0.0
  %165 = vmatpush2.msra.mxu0 0.0
  %166 = vmatprep.subr.mxu0 0.0
  %167 = vmatpush2.msra.mxu0 0.0
  %168 = vmatprep.subr.mxu0 0.0
  %169 = vmatpush2.msra.mxu0 0.0
  %170 = vmatprep.subr.mxu0 0.0
  %171 = vmatpush2.msra.mxu0 0.0
  %172 = vmatprep.subr.mxu0 0.0
  %173 = vmatpush2.msra.mxu0 0.0
  %174 = vmatprep.subr.mxu0 0.0
  %175 = vmatpush2.msra.mxu0 0.0
  %176 = vmatprep.subr.mxu0 0.0
  %177 = vmatpush2.msra.mxu0 0.0
  %178 = vmatprep.subr.mxu0 0.0
  %179 = vmatpush2.msra.mxu0 0.0
  %180 = vmatprep.subr.mxu0 0.0
  %181 = vmatpush2.msra.mxu0 %v63
  %182 = vmatprep.subr.mxu0 0.0
  %183 = vmatpush2.msra.mxu0 %v62
  %184 = vmatprep.mubr.f32.mxu0 %v73
  %185 = vmatmul.mubr.f32.gmra.mxu0 %v14
  %v186 = vpop.f32.mrf.mxu0
  %v187 = vadd.f32 %v69, %v186
  %v188 = vpop.f32.mrf.mxu0
  %189 = vmatprep.mubr.f32.mxu0 %v76
  %190 = vmatmul.mubr.f32.gmra.mxu0 %v16
  %v191 = vpop.f32.mrf.mxu0
  %v192 = vadd.f32 %v69, %v191
  %v193 = vpop.f32.mrf.mxu0
  %194 = vmatprep.mubr.f32.mxu0 %v79
  %195 = vmatmul.mubr.f32.gmra.mxu0 %v18
  %v196 = vpop.f32.mrf.mxu0
  %v197 = vadd.f32 %v69, %v196
  %v198 = vpop.f32.mrf.mxu0
  %199 = vmatprep.mubr.f32.mxu0 %v82
  %200 = vmatmul.mubr.f32.gmra.mxu0 %v20
  %v201 = vpop.f32.mrf.mxu0
  %v202 = vadd.f32 %v69, %v201
  %v203 = vpop.f32.mrf.mxu0
  %204 = vmatprep.mubr.f32.mxu0 %v85
  %205 = vmatmul.mubr.f32.gmra.mxu0 %v22
  %v206 = vpop.f32.mrf.mxu0
  %v207 = vadd.f32 %v69, %v206
  %v208 = vpop.f32.mrf.mxu0
  %209 = vmatprep.mubr.f32.mxu0 %v88
  %210 = vmatmul.mubr.f32.gmra.mxu0 %v24
  %v211 = vpop.f32.mrf.mxu0
  %v212 = vadd.f32 %v69, %v211
  %v213 = vpop.f32.mrf.mxu0
  %214 = vmatprep.mubr.f32.mxu0 %v91
  %215 = vmatmul.mubr.f32.gmra.mxu0 %v26
  %v216 = vpop.f32.mrf.mxu0
  %v217 = vadd.f32 %v69, %v216
  %v218 = vpop.f32.mrf.mxu0
  %219 = vmatprep.mubr.f32.mxu0 %v94
  %220 = vmatmul.mubr.f32.gmra.mxu0 %v28
  %v221 = vpop.f32.mrf.mxu0
  %v222 = vadd.f32 %v69, %v221
  %v223 = vpop.f32.mrf.mxu0
  %224 = vmatprep.mubr.f32.mxu0 %v97
  %225 = vmatmul.mubr.f32.gmra.mxu0 %v30
  %v226 = vpop.f32.mrf.mxu0
  %v227 = vadd.f32 %v69, %v226
  %v228 = vpop.f32.mrf.mxu0
  %229 = vmatprep.mubr.f32.mxu0 %v100
  %230 = vmatmul.mubr.f32.gmra.mxu0 %v32
  %v231 = vpop.f32.mrf.mxu0
  %v232 = vadd.f32 %v69, %v231
  %v233 = vpop.f32.mrf.mxu0
  %234 = vmatprep.mubr.f32.mxu0 %v103
  %235 = vmatmul.mubr.f32.gmra.mxu0 %v34
  %v236 = vpop.f32.mrf.mxu0
  %v237 = vadd.f32 %v69, %v236
  %v238 = vpop.f32.mrf.mxu0
  %239 = vmatprep.mubr.f32.mxu0 %v106
  %240 = vmatmul.mubr.f32.gmra.mxu0 %v36
  %v241 = vpop.f32.mrf.mxu0
  %v242 = vadd.f32 %v69, %v241
  %v243 = vpop.f32.mrf.mxu0
  %244 = vmatprep.mubr.f32.mxu0 %v109
  %245 = vmatmul.mubr.f32.gmra.mxu0 %v38
  %v246 = vpop.f32.mrf.mxu0
  %v247 = vadd.f32 %v69, %v246
  %v248 = vpop.f32.mrf.mxu0
  %249 = vmatprep.mubr.f32.mxu0 %v112
  %250 = vmatmul.mubr.f32.gmra.mxu0 %v40
  %v251 = vpop.f32.mrf.mxu0
  %v252 = vadd.f32 %v69, %v251
  %v253 = vpop.f32.mrf.mxu0
  %254 = vmatprep.mubr.f32.mxu0 %v115
  %255 = vmatmul.mubr.f32.gmra.mxu0 %v42
  %v256 = vpop.f32.mrf.mxu0
  %v257 = vadd.f32 %v69, %v256
  %v258 = vpop.f32.mrf.mxu0
  %259 = vmatprep.mubr.f32.mxu0 %v118
  %260 = vmatmul.mubr.f32.gmra.mxu0 %v44
  %v261 = vpop.f32.mrf.mxu0
  %v262 = vadd.f32 %v69, %v261
  %v263 = vpop.f32.mrf.mxu0
  %264 = vdwg.mxu0
  %v265 = vmul.f32 %v187, 0.5
  %v266 = vmul.f32 %v192, 0.5
  %v267 = vmul.f32 %v197, 0.5
  %v268 = vmul.f32 %v202, 0.5
  %v269 = vmul.f32 %v207, 0.5
  %v270 = vmul.f32 %v212, 0.5
  %v271 = vmul.f32 %v217, 0.5
  %v272 = vmul.f32 %v222, 0.5
  %v273 = vmul.f32 %v227, 0.5
  %v274 = vmul.f32 %v232, 0.5
  %v275 = vmul.f32 %v237, 0.5
  %v276 = vmul.f32 %v242, 0.5
  %v277 = vmul.f32 %v247, 0.5
  %v278 = vmul.f32 %v252, 0.5
  %v279 = vmul.f32 %v257, 0.5
  %v280 = vmul.f32 %v262, 0.5
  %v281 = vmul.f32 %v187, 0.70710677
  %v282 = vmul.f32 %v192, 0.70710677
  %v283 = vmul.f32 %v197, 0.70710677
  %v284 = vmul.f32 %v202, 0.70710677
  %v285 = vmul.f32 %v207, 0.70710677
  %v286 = vmul.f32 %v212, 0.70710677
  %v287 = vmul.f32 %v217, 0.70710677
  %v288 = vmul.f32 %v222, 0.70710677
  %v289 = vmul.f32 %v227, 0.70710677
  %v290 = vmul.f32 %v232, 0.70710677
  %v291 = vmul.f32 %v237, 0.70710677
  %v292 = vmul.f32 %v242, 0.70710677
  %v293 = vmul.f32 %v247, 0.70710677
  %v294 = vmul.f32 %v252, 0.70710677
  %v295 = vmul.f32 %v257, 0.70710677
  %v296 = vmul.f32 %v262, 0.70710677
  %v297 = vand.u32 2147483647, %v281
  %v298 = vand.u32 2147483647, %v282
  %v299 = vand.u32 2147483647, %v283
  %v300 = vand.u32 2147483647, %v284
  %v301 = vand.u32 2147483647, %v285
  %v302 = vand.u32 2147483647, %v286
  %v303 = vand.u32 2147483647, %v287
  %v304 = vand.u32 2147483647, %v288
  %v305 = vand.u32 2147483647, %v289
  %v306 = vand.u32 2147483647, %v290
  %v307 = vand.u32 2147483647, %v291
  %v308 = vand.u32 2147483647, %v292
  %v309 = vand.u32 2147483647, %v293
  %v310 = vand.u32 2147483647, %v294
  %v311 = vand.u32 2147483647, %v295
  %v312 = vand.u32 2147483647, %v296
  %v313 = vmul.f32 %v297, 0.3275911
  %v314 = vmul.f32 %v298, 0.3275911
  %v315 = vmul.f32 %v299, 0.3275911
  %v316 = vmul.f32 %v300, 0.3275911
  %v317 = vmul.f32 %v301, 0.3275911
  %v318 = vmul.f32 %v302, 0.3275911
  %v319 = vmul.f32 %v303, 0.3275911
  %v320 = vmul.f32 %v304, 0.3275911
  %v321 = vmul.f32 %v305, 0.3275911
  %v322 = vmul.f32 %v306, 0.3275911
  %v323 = vmul.f32 %v307, 0.3275911
  %v324 = vmul.f32 %v308, 0.3275911
  %v325 = vmul.f32 %v309, 0.3275911
  %v326 = vmul.f32 %v310, 0.3275911
  %v327 = vmul.f32 %v311, 0.3275911
  %v328 = vmul.f32 %v312, 0.3275911
  %v329 = vadd.f32 %v313, 1.0
  %v330 = vadd.f32 %v314, 1.0
  %v331 = vadd.f32 %v315, 1.0
  %v332 = vadd.f32 %v316, 1.0
  %v333 = vadd.f32 %v317, 1.0
  %v334 = vadd.f32 %v318, 1.0
  %v335 = vadd.f32 %v319, 1.0
  %v336 = vadd.f32 %v320, 1.0
  %v337 = vadd.f32 %v321, 1.0
  %v338 = vadd.f32 %v322, 1.0
  %v339 = vadd.f32 %v323, 1.0
  %v340 = vadd.f32 %v324, 1.0
  %v341 = vadd.f32 %v325, 1.0
  %v342 = vadd.f32 %v326, 1.0
  %v343 = vadd.f32 %v327, 1.0
  %v344 = vadd.f32 %v328, 1.0
  %v345 = vrcp.pop %v329
  %v346 = vmul.f32 1.0, %v345
  %v347 = vrcp.pop %v330
  %v348 = vmul.f32 1.0, %v347
  %v349 = vrcp.pop %v331
  %v350 = vmul.f32 1.0, %v349
  %v351 = vrcp.pop %v332
  %v352 = vmul.f32 1.0, %v351
  %v353 = vrcp.pop %v333
  %v354 = vmul.f32 1.0, %v353
  %v355 = vrcp.pop %v334
  %v356 = vmul.f32 1.0, %v355
  %v357 = vrcp.pop %v335
  %v358 = vmul.f32 1.0, %v357
  %v359 = vrcp.pop %v336
  %v360 = vmul.f32 1.0, %v359
  %v361 = vrcp.pop %v337
  %v362 = vmul.f32 1.0, %v361
  %v363 = vrcp.pop %v338
  %v364 = vmul.f32 1.0, %v363
  %v365 = vrcp.pop %v339
  %v366 = vmul.f32 1.0, %v365
  %v367 = vrcp.pop %v340
  %v368 = vmul.f32 1.0, %v367
  %v369 = vrcp.pop %v341
  %v370 = vmul.f32 1.0, %v369
  %v371 = vrcp.pop %v342
  %v372 = vmul.f32 1.0, %v371
  %v373 = vrcp.pop %v343
  %v374 = vmul.f32 1.0, %v373
  %v375 = vrcp.pop %v344
  %v376 = vmul.f32 1.0, %v375
  %v377 = vmul.f32 %v346, 1.0614054
  %v378 = vmul.f32 %v348, 1.0614054
  %v379 = vmul.f32 %v350, 1.0614054
  %v380 = vmul.f32 %v352, 1.0614054
  %v381 = vmul.f32 %v354, 1.0614054
  %v382 = vmul.f32 %v356, 1.0614054
  %v383 = vmul.f32 %v358, 1.0614054
  %v384 = vmul.f32 %v360, 1.0614054
  %v385 = vmul.f32 %v362, 1.0614054
  %v386 = vmul.f32 %v364, 1.0614054
  %v387 = vmul.f32 %v366, 1.0614054
  %v388 = vmul.f32 %v368, 1.0614054
  %v389 = vmul.f32 %v370, 1.0614054
  %v390 = vmul.f32 %v372, 1.0614054
  %v391 = vmul.f32 %v374, 1.0614054
  %v392 = vmul.f32 %v376, 1.0614054
  %v393 = vadd.f32 %v377, -1.4531521
  %v394 = vadd.f32 %v378, -1.4531521
  %v395 = vadd.f32 %v379, -1.4531521
  %v396 = vadd.f32 %v380, -1.4531521
  %v397 = vadd.f32 %v381, -1.4531521
  %v398 = vadd.f32 %v382, -1.4531521
  %v399 = vadd.f32 %v383, -1.4531521
  %v400 = vadd.f32 %v384, -1.4531521
  %v401 = vadd.f32 %v385, -1.4531521
  %v402 = vadd.f32 %v386, -1.4531521
  %v403 = vadd.f32 %v387, -1.4531521
  %v404 = vadd.f32 %v388, -1.4531521
  %v405 = vadd.f32 %v389, -1.4531521
  %v406 = vadd.f32 %v390, -1.4531521
  %v407 = vadd.f32 %v391, -1.4531521
  %v408 = vadd.f32 %v392, -1.4531521
  %v409 = vmul.f32 %v393, %v346
  %v410 = vmul.f32 %v394, %v348
  %v411 = vmul.f32 %v395, %v350
  %v412 = vmul.f32 %v396, %v352
  %v413 = vmul.f32 %v397, %v354
  %v414 = vmul.f32 %v398, %v356
  %v415 = vmul.f32 %v399, %v358
  %v416 = vmul.f32 %v400, %v360
  %v417 = vmul.f32 %v401, %v362
  %v418 = vmul.f32 %v402, %v364
  %v419 = vmul.f32 %v403, %v366
  %v420 = vmul.f32 %v404, %v368
  %v421 = vmul.f32 %v405, %v370
  %v422 = vmul.f32 %v406, %v372
  %v423 = vmul.f32 %v407, %v374
  %v424 = vmul.f32 %v408, %v376
  %v425 = vadd.f32 %v409, 1.4214138
  %v426 = vadd.f32 %v410, 1.4214138
  %v427 = vadd.f32 %v411, 1.4214138
  %v428 = vadd.f32 %v412, 1.4214138
  %v429 = vadd.f32 %v413, 1.4214138
  %v430 = vadd.f32 %v414, 1.4214138
  %v431 = vadd.f32 %v415, 1.4214138
  %v432 = vadd.f32 %v416, 1.4214138
  %v433 = vadd.f32 %v417, 1.4214138
  %v434 = vadd.f32 %v418, 1.4214138
  %v435 = vadd.f32 %v419, 1.4214138
  %v436 = vadd.f32 %v420, 1.4214138
  %v437 = vadd.f32 %v421, 1.4214138
  %v438 = vadd.f32 %v422, 1.4214138
  %v439 = vadd.f32 %v423, 1.4214138
  %v440 = vadd.f32 %v424, 1.4214138
  %v441 = vmul.f32 %v425, %v346
  %v442 = vmul.f32 %v426, %v348
  %v443 = vmul.f32 %v427, %v350
  %v444 = vmul.f32 %v428, %v352
  %v445 = vmul.f32 %v429, %v354
  %v446 = vmul.f32 %v430, %v356
  %v447 = vmul.f32 %v431, %v358
  %v448 = vmul.f32 %v432, %v360
  %v449 = vmul.f32 %v433, %v362
  %v450 = vmul.f32 %v434, %v364
  %v451 = vmul.f32 %v435, %v366
  %v452 = vmul.f32 %v436, %v368
  %v453 = vmul.f32 %v437, %v370
  %v454 = vmul.f32 %v438, %v372
  %v455 = vmul.f32 %v439, %v374
  %v456 = vmul.f32 %v440, %v376
  %v457 = vadd.f32 %v441, -0.28449672
  %v458 = vadd.f32 %v442, -0.28449672
  %v459 = vadd.f32 %v443, -0.28449672
  %v460 = vadd.f32 %v444, -0.28449672
  %v461 = vadd.f32 %v445, -0.28449672
  %v462 = vadd.f32 %v446, -0.28449672
  %v463 = vadd.f32 %v447, -0.28449672
  %v464 = vadd.f32 %v448, -0.28449672
  %v465 = vadd.f32 %v449, -0.28449672
  %v466 = vadd.f32 %v450, -0.28449672
  %v467 = vadd.f32 %v451, -0.28449672
  %v468 = vadd.f32 %v452, -0.28449672
  %v469 = vadd.f32 %v453, -0.28449672
  %v470 = vadd.f32 %v454, -0.28449672
  %v471 = vadd.f32 %v455, -0.28449672
  %v472 = vadd.f32 %v456, -0.28449672
  %v473 = vmul.f32 %v457, %v346
  %v474 = vmul.f32 %v458, %v348
  %v475 = vmul.f32 %v459, %v350
  %v476 = vmul.f32 %v460, %v352
  %v477 = vmul.f32 %v461, %v354
  %v478 = vmul.f32 %v462, %v356
  %v479 = vmul.f32 %v463, %v358
  %v480 = vmul.f32 %v464, %v360
  %v481 = vmul.f32 %v465, %v362
  %v482 = vmul.f32 %v466, %v364
  %v483 = vmul.f32 %v467, %v366
  %v484 = vmul.f32 %v468, %v368
  %v485 = vmul.f32 %v469, %v370
  %v486 = vmul.f32 %v470, %v372
  %v487 = vmul.f32 %v471, %v374
  %v488 = vmul.f32 %v472, %v376
  %v489 = vadd.f32 %v473, 0.2548296
  %v490 = vadd.f32 %v474, 0.2548296
  %v491 = vadd.f32 %v475, 0.2548296
  %v492 = vadd.f32 %v476, 0.2548296
  %v493 = vadd.f32 %v477, 0.2548296
  %v494 = vadd.f32 %v478, 0.2548296
  %v495 = vadd.f32 %v479, 0.2548296
  %v496 = vadd.f32 %v480, 0.2548296
  %v497 = vadd.f32 %v481, 0.2548296
  %v498 = vadd.f32 %v482, 0.2548296
  %v499 = vadd.f32 %v483, 0.2548296
  %v500 = vadd.f32 %v484, 0.2548296
  %v501 = vadd.f32 %v485, 0.2548296
  %v502 = vadd.f32 %v486, 0.2548296
  %v503 = vadd.f32 %v487, 0.2548296
  %v504 = vadd.f32 %v488, 0.2548296
  %v505 = vmul.f32 %v489, %v346
  %v506 = vmul.f32 %v490, %v348
  %v507 = vmul.f32 %v491, %v350
  %v508 = vmul.f32 %v492, %v352
  %v509 = vmul.f32 %v493, %v354
  %v510 = vmul.f32 %v494, %v356
  %v511 = vmul.f32 %v495, %v358
  %v512 = vmul.f32 %v496, %v360
  %v513 = vmul.f32 %v497, %v362
  %v514 = vmul.f32 %v498, %v364
  %v515 = vmul.f32 %v499, %v366
  %v516 = vmul.f32 %v500, %v368
  %v517 = vmul.f32 %v501, %v370
  %v518 = vmul.f32 %v502, %v372
  %v519 = vmul.f32 %v503, %v374
  %v520 = vmul.f32 %v504, %v376
  %v521 = vsub.f32 0.0, %v297
  %v522 = vsub.f32 0.0, %v298
  %v523 = vsub.f32 0.0, %v299
  %v524 = vsub.f32 0.0, %v300
  %v525 = vsub.f32 0.0, %v301
  %v526 = vsub.f32 0.0, %v302
  %v527 = vsub.f32 0.0, %v303
  %v528 = vsub.f32 0.0, %v304
  %v529 = vsub.f32 0.0, %v305
  %v530 = vsub.f32 0.0, %v306
  %v531 = vsub.f32 0.0, %v307
  %v532 = vsub.f32 0.0, %v308
  %v533 = vsub.f32 0.0, %v309
  %v534 = vsub.f32 0.0, %v310
  %v535 = vsub.f32 0.0, %v311
  %v536 = vsub.f32 0.0, %v312
  %v537 = vmul.f32 %v521, %v297
  %v538 = vmul.f32 %v522, %v298
  %v539 = vmul.f32 %v523, %v299
  %v540 = vmul.f32 %v524, %v300
  %v541 = vmul.f32 %v525, %v301
  %v542 = vmul.f32 %v526, %v302
  %v543 = vmul.f32 %v527, %v303
  %v544 = vmul.f32 %v528, %v304
  %v545 = vmul.f32 %v529, %v305
  %v546 = vmul.f32 %v530, %v306
  %v547 = vmul.f32 %v531, %v307
  %v548 = vmul.f32 %v532, %v308
  %v549 = vmul.f32 %v533, %v309
  %v550 = vmul.f32 %v534, %v310
  %v551 = vmul.f32 %v535, %v311
  %v552 = vmul.f32 %v536, %v312
  %v553 = vmul.f32 %v537, 1.442695
  %v554 = vpow.pop %v553
  %v555 = vmul.f32 %v538, 1.442695
  %v556 = vpow.pop %v555
  %v557 = vmul.f32 %v539, 1.442695
  %v558 = vpow.pop %v557
  %v559 = vmul.f32 %v540, 1.442695
  %v560 = vpow.pop %v559
  %v561 = vmul.f32 %v541, 1.442695
  %v562 = vpow.pop %v561
  %v563 = vmul.f32 %v542, 1.442695
  %v564 = vpow.pop %v563
  %v565 = vmul.f32 %v543, 1.442695
  %v566 = vpow.pop %v565
  %v567 = vmul.f32 %v544, 1.442695
  %v568 = vpow.pop %v567
  %v569 = vmul.f32 %v545, 1.442695
  %v570 = vpow.pop %v569
  %v571 = vmul.f32 %v546, 1.442695
  %v572 = vpow.pop %v571
  %v573 = vmul.f32 %v547, 1.442695
  %v574 = vpow.pop %v573
  %v575 = vmul.f32 %v548, 1.442695
  %v576 = vpow.pop %v575
  %v577 = vmul.f32 %v549, 1.442695
  %v578 = vpow.pop %v577
  %v579 = vmul.f32 %v550, 1.442695
  %v580 = vpow.pop %v579
  %v581 = vmul.f32 %v551, 1.442695
  %v582 = vpow.pop %v581
  %v583 = vmul.f32 %v552, 1.442695
  %v584 = vpow.pop %v583
  %v585 = vmul.f32 %v505, %v554
  %v586 = vmul.f32 %v506, %v556
  %v587 = vmul.f32 %v507, %v558
  %v588 = vmul.f32 %v508, %v560
  %v589 = vmul.f32 %v509, %v562
  %v590 = vmul.f32 %v510, %v564
  %v591 = vmul.f32 %v511, %v566
  %v592 = vmul.f32 %v512, %v568
  %v593 = vmul.f32 %v513, %v570
  %v594 = vmul.f32 %v514, %v572
  %v595 = vmul.f32 %v515, %v574
  %v596 = vmul.f32 %v516, %v576
  %v597 = vmul.f32 %v517, %v578
  %v598 = vmul.f32 %v518, %v580
  %v599 = vmul.f32 %v519, %v582
  %v600 = vmul.f32 %v520, %v584
  %v601 = vsub.f32 1.0, %v585
  %v602 = vsub.f32 1.0, %v586
  %v603 = vsub.f32 1.0, %v587
  %v604 = vsub.f32 1.0, %v588
  %v605 = vsub.f32 1.0, %v589
  %v606 = vsub.f32 1.0, %v590
  %v607 = vsub.f32 1.0, %v591
  %v608 = vsub.f32 1.0, %v592
  %v609 = vsub.f32 1.0, %v593
  %v610 = vsub.f32 1.0, %v594
  %v611 = vsub.f32 1.0, %v595
  %v612 = vsub.f32 1.0, %v596
  %v613 = vsub.f32 1.0, %v597
  %v614 = vsub.f32 1.0, %v598
  %v615 = vsub.f32 1.0, %v599
  %v616 = vsub.f32 1.0, %v600
  %vm617 = vcmp.ge.f32.partialorder %v281, 0.0
  %vm618 = vcmp.ge.f32.partialorder %v282, 0.0
  %vm619 = vcmp.ge.f32.partialorder %v283, 0.0
  %vm620 = vcmp.ge.f32.partialorder %v284, 0.0
  %vm621 = vcmp.ge.f32.partialorder %v285, 0.0
  %vm622 = vcmp.ge.f32.partialorder %v286, 0.0
  %vm623 = vcmp.ge.f32.partialorder %v287, 0.0
  %vm624 = vcmp.ge.f32.partialorder %v288, 0.0
  %vm625 = vcmp.ge.f32.partialorder %v289, 0.0
  %vm626 = vcmp.ge.f32.partialorder %v290, 0.0
  %vm627 = vcmp.ge.f32.partialorder %v291, 0.0
  %vm628 = vcmp.ge.f32.partialorder %v292, 0.0
  %vm629 = vcmp.ge.f32.partialorder %v293, 0.0
  %vm630 = vcmp.ge.f32.partialorder %v294, 0.0
  %vm631 = vcmp.ge.f32.partialorder %v295, 0.0
  %vm632 = vcmp.ge.f32.partialorder %v296, 0.0
  %v633 = vsub.f32 0.0, %v601
  %v634 = vsub.f32 0.0, %v602
  %v635 = vsub.f32 0.0, %v603
  %v636 = vsub.f32 0.0, %v604
  %v637 = vsub.f32 0.0, %v605
  %v638 = vsub.f32 0.0, %v606
  %v639 = vsub.f32 0.0, %v607
  %v640 = vsub.f32 0.0, %v608
  %v641 = vsub.f32 0.0, %v609
  %v642 = vsub.f32 0.0, %v610
  %v643 = vsub.f32 0.0, %v611
  %v644 = vsub.f32 0.0, %v612
  %v645 = vsub.f32 0.0, %v613
  %v646 = vsub.f32 0.0, %v614
  %v647 = vsub.f32 0.0, %v615
  %v648 = vsub.f32 0.0, %v616
  %v649 = vsel %vm617, %v601, %v633
  %v650 = vsel %vm618, %v602, %v634
  %v651 = vsel %vm619, %v603, %v635
  %v652 = vsel %vm620, %v604, %v636
  %v653 = vsel %vm621, %v605, %v637
  %v654 = vsel %vm622, %v606, %v638
  %v655 = vsel %vm623, %v607, %v639
  %v656 = vsel %vm624, %v608, %v640
  %v657 = vsel %vm625, %v609, %v641
  %v658 = vsel %vm626, %v610, %v642
  %v659 = vsel %vm627, %v611, %v643
  %v660 = vsel %vm628, %v612, %v644
  %v661 = vsel %vm629, %v613, %v645
  %v662 = vsel %vm630, %v614, %v646
  %v663 = vsel %vm631, %v615, %v647
  %v664 = vsel %vm632, %v616, %v648
  %v665 = vadd.f32 %v649, 1.0
  %v666 = vadd.f32 %v650, 1.0
  %v667 = vadd.f32 %v651, 1.0
  %v668 = vadd.f32 %v652, 1.0
  %v669 = vadd.f32 %v653, 1.0
  %v670 = vadd.f32 %v654, 1.0
  %v671 = vadd.f32 %v655, 1.0
  %v672 = vadd.f32 %v656, 1.0
  %v673 = vadd.f32 %v657, 1.0
  %v674 = vadd.f32 %v658, 1.0
  %v675 = vadd.f32 %v659, 1.0
  %v676 = vadd.f32 %v660, 1.0
  %v677 = vadd.f32 %v661, 1.0
  %v678 = vadd.f32 %v662, 1.0
  %v679 = vadd.f32 %v663, 1.0
  %v680 = vadd.f32 %v664, 1.0
  %v681 = vmul.f32 %v265, %v665
  %v682 = vmul.f32 %v266, %v666
  %v683 = vmul.f32 %v267, %v667
  %v684 = vmul.f32 %v268, %v668
  %v685 = vmul.f32 %v269, %v669
  %v686 = vmul.f32 %v270, %v670
  %v687 = vmul.f32 %v271, %v671
  %v688 = vmul.f32 %v272, %v672
  %v689 = vmul.f32 %v273, %v673
  %v690 = vmul.f32 %v274, %v674
  %v691 = vmul.f32 %v275, %v675
  %v692 = vmul.f32 %v276, %v676
  %v693 = vmul.f32 %v277, %v677
  %v694 = vmul.f32 %v278, %v678
  %v695 = vmul.f32 %v279, %v679
  %v696 = vmul.f32 %v280, %v680
  %697 = vst.msk [vmem:[%s3] sm:$0xff] %vm71, %v681
  %698 = vst.msk [vmem:[%s3 + $0x8] sm:$0xff] %vm71, %v682
  %699 = vst.msk [vmem:[%s3 + $0x10] sm:$0xff] %vm71, %v683
  %700 = vst.msk [vmem:[%s3 + $0x18] sm:$0xff] %vm71, %v684
  %701 = vst.msk [vmem:[%s3 + $0x20] sm:$0xff] %vm71, %v685
  %702 = vst.msk [vmem:[%s3 + $0x28] sm:$0xff] %vm71, %v686
  %703 = vst.msk [vmem:[%s3 + $0x30] sm:$0xff] %vm71, %v687
  %704 = vst.msk [vmem:[%s3 + $0x38] sm:$0xff] %vm71, %v688
  %705 = vst.msk [vmem:[%s3 + $0x40] sm:$0xff] %vm71, %v689
  %706 = vst.msk [vmem:[%s3 + $0x48] sm:$0xff] %vm71, %v690
  %707 = vst.msk [vmem:[%s3 + $0x50] sm:$0xff] %vm71, %v691
  %708 = vst.msk [vmem:[%s3 + $0x58] sm:$0xff] %vm71, %v692
  %709 = vst.msk [vmem:[%s3 + $0x60] sm:$0xff] %vm71, %v693
  %710 = vst.msk [vmem:[%s3 + $0x68] sm:$0xff] %vm71, %v694
  %711 = vst.msk [vmem:[%s3 + $0x70] sm:$0xff] %vm71, %v695
  %712 = vst.msk [vmem:[%s3 + $0x78] sm:$0xff] %vm71, %v696
  // Predicated region
  $region14: #{video_encoder_cnn_forward.4} parent=0 // pred_check
    _
  $region15: #{video_encoder_cnn_forward.4} parent=0 // pred_check_branch
    %714 = sbr.rel (0) target = $region17
  $region16: #{video_encoder_cnn_forward.4} parent=0 // pred_region
    _
  $region17: #{video_encoder_cnn_forward.4} parent=0 // pred_fallthru
    _
  // Predicated region
  $region18: #{video_encoder_cnn_forward.4} parent=0 // pred_check
    _
  $region19: #{video_encoder_cnn_forward.4} parent=0 // pred_check_branch
    %716 = sbr.rel (0) target = $region21
  $region20: #{video_encoder_cnn_forward.4} parent=0 // pred_region
    _
  $region21: #{video_encoder_cnn_forward.4} parent=0 // pred_fallthru
    _

// kernel: video_encoder_cnn_forward.5
$region0: #{video_encoder_cnn_forward.5}
  #allocation0 [shape = 'u32[]', space=smem, size = 0x4, offset = 0x4, fixed_abs, tag = 'smem constant byte address 0x4 - core index']
  #allocation1 [shape = 'u32[144,128]{1,0:T(1,128)}', space=vmem, size = 0x12000, scoped, tag = 'internal scratch']
  %s0 = inlined_call_operand.vmem [shape: f32[2,1024], index: 0, kind: input, shape index: {}]
  %s1 = inlined_call_operand.vmem [shape: f32[1024,32], index: 1, kind: input, shape index: {}]
  %s2 = inlined_call_operand.vmem [shape: f32[1,32], index: 2, kind: input, shape index: {}]
  %s3 = inlined_call_operand.hbm [shape: f32[2,32], index: 3, kind: output, shape index: {}]
  %s4 = sld [smem:[#allocation0]]
  $region22: #{video_encoder_cnn_forward.5} parent=0
    _
  %s6 = ssub.s32 1, %s4
  %s7 = scalar_select 0, %s6, %s4
  $region1: #{video_encoder_cnn_forward.5} parent=0
    #allocation2 [shape = 'u8[1024]{0}', space=vmem, size = 0x400, scoped, tag = 'output window, operand 0, single buffered']
    #allocation3 [shape = 's32[1]{0}', space=sflag, size = 0x4, scoped, tag = 'scoped memory for video_encoder_cnn_forward.5']
    %8 = vsyncpa [#allocation3], 0
    // Predicated region
    $region2: #{video_encoder_cnn_forward.5} parent=1 // pred_check
      _
    $region3: #{video_encoder_cnn_forward.5} parent=1 // pred_check_branch
      %10 = sbr.rel (0) target = $region5
    $region4: #{video_encoder_cnn_forward.5} parent=1 // pred_region
      _
    $region5: #{video_encoder_cnn_forward.5} parent=1 // pred_fallthru
      _
    // Predicated region
    $region6: #{video_encoder_cnn_forward.5} parent=1 // pred_check
      _
    $region7: #{video_encoder_cnn_forward.5} parent=1 // pred_check_branch
      %12 = sbr.rel (0) target = $region9
    $region8: #{video_encoder_cnn_forward.5} parent=1 // pred_region
      _
    $region9: #{video_encoder_cnn_forward.5} parent=1 // pred_fallthru
      _
    // Predicated region
    $region10: #{video_encoder_cnn_forward.5} parent=1 // pred_check
      _
    $region11: #{video_encoder_cnn_forward.5} parent=1 // pred_check_branch
      %14 = sbr.rel (0) target = $region13
    $region12: #{video_encoder_cnn_forward.5} parent=1 // pred_region
      _
    $region13: #{video_encoder_cnn_forward.5} parent=1 // pred_fallthru
      _
    %v15 = vld [vmem:[%s0] sm:$0xff]
    %v16 = vld [vmem:[%s0 + $0x8] sm:$0xff]
    %v17 = vld [vmem:[%s1] sm:$0xff]
    %v18 = vld [vmem:[%s1 + $0x8] sm:$0xff]
    %v19 = vld [vmem:[%s1 + $0x10] sm:$0xff]
    %v20 = vld [vmem:[%s1 + $0x18] sm:$0xff]
    %v21 = vld [vmem:[%s1 + $0x20] sm:$0xff]
    %v22 = vld [vmem:[%s1 + $0x28] sm:$0xff]
    %v23 = vld [vmem:[%s1 + $0x30] sm:$0xff]
    %v24 = vld [vmem:[%s1 + $0x38] sm:$0xff]
    %v25 = vld [vmem:[%s1 + $0x40] sm:$0xff]
    %v26 = vld [vmem:[%s1 + $0x48] sm:$0xff]
    %v27 = vld [vmem:[%s1 + $0x50] sm:$0xff]
    %v28 = vld [vmem:[%s1 + $0x58] sm:$0xff]
    %v29 = vld [vmem:[%s1 + $0x60] sm:$0xff]
    %v30 = vld [vmem:[%s1 + $0x68] sm:$0xff]
    %v31 = vld [vmem:[%s1 + $0x70] sm:$0xff]
    %v32 = vld [vmem:[%s1 + $0x78] sm:$0xff]
    %v33 = vld [vmem:[%s1 + $0x80] sm:$0xff]
    %v34 = vld [vmem:[%s1 + $0x88] sm:$0xff]
    %v35 = vld [vmem:[%s1 + $0x90] sm:$0xff]
    %v36 = vld [vmem:[%s1 + $0x98] sm:$0xff]
    %v37 = vld [vmem:[%s1 + $0xa0] sm:$0xff]
    %v38 = vld [vmem:[%s1 + $0xa8] sm:$0xff]
    %v39 = vld [vmem:[%s1 + $0xb0] sm:$0xff]
    %v40 = vld [vmem:[%s1 + $0xb8] sm:$0xff]
    %v41 = vld [vmem:[%s1 + $0xc0] sm:$0xff]
    %v42 = vld [vmem:[%s1 + $0xc8] sm:$0xff]
    %v43 = vld [vmem:[%s1 + $0xd0] sm:$0xff]
    %v44 = vld [vmem:[%s1 + $0xd8] sm:$0xff]
    %v45 = vld [vmem:[%s1 + $0xe0] sm:$0xff]
    %v46 = vld [vmem:[%s1 + $0xe8] sm:$0xff]
    %v47 = vld [vmem:[%s1 + $0xf0] sm:$0xff]
    %v48 = vld [vmem:[%s1 + $0xf8] sm:$0xff]
    %v49 = vld [vmem:[%s1 + $0x100] sm:$0xff]
    %v50 = vld [vmem:[%s1 + $0x108] sm:$0xff]
    %v51 = vld [vmem:[%s1 + $0x110] sm:$0xff]
    %v52 = vld [vmem:[%s1 + $0x118] sm:$0xff]
    %v53 = vld [vmem:[%s1 + $0x120] sm:$0xff]
    %v54 = vld [vmem:[%s1 + $0x128] sm:$0xff]
    %v55 = vld [vmem:[%s1 + $0x130] sm:$0xff]
    %v56 = vld [vmem:[%s1 + $0x138] sm:$0xff]
    %v57 = vld [vmem:[%s1 + $0x140] sm:$0xff]
    %v58 = vld [vmem:[%s1 + $0x148] sm:$0xff]
    %v59 = vld [vmem:[%s1 + $0x150] sm:$0xff]
    %v60 = vld [vmem:[%s1 + $0x158] sm:$0xff]
    %v61 = vld [vmem:[%s1 + $0x160] sm:$0xff]
    %v62 = vld [vmem:[%s1 + $0x168] sm:$0xff]
    %v63 = vld [vmem:[%s1 + $0x170] sm:$0xff]
    %v64 = vld [vmem:[%s1 + $0x178] sm:$0xff]
    %v65 = vld [vmem:[%s1 + $0x180] sm:$0xff]
    %v66 = vld [vmem:[%s1 + $0x188] sm:$0xff]
    %v67 = vld [vmem:[%s1 + $0x190] sm:$0xff]
    %v68 = vld [vmem:[%s1 + $0x198] sm:$0xff]
    %v69 = vld [vmem:[%s1 + $0x1a0] sm:$0xff]
    %v70 = vld [vmem:[%s1 + $0x1a8] sm:$0xff]
    %v71 = vld [vmem:[%s1 + $0x1b0] sm:$0xff]
    %v72 = vld [vmem:[%s1 + $0x1b8] sm:$0xff]
    %v73 = vld [vmem:[%s1 + $0x1c0] sm:$0xff]
    %v74 = vld [vmem:[%s1 + $0x1c8] sm:$0xff]
    %v75 = vld [vmem:[%s1 + $0x1d0] sm:$0xff]
    %v76 = vld [vmem:[%s1 + $0x1d8] sm:$0xff]
    %v77 = vld [vmem:[%s1 + $0x1e0] sm:$0xff]
    %v78 = vld [vmem:[%s1 + $0x1e8] sm:$0xff]
    %v79 = vld [vmem:[%s1 + $0x1f0] sm:$0xff]
    %v80 = vld [vmem:[%s1 + $0x1f8] sm:$0xff]
    %v81 = vld [vmem:[%s1 + $0x200] sm:$0xff]
    %v82 = vld [vmem:[%s1 + $0x208] sm:$0xff]
    %v83 = vld [vmem:[%s1 + $0x210] sm:$0xff]
    %v84 = vld [vmem:[%s1 + $0x218] sm:$0xff]
    %v85 = vld [vmem:[%s1 + $0x220] sm:$0xff]
    %v86 = vld [vmem:[%s1 + $0x228] sm:$0xff]
    %v87 = vld [vmem:[%s1 + $0x230] sm:$0xff]
    %v88 = vld [vmem:[%s1 + $0x238] sm:$0xff]
    %v89 = vld [vmem:[%s1 + $0x240] sm:$0xff]
    %v90 = vld [vmem:[%s1 + $0x248] sm:$0xff]
    %v91 = vld [vmem:[%s1 + $0x250] sm:$0xff]
    %v92 = vld [vmem:[%s1 + $0x258] sm:$0xff]
    %v93 = vld [vmem:[%s1 + $0x260] sm:$0xff]
    %v94 = vld [vmem:[%s1 + $0x268] sm:$0xff]
    %v95 = vld [vmem:[%s1 + $0x270] sm:$0xff]
    %v96 = vld [vmem:[%s1 + $0x278] sm:$0xff]
    %v97 = vld [vmem:[%s1 + $0x280] sm:$0xff]
    %v98 = vld [vmem:[%s1 + $0x288] sm:$0xff]
    %v99 = vld [vmem:[%s1 + $0x290] sm:$0xff]
    %v100 = vld [vmem:[%s1 + $0x298] sm:$0xff]
    %v101 = vld [vmem:[%s1 + $0x2a0] sm:$0xff]
    %v102 = vld [vmem:[%s1 + $0x2a8] sm:$0xff]
    %v103 = vld [vmem:[%s1 + $0x2b0] sm:$0xff]
    %v104 = vld [vmem:[%s1 + $0x2b8] sm:$0xff]
    %v105 = vld [vmem:[%s1 + $0x2c0] sm:$0xff]
    %v106 = vld [vmem:[%s1 + $0x2c8] sm:$0xff]
    %v107 = vld [vmem:[%s1 + $0x2d0] sm:$0xff]
    %v108 = vld [vmem:[%s1 + $0x2d8] sm:$0xff]
    %v109 = vld [vmem:[%s1 + $0x2e0] sm:$0xff]
    %v110 = vld [vmem:[%s1 + $0x2e8] sm:$0xff]
    %v111 = vld [vmem:[%s1 + $0x2f0] sm:$0xff]
    %v112 = vld [vmem:[%s1 + $0x2f8] sm:$0xff]
    %v113 = vld [vmem:[%s1 + $0x300] sm:$0xff]
    %v114 = vld [vmem:[%s1 + $0x308] sm:$0xff]
    %v115 = vld [vmem:[%s1 + $0x310] sm:$0xff]
    %v116 = vld [vmem:[%s1 + $0x318] sm:$0xff]
    %v117 = vld [vmem:[%s1 + $0x320] sm:$0xff]
    %v118 = vld [vmem:[%s1 + $0x328] sm:$0xff]
    %v119 = vld [vmem:[%s1 + $0x330] sm:$0xff]
    %v120 = vld [vmem:[%s1 + $0x338] sm:$0xff]
    %v121 = vld [vmem:[%s1 + $0x340] sm:$0xff]
    %v122 = vld [vmem:[%s1 + $0x348] sm:$0xff]
    %v123 = vld [vmem:[%s1 + $0x350] sm:$0xff]
    %v124 = vld [vmem:[%s1 + $0x358] sm:$0xff]
    %v125 = vld [vmem:[%s1 + $0x360] sm:$0xff]
    %v126 = vld [vmem:[%s1 + $0x368] sm:$0xff]
    %v127 = vld [vmem:[%s1 + $0x370] sm:$0xff]
    %v128 = vld [vmem:[%s1 + $0x378] sm:$0xff]
    %v129 = vld [vmem:[%s1 + $0x380] sm:$0xff]
    %v130 = vld [vmem:[%s1 + $0x388] sm:$0xff]
    %v131 = vld [vmem:[%s1 + $0x390] sm:$0xff]
    %v132 = vld [vmem:[%s1 + $0x398] sm:$0xff]
    %v133 = vld [vmem:[%s1 + $0x3a0] sm:$0xff]
    %v134 = vld [vmem:[%s1 + $0x3a8] sm:$0xff]
    %v135 = vld [vmem:[%s1 + $0x3b0] sm:$0xff]
    %v136 = vld [vmem:[%s1 + $0x3b8] sm:$0xff]
    %v137 = vld [vmem:[%s1 + $0x3c0] sm:$0xff]
    %v138 = vld [vmem:[%s1 + $0x3c8] sm:$0xff]
    %v139 = vld [vmem:[%s1 + $0x3d0] sm:$0xff]
    %v140 = vld [vmem:[%s1 + $0x3d8] sm:$0xff]
    %v141 = vld [vmem:[%s1 + $0x3e0] sm:$0xff]
    %v142 = vld [vmem:[%s1 + $0x3e8] sm:$0xff]
    %v143 = vld [vmem:[%s1 + $0x3f0] sm:$0xff]
    %v144 = vld [vmem:[%s1 + $0x3f8] sm:$0xff]
    %v145 = vld [vmem:[%s2] sm:$0x1]
    %v147 = vlaneseq
    %v148 = vshrl.u32 %v147, 7
    %v149 = vsub.s32 0, %v148
    %v150 = vrot.slane %v145, %v149
    %v154 = vcombine.high %v15, %v15
    %v156 = vunpack.c.l.s4 1983009808
    %v157 = vunpack.c.0.s8 %v156
    %v158 = vlaneseq
    %v159 = vshrl.u32 %v158, 7
    %v160 = vsub.s32 %v157, %v159
    %v161 = vrot.slane %v15, %v160
    %v163 = vunpack.c.l.s4 1983009808
    %v164 = vunpack.c.0.s8 %v163
    %v165 = vlaneseq
    %v166 = vshrl.u32 %v165, 7
    %v167 = vsub.s32 %v164, %v166
    %v168 = vrot.slane %v154, %v167
    %v169 = vcombine.high %v161, %v161
    %v170 = vcombine.high %v168, %v168
    %v171 = vcombine.high %v16, %v16
    %v173 = vunpack.c.l.s4 1983009808
    %v174 = vunpack.c.0.s8 %v173
    %v175 = vlaneseq
    %v176 = vshrl.u32 %v175, 7
    %v177 = vsub.s32 %v174, %v176
    %v178 = vrot.slane %v16, %v177
    %v180 = vunpack.c.l.s4 1983009808
    %v181 = vunpack.c.0.s8 %v180
    %v182 = vlaneseq
    %v183 = vshrl.u32 %v182, 7
    %v184 = vsub.s32 %v181, %v183
    %v185 = vrot.slane %v171, %v184
    %v186 = vcombine.high %v178, %v178
    %v187 = vcombine.high %v185, %v185
    %196 = vmatprep.subr.mxu0 0.0
    %197 = vmatpush1.msra.mxu0 %v32
    %198 = vmatprep.subr.mxu0 0.0
    %199 = vmatpush1.msra.mxu0 %v31
    %200 = vmatprep.subr.mxu0 0.0
    %201 = vmatpush1.msra.mxu0 %v30
    %202 = vmatprep.subr.mxu0 0.0
    %203 = vmatpush1.msra.mxu0 %v29
    %204 = vmatprep.subr.mxu0 0.0
    %205 = vmatpush1.msra.mxu0 %v28
    %206 = vmatprep.subr.mxu0 0.0
    %207 = vmatpush1.msra.mxu0 %v27
    %208 = vmatprep.subr.mxu0 0.0
    %209 = vmatpush1.msra.mxu0 %v26
    %210 = vmatprep.subr.mxu0 0.0
    %211 = vmatpush1.msra.mxu0 %v25
    %212 = vmatprep.subr.mxu0 0.0
    %213 = vmatpush1.msra.mxu0 %v24
    %214 = vmatprep.subr.mxu0 0.0
    %215 = vmatpush1.msra.mxu0 %v23
    %216 = vmatprep.subr.mxu0 0.0
    %217 = vmatpush1.msra.mxu0 %v22
    %218 = vmatprep.subr.mxu0 0.0
    %219 = vmatpush1.msra.mxu0 %v21
    %220 = vmatprep.subr.mxu0 0.0
    %221 = vmatpush1.msra.mxu0 %v20
    %222 = vmatprep.subr.mxu0 0.0
    %223 = vmatpush1.msra.mxu0 %v19
    %224 = vmatprep.subr.mxu0 0.0
    %225 = vmatpush1.msra.mxu0 %v18
    %226 = vmatprep.subr.mxu0 0.0
    %227 = vmatpush1.msra.mxu0 %v17
    %228 = vmatprep.subr.mxu0 0.0
    %229 = vmatpush2.msra.mxu0 %v48
    %230 = vmatprep.subr.mxu0 0.0
    %231 = vmatpush2.msra.mxu0 %v47
    %232 = vmatprep.subr.mxu0 0.0
    %233 = vmatpush2.msra.mxu0 %v46
    %234 = vmatprep.subr.mxu0 0.0
    %235 = vmatpush2.msra.mxu0 %v45
    %236 = vmatprep.subr.mxu0 0.0
    %237 = vmatpush2.msra.mxu0 %v44
    %238 = vmatprep.subr.mxu0 0.0
    %239 = vmatpush2.msra.mxu0 %v43
    %240 = vmatprep.subr.mxu0 0.0
    %241 = vmatpush2.msra.mxu0 %v42
    %242 = vmatprep.subr.mxu0 0.0
    %243 = vmatpush2.msra.mxu0 %v41
    %244 = vmatprep.subr.mxu0 0.0
    %245 = vmatpush2.msra.mxu0 %v40
    %246 = vmatprep.subr.mxu0 0.0
    %247 = vmatpush2.msra.mxu0 %v39
    %248 = vmatprep.subr.mxu0 0.0
    %249 = vmatpush2.msra.mxu0 %v38
    %250 = vmatprep.subr.mxu0 0.0
    %251 = vmatpush2.msra.mxu0 %v37
    %252 = vmatprep.subr.mxu0 0.0
    %253 = vmatpush2.msra.mxu0 %v36
    %254 = vmatprep.subr.mxu0 0.0
    %255 = vmatpush2.msra.mxu0 %v35
    %256 = vmatprep.subr.mxu0 0.0
    %257 = vmatpush2.msra.mxu0 %v34
    %258 = vmatprep.subr.mxu0 0.0
    %259 = vmatpush2.msra.mxu0 %v33
    %260 = vmatprep.mubr.f32.mxu0 %v169
    %261 = vmatmul.mubr.f32.gmra.mxu0 %v161
    %v262 = vpop.f32.mrf.mxu0
    %v263 = vadd.f32 %v150, %v262
    %v264 = vpop.f32.mrf.mxu0
    %265 = vdwg.mxu0
    %266 = vmatprep.subr.mxu0 0.0
    %267 = vmatpush1.msra.mxu0 %v64
    %268 = vmatprep.subr.mxu0 0.0
    %269 = vmatpush1.msra.mxu0 %v63
    %270 = vmatprep.subr.mxu0 0.0
    %271 = vmatpush1.msra.mxu0 %v62
    %272 = vmatprep.subr.mxu0 0.0
    %273 = vmatpush1.msra.mxu0 %v61
    %274 = vmatprep.subr.mxu0 0.0
    %275 = vmatpush1.msra.mxu0 %v60
    %276 = vmatprep.subr.mxu0 0.0
    %277 = vmatpush1.msra.mxu0 %v59
    %278 = vmatprep.subr.mxu0 0.0
    %279 = vmatpush1.msra.mxu0 %v58
    %280 = vmatprep.subr.mxu0 0.0
    %281 = vmatpush1.msra.mxu0 %v57
    %282 = vmatprep.subr.mxu0 0.0
    %283 = vmatpush1.msra.mxu0 %v56
    %284 = vmatprep.subr.mxu0 0.0
    %285 = vmatpush1.msra.mxu0 %v55
    %286 = vmatprep.subr.mxu0 0.0
    %287 = vmatpush1.msra.mxu0 %v54
    %288 = vmatprep.subr.mxu0 0.0
    %289 = vmatpush1.msra.mxu0 %v53
    %290 = vmatprep.subr.mxu0 0.0
    %291 = vmatpush1.msra.mxu0 %v52
    %292 = vmatprep.subr.mxu0 0.0
    %293 = vmatpush1.msra.mxu0 %v51
    %294 = vmatprep.subr.mxu0 0.0
    %295 = vmatpush1.msra.mxu0 %v50
    %296 = vmatprep.subr.mxu0 0.0
    %297 = vmatpush1.msra.mxu0 %v49
    %298 = vmatprep.subr.mxu0 0.0
    %299 = vmatpush2.msra.mxu0 %v80
    %300 = vmatprep.subr.mxu0 0.0
    %301 = vmatpush2.msra.mxu0 %v79
    %302 = vmatprep.subr.mxu0 0.0
    %303 = vmatpush2.msra.mxu0 %v78
    %304 = vmatprep.subr.mxu0 0.0
    %305 = vmatpush2.msra.mxu0 %v77
    %306 = vmatprep.subr.mxu0 0.0
    %307 = vmatpush2.msra.mxu0 %v76
    %308 = vmatprep.subr.mxu0 0.0
    %309 = vmatpush2.msra.mxu0 %v75
    %310 = vmatprep.subr.mxu0 0.0
    %311 = vmatpush2.msra.mxu0 %v74
    %312 = vmatprep.subr.mxu0 0.0
    %313 = vmatpush2.msra.mxu0 %v73
    %314 = vmatprep.subr.mxu0 0.0
    %315 = vmatpush2.msra.mxu0 %v72
    %316 = vmatprep.subr.mxu0 0.0
    %317 = vmatpush2.msra.mxu0 %v71
    %318 = vmatprep.subr.mxu0 0.0
    %319 = vmatpush2.msra.mxu0 %v70
    %320 = vmatprep.subr.mxu0 0.0
    %321 = vmatpush2.msra.mxu0 %v69
    %322 = vmatprep.subr.mxu0 0.0
    %323 = vmatpush2.msra.mxu0 %v68
    %324 = vmatprep.subr.mxu0 0.0
    %325 = vmatpush2.msra.mxu0 %v67
    %326 = vmatprep.subr.mxu0 0.0
    %327 = vmatpush2.msra.mxu0 %v66
    %328 = vmatprep.subr.mxu0 0.0
    %329 = vmatpush2.msra.mxu0 %v65
    %330 = vmatprep.mubr.f32.mxu0 %v170
    %331 = vmatmul.mubr.f32.gmra.mxu0 %v168
    %v332 = vpop.f32.mrf.mxu0
    %v333 = vadd.f32 %v263, %v332
    %v334 = vpop.f32.mrf.mxu0
    %335 = vdwg.mxu0
    %336 = vmatprep.subr.mxu0 0.0
    %337 = vmatpush1.msra.mxu0 %v96
    %338 = vmatprep.subr.mxu0 0.0
    %339 = vmatpush1.msra.mxu0 %v95
    %340 = vmatprep.subr.mxu0 0.0
    %341 = vmatpush1.msra.mxu0 %v94
    %342 = vmatprep.subr.mxu0 0.0
    %343 = vmatpush1.msra.mxu0 %v93
    %344 = vmatprep.subr.mxu0 0.0
    %345 = vmatpush1.msra.mxu0 %v92
    %346 = vmatprep.subr.mxu0 0.0
    %347 = vmatpush1.msra.mxu0 %v91
    %348 = vmatprep.subr.mxu0 0.0
    %349 = vmatpush1.msra.mxu0 %v90
    %350 = vmatprep.subr.mxu0 0.0
    %351 = vmatpush1.msra.mxu0 %v89
    %352 = vmatprep.subr.mxu0 0.0
    %353 = vmatpush1.msra.mxu0 %v88
    %354 = vmatprep.subr.mxu0 0.0
    %355 = vmatpush1.msra.mxu0 %v87
    %356 = vmatprep.subr.mxu0 0.0
    %357 = vmatpush1.msra.mxu0 %v86
    %358 = vmatprep.subr.mxu0 0.0
    %359 = vmatpush1.msra.mxu0 %v85
    %360 = vmatprep.subr.mxu0 0.0
    %361 = vmatpush1.msra.mxu0 %v84
    %362 = vmatprep.subr.mxu0 0.0
    %363 = vmatpush1.msra.mxu0 %v83
    %364 = vmatprep.subr.mxu0 0.0
    %365 = vmatpush1.msra.mxu0 %v82
    %366 = vmatprep.subr.mxu0 0.0
    %367 = vmatpush1.msra.mxu0 %v81
    %368 = vmatprep.subr.mxu0 0.0
    %369 = vmatpush2.msra.mxu0 %v112
    %370 = vmatprep.subr.mxu0 0.0
    %371 = vmatpush2.msra.mxu0 %v111
    %372 = vmatprep.subr.mxu0 0.0
    %373 = vmatpush2.msra.mxu0 %v110
    %374 = vmatprep.subr.mxu0 0.0
    %375 = vmatpush2.msra.mxu0 %v109
    %376 = vmatprep.subr.mxu0 0.0
    %377 = vmatpush2.msra.mxu0 %v108
    %378 = vmatprep.subr.mxu0 0.0
    %379 = vmatpush2.msra.mxu0 %v107
    %380 = vmatprep.subr.mxu0 0.0
    %381 = vmatpush2.msra.mxu0 %v106
    %382 = vmatprep.subr.mxu0 0.0
    %383 = vmatpush2.msra.mxu0 %v105
    %384 = vmatprep.subr.mxu0 0.0
    %385 = vmatpush2.msra.mxu0 %v104
    %386 = vmatprep.subr.mxu0 0.0
    %387 = vmatpush2.msra.mxu0 %v103
    %388 = vmatprep.subr.mxu0 0.0
    %389 = vmatpush2.msra.mxu0 %v102
    %390 = vmatprep.subr.mxu0 0.0
    %391 = vmatpush2.msra.mxu0 %v101
    %392 = vmatprep.subr.mxu0 0.0
    %393 = vmatpush2.msra.mxu0 %v100
    %394 = vmatprep.subr.mxu0 0.0
    %395 = vmatpush2.msra.mxu0 %v99
    %396 = vmatprep.subr.mxu0 0.0
    %397 = vmatpush2.msra.mxu0 %v98
    %398 = vmatprep.subr.mxu0 0.0
    %399 = vmatpush2.msra.mxu0 %v97
    %400 = vmatprep.mubr.f32.mxu0 %v186
    %401 = vmatmul.mubr.f32.gmra.mxu0 %v178
    %v402 = vpop.f32.mrf.mxu0
    %v403 = vadd.f32 %v333, %v402
    %v404 = vpop.f32.mrf.mxu0
    %405 = vdwg.mxu0
    %406 = vmatprep.subr.mxu0 0.0
    %407 = vmatpush1.msra.mxu0 %v128
    %408 = vmatprep.subr.mxu0 0.0
    %409 = vmatpush1.msra.mxu0 %v127
    %410 = vmatprep.subr.mxu0 0.0
    %411 = vmatpush1.msra.mxu0 %v126
    %412 = vmatprep.subr.mxu0 0.0
    %413 = vmatpush1.msra.mxu0 %v125
    %414 = vmatprep.subr.mxu0 0.0
    %415 = vmatpush1.msra.mxu0 %v124
    %416 = vmatprep.subr.mxu0 0.0
    %417 = vmatpush1.msra.mxu0 %v123
    %418 = vmatprep.subr.mxu0 0.0
    %419 = vmatpush1.msra.mxu0 %v122
    %420 = vmatprep.subr.mxu0 0.0
    %421 = vmatpush1.msra.mxu0 %v121
    %422 = vmatprep.subr.mxu0 0.0
    %423 = vmatpush1.msra.mxu0 %v120
    %424 = vmatprep.subr.mxu0 0.0
    %425 = vmatpush1.msra.mxu0 %v119
    %426 = vmatprep.subr.mxu0 0.0
    %427 = vmatpush1.msra.mxu0 %v118
    %428 = vmatprep.subr.mxu0 0.0
    %429 = vmatpush1.msra.mxu0 %v117
    %430 = vmatprep.subr.mxu0 0.0
    %431 = vmatpush1.msra.mxu0 %v116
    %432 = vmatprep.subr.mxu0 0.0
    %433 = vmatpush1.msra.mxu0 %v115
    %434 = vmatprep.subr.mxu0 0.0
    %435 = vmatpush1.msra.mxu0 %v114
    %436 = vmatprep.subr.mxu0 0.0
    %437 = vmatpush1.msra.mxu0 %v113
    %438 = vmatprep.subr.mxu0 0.0
    %439 = vmatpush2.msra.mxu0 %v144
    %440 = vmatprep.subr.mxu0 0.0
    %441 = vmatpush2.msra.mxu0 %v143
    %442 = vmatprep.subr.mxu0 0.0
    %443 = vmatpush2.msra.mxu0 %v142
    %444 = vmatprep.subr.mxu0 0.0
    %445 = vmatpush2.msra.mxu0 %v141
    %446 = vmatprep.subr.mxu0 0.0
    %447 = vmatpush2.msra.mxu0 %v140
    %448 = vmatprep.subr.mxu0 0.0
    %449 = vmatpush2.msra.mxu0 %v139
    %450 = vmatprep.subr.mxu0 0.0
    %451 = vmatpush2.msra.mxu0 %v138
    %452 = vmatprep.subr.mxu0 0.0
    %453 = vmatpush2.msra.mxu0 %v137
    %454 = vmatprep.subr.mxu0 0.0
    %455 = vmatpush2.msra.mxu0 %v136
    %456 = vmatprep.subr.mxu0 0.0
    %457 = vmatpush2.msra.mxu0 %v135
    %458 = vmatprep.subr.mxu0 0.0
    %459 = vmatpush2.msra.mxu0 %v134
    %460 = vmatprep.subr.mxu0 0.0
    %461 = vmatpush2.msra.mxu0 %v133
    %462 = vmatprep.subr.mxu0 0.0
    %463 = vmatpush2.msra.mxu0 %v132
    %464 = vmatprep.subr.mxu0 0.0
    %465 = vmatpush2.msra.mxu0 %v131
    %466 = vmatprep.subr.mxu0 0.0
    %467 = vmatpush2.msra.mxu0 %v130
    %468 = vmatprep.subr.mxu0 0.0
    %469 = vmatpush2.msra.mxu0 %v129
    %470 = vmatprep.mubr.f32.mxu0 %v187
    %471 = vmatmul.mubr.f32.gmra.mxu0 %v185
    %v472 = vpop.f32.mrf.mxu0
    %v473 = vadd.f32 %v403, %v472
    %v474 = vpop.f32.mrf.mxu0
    %475 = vdwg.mxu0
    %vm476 = vcmask 254976
    %477 = vst.msk [vmem:[#allocation2] sm:$0x3] %vm476, %v473
    // Predicated region
    $region14: #{video_encoder_cnn_forward.5} parent=1 // pred_check
      _
    $region15: #{video_encoder_cnn_forward.5} parent=1 // pred_check_branch
      %479 = sbr.rel (0) target = $region17
    $region16: #{video_encoder_cnn_forward.5} parent=1 // pred_region
      %s481 = ssub.s32 32, 32
      %482 = vsyncadd [#allocation3], %s481
      %s484 = sshll.u32 [#allocation2], 4
      %s485 = int_to_ptr.vmem [resolvable:$true] %s484
      %487 = dma.vmem_to_hbm [thread:$0]  %s485, 32, %s3, [#allocation3]
    $region17: #{video_encoder_cnn_forward.5} parent=1 // pred_fallthru
      _
    // Predicated region
    $region18: #{video_encoder_cnn_forward.5} parent=1 // pred_check
      _
    $region19: #{video_encoder_cnn_forward.5} parent=1 // pred_check_branch
      %489 = sbr.rel (0) target = $region21
    $region20: #{video_encoder_cnn_forward.5} parent=1 // pred_region
      %490 = dma.done [#allocation3], 32
    $region21: #{video_encoder_cnn_forward.5} parent=1 // pred_fallthru
      _
    %491 = vsyncpa [#allocation3], 1

// kernel: video_encoder_cnn_forward.3
$region0: #{video_encoder_cnn_forward.3}
  #allocation0 [shape = 'u32[]', space=smem, size = 0x4, offset = 0x4, fixed_abs, tag = 'smem constant byte address 0x4 - core index']
  #allocation1 [shape = 'u32[144,128]{1,0:T(1,128)}', space=vmem, size = 0x12000, scoped, tag = 'internal scratch']
  #allocation2 [shape = 'f32[16,32,16]{2,1,0:T(8,128)}', space=vmem, size = 0x40000, scoped, tag = 'scratch operand']
  %s0 = inlined_call_operand.vmem [shape: f32[2048,196], index: 0, kind: input, shape index: {}]
  %s1 = inlined_call_operand.vmem [shape: f32[196,16], index: 1, kind: input, shape index: {}]
  %s2 = inlined_call_operand.vmem [shape: f32[1,16], index: 2, kind: input, shape index: {}]
  %s3 = inlined_call_operand.vmem [shape: f32[2,16,16,16], index: 3, kind: output, shape index: {}]
  %s4 = sld [smem:[#allocation0]]
  $region45: #{video_encoder_cnn_forward.3} parent=0
    _
  %s6 = ssub.s32 1, %s4
  %s7 = scalar_select 0, %s6, %s4
  loop: start=0, step=1, limit=4
  $region2: #{video_encoder_cnn_forward.3} parent=0 // loop_pre_header
    _
  $region3: #{video_encoder_cnn_forward.3} parent=0 // loop_header
    %s9 = sphi 0, %s13
    %p10 = scmp.ge.s32.totalorder %s9, 4
    %s19 = sphi 0, %s21
    %s22 = sphi 0, %s19
    %s23 = sphi 0, %s22
    %s39 = sphi 0, %s23
    %s43 = sphi 0, %s43
    %s45 = sphi 0, %s43
    %s46 = sphi 0, %s45
    %s60 = sphi 0, %s46
    %s64 = sphi 0, %s64
    %s66 = sphi 0, %s64
    %s67 = sphi 0, %s66
    %s81 = sphi 0, %s67
    %s87 = sphi 0, %s89
    %s90 = sphi 0, %s87
    %s91 = sphi 0, %s90
    %s107 = sphi 0, %s91
  $region4: #{video_encoder_cnn_forward.3} parent=0 // loop_header_branch
    %12 = sbr.rel (%p10) target = $region8
  $region5: #{video_encoder_cnn_forward.3} parent=0 // loop_body
    %s14 = ssub.s32 %s9, 1
    %s15 = ssub.s32 %s9, 2
    %s16 = sadd.s32 %s9, 1
    %s17 = ssub.s32 %s9, %s16
    %p18 = scmp.eq.s32.totalorder %s17, 0
    %s20 = sadd.s32 %s19, 1
    %s21 = scalar_select %p18, %s19, %s20
    %p24 = pneg %p18
    %p25 = scmp.eq.s32.totalorder %s9, 1
    %p26 = por %p24, %p25
    %p27 = scmp.ne.s32.totalorder %s19, %s22
    %p28 = scmp.eq.s32.totalorder %s9, 0
    %p29 = por %p27, %p28
    %p30 = scmp.ne.s32.totalorder %s19, %s22
    %p31 = scmp.eq.s32.totalorder %s14, 1
    %p32 = por %p30, %p31
    %p33 = scmp.ne.s32.totalorder %s22, %s23
    %p34 = scmp.eq.s32.totalorder %s14, 0
    %p35 = por %p33, %p34
    %p36 = scmp.ne.s32.totalorder %s22, %s23
    %p37 = scmp.eq.s32.totalorder %s15, 1
    %p38 = por %p36, %p37
    %p40 = scmp.ne.s32.totalorder %s23, %s39
    %p41 = scmp.eq.s32.totalorder %s15, 0
    %p42 = por %p40, %p41
    %s44 = sadd.s32 %s43, 1
    %p47 = scmp.eq.s32.totalorder %s9, 1
    %p48 = scmp.ne.s32.totalorder %s43, %s45
    %p49 = scmp.eq.s32.totalorder %s9, 0
    %p50 = por %p48, %p49
    %p51 = scmp.ne.s32.totalorder %s43, %s45
    %p52 = scmp.eq.s32.totalorder %s14, 1
    %p53 = por %p51, %p52
    %p54 = scmp.ne.s32.totalorder %s45, %s46
    %p55 = scmp.eq.s32.totalorder %s14, 0
    %p56 = por %p54, %p55
    %p57 = scmp.ne.s32.totalorder %s45, %s46
    %p58 = scmp.eq.s32.totalorder %s15, 1
    %p59 = por %p57, %p58
    %p61 = scmp.ne.s32.totalorder %s46, %s60
    %p62 = scmp.eq.s32.totalorder %s15, 0
    %p63 = por %p61, %p62
    %s65 = sadd.s32 %s64, 1
    %p68 = scmp.eq.s32.totalorder %s9, 1
    %p69 = scmp.ne.s32.totalorder %s64, %s66
    %p70 = scmp.eq.s32.totalorder %s9, 0
    %p71 = por %p69, %p70
    %p72 = scmp.ne.s32.totalorder %s64, %s66
    %p73 = scmp.eq.s32.totalorder %s14, 1
    %p74 = por %p72, %p73
    %p75 = scmp.ne.s32.totalorder %s66, %s67
    %p76 = scmp.eq.s32.totalorder %s14, 0
    %p77 = por %p75, %p76
    %p78 = scmp.ne.s32.totalorder %s66, %s67
    %p79 = scmp.eq.s32.totalorder %s15, 1
    %p80 = por %p78, %p79
    %p82 = scmp.ne.s32.totalorder %s67, %s81
    %p83 = scmp.eq.s32.totalorder %s15, 0
    %p84 = por %p82, %p83
    %s85 = ssub.s32 %s9, %s16
    %p86 = scmp.eq.s32.totalorder %s85, 0
    %s88 = sadd.s32 %s87, 1
    %s89 = scalar_select %p86, %s87, %s88
    %p92 = pneg %p86
    %p93 = scmp.eq.s32.totalorder %s9, 1
    %p94 = por %p92, %p93
    %p95 = scmp.ne.s32.totalorder %s87, %s90
    %p96 = scmp.eq.s32.totalorder %s9, 0
    %p97 = por %p95, %p96
    %p98 = scmp.ne.s32.totalorder %s87, %s90
    %p99 = scmp.eq.s32.totalorder %s14, 1
    %p100 = por %p98, %p99
    %p101 = scmp.ne.s32.totalorder %s90, %s91
    %p102 = scmp.eq.s32.totalorder %s14, 0
    %p103 = por %p101, %p102
    %p104 = scmp.ne.s32.totalorder %s90, %s91
    %p105 = scmp.eq.s32.totalorder %s15, 1
    %p106 = por %p104, %p105
    %p108 = scmp.ne.s32.totalorder %s91, %s107
    %p109 = scmp.eq.s32.totalorder %s15, 0
    %p110 = por %p108, %p109
    %p111 = scmp.le.s32.totalorder 1, %s9
    %p112 = scmp.lt.s32.totalorder %s9, 3
    %p113 = pnand %p111, %p112
    %p114 = pneg %p113
    // Predicated region
    $region9: #{video_encoder_cnn_forward.3} parent=5 // pred_check
      _
    $region10: #{video_encoder_cnn_forward.3} parent=5 // pred_check_branch
      %116 = sbr.rel (%p113) target = $region12
    $region11: #{video_encoder_cnn_forward.3} parent=5 // pred_region
      %s117 = ssub.s32 %s9, 1
      // Predicated region
      $region13: #{video_encoder_cnn_forward.3} parent=11 // pred_check
        %p118 = pneg %p56
      $region14: #{video_encoder_cnn_forward.3} parent=11 // pred_check_branch
        %120 = sbr.rel (%p118) target = $region16
      $region15: #{video_encoder_cnn_forward.3} parent=11 // pred_region
        _
      $region16: #{video_encoder_cnn_forward.3} parent=11 // pred_fallthru
        _
      // Predicated region
      $region17: #{video_encoder_cnn_forward.3} parent=11 // pred_check
        %p121 = pneg %p77
      $region18: #{video_encoder_cnn_forward.3} parent=11 // pred_check_branch
        %123 = sbr.rel (%p121) target = $region20
      $region19: #{video_encoder_cnn_forward.3} parent=11 // pred_region
        _
      $region20: #{video_encoder_cnn_forward.3} parent=11 // pred_fallthru
        _
    $region12: #{video_encoder_cnn_forward.3} parent=5 // pred_fallthru
      _
    %p124 = scmp.lt.s32.totalorder %s9, 2
    // Predicated region
    $region21: #{video_encoder_cnn_forward.3} parent=5 // pred_check
      %p125 = pneg %p124
    $region22: #{video_encoder_cnn_forward.3} parent=5 // pred_check_branch
      %127 = sbr.rel (%p125) target = $region24
    $region23: #{video_encoder_cnn_forward.3} parent=5 // pred_region
      // Predicated region
      $region25: #{video_encoder_cnn_forward.3} parent=23 // pred_check
        %p128 = pneg %p29
      $region26: #{video_encoder_cnn_forward.3} parent=23 // pred_check_branch
        %130 = sbr.rel (%p128) target = $region28
      $region27: #{video_encoder_cnn_forward.3} parent=23 // pred_region
        %s131 = smul.u32 128, %s9
        %p132 = scmp.lt.s32.totalorder %s131, 255
        %s133 = scalar_select %p132, %s131, 255
        %s134 = smul.addr %s133, 2
        %s135 = smul.addr %s134, 8
        %s136 = scalar_lea.vmem %s0, %s135
        %s137 = smul.u32 128, %s9
      $region28: #{video_encoder_cnn_forward.3} parent=23 // pred_fallthru
        _
    $region24: #{video_encoder_cnn_forward.3} parent=5 // pred_fallthru
      _
    %p138 = scmp.le.s32.totalorder 1, %s9
    %p139 = scmp.lt.s32.totalorder %s9, 3
    %p140 = pnand %p138, %p139
    %p141 = pneg %p140
    // Predicated region
    $region29: #{video_encoder_cnn_forward.3} parent=5 // pred_check
      _
    $region30: #{video_encoder_cnn_forward.3} parent=5 // pred_check_branch
      %143 = sbr.rel (%p140) target = $region32
    $region31: #{video_encoder_cnn_forward.3} parent=5 // pred_region
      %s144 = ssub.s32 %s9, 1
      %s145 = smul.u32 128, %s14
      %p146 = scmp.lt.s32.totalorder %s145, 255
      %s147 = scalar_select %p146, %s145, 255
      %s148 = smul.addr %s147, 2
      %s149 = smul.addr %s148, 8
      %s150 = scalar_lea.vmem %s0, %s149
      %p151 = pneg %p35
      %p152 = pneg %p32
      %p153 = pneg %p56
      %p154 = pneg %p53
      %p155 = pneg %p77
      %p156 = pneg %p74
      %p157 = pneg %p103
      %p158 = pneg %p100
      %p159 = scmp.lt.s32.totalorder %s14, 1
      %s160 = scalar_select %p159, %s14, 1
      %s161 = smul.addr %s160, 32
      %s162 = smul.addr %s161, 8
      %s163 = scalar_lea.vmem %s3, %s162
      %s164 = smul.u32 128, %s14
      %p165 = scmp.lt.s32.totalorder %s164, 255
      %s166 = scalar_select %p165, %s164, 255
      %s167 = smul.addr %s166, 2
      %s168 = smul.addr %s167, 8
      %s169 = scalar_lea.vmem %s0, %s168
      %s170 = smul.u32 128, %s14
      %p171 = scmp.lt.s32.totalorder %s14, 1
      %s172 = scalar_select %p171, %s14, 1
      %s173 = smul.addr %s172, 32
      %s174 = smul.addr %s173, 8
      %s175 = scalar_lea.vmem %s3, %s174
      %v176 = vld [vmem:[%s169] sm:$0xff]
      %v177 = vld [vmem:[%s169 + $0x8] sm:$0xff]
      %v178 = vld [vmem:[%s169 + $0x10] sm:$0xff]
      %v179 = vld [vmem:[%s169 + $0x18] sm:$0xff]
      %v180 = vld [vmem:[%s169 + $0x20] sm:$0xff]
      %v181 = vld [vmem:[%s169 + $0x28] sm:$0xff]
      %v182 = vld [vmem:[%s169 + $0x30] sm:$0xff]
      %v183 = vld [vmem:[%s169 + $0x38] sm:$0xff]
      %v184 = vld [vmem:[%s169 + $0x40] sm:$0xff]
      %v185 = vld [vmem:[%s169 + $0x48] sm:$0xff]
      %v186 = vld [vmem:[%s169 + $0x50] sm:$0xff]
      %v187 = vld [vmem:[%s169 + $0x58] sm:$0xff]
      %v188 = vld [vmem:[%s169 + $0x60] sm:$0xff]
      %v189 = vld [vmem:[%s169 + $0x68] sm:$0xff]
      %v190 = vld [vmem:[%s169 + $0x70] sm:$0xff]
      %v191 = vld [vmem:[%s169 + $0x78] sm:$0xff]
      %v192 = vld [vmem:[%s169 + $0x80] sm:$0xff]
      %v193 = vld [vmem:[%s169 + $0x88] sm:$0xff]
      %v194 = vld [vmem:[%s169 + $0x90] sm:$0xff]
      %v195 = vld [vmem:[%s169 + $0x98] sm:$0xff]
      %v196 = vld [vmem:[%s169 + $0xa0] sm:$0xff]
      %v197 = vld [vmem:[%s169 + $0xa8] sm:$0xff]
      %v198 = vld [vmem:[%s169 + $0xb0] sm:$0xff]
      %v199 = vld [vmem:[%s169 + $0xb8] sm:$0xff]
      %v200 = vld [vmem:[%s169 + $0xc0] sm:$0xff]
      %v201 = vld [vmem:[%s169 + $0xc8] sm:$0xff]
      %v202 = vld [vmem:[%s169 + $0xd0] sm:$0xff]
      %v203 = vld [vmem:[%s169 + $0xd8] sm:$0xff]
      %v204 = vld [vmem:[%s169 + $0xe0] sm:$0xff]
      %v205 = vld [vmem:[%s169 + $0xe8] sm:$0xff]
      %v206 = vld [vmem:[%s169 + $0xf0] sm:$0xff]
      %v207 = vld [vmem:[%s169 + $0xf8] sm:$0xff]
      %v208 = vld [vmem:[%s169 + $0x100] sm:$0xff]
      %v209 = vld [vmem:[%s169 + $0x108] sm:$0xff]
      %v210 = vld [vmem:[%s169 + $0x110] sm:$0xff]
      %v211 = vld [vmem:[%s169 + $0x118] sm:$0xff]
      %v212 = vld [vmem:[%s169 + $0x120] sm:$0xff]
      %v213 = vld [vmem:[%s169 + $0x128] sm:$0xff]
      %v214 = vld [vmem:[%s169 + $0x130] sm:$0xff]
      %v215 = vld [vmem:[%s169 + $0x138] sm:$0xff]
      %v216 = vld [vmem:[%s169 + $0x140] sm:$0xff]
      %v217 = vld [vmem:[%s169 + $0x148] sm:$0xff]
      %v218 = vld [vmem:[%s169 + $0x150] sm:$0xff]
      %v219 = vld [vmem:[%s169 + $0x158] sm:$0xff]
      %v220 = vld [vmem:[%s169 + $0x160] sm:$0xff]
      %v221 = vld [vmem:[%s169 + $0x168] sm:$0xff]
      %v222 = vld [vmem:[%s169 + $0x170] sm:$0xff]
      %v223 = vld [vmem:[%s169 + $0x178] sm:$0xff]
      %v224 = vld [vmem:[%s169 + $0x180] sm:$0xff]
      %v225 = vld [vmem:[%s169 + $0x188] sm:$0xff]
      %v226 = vld [vmem:[%s169 + $0x190] sm:$0xff]
      %v227 = vld [vmem:[%s169 + $0x198] sm:$0xff]
      %v228 = vld [vmem:[%s169 + $0x1a0] sm:$0xff]
      %v229 = vld [vmem:[%s169 + $0x1a8] sm:$0xff]
      %v230 = vld [vmem:[%s169 + $0x1b0] sm:$0xff]
      %v231 = vld [vmem:[%s169 + $0x1b8] sm:$0xff]
      %v232 = vld [vmem:[%s169 + $0x1c0] sm:$0xff]
      %v233 = vld [vmem:[%s169 + $0x1c8] sm:$0xff]
      %v234 = vld [vmem:[%s169 + $0x1d0] sm:$0xff]
      %v235 = vld [vmem:[%s169 + $0x1d8] sm:$0xff]
      %v236 = vld [vmem:[%s169 + $0x1e0] sm:$0xff]
      %v237 = vld [vmem:[%s169 + $0x1e8] sm:$0xff]
      %v238 = vld [vmem:[%s169 + $0x1f0] sm:$0xff]
      %v239 = vld [vmem:[%s169 + $0x1f8] sm:$0xff]
      %v240 = vld [vmem:[%s169 + $0x200] sm:$0xff]
      %v241 = vld [vmem:[%s169 + $0x208] sm:$0xff]
      %v242 = vld [vmem:[%s169 + $0x210] sm:$0xff]
      %v243 = vld [vmem:[%s169 + $0x218] sm:$0xff]
      %v244 = vld [vmem:[%s169 + $0x220] sm:$0xff]
      %v245 = vld [vmem:[%s169 + $0x228] sm:$0xff]
      %v246 = vld [vmem:[%s169 + $0x230] sm:$0xff]
      %v247 = vld [vmem:[%s169 + $0x238] sm:$0xff]
      %v248 = vld [vmem:[%s169 + $0x240] sm:$0xff]
      %v249 = vld [vmem:[%s169 + $0x248] sm:$0xff]
      %v250 = vld [vmem:[%s169 + $0x250] sm:$0xff]
      %v251 = vld [vmem:[%s169 + $0x258] sm:$0xff]
      %v252 = vld [vmem:[%s169 + $0x260] sm:$0xff]
      %v253 = vld [vmem:[%s169 + $0x268] sm:$0xff]
      %v254 = vld [vmem:[%s169 + $0x270] sm:$0xff]
      %v255 = vld [vmem:[%s169 + $0x278] sm:$0xff]
      %v256 = vld [vmem:[%s169 + $0x280] sm:$0xff]
      %v257 = vld [vmem:[%s169 + $0x288] sm:$0xff]
      %v258 = vld [vmem:[%s169 + $0x290] sm:$0xff]
      %v259 = vld [vmem:[%s169 + $0x298] sm:$0xff]
      %v260 = vld [vmem:[%s169 + $0x2a0] sm:$0xff]
      %v261 = vld [vmem:[%s169 + $0x2a8] sm:$0xff]
      %v262 = vld [vmem:[%s169 + $0x2b0] sm:$0xff]
      %v263 = vld [vmem:[%s169 + $0x2b8] sm:$0xff]
      %v264 = vld [vmem:[%s169 + $0x2c0] sm:$0xff]
      %v265 = vld [vmem:[%s169 + $0x2c8] sm:$0xff]
      %v266 = vld [vmem:[%s169 + $0x2d0] sm:$0xff]
      %v267 = vld [vmem:[%s169 + $0x2d8] sm:$0xff]
      %v268 = vld [vmem:[%s169 + $0x2e0] sm:$0xff]
      %v269 = vld [vmem:[%s169 + $0x2e8] sm:$0xff]
      %v270 = vld [vmem:[%s169 + $0x2f0] sm:$0xff]
      %v271 = vld [vmem:[%s169 + $0x2f8] sm:$0xff]
      %v272 = vld [vmem:[%s169 + $0x300] sm:$0xff]
      %v273 = vld [vmem:[%s169 + $0x308] sm:$0xff]
      %v274 = vld [vmem:[%s169 + $0x310] sm:$0xff]
      %v275 = vld [vmem:[%s169 + $0x318] sm:$0xff]
      %v276 = vld [vmem:[%s169 + $0x320] sm:$0xff]
      %v277 = vld [vmem:[%s169 + $0x328] sm:$0xff]
      %v278 = vld [vmem:[%s169 + $0x330] sm:$0xff]
      %v279 = vld [vmem:[%s169 + $0x338] sm:$0xff]
      %v280 = vld [vmem:[%s169 + $0x340] sm:$0xff]
      %v281 = vld [vmem:[%s169 + $0x348] sm:$0xff]
      %v282 = vld [vmem:[%s169 + $0x350] sm:$0xff]
      %v283 = vld [vmem:[%s169 + $0x358] sm:$0xff]
      %v284 = vld [vmem:[%s169 + $0x360] sm:$0xff]
      %v285 = vld [vmem:[%s169 + $0x368] sm:$0xff]
      %v286 = vld [vmem:[%s169 + $0x370] sm:$0xff]
      %v287 = vld [vmem:[%s169 + $0x378] sm:$0xff]
      %v288 = vld [vmem:[%s169 + $0x380] sm:$0xff]
      %v289 = vld [vmem:[%s169 + $0x388] sm:$0xff]
      %v290 = vld [vmem:[%s169 + $0x390] sm:$0xff]
      %v291 = vld [vmem:[%s169 + $0x398] sm:$0xff]
      %v292 = vld [vmem:[%s169 + $0x3a0] sm:$0xff]
      %v293 = vld [vmem:[%s169 + $0x3a8] sm:$0xff]
      %v294 = vld [vmem:[%s169 + $0x3b0] sm:$0xff]
      %v295 = vld [vmem:[%s169 + $0x3b8] sm:$0xff]
      %v296 = vld [vmem:[%s169 + $0x3c0] sm:$0xff]
      %v297 = vld [vmem:[%s169 + $0x3c8] sm:$0xff]
      %v298 = vld [vmem:[%s169 + $0x3d0] sm:$0xff]
      %v299 = vld [vmem:[%s169 + $0x3d8] sm:$0xff]
      %v300 = vld [vmem:[%s169 + $0x3e0] sm:$0xff]
      %v301 = vld [vmem:[%s169 + $0x3e8] sm:$0xff]
      %v302 = vld [vmem:[%s169 + $0x3f0] sm:$0xff]
      %v303 = vld [vmem:[%s169 + $0x3f8] sm:$0xff]
      %v304 = vld [vmem:[%s169 + $0x400] sm:$0xff]
      %v305 = vld [vmem:[%s169 + $0x408] sm:$0xff]
      %v306 = vld [vmem:[%s169 + $0x410] sm:$0xff]
      %v307 = vld [vmem:[%s169 + $0x418] sm:$0xff]
      %v308 = vld [vmem:[%s169 + $0x420] sm:$0xff]
      %v309 = vld [vmem:[%s169 + $0x428] sm:$0xff]
      %v310 = vld [vmem:[%s169 + $0x430] sm:$0xff]
      %v311 = vld [vmem:[%s169 + $0x438] sm:$0xff]
      %v312 = vld [vmem:[%s169 + $0x440] sm:$0xff]
      %v313 = vld [vmem:[%s169 + $0x448] sm:$0xff]
      %v314 = vld [vmem:[%s169 + $0x450] sm:$0xff]
      %v315 = vld [vmem:[%s169 + $0x458] sm:$0xff]
      %v316 = vld [vmem:[%s169 + $0x460] sm:$0xff]
      %v317 = vld [vmem:[%s169 + $0x468] sm:$0xff]
      %v318 = vld [vmem:[%s169 + $0x470] sm:$0xff]
      %v319 = vld [vmem:[%s169 + $0x478] sm:$0xff]
      %v320 = vld [vmem:[%s169 + $0x480] sm:$0xff]
      %v321 = vld [vmem:[%s169 + $0x488] sm:$0xff]
      %v322 = vld [vmem:[%s169 + $0x490] sm:$0xff]
      %v323 = vld [vmem:[%s169 + $0x498] sm:$0xff]
      %v324 = vld [vmem:[%s169 + $0x4a0] sm:$0xff]
      %v325 = vld [vmem:[%s169 + $0x4a8] sm:$0xff]
      %v326 = vld [vmem:[%s169 + $0x4b0] sm:$0xff]
      %v327 = vld [vmem:[%s169 + $0x4b8] sm:$0xff]
      %v328 = vld [vmem:[%s169 + $0x4c0] sm:$0xff]
      %v329 = vld [vmem:[%s169 + $0x4c8] sm:$0xff]
      %v330 = vld [vmem:[%s169 + $0x4d0] sm:$0xff]
      %v331 = vld [vmem:[%s169 + $0x4d8] sm:$0xff]
      %v332 = vld [vmem:[%s169 + $0x4e0] sm:$0xff]
      %v333 = vld [vmem:[%s169 + $0x4e8] sm:$0xff]
      %v334 = vld [vmem:[%s169 + $0x4f0] sm:$0xff]
      %v335 = vld [vmem:[%s169 + $0x4f8] sm:$0xff]
      %v336 = vld [vmem:[%s169 + $0x500] sm:$0xff]
      %v337 = vld [vmem:[%s169 + $0x508] sm:$0xff]
      %v338 = vld [vmem:[%s169 + $0x510] sm:$0xff]
      %v339 = vld [vmem:[%s169 + $0x518] sm:$0xff]
      %v340 = vld [vmem:[%s169 + $0x520] sm:$0xff]
      %v341 = vld [vmem:[%s169 + $0x528] sm:$0xff]
      %v342 = vld [vmem:[%s169 + $0x530] sm:$0xff]
      %v343 = vld [vmem:[%s169 + $0x538] sm:$0xff]
      %v344 = vld [vmem:[%s169 + $0x540] sm:$0xff]
      %v345 = vld [vmem:[%s169 + $0x548] sm:$0xff]
      %v346 = vld [vmem:[%s169 + $0x550] sm:$0xff]
      %v347 = vld [vmem:[%s169 + $0x558] sm:$0xff]
      %v348 = vld [vmem:[%s169 + $0x560] sm:$0xff]
      %v349 = vld [vmem:[%s169 + $0x568] sm:$0xff]
      %v350 = vld [vmem:[%s169 + $0x570] sm:$0xff]
      %v351 = vld [vmem:[%s169 + $0x578] sm:$0xff]
      %v352 = vld [vmem:[%s169 + $0x580] sm:$0xff]
      %v353 = vld [vmem:[%s169 + $0x588] sm:$0xff]
      %v354 = vld [vmem:[%s169 + $0x590] sm:$0xff]
      %v355 = vld [vmem:[%s169 + $0x598] sm:$0xff]
      %v356 = vld [vmem:[%s169 + $0x5a0] sm:$0xff]
      %v357 = vld [vmem:[%s169 + $0x5a8] sm:$0xff]
      %v358 = vld [vmem:[%s169 + $0x5b0] sm:$0xff]
      %v359 = vld [vmem:[%s169 + $0x5b8] sm:$0xff]
      %v360 = vld [vmem:[%s169 + $0x5c0] sm:$0xff]
      %v361 = vld [vmem:[%s169 + $0x5c8] sm:$0xff]
      %v362 = vld [vmem:[%s169 + $0x5d0] sm:$0xff]
      %v363 = vld [vmem:[%s169 + $0x5d8] sm:$0xff]
      %v364 = vld [vmem:[%s169 + $0x5e0] sm:$0xff]
      %v365 = vld [vmem:[%s169 + $0x5e8] sm:$0xff]
      %v366 = vld [vmem:[%s169 + $0x5f0] sm:$0xff]
      %v367 = vld [vmem:[%s169 + $0x5f8] sm:$0xff]
      %v368 = vld [vmem:[%s169 + $0x600] sm:$0xff]
      %v369 = vld [vmem:[%s169 + $0x608] sm:$0xff]
      %v370 = vld [vmem:[%s169 + $0x610] sm:$0xff]
      %v371 = vld [vmem:[%s169 + $0x618] sm:$0xff]
      %v372 = vld [vmem:[%s169 + $0x620] sm:$0xff]
      %v373 = vld [vmem:[%s169 + $0x628] sm:$0xff]
      %v374 = vld [vmem:[%s169 + $0x630] sm:$0xff]
      %v375 = vld [vmem:[%s169 + $0x638] sm:$0xff]
      %v376 = vld [vmem:[%s169 + $0x640] sm:$0xff]
      %v377 = vld [vmem:[%s169 + $0x648] sm:$0xff]
      %v378 = vld [vmem:[%s169 + $0x650] sm:$0xff]
      %v379 = vld [vmem:[%s169 + $0x658] sm:$0xff]
      %v380 = vld [vmem:[%s169 + $0x660] sm:$0xff]
      %v381 = vld [vmem:[%s169 + $0x668] sm:$0xff]
      %v382 = vld [vmem:[%s169 + $0x670] sm:$0xff]
      %v383 = vld [vmem:[%s169 + $0x678] sm:$0xff]
      %v384 = vld [vmem:[%s169 + $0x680] sm:$0xff]
      %v385 = vld [vmem:[%s169 + $0x688] sm:$0xff]
      %v386 = vld [vmem:[%s169 + $0x690] sm:$0xff]
      %v387 = vld [vmem:[%s169 + $0x698] sm:$0xff]
      %v388 = vld [vmem:[%s169 + $0x6a0] sm:$0xff]
      %v389 = vld [vmem:[%s169 + $0x6a8] sm:$0xff]
      %v390 = vld [vmem:[%s169 + $0x6b0] sm:$0xff]
      %v391 = vld [vmem:[%s169 + $0x6b8] sm:$0xff]
      %v392 = vld [vmem:[%s169 + $0x6c0] sm:$0xff]
      %v393 = vld [vmem:[%s169 + $0x6c8] sm:$0xff]
      %v394 = vld [vmem:[%s169 + $0x6d0] sm:$0xff]
      %v395 = vld [vmem:[%s169 + $0x6d8] sm:$0xff]
      %v396 = vld [vmem:[%s169 + $0x6e0] sm:$0xff]
      %v397 = vld [vmem:[%s169 + $0x6e8] sm:$0xff]
      %v398 = vld [vmem:[%s169 + $0x6f0] sm:$0xff]
      %v399 = vld [vmem:[%s169 + $0x6f8] sm:$0xff]
      %v400 = vld [vmem:[%s169 + $0x700] sm:$0xff]
      %v401 = vld [vmem:[%s169 + $0x708] sm:$0xff]
      %v402 = vld [vmem:[%s169 + $0x710] sm:$0xff]
      %v403 = vld [vmem:[%s169 + $0x718] sm:$0xff]
      %v404 = vld [vmem:[%s169 + $0x720] sm:$0xff]
      %v405 = vld [vmem:[%s169 + $0x728] sm:$0xff]
      %v406 = vld [vmem:[%s169 + $0x730] sm:$0xff]
      %v407 = vld [vmem:[%s169 + $0x738] sm:$0xff]
      %v408 = vld [vmem:[%s169 + $0x740] sm:$0xff]
      %v409 = vld [vmem:[%s169 + $0x748] sm:$0xff]
      %v410 = vld [vmem:[%s169 + $0x750] sm:$0xff]
      %v411 = vld [vmem:[%s169 + $0x758] sm:$0xff]
      %v412 = vld [vmem:[%s169 + $0x760] sm:$0xff]
      %v413 = vld [vmem:[%s169 + $0x768] sm:$0xff]
      %v414 = vld [vmem:[%s169 + $0x770] sm:$0xff]
      %v415 = vld [vmem:[%s169 + $0x778] sm:$0xff]
      %v416 = vld [vmem:[%s169 + $0x780] sm:$0xff]
      %v417 = vld [vmem:[%s169 + $0x788] sm:$0xff]
      %v418 = vld [vmem:[%s169 + $0x790] sm:$0xff]
      %v419 = vld [vmem:[%s169 + $0x798] sm:$0xff]
      %v420 = vld [vmem:[%s169 + $0x7a0] sm:$0xff]
      %v421 = vld [vmem:[%s169 + $0x7a8] sm:$0xff]
      %v422 = vld [vmem:[%s169 + $0x7b0] sm:$0xff]
      %v423 = vld [vmem:[%s169 + $0x7b8] sm:$0xff]
      %v424 = vld [vmem:[%s169 + $0x7c0] sm:$0xff]
      %v425 = vld [vmem:[%s169 + $0x7c8] sm:$0xff]
      %v426 = vld [vmem:[%s169 + $0x7d0] sm:$0xff]
      %v427 = vld [vmem:[%s169 + $0x7d8] sm:$0xff]
      %v428 = vld [vmem:[%s169 + $0x7e0] sm:$0xff]
      %v429 = vld [vmem:[%s169 + $0x7e8] sm:$0xff]
      %v430 = vld [vmem:[%s169 + $0x7f0] sm:$0xff]
      %v431 = vld [vmem:[%s169 + $0x7f8] sm:$0xff]
      %v432 = vld [vmem:[%s1] sm:$0xff]
      %v433 = vld [vmem:[%s1 + $0x8] sm:$0xff]
      %v434 = vld [vmem:[%s1 + $0x10] sm:$0xff]
      %v435 = vld [vmem:[%s1 + $0x18] sm:$0xff]
      %v436 = vld [vmem:[%s1 + $0x20] sm:$0xff]
      %v437 = vld [vmem:[%s1 + $0x28] sm:$0xff]
      %v438 = vld [vmem:[%s1 + $0x30] sm:$0xff]
      %v439 = vld [vmem:[%s1 + $0x38] sm:$0xff]
      %v440 = vld [vmem:[%s1 + $0x40] sm:$0xff]
      %v441 = vld [vmem:[%s1 + $0x48] sm:$0xff]
      %v442 = vld [vmem:[%s1 + $0x50] sm:$0xff]
      %v443 = vld [vmem:[%s1 + $0x58] sm:$0xff]
      %v444 = vld [vmem:[%s1 + $0x60] sm:$0xff]
      %v445 = vld [vmem:[%s1 + $0x68] sm:$0xff]
      %v446 = vld [vmem:[%s1 + $0x70] sm:$0xff]
      %v447 = vld [vmem:[%s1 + $0x78] sm:$0xff]
      %v448 = vld [vmem:[%s1 + $0x80] sm:$0xff]
      %v449 = vld [vmem:[%s1 + $0x88] sm:$0xff]
      %v450 = vld [vmem:[%s1 + $0x90] sm:$0xff]
      %v451 = vld [vmem:[%s1 + $0x98] sm:$0xff]
      %v452 = vld [vmem:[%s1 + $0xa0] sm:$0xff]
      %v453 = vld [vmem:[%s1 + $0xa8] sm:$0xff]
      %v454 = vld [vmem:[%s1 + $0xb0] sm:$0xff]
      %v455 = vld [vmem:[%s1 + $0xb8] sm:$0xff]
      %v456 = vld [vmem:[%s1 + $0xc0] sm:$0xf]
      %v457 = vld [vmem:[%s2] sm:$0x1]
      %v459 = vlaneseq
      %v460 = vshrl.u32 %v459, 7
      %v461 = vsub.s32 0, %v460
      %v462 = vrot.slane %v457, %v461
      %vm464 = vcmask 556032
      %v466 = vsel %vm464, %v177, 0
      %v469 = vsel %vm464, %v179, 0
      %v472 = vsel %vm464, %v181, 0
      %v475 = vsel %vm464, %v183, 0
      %v478 = vsel %vm464, %v185, 0
      %v481 = vsel %vm464, %v187, 0
      %v484 = vsel %vm464, %v189, 0
      %v487 = vsel %vm464, %v191, 0
      %v490 = vsel %vm464, %v193, 0
      %v493 = vsel %vm464, %v195, 0
      %v496 = vsel %vm464, %v197, 0
      %v499 = vsel %vm464, %v199, 0
      %v502 = vsel %vm464, %v201, 0
      %v505 = vsel %vm464, %v203, 0
      %v508 = vsel %vm464, %v205, 0
      %v511 = vsel %vm464, %v207, 0
      %v514 = vsel %vm464, %v209, 0
      %v517 = vsel %vm464, %v211, 0
      %v520 = vsel %vm464, %v213, 0
      %v523 = vsel %vm464, %v215, 0
      %v526 = vsel %vm464, %v217, 0
      %v529 = vsel %vm464, %v219, 0
      %v532 = vsel %vm464, %v221, 0
      %v535 = vsel %vm464, %v223, 0
      %v538 = vsel %vm464, %v225, 0
      %v541 = vsel %vm464, %v227, 0
      %v544 = vsel %vm464, %v229, 0
      %v547 = vsel %vm464, %v231, 0
      %v550 = vsel %vm464, %v233, 0
      %v553 = vsel %vm464, %v235, 0
      %v556 = vsel %vm464, %v237, 0
      %v559 = vsel %vm464, %v239, 0
      %v562 = vsel %vm464, %v241, 0
      %v565 = vsel %vm464, %v243, 0
      %v568 = vsel %vm464, %v245, 0
      %v571 = vsel %vm464, %v247, 0
      %v574 = vsel %vm464, %v249, 0
      %v577 = vsel %vm464, %v251, 0
      %v580 = vsel %vm464, %v253, 0
      %v583 = vsel %vm464, %v255, 0
      %v586 = vsel %vm464, %v257, 0
      %v589 = vsel %vm464, %v259, 0
      %v592 = vsel %vm464, %v261, 0
      %v595 = vsel %vm464, %v263, 0
      %v598 = vsel %vm464, %v265, 0
      %v601 = vsel %vm464, %v267, 0
      %v604 = vsel %vm464, %v269, 0
      %v607 = vsel %vm464, %v271, 0
      %v610 = vsel %vm464, %v273, 0
      %v613 = vsel %vm464, %v275, 0
      %v616 = vsel %vm464, %v277, 0
      %v619 = vsel %vm464, %v279, 0
      %v622 = vsel %vm464, %v281, 0
      %v625 = vsel %vm464, %v283, 0
      %v628 = vsel %vm464, %v285, 0
      %v631 = vsel %vm464, %v287, 0
      %v634 = vsel %vm464, %v289, 0
      %v637 = vsel %vm464, %v291, 0
      %v640 = vsel %vm464, %v293, 0
      %v643 = vsel %vm464, %v295, 0
      %v646 = vsel %vm464, %v297, 0
      %v649 = vsel %vm464, %v299, 0
      %v652 = vsel %vm464, %v301, 0
      %v655 = vsel %vm464, %v303, 0
      %v658 = vsel %vm464, %v305, 0
      %v661 = vsel %vm464, %v307, 0
      %v664 = vsel %vm464, %v309, 0
      %v667 = vsel %vm464, %v311, 0
      %v670 = vsel %vm464, %v313, 0
      %v673 = vsel %vm464, %v315, 0
      %v676 = vsel %vm464, %v317, 0
      %v679 = vsel %vm464, %v319, 0
      %v682 = vsel %vm464, %v321, 0
      %v685 = vsel %vm464, %v323, 0
      %v688 = vsel %vm464, %v325, 0
      %v691 = vsel %vm464, %v327, 0
      %v694 = vsel %vm464, %v329, 0
      %v697 = vsel %vm464, %v331, 0
      %v700 = vsel %vm464, %v333, 0
      %v703 = vsel %vm464, %v335, 0
      %v706 = vsel %vm464, %v337, 0
      %v709 = vsel %vm464, %v339, 0
      %v712 = vsel %vm464, %v341, 0
      %v715 = vsel %vm464, %v343, 0
      %v718 = vsel %vm464, %v345, 0
      %v721 = vsel %vm464, %v347, 0
      %v724 = vsel %vm464, %v349, 0
      %v727 = vsel %vm464, %v351, 0
      %v730 = vsel %vm464, %v353, 0
      %v733 = vsel %vm464, %v355, 0
      %v736 = vsel %vm464, %v357, 0
      %v739 = vsel %vm464, %v359, 0
      %v742 = vsel %vm464, %v361, 0
      %v745 = vsel %vm464, %v363, 0
      %v748 = vsel %vm464, %v365, 0
      %v751 = vsel %vm464, %v367, 0
      %v754 = vsel %vm464, %v369, 0
      %v757 = vsel %vm464, %v371, 0
      %v760 = vsel %vm464, %v373, 0
      %v763 = vsel %vm464, %v375, 0
      %v766 = vsel %vm464, %v377, 0
      %v769 = vsel %vm464, %v379, 0
      %v772 = vsel %vm464, %v381, 0
      %v775 = vsel %vm464, %v383, 0
      %v778 = vsel %vm464, %v385, 0
      %v781 = vsel %vm464, %v387, 0
      %v784 = vsel %vm464, %v389, 0
      %v787 = vsel %vm464, %v391, 0
      %v790 = vsel %vm464, %v393, 0
      %v793 = vsel %vm464, %v395, 0
      %v796 = vsel %vm464, %v397, 0
      %v799 = vsel %vm464, %v399, 0
      %v802 = vsel %vm464, %v401, 0
      %v805 = vsel %vm464, %v403, 0
      %v808 = vsel %vm464, %v405, 0
      %v811 = vsel %vm464, %v407, 0
      %v814 = vsel %vm464, %v409, 0
      %v817 = vsel %vm464, %v411, 0
      %v820 = vsel %vm464, %v413, 0
      %v823 = vsel %vm464, %v415, 0
      %v826 = vsel %vm464, %v417, 0
      %v829 = vsel %vm464, %v419, 0
      %v832 = vsel %vm464, %v421, 0
      %v835 = vsel %vm464, %v423, 0
      %v838 = vsel %vm464, %v425, 0
      %v841 = vsel %vm464, %v427, 0
      %v844 = vsel %vm464, %v429, 0
      %v847 = vsel %vm464, %v431, 0
      %vm849 = vcmask 1043456
      %v851 = vsel %vm849, %v456, 0
      %853 = vmatprep.subr.mxu0 0.0
      %854 = vmatpush1.msra.mxu0 %v447
      %855 = vmatprep.subr.mxu0 0.0
      %856 = vmatpush1.msra.mxu0 %v446
      %857 = vmatprep.subr.mxu0 0.0
      %858 = vmatpush1.msra.mxu0 %v445
      %859 = vmatprep.subr.mxu0 0.0
      %860 = vmatpush1.msra.mxu0 %v444
      %861 = vmatprep.subr.mxu0 0.0
      %862 = vmatpush1.msra.mxu0 %v443
      %863 = vmatprep.subr.mxu0 0.0
      %864 = vmatpush1.msra.mxu0 %v442
      %865 = vmatprep.subr.mxu0 0.0
      %866 = vmatpush1.msra.mxu0 %v441
      %867 = vmatprep.subr.mxu0 0.0
      %868 = vmatpush1.msra.mxu0 %v440
      %869 = vmatprep.subr.mxu0 0.0
      %870 = vmatpush1.msra.mxu0 %v439
      %871 = vmatprep.subr.mxu0 0.0
      %872 = vmatpush1.msra.mxu0 %v438
      %873 = vmatprep.subr.mxu0 0.0
      %874 = vmatpush1.msra.mxu0 %v437
      %875 = vmatprep.subr.mxu0 0.0
      %876 = vmatpush1.msra.mxu0 %v436
      %877 = vmatprep.subr.mxu0 0.0
      %878 = vmatpush1.msra.mxu0 %v435
      %879 = vmatprep.subr.mxu0 0.0
      %880 = vmatpush1.msra.mxu0 %v434
      %881 = vmatprep.subr.mxu0 0.0
      %882 = vmatpush1.msra.mxu0 %v433
      %883 = vmatprep.subr.mxu0 0.0
      %884 = vmatpush1.msra.mxu0 %v432
      %885 = vmatprep.subr.mxu0 0.0
      %886 = vmatpush2.msra.mxu0 0.0
      %887 = vmatprep.subr.mxu0 0.0
      %888 = vmatpush2.msra.mxu0 0.0
      %889 = vmatprep.subr.mxu0 0.0
      %890 = vmatpush2.msra.mxu0 0.0
      %891 = vmatprep.subr.mxu0 0.0
      %892 = vmatpush2.msra.mxu0 0.0
      %893 = vmatprep.subr.mxu0 0.0
      %894 = vmatpush2.msra.mxu0 0.0
      %895 = vmatprep.subr.mxu0 0.0
      %896 = vmatpush2.msra.mxu0 0.0
      %897 = vmatprep.subr.mxu0 0.0
      %898 = vmatpush2.msra.mxu0 0.0
      %899 = vmatprep.subr.mxu0 0.0
      %900 = vmatpush2.msra.mxu0 %v851
      %901 = vmatprep.subr.mxu0 0.0
      %902 = vmatpush2.msra.mxu0 %v455
      %903 = vmatprep.subr.mxu0 0.0
      %904 = vmatpush2.msra.mxu0 %v454
      %905 = vmatprep.subr.mxu0 0.0
      %906 = vmatpush2.msra.mxu0 %v453
      %907 = vmatprep.subr.mxu0 0.0
      %908 = vmatpush2.msra.mxu0 %v452
      %909 = vmatprep.subr.mxu0 0.0
      %910 = vmatpush2.msra.mxu0 %v451
      %911 = vmatprep.subr.mxu0 0.0
      %912 = vmatpush2.msra.mxu0 %v450
      %913 = vmatprep.subr.mxu0 0.0
      %914 = vmatpush2.msra.mxu0 %v449
      %915 = vmatprep.subr.mxu0 0.0
      %916 = vmatpush2.msra.mxu0 %v448
      %917 = vmatprep.mubr.f32.mxu0 %v466
      %918 = vmatmul.mubr.f32.gmra.mxu0 %v176
      %v919 = vpop.f32.mrf.mxu0
      %v920 = vadd.f32 %v462, %v919
      %v921 = vpop.f32.mrf.mxu0
      %922 = vmatprep.mubr.f32.mxu0 %v469
      %923 = vmatmul.mubr.f32.gmra.mxu0 %v178
      %v924 = vpop.f32.mrf.mxu0
      %v925 = vadd.f32 %v462, %v924
      %v926 = vpop.f32.mrf.mxu0
      %927 = vmatprep.mubr.f32.mxu0 %v472
      %928 = vmatmul.mubr.f32.gmra.mxu0 %v180
      %v929 = vpop.f32.mrf.mxu0
      %v930 = vadd.f32 %v462, %v929
      %v931 = vpop.f32.mrf.mxu0
      %932 = vmatprep.mubr.f32.mxu0 %v475
      %933 = vmatmul.mubr.f32.gmra.mxu0 %v182
      %v934 = vpop.f32.mrf.mxu0
      %v935 = vadd.f32 %v462, %v934
      %v936 = vpop.f32.mrf.mxu0
      %937 = vmatprep.mubr.f32.mxu0 %v478
      %938 = vmatmul.mubr.f32.gmra.mxu0 %v184
      %v939 = vpop.f32.mrf.mxu0
      %v940 = vadd.f32 %v462, %v939
      %v941 = vpop.f32.mrf.mxu0
      %942 = vmatprep.mubr.f32.mxu0 %v481
      %943 = vmatmul.mubr.f32.gmra.mxu0 %v186
      %v944 = vpop.f32.mrf.mxu0
      %v945 = vadd.f32 %v462, %v944
      %v946 = vpop.f32.mrf.mxu0
      %947 = vmatprep.mubr.f32.mxu0 %v484
      %948 = vmatmul.mubr.f32.gmra.mxu0 %v188
      %v949 = vpop.f32.mrf.mxu0
      %v950 = vadd.f32 %v462, %v949
      %v951 = vpop.f32.mrf.mxu0
      %952 = vmatprep.mubr.f32.mxu0 %v487
      %953 = vmatmul.mubr.f32.gmra.mxu0 %v190
      %v954 = vpop.f32.mrf.mxu0
      %v955 = vadd.f32 %v462, %v954
      %v956 = vpop.f32.mrf.mxu0
      %957 = vmatprep.mubr.f32.mxu0 %v490
      %958 = vmatmul.mubr.f32.gmra.mxu0 %v192
      %v959 = vpop.f32.mrf.mxu0
      %v960 = vadd.f32 %v462, %v959
      %v961 = vpop.f32.mrf.mxu0
      %962 = vmatprep.mubr.f32.mxu0 %v493
      %963 = vmatmul.mubr.f32.gmra.mxu0 %v194
      %v964 = vpop.f32.mrf.mxu0
      %v965 = vadd.f32 %v462, %v964
      %v966 = vpop.f32.mrf.mxu0
      %967 = vmatprep.mubr.f32.mxu0 %v496
      %968 = vmatmul.mubr.f32.gmra.mxu0 %v196
      %v969 = vpop.f32.mrf.mxu0
      %v970 = vadd.f32 %v462, %v969
      %v971 = vpop.f32.mrf.mxu0
      %972 = vmatprep.mubr.f32.mxu0 %v499
      %973 = vmatmul.mubr.f32.gmra.mxu0 %v198
      %v974 = vpop.f32.mrf.mxu0
      %v975 = vadd.f32 %v462, %v974
      %v976 = vpop.f32.mrf.mxu0
      %977 = vmatprep.mubr.f32.mxu0 %v502
      %978 = vmatmul.mubr.f32.gmra.mxu0 %v200
      %v979 = vpop.f32.mrf.mxu0
      %v980 = vadd.f32 %v462, %v979
      %v981 = vpop.f32.mrf.mxu0
      %982 = vmatprep.mubr.f32.mxu0 %v505
      %983 = vmatmul.mubr.f32.gmra.mxu0 %v202
      %v984 = vpop.f32.mrf.mxu0
      %v985 = vadd.f32 %v462, %v984
      %v986 = vpop.f32.mrf.mxu0
      %987 = vmatprep.mubr.f32.mxu0 %v508
      %988 = vmatmul.mubr.f32.gmra.mxu0 %v204
      %v989 = vpop.f32.mrf.mxu0
      %v990 = vadd.f32 %v462, %v989
      %v991 = vpop.f32.mrf.mxu0
      %992 = vmatprep.mubr.f32.mxu0 %v511
      %993 = vmatmul.mubr.f32.gmra.mxu0 %v206
      %v994 = vpop.f32.mrf.mxu0
      %v995 = vadd.f32 %v462, %v994
      %v996 = vpop.f32.mrf.mxu0
      %997 = vmatprep.mubr.f32.mxu0 %v514
      %998 = vmatmul.mubr.f32.gmra.mxu0 %v208
      %v999 = vpop.f32.mrf.mxu0
      %v1000 = vadd.f32 %v462, %v999
      %v1001 = vpop.f32.mrf.mxu0
      %1002 = vmatprep.mubr.f32.mxu0 %v517
      %1003 = vmatmul.mubr.f32.gmra.mxu0 %v210
      %v1004 = vpop.f32.mrf.mxu0
      %v1005 = vadd.f32 %v462, %v1004
      %v1006 = vpop.f32.mrf.mxu0
      %1007 = vmatprep.mubr.f32.mxu0 %v520
      %1008 = vmatmul.mubr.f32.gmra.mxu0 %v212
      %v1009 = vpop.f32.mrf.mxu0
      %v1010 = vadd.f32 %v462, %v1009
      %v1011 = vpop.f32.mrf.mxu0
      %1012 = vmatprep.mubr.f32.mxu0 %v523
      %1013 = vmatmul.mubr.f32.gmra.mxu0 %v214
      %v1014 = vpop.f32.mrf.mxu0
      %v1015 = vadd.f32 %v462, %v1014
      %v1016 = vpop.f32.mrf.mxu0
      %1017 = vmatprep.mubr.f32.mxu0 %v526
      %1018 = vmatmul.mubr.f32.gmra.mxu0 %v216
      %v1019 = vpop.f32.mrf.mxu0
      %v1020 = vadd.f32 %v462, %v1019
      %v1021 = vpop.f32.mrf.mxu0
      %1022 = vmatprep.mubr.f32.mxu0 %v529
      %1023 = vmatmul.mubr.f32.gmra.mxu0 %v218
      %v1024 = vpop.f32.mrf.mxu0
      %v1025 = vadd.f32 %v462, %v1024
      %v1026 = vpop.f32.mrf.mxu0
      %1027 = vmatprep.mubr.f32.mxu0 %v532
      %1028 = vmatmul.mubr.f32.gmra.mxu0 %v220
      %v1029 = vpop.f32.mrf.mxu0
      %v1030 = vadd.f32 %v462, %v1029
      %v1031 = vpop.f32.mrf.mxu0
      %1032 = vmatprep.mubr.f32.mxu0 %v535
      %1033 = vmatmul.mubr.f32.gmra.mxu0 %v222
      %v1034 = vpop.f32.mrf.mxu0
      %v1035 = vadd.f32 %v462, %v1034
      %v1036 = vpop.f32.mrf.mxu0
      %1037 = vmatprep.mubr.f32.mxu0 %v538
      %1038 = vmatmul.mubr.f32.gmra.mxu0 %v224
      %v1039 = vpop.f32.mrf.mxu0
      %v1040 = vadd.f32 %v462, %v1039
      %v1041 = vpop.f32.mrf.mxu0
      %1042 = vmatprep.mubr.f32.mxu0 %v541
      %1043 = vmatmul.mubr.f32.gmra.mxu0 %v226
      %v1044 = vpop.f32.mrf.mxu0
      %v1045 = vadd.f32 %v462, %v1044
      %v1046 = vpop.f32.mrf.mxu0
      %1047 = vmatprep.mubr.f32.mxu0 %v544
      %1048 = vmatmul.mubr.f32.gmra.mxu0 %v228
      %v1049 = vpop.f32.mrf.mxu0
      %v1050 = vadd.f32 %v462, %v1049
      %v1051 = vpop.f32.mrf.mxu0
      %1052 = vmatprep.mubr.f32.mxu0 %v547
      %1053 = vmatmul.mubr.f32.gmra.mxu0 %v230
      %v1054 = vpop.f32.mrf.mxu0
      %v1055 = vadd.f32 %v462, %v1054
      %v1056 = vpop.f32.mrf.mxu0
      %1057 = vmatprep.mubr.f32.mxu0 %v550
      %1058 = vmatmul.mubr.f32.gmra.mxu0 %v232
      %v1059 = vpop.f32.mrf.mxu0
      %v1060 = vadd.f32 %v462, %v1059
      %v1061 = vpop.f32.mrf.mxu0
      %1062 = vmatprep.mubr.f32.mxu0 %v553
      %1063 = vmatmul.mubr.f32.gmra.mxu0 %v234
      %v1064 = vpop.f32.mrf.mxu0
      %v1065 = vadd.f32 %v462, %v1064
      %v1066 = vpop.f32.mrf.mxu0
      %1067 = vmatprep.mubr.f32.mxu0 %v556
      %1068 = vmatmul.mubr.f32.gmra.mxu0 %v236
      %v1069 = vpop.f32.mrf.mxu0
      %v1070 = vadd.f32 %v462, %v1069
      %v1071 = vpop.f32.mrf.mxu0
      %1072 = vmatprep.mubr.f32.mxu0 %v559
      %1073 = vmatmul.mubr.f32.gmra.mxu0 %v238
      %v1074 = vpop.f32.mrf.mxu0
      %v1075 = vadd.f32 %v462, %v1074
      %v1076 = vpop.f32.mrf.mxu0
      %1077 = vmatprep.mubr.f32.mxu0 %v562
      %1078 = vmatmul.mubr.f32.gmra.mxu0 %v240
      %v1079 = vpop.f32.mrf.mxu0
      %v1080 = vadd.f32 %v462, %v1079
      %v1081 = vpop.f32.mrf.mxu0
      %1082 = vmatprep.mubr.f32.mxu0 %v565
      %1083 = vmatmul.mubr.f32.gmra.mxu0 %v242
      %v1084 = vpop.f32.mrf.mxu0
      %v1085 = vadd.f32 %v462, %v1084
      %v1086 = vpop.f32.mrf.mxu0
      %1087 = vmatprep.mubr.f32.mxu0 %v568
      %1088 = vmatmul.mubr.f32.gmra.mxu0 %v244
      %v1089 = vpop.f32.mrf.mxu0
      %v1090 = vadd.f32 %v462, %v1089
      %v1091 = vpop.f32.mrf.mxu0
      %1092 = vmatprep.mubr.f32.mxu0 %v571
      %1093 = vmatmul.mubr.f32.gmra.mxu0 %v246
      %v1094 = vpop.f32.mrf.mxu0
      %v1095 = vadd.f32 %v462, %v1094
      %v1096 = vpop.f32.mrf.mxu0
      %1097 = vmatprep.mubr.f32.mxu0 %v574
      %1098 = vmatmul.mubr.f32.gmra.mxu0 %v248
      %v1099 = vpop.f32.mrf.mxu0
      %v1100 = vadd.f32 %v462, %v1099
      %v1101 = vpop.f32.mrf.mxu0
      %1102 = vmatprep.mubr.f32.mxu0 %v577
      %1103 = vmatmul.mubr.f32.gmra.mxu0 %v250
      %v1104 = vpop.f32.mrf.mxu0
      %v1105 = vadd.f32 %v462, %v1104
      %v1106 = vpop.f32.mrf.mxu0
      %1107 = vmatprep.mubr.f32.mxu0 %v580
      %1108 = vmatmul.mubr.f32.gmra.mxu0 %v252
      %v1109 = vpop.f32.mrf.mxu0
      %v1110 = vadd.f32 %v462, %v1109
      %v1111 = vpop.f32.mrf.mxu0
      %1112 = vmatprep.mubr.f32.mxu0 %v583
      %1113 = vmatmul.mubr.f32.gmra.mxu0 %v254
      %v1114 = vpop.f32.mrf.mxu0
      %v1115 = vadd.f32 %v462, %v1114
      %v1116 = vpop.f32.mrf.mxu0
      %1117 = vmatprep.mubr.f32.mxu0 %v586
      %1118 = vmatmul.mubr.f32.gmra.mxu0 %v256
      %v1119 = vpop.f32.mrf.mxu0
      %v1120 = vadd.f32 %v462, %v1119
      %v1121 = vpop.f32.mrf.mxu0
      %1122 = vmatprep.mubr.f32.mxu0 %v589
      %1123 = vmatmul.mubr.f32.gmra.mxu0 %v258
      %v1124 = vpop.f32.mrf.mxu0
      %v1125 = vadd.f32 %v462, %v1124
      %v1126 = vpop.f32.mrf.mxu0
      %1127 = vmatprep.mubr.f32.mxu0 %v592
      %1128 = vmatmul.mubr.f32.gmra.mxu0 %v260
      %v1129 = vpop.f32.mrf.mxu0
      %v1130 = vadd.f32 %v462, %v1129
      %v1131 = vpop.f32.mrf.mxu0
      %1132 = vmatprep.mubr.f32.mxu0 %v595
      %1133 = vmatmul.mubr.f32.gmra.mxu0 %v262
      %v1134 = vpop.f32.mrf.mxu0
      %v1135 = vadd.f32 %v462, %v1134
      %v1136 = vpop.f32.mrf.mxu0
      %1137 = vmatprep.mubr.f32.mxu0 %v598
      %1138 = vmatmul.mubr.f32.gmra.mxu0 %v264
      %v1139 = vpop.f32.mrf.mxu0
      %v1140 = vadd.f32 %v462, %v1139
      %v1141 = vpop.f32.mrf.mxu0
      %1142 = vmatprep.mubr.f32.mxu0 %v601
      %1143 = vmatmul.mubr.f32.gmra.mxu0 %v266
      %v1144 = vpop.f32.mrf.mxu0
      %v1145 = vadd.f32 %v462, %v1144
      %v1146 = vpop.f32.mrf.mxu0
      %1147 = vmatprep.mubr.f32.mxu0 %v604
      %1148 = vmatmul.mubr.f32.gmra.mxu0 %v268
      %v1149 = vpop.f32.mrf.mxu0
      %v1150 = vadd.f32 %v462, %v1149
      %v1151 = vpop.f32.mrf.mxu0
      %1152 = vmatprep.mubr.f32.mxu0 %v607
      %1153 = vmatmul.mubr.f32.gmra.mxu0 %v270
      %v1154 = vpop.f32.mrf.mxu0
      %v1155 = vadd.f32 %v462, %v1154
      %v1156 = vpop.f32.mrf.mxu0
      %1157 = vmatprep.mubr.f32.mxu0 %v610
      %1158 = vmatmul.mubr.f32.gmra.mxu0 %v272
      %v1159 = vpop.f32.mrf.mxu0
      %v1160 = vadd.f32 %v462, %v1159
      %v1161 = vpop.f32.mrf.mxu0
      %1162 = vmatprep.mubr.f32.mxu0 %v613
      %1163 = vmatmul.mubr.f32.gmra.mxu0 %v274
      %v1164 = vpop.f32.mrf.mxu0
      %v1165 = vadd.f32 %v462, %v1164
      %v1166 = vpop.f32.mrf.mxu0
      %1167 = vmatprep.mubr.f32.mxu0 %v616
      %1168 = vmatmul.mubr.f32.gmra.mxu0 %v276
      %v1169 = vpop.f32.mrf.mxu0
      %v1170 = vadd.f32 %v462, %v1169
      %v1171 = vpop.f32.mrf.mxu0
      %1172 = vmatprep.mubr.f32.mxu0 %v619
      %1173 = vmatmul.mubr.f32.gmra.mxu0 %v278
      %v1174 = vpop.f32.mrf.mxu0
      %v1175 = vadd.f32 %v462, %v1174
      %v1176 = vpop.f32.mrf.mxu0
      %1177 = vmatprep.mubr.f32.mxu0 %v622
      %1178 = vmatmul.mubr.f32.gmra.mxu0 %v280
      %v1179 = vpop.f32.mrf.mxu0
      %v1180 = vadd.f32 %v462, %v1179
      %v1181 = vpop.f32.mrf.mxu0
      %1182 = vmatprep.mubr.f32.mxu0 %v625
      %1183 = vmatmul.mubr.f32.gmra.mxu0 %v282
      %v1184 = vpop.f32.mrf.mxu0
      %v1185 = vadd.f32 %v462, %v1184
      %v1186 = vpop.f32.mrf.mxu0
      %1187 = vmatprep.mubr.f32.mxu0 %v628
      %1188 = vmatmul.mubr.f32.gmra.mxu0 %v284
      %v1189 = vpop.f32.mrf.mxu0
      %v1190 = vadd.f32 %v462, %v1189
      %v1191 = vpop.f32.mrf.mxu0
      %1192 = vmatprep.mubr.f32.mxu0 %v631
      %1193 = vmatmul.mubr.f32.gmra.mxu0 %v286
      %v1194 = vpop.f32.mrf.mxu0
      %v1195 = vadd.f32 %v462, %v1194
      %v1196 = vpop.f32.mrf.mxu0
      %1197 = vmatprep.mubr.f32.mxu0 %v634
      %1198 = vmatmul.mubr.f32.gmra.mxu0 %v288
      %v1199 = vpop.f32.mrf.mxu0
      %v1200 = vadd.f32 %v462, %v1199
      %v1201 = vpop.f32.mrf.mxu0
      %1202 = vmatprep.mubr.f32.mxu0 %v637
      %1203 = vmatmul.mubr.f32.gmra.mxu0 %v290
      %v1204 = vpop.f32.mrf.mxu0
      %v1205 = vadd.f32 %v462, %v1204
      %v1206 = vpop.f32.mrf.mxu0
      %1207 = vmatprep.mubr.f32.mxu0 %v640
      %1208 = vmatmul.mubr.f32.gmra.mxu0 %v292
      %v1209 = vpop.f32.mrf.mxu0
      %v1210 = vadd.f32 %v462, %v1209
      %v1211 = vpop.f32.mrf.mxu0
      %1212 = vmatprep.mubr.f32.mxu0 %v643
      %1213 = vmatmul.mubr.f32.gmra.mxu0 %v294
      %v1214 = vpop.f32.mrf.mxu0
      %v1215 = vadd.f32 %v462, %v1214
      %v1216 = vpop.f32.mrf.mxu0
      %1217 = vmatprep.mubr.f32.mxu0 %v646
      %1218 = vmatmul.mubr.f32.gmra.mxu0 %v296
      %v1219 = vpop.f32.mrf.mxu0
      %v1220 = vadd.f32 %v462, %v1219
      %v1221 = vpop.f32.mrf.mxu0
      %1222 = vmatprep.mubr.f32.mxu0 %v649
      %1223 = vmatmul.mubr.f32.gmra.mxu0 %v298
      %v1224 = vpop.f32.mrf.mxu0
      %v1225 = vadd.f32 %v462, %v1224
      %v1226 = vpop.f32.mrf.mxu0
      %1227 = vmatprep.mubr.f32.mxu0 %v652
      %1228 = vmatmul.mubr.f32.gmra.mxu0 %v300
      %v1229 = vpop.f32.mrf.mxu0
      %v1230 = vadd.f32 %v462, %v1229
      %v1231 = vpop.f32.mrf.mxu0
      %1232 = vmatprep.mubr.f32.mxu0 %v655
      %1233 = vmatmul.mubr.f32.gmra.mxu0 %v302
      %v1234 = vpop.f32.mrf.mxu0
      %v1235 = vadd.f32 %v462, %v1234
      %v1236 = vpop.f32.mrf.mxu0
      %1237 = vmatprep.mubr.f32.mxu0 %v658
      %1238 = vmatmul.mubr.f32.gmra.mxu0 %v304
      %v1239 = vpop.f32.mrf.mxu0
      %v1240 = vadd.f32 %v462, %v1239
      %v1241 = vpop.f32.mrf.mxu0
      %1242 = vmatprep.mubr.f32.mxu0 %v661
      %1243 = vmatmul.mubr.f32.gmra.mxu0 %v306
      %v1244 = vpop.f32.mrf.mxu0
      %v1245 = vadd.f32 %v462, %v1244
      %v1246 = vpop.f32.mrf.mxu0
      %1247 = vmatprep.mubr.f32.mxu0 %v664
      %1248 = vmatmul.mubr.f32.gmra.mxu0 %v308
      %v1249 = vpop.f32.mrf.mxu0
      %v1250 = vadd.f32 %v462, %v1249
      %v1251 = vpop.f32.mrf.mxu0
      %1252 = vmatprep.mubr.f32.mxu0 %v667
      %1253 = vmatmul.mubr.f32.gmra.mxu0 %v310
      %v1254 = vpop.f32.mrf.mxu0
      %v1255 = vadd.f32 %v462, %v1254
      %v1256 = vpop.f32.mrf.mxu0
      %1257 = vmatprep.mubr.f32.mxu0 %v670
      %1258 = vmatmul.mubr.f32.gmra.mxu0 %v312
      %v1259 = vpop.f32.mrf.mxu0
      %v1260 = vadd.f32 %v462, %v1259
      %v1261 = vpop.f32.mrf.mxu0
      %1262 = vmatprep.mubr.f32.mxu0 %v673
      %1263 = vmatmul.mubr.f32.gmra.mxu0 %v314
      %v1264 = vpop.f32.mrf.mxu0
      %v1265 = vadd.f32 %v462, %v1264
      %v1266 = vpop.f32.mrf.mxu0
      %1267 = vmatprep.mubr.f32.mxu0 %v676
      %1268 = vmatmul.mubr.f32.gmra.mxu0 %v316
      %v1269 = vpop.f32.mrf.mxu0
      %v1270 = vadd.f32 %v462, %v1269
      %v1271 = vpop.f32.mrf.mxu0
      %1272 = vmatprep.mubr.f32.mxu0 %v679
      %1273 = vmatmul.mubr.f32.gmra.mxu0 %v318
      %v1274 = vpop.f32.mrf.mxu0
      %v1275 = vadd.f32 %v462, %v1274
      %v1276 = vpop.f32.mrf.mxu0
      %1277 = vmatprep.mubr.f32.mxu0 %v682
      %1278 = vmatmul.mubr.f32.gmra.mxu0 %v320
      %v1279 = vpop.f32.mrf.mxu0
      %v1280 = vadd.f32 %v462, %v1279
      %v1281 = vpop.f32.mrf.mxu0
      %1282 = vmatprep.mubr.f32.mxu0 %v685
      %1283 = vmatmul.mubr.f32.gmra.mxu0 %v322
      %v1284 = vpop.f32.mrf.mxu0
      %v1285 = vadd.f32 %v462, %v1284
      %v1286 = vpop.f32.mrf.mxu0
      %1287 = vmatprep.mubr.f32.mxu0 %v688
      %1288 = vmatmul.mubr.f32.gmra.mxu0 %v324
      %v1289 = vpop.f32.mrf.mxu0
      %v1290 = vadd.f32 %v462, %v1289
      %v1291 = vpop.f32.mrf.mxu0
      %1292 = vmatprep.mubr.f32.mxu0 %v691
      %1293 = vmatmul.mubr.f32.gmra.mxu0 %v326
      %v1294 = vpop.f32.mrf.mxu0
      %v1295 = vadd.f32 %v462, %v1294
      %v1296 = vpop.f32.mrf.mxu0
      %1297 = vmatprep.mubr.f32.mxu0 %v694
      %1298 = vmatmul.mubr.f32.gmra.mxu0 %v328
      %v1299 = vpop.f32.mrf.mxu0
      %v1300 = vadd.f32 %v462, %v1299
      %v1301 = vpop.f32.mrf.mxu0
      %1302 = vmatprep.mubr.f32.mxu0 %v697
      %1303 = vmatmul.mubr.f32.gmra.mxu0 %v330
      %v1304 = vpop.f32.mrf.mxu0
      %v1305 = vadd.f32 %v462, %v1304
      %v1306 = vpop.f32.mrf.mxu0
      %1307 = vmatprep.mubr.f32.mxu0 %v700
      %1308 = vmatmul.mubr.f32.gmra.mxu0 %v332
      %v1309 = vpop.f32.mrf.mxu0
      %v1310 = vadd.f32 %v462, %v1309
      %v1311 = vpop.f32.mrf.mxu0
      %1312 = vmatprep.mubr.f32.mxu0 %v703
      %1313 = vmatmul.mubr.f32.gmra.mxu0 %v334
      %v1314 = vpop.f32.mrf.mxu0
      %v1315 = vadd.f32 %v462, %v1314
      %v1316 = vpop.f32.mrf.mxu0
      %1317 = vmatprep.mubr.f32.mxu0 %v706
      %1318 = vmatmul.mubr.f32.gmra.mxu0 %v336
      %v1319 = vpop.f32.mrf.mxu0
      %v1320 = vadd.f32 %v462, %v1319
      %v1321 = vpop.f32.mrf.mxu0
      %1322 = vmatprep.mubr.f32.mxu0 %v709
      %1323 = vmatmul.mubr.f32.gmra.mxu0 %v338
      %v1324 = vpop.f32.mrf.mxu0
      %v1325 = vadd.f32 %v462, %v1324
      %v1326 = vpop.f32.mrf.mxu0
      %1327 = vmatprep.mubr.f32.mxu0 %v712
      %1328 = vmatmul.mubr.f32.gmra.mxu0 %v340
      %v1329 = vpop.f32.mrf.mxu0
      %v1330 = vadd.f32 %v462, %v1329
      %v1331 = vpop.f32.mrf.mxu0
      %1332 = vmatprep.mubr.f32.mxu0 %v715
      %1333 = vmatmul.mubr.f32.gmra.mxu0 %v342
      %v1334 = vpop.f32.mrf.mxu0
      %v1335 = vadd.f32 %v462, %v1334
      %v1336 = vpop.f32.mrf.mxu0
      %1337 = vmatprep.mubr.f32.mxu0 %v718
      %1338 = vmatmul.mubr.f32.gmra.mxu0 %v344
      %v1339 = vpop.f32.mrf.mxu0
      %v1340 = vadd.f32 %v462, %v1339
      %v1341 = vpop.f32.mrf.mxu0
      %1342 = vmatprep.mubr.f32.mxu0 %v721
      %1343 = vmatmul.mubr.f32.gmra.mxu0 %v346
      %v1344 = vpop.f32.mrf.mxu0
      %v1345 = vadd.f32 %v462, %v1344
      %v1346 = vpop.f32.mrf.mxu0
      %1347 = vmatprep.mubr.f32.mxu0 %v724
      %1348 = vmatmul.mubr.f32.gmra.mxu0 %v348
      %v1349 = vpop.f32.mrf.mxu0
      %v1350 = vadd.f32 %v462, %v1349
      %v1351 = vpop.f32.mrf.mxu0
      %1352 = vmatprep.mubr.f32.mxu0 %v727
      %1353 = vmatmul.mubr.f32.gmra.mxu0 %v350
      %v1354 = vpop.f32.mrf.mxu0
      %v1355 = vadd.f32 %v462, %v1354
      %v1356 = vpop.f32.mrf.mxu0
      %1357 = vmatprep.mubr.f32.mxu0 %v730
      %1358 = vmatmul.mubr.f32.gmra.mxu0 %v352
      %v1359 = vpop.f32.mrf.mxu0
      %v1360 = vadd.f32 %v462, %v1359
      %v1361 = vpop.f32.mrf.mxu0
      %1362 = vmatprep.mubr.f32.mxu0 %v733
      %1363 = vmatmul.mubr.f32.gmra.mxu0 %v354
      %v1364 = vpop.f32.mrf.mxu0
      %v1365 = vadd.f32 %v462, %v1364
      %v1366 = vpop.f32.mrf.mxu0
      %1367 = vmatprep.mubr.f32.mxu0 %v736
      %1368 = vmatmul.mubr.f32.gmra.mxu0 %v356
      %v1369 = vpop.f32.mrf.mxu0
      %v1370 = vadd.f32 %v462, %v1369
      %v1371 = vpop.f32.mrf.mxu0
      %1372 = vmatprep.mubr.f32.mxu0 %v739
      %1373 = vmatmul.mubr.f32.gmra.mxu0 %v358
      %v1374 = vpop.f32.mrf.mxu0
      %v1375 = vadd.f32 %v462, %v1374
      %v1376 = vpop.f32.mrf.mxu0
      %1377 = vmatprep.mubr.f32.mxu0 %v742
      %1378 = vmatmul.mubr.f32.gmra.mxu0 %v360
      %v1379 = vpop.f32.mrf.mxu0
      %v1380 = vadd.f32 %v462, %v1379
      %v1381 = vpop.f32.mrf.mxu0
      %1382 = vmatprep.mubr.f32.mxu0 %v745
      %1383 = vmatmul.mubr.f32.gmra.mxu0 %v362
      %v1384 = vpop.f32.mrf.mxu0
      %v1385 = vadd.f32 %v462, %v1384
      %v1386 = vpop.f32.mrf.mxu0
      %1387 = vmatprep.mubr.f32.mxu0 %v748
      %1388 = vmatmul.mubr.f32.gmra.mxu0 %v364
      %v1389 = vpop.f32.mrf.mxu0
      %v1390 = vadd.f32 %v462, %v1389
      %v1391 = vpop.f32.mrf.mxu0
      %1392 = vmatprep.mubr.f32.mxu0 %v751
      %1393 = vmatmul.mubr.f32.gmra.mxu0 %v366
      %v1394 = vpop.f32.mrf.mxu0
      %v1395 = vadd.f32 %v462, %v1394
      %v1396 = vpop.f32.mrf.mxu0
      %1397 = vmatprep.mubr.f32.mxu0 %v754
      %1398 = vmatmul.mubr.f32.gmra.mxu0 %v368
      %v1399 = vpop.f32.mrf.mxu0
      %v1400 = vadd.f32 %v462, %v1399
      %v1401 = vpop.f32.mrf.mxu0
      %1402 = vmatprep.mubr.f32.mxu0 %v757
      %1403 = vmatmul.mubr.f32.gmra.mxu0 %v370
      %v1404 = vpop.f32.mrf.mxu0
      %v1405 = vadd.f32 %v462, %v1404
      %v1406 = vpop.f32.mrf.mxu0
      %1407 = vmatprep.mubr.f32.mxu0 %v760
      %1408 = vmatmul.mubr.f32.gmra.mxu0 %v372
      %v1409 = vpop.f32.mrf.mxu0
      %v1410 = vadd.f32 %v462, %v1409
      %v1411 = vpop.f32.mrf.mxu0
      %1412 = vmatprep.mubr.f32.mxu0 %v763
      %1413 = vmatmul.mubr.f32.gmra.mxu0 %v374
      %v1414 = vpop.f32.mrf.mxu0
      %v1415 = vadd.f32 %v462, %v1414
      %v1416 = vpop.f32.mrf.mxu0
      %1417 = vmatprep.mubr.f32.mxu0 %v766
      %1418 = vmatmul.mubr.f32.gmra.mxu0 %v376
      %v1419 = vpop.f32.mrf.mxu0
      %v1420 = vadd.f32 %v462, %v1419
      %v1421 = vpop.f32.mrf.mxu0
      %1422 = vmatprep.mubr.f32.mxu0 %v769
      %1423 = vmatmul.mubr.f32.gmra.mxu0 %v378
      %v1424 = vpop.f32.mrf.mxu0
      %v1425 = vadd.f32 %v462, %v1424
      %v1426 = vpop.f32.mrf.mxu0
      %1427 = vmatprep.mubr.f32.mxu0 %v772
      %1428 = vmatmul.mubr.f32.gmra.mxu0 %v380
      %v1429 = vpop.f32.mrf.mxu0
      %v1430 = vadd.f32 %v462, %v1429
      %v1431 = vpop.f32.mrf.mxu0
      %1432 = vmatprep.mubr.f32.mxu0 %v775
      %1433 = vmatmul.mubr.f32.gmra.mxu0 %v382
      %v1434 = vpop.f32.mrf.mxu0
      %v1435 = vadd.f32 %v462, %v1434
      %v1436 = vpop.f32.mrf.mxu0
      %1437 = vmatprep.mubr.f32.mxu0 %v778
      %1438 = vmatmul.mubr.f32.gmra.mxu0 %v384
      %v1439 = vpop.f32.mrf.mxu0
      %v1440 = vadd.f32 %v462, %v1439
      %v1441 = vpop.f32.mrf.mxu0
      %1442 = vmatprep.mubr.f32.mxu0 %v781
      %1443 = vmatmul.mubr.f32.gmra.mxu0 %v386
      %v1444 = vpop.f32.mrf.mxu0
      %v1445 = vadd.f32 %v462, %v1444
      %v1446 = vpop.f32.mrf.mxu0
      %1447 = vmatprep.mubr.f32.mxu0 %v784
      %1448 = vmatmul.mubr.f32.gmra.mxu0 %v388
      %v1449 = vpop.f32.mrf.mxu0
      %v1450 = vadd.f32 %v462, %v1449
      %v1451 = vpop.f32.mrf.mxu0
      %1452 = vmatprep.mubr.f32.mxu0 %v787
      %1453 = vmatmul.mubr.f32.gmra.mxu0 %v390
      %v1454 = vpop.f32.mrf.mxu0
      %v1455 = vadd.f32 %v462, %v1454
      %v1456 = vpop.f32.mrf.mxu0
      %1457 = vmatprep.mubr.f32.mxu0 %v790
      %1458 = vmatmul.mubr.f32.gmra.mxu0 %v392
      %v1459 = vpop.f32.mrf.mxu0
      %v1460 = vadd.f32 %v462, %v1459
      %v1461 = vpop.f32.mrf.mxu0
      %1462 = vmatprep.mubr.f32.mxu0 %v793
      %1463 = vmatmul.mubr.f32.gmra.mxu0 %v394
      %v1464 = vpop.f32.mrf.mxu0
      %v1465 = vadd.f32 %v462, %v1464
      %v1466 = vpop.f32.mrf.mxu0
      %1467 = vmatprep.mubr.f32.mxu0 %v796
      %1468 = vmatmul.mubr.f32.gmra.mxu0 %v396
      %v1469 = vpop.f32.mrf.mxu0
      %v1470 = vadd.f32 %v462, %v1469
      %v1471 = vpop.f32.mrf.mxu0
      %1472 = vmatprep.mubr.f32.mxu0 %v799
      %1473 = vmatmul.mubr.f32.gmra.mxu0 %v398
      %v1474 = vpop.f32.mrf.mxu0
      %v1475 = vadd.f32 %v462, %v1474
      %v1476 = vpop.f32.mrf.mxu0
      %1477 = vmatprep.mubr.f32.mxu0 %v802
      %1478 = vmatmul.mubr.f32.gmra.mxu0 %v400
      %v1479 = vpop.f32.mrf.mxu0
      %v1480 = vadd.f32 %v462, %v1479
      %v1481 = vpop.f32.mrf.mxu0
      %1482 = vmatprep.mubr.f32.mxu0 %v805
      %1483 = vmatmul.mubr.f32.gmra.mxu0 %v402
      %v1484 = vpop.f32.mrf.mxu0
      %v1485 = vadd.f32 %v462, %v1484
      %v1486 = vpop.f32.mrf.mxu0
      %1487 = vmatprep.mubr.f32.mxu0 %v808
      %1488 = vmatmul.mubr.f32.gmra.mxu0 %v404
      %v1489 = vpop.f32.mrf.mxu0
      %v1490 = vadd.f32 %v462, %v1489
      %v1491 = vpop.f32.mrf.mxu0
      %1492 = vmatprep.mubr.f32.mxu0 %v811
      %1493 = vmatmul.mubr.f32.gmra.mxu0 %v406
      %v1494 = vpop.f32.mrf.mxu0
      %v1495 = vadd.f32 %v462, %v1494
      %v1496 = vpop.f32.mrf.mxu0
      %1497 = vmatprep.mubr.f32.mxu0 %v814
      %1498 = vmatmul.mubr.f32.gmra.mxu0 %v408
      %v1499 = vpop.f32.mrf.mxu0
      %v1500 = vadd.f32 %v462, %v1499
      %v1501 = vpop.f32.mrf.mxu0
      %1502 = vmatprep.mubr.f32.mxu0 %v817
      %1503 = vmatmul.mubr.f32.gmra.mxu0 %v410
      %v1504 = vpop.f32.mrf.mxu0
      %v1505 = vadd.f32 %v462, %v1504
      %v1506 = vpop.f32.mrf.mxu0
      %1507 = vmatprep.mubr.f32.mxu0 %v820
      %1508 = vmatmul.mubr.f32.gmra.mxu0 %v412
      %v1509 = vpop.f32.mrf.mxu0
      %v1510 = vadd.f32 %v462, %v1509
      %v1511 = vpop.f32.mrf.mxu0
      %1512 = vmatprep.mubr.f32.mxu0 %v823
      %1513 = vmatmul.mubr.f32.gmra.mxu0 %v414
      %v1514 = vpop.f32.mrf.mxu0
      %v1515 = vadd.f32 %v462, %v1514
      %v1516 = vpop.f32.mrf.mxu0
      %1517 = vmatprep.mubr.f32.mxu0 %v826
      %1518 = vmatmul.mubr.f32.gmra.mxu0 %v416
      %v1519 = vpop.f32.mrf.mxu0
      %v1520 = vadd.f32 %v462, %v1519
      %v1521 = vpop.f32.mrf.mxu0
      %1522 = vmatprep.mubr.f32.mxu0 %v829
      %1523 = vmatmul.mubr.f32.gmra.mxu0 %v418
      %v1524 = vpop.f32.mrf.mxu0
      %v1525 = vadd.f32 %v462, %v1524
      %v1526 = vpop.f32.mrf.mxu0
      %1527 = vmatprep.mubr.f32.mxu0 %v832
      %1528 = vmatmul.mubr.f32.gmra.mxu0 %v420
      %v1529 = vpop.f32.mrf.mxu0
      %v1530 = vadd.f32 %v462, %v1529
      %v1531 = vpop.f32.mrf.mxu0
      %1532 = vmatprep.mubr.f32.mxu0 %v835
      %1533 = vmatmul.mubr.f32.gmra.mxu0 %v422
      %v1534 = vpop.f32.mrf.mxu0
      %v1535 = vadd.f32 %v462, %v1534
      %v1536 = vpop.f32.mrf.mxu0
      %1537 = vmatprep.mubr.f32.mxu0 %v838
      %1538 = vmatmul.mubr.f32.gmra.mxu0 %v424
      %v1539 = vpop.f32.mrf.mxu0
      %v1540 = vadd.f32 %v462, %v1539
      %v1541 = vpop.f32.mrf.mxu0
      %1542 = vmatprep.mubr.f32.mxu0 %v841
      %1543 = vmatmul.mubr.f32.gmra.mxu0 %v426
      %v1544 = vpop.f32.mrf.mxu0
      %v1545 = vadd.f32 %v462, %v1544
      %v1546 = vpop.f32.mrf.mxu0
      %1547 = vmatprep.mubr.f32.mxu0 %v844
      %1548 = vmatmul.mubr.f32.gmra.mxu0 %v428
      %v1549 = vpop.f32.mrf.mxu0
      %v1550 = vadd.f32 %v462, %v1549
      %v1551 = vpop.f32.mrf.mxu0
      %1552 = vmatprep.mubr.f32.mxu0 %v847
      %1553 = vmatmul.mubr.f32.gmra.mxu0 %v430
      %v1554 = vpop.f32.mrf.mxu0
      %v1555 = vadd.f32 %v462, %v1554
      %v1556 = vpop.f32.mrf.mxu0
      %1557 = vdwg.mxu0
      %v1558 = vmul.f32 %v920, 0.5
      %v1559 = vmul.f32 %v925, 0.5
      %v1560 = vmul.f32 %v930, 0.5
      %v1561 = vmul.f32 %v935, 0.5
      %v1562 = vmul.f32 %v940, 0.5
      %v1563 = vmul.f32 %v945, 0.5
      %v1564 = vmul.f32 %v950, 0.5
      %v1565 = vmul.f32 %v955, 0.5
      %v1566 = vmul.f32 %v960, 0.5
      %v1567 = vmul.f32 %v965, 0.5
      %v1568 = vmul.f32 %v970, 0.5
      %v1569 = vmul.f32 %v975, 0.5
      %v1570 = vmul.f32 %v980, 0.5
      %v1571 = vmul.f32 %v985, 0.5
      %v1572 = vmul.f32 %v990, 0.5
      %v1573 = vmul.f32 %v995, 0.5
      %v1574 = vmul.f32 %v1000, 0.5
      %v1575 = vmul.f32 %v1005, 0.5
      %v1576 = vmul.f32 %v1010, 0.5
      %v1577 = vmul.f32 %v1015, 0.5
      %v1578 = vmul.f32 %v1020, 0.5
      %v1579 = vmul.f32 %v1025, 0.5
      %v1580 = vmul.f32 %v1030, 0.5
      %v1581 = vmul.f32 %v1035, 0.5
      %v1582 = vmul.f32 %v1040, 0.5
      %v1583 = vmul.f32 %v1045, 0.5
      %v1584 = vmul.f32 %v1050, 0.5
      %v1585 = vmul.f32 %v1055, 0.5
      %v1586 = vmul.f32 %v1060, 0.5
      %v1587 = vmul.f32 %v1065, 0.5
      %v1588 = vmul.f32 %v1070, 0.5
      %v1589 = vmul.f32 %v1075, 0.5
      %v1590 = vmul.f32 %v1080, 0.5
      %v1591 = vmul.f32 %v1085, 0.5
      %v1592 = vmul.f32 %v1090, 0.5
      %v1593 = vmul.f32 %v1095, 0.5
      %v1594 = vmul.f32 %v1100, 0.5
      %v1595 = vmul.f32 %v1105, 0.5
      %v1596 = vmul.f32 %v1110, 0.5
      %v1597 = vmul.f32 %v1115, 0.5
      %v1598 = vmul.f32 %v1120, 0.5
      %v1599 = vmul.f32 %v1125, 0.5
      %v1600 = vmul.f32 %v1130, 0.5
      %v1601 = vmul.f32 %v1135, 0.5
      %v1602 = vmul.f32 %v1140, 0.5
      %v1603 = vmul.f32 %v1145, 0.5
      %v1604 = vmul.f32 %v1150, 0.5
      %v1605 = vmul.f32 %v1155, 0.5
      %v1606 = vmul.f32 %v1160, 0.5
      %v1607 = vmul.f32 %v1165, 0.5
      %v1608 = vmul.f32 %v1170, 0.5
      %v1609 = vmul.f32 %v1175, 0.5
      %v1610 = vmul.f32 %v1180, 0.5
      %v1611 = vmul.f32 %v1185, 0.5
      %v1612 = vmul.f32 %v1190, 0.5
      %v1613 = vmul.f32 %v1195, 0.5
      %v1614 = vmul.f32 %v1200, 0.5
      %v1615 = vmul.f32 %v1205, 0.5
      %v1616 = vmul.f32 %v1210, 0.5
      %v1617 = vmul.f32 %v1215, 0.5
      %v1618 = vmul.f32 %v1220, 0.5
      %v1619 = vmul.f32 %v1225, 0.5
      %v1620 = vmul.f32 %v1230, 0.5
      %v1621 = vmul.f32 %v1235, 0.5
      %v1622 = vmul.f32 %v1240, 0.5
      %v1623 = vmul.f32 %v1245, 0.5
      %v1624 = vmul.f32 %v1250, 0.5
      %v1625 = vmul.f32 %v1255, 0.5
      %v1626 = vmul.f32 %v1260, 0.5
      %v1627 = vmul.f32 %v1265, 0.5
      %v1628 = vmul.f32 %v1270, 0.5
      %v1629 = vmul.f32 %v1275, 0.5
      %v1630 = vmul.f32 %v1280, 0.5
      %v1631 = vmul.f32 %v1285, 0.5
      %v1632 = vmul.f32 %v1290, 0.5
      %v1633 = vmul.f32 %v1295, 0.5
      %v1634 = vmul.f32 %v1300, 0.5
      %v1635 = vmul.f32 %v1305, 0.5
      %v1636 = vmul.f32 %v1310, 0.5
      %v1637 = vmul.f32 %v1315, 0.5
      %v1638 = vmul.f32 %v1320, 0.5
      %v1639 = vmul.f32 %v1325, 0.5
      %v1640 = vmul.f32 %v1330, 0.5
      %v1641 = vmul.f32 %v1335, 0.5
      %v1642 = vmul.f32 %v1340, 0.5
      %v1643 = vmul.f32 %v1345, 0.5
      %v1644 = vmul.f32 %v1350, 0.5
      %v1645 = vmul.f32 %v1355, 0.5
      %v1646 = vmul.f32 %v1360, 0.5
      %v1647 = vmul.f32 %v1365, 0.5
      %v1648 = vmul.f32 %v1370, 0.5
      %v1649 = vmul.f32 %v1375, 0.5
      %v1650 = vmul.f32 %v1380, 0.5
      %v1651 = vmul.f32 %v1385, 0.5
      %v1652 = vmul.f32 %v1390, 0.5
      %v1653 = vmul.f32 %v1395, 0.5
      %v1654 = vmul.f32 %v1400, 0.5
      %v1655 = vmul.f32 %v1405, 0.5
      %v1656 = vmul.f32 %v1410, 0.5
      %v1657 = vmul.f32 %v1415, 0.5
      %v1658 = vmul.f32 %v1420, 0.5
      %v1659 = vmul.f32 %v1425, 0.5
      %v1660 = vmul.f32 %v1430, 0.5
      %v1661 = vmul.f32 %v1435, 0.5
      %v1662 = vmul.f32 %v1440, 0.5
      %v1663 = vmul.f32 %v1445, 0.5
      %v1664 = vmul.f32 %v1450, 0.5
      %v1665 = vmul.f32 %v1455, 0.5
      %v1666 = vmul.f32 %v1460, 0.5
      %v1667 = vmul.f32 %v1465, 0.5
      %v1668 = vmul.f32 %v1470, 0.5
      %v1669 = vmul.f32 %v1475, 0.5
      %v1670 = vmul.f32 %v1480, 0.5
      %v1671 = vmul.f32 %v1485, 0.5
      %v1672 = vmul.f32 %v1490, 0.5
      %v1673 = vmul.f32 %v1495, 0.5
      %v1674 = vmul.f32 %v1500, 0.5
      %v1675 = vmul.f32 %v1505, 0.5
      %v1676 = vmul.f32 %v1510, 0.5
      %v1677 = vmul.f32 %v1515, 0.5
      %v1678 = vmul.f32 %v1520, 0.5
      %v1679 = vmul.f32 %v1525, 0.5
      %v1680 = vmul.f32 %v1530, 0.5
      %v1681 = vmul.f32 %v1535, 0.5
      %v1682 = vmul.f32 %v1540, 0.5
      %v1683 = vmul.f32 %v1545, 0.5
      %v1684 = vmul.f32 %v1550, 0.5
      %v1685 = vmul.f32 %v1555, 0.5
      %v1686 = vmul.f32 %v920, 0.70710677
      %v1687 = vmul.f32 %v925, 0.70710677
      %v1688 = vmul.f32 %v930, 0.70710677
      %v1689 = vmul.f32 %v935, 0.70710677
      %v1690 = vmul.f32 %v940, 0.70710677
      %v1691 = vmul.f32 %v945, 0.70710677
      %v1692 = vmul.f32 %v950, 0.70710677
      %v1693 = vmul.f32 %v955, 0.70710677
      %v1694 = vmul.f32 %v960, 0.70710677
      %v1695 = vmul.f32 %v965, 0.70710677
      %v1696 = vmul.f32 %v970, 0.70710677
      %v1697 = vmul.f32 %v975, 0.70710677
      %v1698 = vmul.f32 %v980, 0.70710677
      %v1699 = vmul.f32 %v985, 0.70710677
      %v1700 = vmul.f32 %v990, 0.70710677
      %v1701 = vmul.f32 %v995, 0.70710677
      %v1702 = vmul.f32 %v1000, 0.70710677
      %v1703 = vmul.f32 %v1005, 0.70710677
      %v1704 = vmul.f32 %v1010, 0.70710677
      %v1705 = vmul.f32 %v1015, 0.70710677
      %v1706 = vmul.f32 %v1020, 0.70710677
      %v1707 = vmul.f32 %v1025, 0.70710677
      %v1708 = vmul.f32 %v1030, 0.70710677
      %v1709 = vmul.f32 %v1035, 0.70710677
      %v1710 = vmul.f32 %v1040, 0.70710677
      %v1711 = vmul.f32 %v1045, 0.70710677
      %v1712 = vmul.f32 %v1050, 0.70710677
      %v1713 = vmul.f32 %v1055, 0.70710677
      %v1714 = vmul.f32 %v1060, 0.70710677
      %v1715 = vmul.f32 %v1065, 0.70710677
      %v1716 = vmul.f32 %v1070, 0.70710677
      %v1717 = vmul.f32 %v1075, 0.70710677
      %v1718 = vmul.f32 %v1080, 0.70710677
      %v1719 = vmul.f32 %v1085, 0.70710677
      %v1720 = vmul.f32 %v1090, 0.70710677
      %v1721 = vmul.f32 %v1095, 0.70710677
      %v1722 = vmul.f32 %v1100, 0.70710677
      %v1723 = vmul.f32 %v1105, 0.70710677
      %v1724 = vmul.f32 %v1110, 0.70710677
      %v1725 = vmul.f32 %v1115, 0.70710677
      %v1726 = vmul.f32 %v1120, 0.70710677
      %v1727 = vmul.f32 %v1125, 0.70710677
      %v1728 = vmul.f32 %v1130, 0.70710677
      %v1729 = vmul.f32 %v1135, 0.70710677
      %v1730 = vmul.f32 %v1140, 0.70710677
      %v1731 = vmul.f32 %v1145, 0.70710677
      %v1732 = vmul.f32 %v1150, 0.70710677
      %v1733 = vmul.f32 %v1155, 0.70710677
      %v1734 = vmul.f32 %v1160, 0.70710677
      %v1735 = vmul.f32 %v1165, 0.70710677
      %v1736 = vmul.f32 %v1170, 0.70710677
      %v1737 = vmul.f32 %v1175, 0.70710677
      %v1738 = vmul.f32 %v1180, 0.70710677
      %v1739 = vmul.f32 %v1185, 0.70710677
      %v1740 = vmul.f32 %v1190, 0.70710677
      %v1741 = vmul.f32 %v1195, 0.70710677
      %v1742 = vmul.f32 %v1200, 0.70710677
      %v1743 = vmul.f32 %v1205, 0.70710677
      %v1744 = vmul.f32 %v1210, 0.70710677
      %v1745 = vmul.f32 %v1215, 0.70710677
      %v1746 = vmul.f32 %v1220, 0.70710677
      %v1747 = vmul.f32 %v1225, 0.70710677
      %v1748 = vmul.f32 %v1230, 0.70710677
      %v1749 = vmul.f32 %v1235, 0.70710677
      %v1750 = vmul.f32 %v1240, 0.70710677
      %v1751 = vmul.f32 %v1245, 0.70710677
      %v1752 = vmul.f32 %v1250, 0.70710677
      %v1753 = vmul.f32 %v1255, 0.70710677
      %v1754 = vmul.f32 %v1260, 0.70710677
      %v1755 = vmul.f32 %v1265, 0.70710677
      %v1756 = vmul.f32 %v1270, 0.70710677
      %v1757 = vmul.f32 %v1275, 0.70710677
      %v1758 = vmul.f32 %v1280, 0.70710677
      %v1759 = vmul.f32 %v1285, 0.70710677
      %v1760 = vmul.f32 %v1290, 0.70710677
      %v1761 = vmul.f32 %v1295, 0.70710677
      %v1762 = vmul.f32 %v1300, 0.70710677
      %v1763 = vmul.f32 %v1305, 0.70710677
      %v1764 = vmul.f32 %v1310, 0.70710677
      %v1765 = vmul.f32 %v1315, 0.70710677
      %v1766 = vmul.f32 %v1320, 0.70710677
      %v1767 = vmul.f32 %v1325, 0.70710677
      %v1768 = vmul.f32 %v1330, 0.70710677
      %v1769 = vmul.f32 %v1335, 0.70710677
      %v1770 = vmul.f32 %v1340, 0.70710677
      %v1771 = vmul.f32 %v1345, 0.70710677
      %v1772 = vmul.f32 %v1350, 0.70710677
      %v1773 = vmul.f32 %v1355, 0.70710677
      %v1774 = vmul.f32 %v1360, 0.70710677
      %v1775 = vmul.f32 %v1365, 0.70710677
      %v1776 = vmul.f32 %v1370, 0.70710677
      %v1777 = vmul.f32 %v1375, 0.70710677
      %v1778 = vmul.f32 %v1380, 0.70710677
      %v1779 = vmul.f32 %v1385, 0.70710677
      %v1780 = vmul.f32 %v1390, 0.70710677
      %v1781 = vmul.f32 %v1395, 0.70710677
      %v1782 = vmul.f32 %v1400, 0.70710677
      %v1783 = vmul.f32 %v1405, 0.70710677
      %v1784 = vmul.f32 %v1410, 0.70710677
      %v1785 = vmul.f32 %v1415, 0.70710677
      %v1786 = vmul.f32 %v1420, 0.70710677
      %v1787 = vmul.f32 %v1425, 0.70710677
      %v1788 = vmul.f32 %v1430, 0.70710677
      %v1789 = vmul.f32 %v1435, 0.70710677
      %v1790 = vmul.f32 %v1440, 0.70710677
      %v1791 = vmul.f32 %v1445, 0.70710677
      %v1792 = vmul.f32 %v1450, 0.70710677
      %v1793 = vmul.f32 %v1455, 0.70710677
      %v1794 = vmul.f32 %v1460, 0.70710677
      %v1795 = vmul.f32 %v1465, 0.70710677
      %v1796 = vmul.f32 %v1470, 0.70710677
      %v1797 = vmul.f32 %v1475, 0.70710677
      %v1798 = vmul.f32 %v1480, 0.70710677
      %v1799 = vmul.f32 %v1485, 0.70710677
      %v1800 = vmul.f32 %v1490, 0.70710677
      %v1801 = vmul.f32 %v1495, 0.70710677
      %v1802 = vmul.f32 %v1500, 0.70710677
      %v1803 = vmul.f32 %v1505, 0.70710677
      %v1804 = vmul.f32 %v1510, 0.70710677
      %v1805 = vmul.f32 %v1515, 0.70710677
      %v1806 = vmul.f32 %v1520, 0.70710677
      %v1807 = vmul.f32 %v1525, 0.70710677
      %v1808 = vmul.f32 %v1530, 0.70710677
      %v1809 = vmul.f32 %v1535, 0.70710677
      %v1810 = vmul.f32 %v1540, 0.70710677
      %v1811 = vmul.f32 %v1545, 0.70710677
      %v1812 = vmul.f32 %v1550, 0.70710677
      %v1813 = vmul.f32 %v1555, 0.70710677
      %v1814 = vand.u32 2147483647, %v1686
      %v1815 = vand.u32 2147483647, %v1687
      %v1816 = vand.u32 2147483647, %v1688
      %v1817 = vand.u32 2147483647, %v1689
      %v1818 = vand.u32 2147483647, %v1690
      %v1819 = vand.u32 2147483647, %v1691
      %v1820 = vand.u32 2147483647, %v1692
      %v1821 = vand.u32 2147483647, %v1693
      %v1822 = vand.u32 2147483647, %v1694
      %v1823 = vand.u32 2147483647, %v1695
      %v1824 = vand.u32 2147483647, %v1696
      %v1825 = vand.u32 2147483647, %v1697
      %v1826 = vand.u32 2147483647, %v1698
      %v1827 = vand.u32 2147483647, %v1699
      %v1828 = vand.u32 2147483647, %v1700
      %v1829 = vand.u32 2147483647, %v1701
      %v1830 = vand.u32 2147483647, %v1702
      %v1831 = vand.u32 2147483647, %v1703
      %v1832 = vand.u32 2147483647, %v1704
      %v1833 = vand.u32 2147483647, %v1705
      %v1834 = vand.u32 2147483647, %v1706
      %v1835 = vand.u32 2147483647, %v1707
      %v1836 = vand.u32 2147483647, %v1708
      %v1837 = vand.u32 2147483647, %v1709
      %v1838 = vand.u32 2147483647, %v1710
      %v1839 = vand.u32 2147483647, %v1711
      %v1840 = vand.u32 2147483647, %v1712
      %v1841 = vand.u32 2147483647, %v1713
      %v1842 = vand.u32 2147483647, %v1714
      %v1843 = vand.u32 2147483647, %v1715
      %v1844 = vand.u32 2147483647, %v1716
      %v1845 = vand.u32 2147483647, %v1717
      %v1846 = vand.u32 2147483647, %v1718
      %v1847 = vand.u32 2147483647, %v1719
      %v1848 = vand.u32 2147483647, %v1720
      %v1849 = vand.u32 2147483647, %v1721
      %v1850 = vand.u32 2147483647, %v1722
      %v1851 = vand.u32 2147483647, %v1723
      %v1852 = vand.u32 2147483647, %v1724
      %v1853 = vand.u32 2147483647, %v1725
      %v1854 = vand.u32 2147483647, %v1726
      %v1855 = vand.u32 2147483647, %v1727
      %v1856 = vand.u32 2147483647, %v1728
      %v1857 = vand.u32 2147483647, %v1729
      %v1858 = vand.u32 2147483647, %v1730
      %v1859 = vand.u32 2147483647, %v1731
      %v1860 = vand.u32 2147483647, %v1732
      %v1861 = vand.u32 2147483647, %v1733
      %v1862 = vand.u32 2147483647, %v1734
      %v1863 = vand.u32 2147483647, %v1735
      %v1864 = vand.u32 2147483647, %v1736
      %v1865 = vand.u32 2147483647, %v1737
      %v1866 = vand.u32 2147483647, %v1738
      %v1867 = vand.u32 2147483647, %v1739
      %v1868 = vand.u32 2147483647, %v1740
      %v1869 = vand.u32 2147483647, %v1741
      %v1870 = vand.u32 2147483647, %v1742
      %v1871 = vand.u32 2147483647, %v1743
      %v1872 = vand.u32 2147483647, %v1744
      %v1873 = vand.u32 2147483647, %v1745
      %v1874 = vand.u32 2147483647, %v1746
      %v1875 = vand.u32 2147483647, %v1747
      %v1876 = vand.u32 2147483647, %v1748
      %v1877 = vand.u32 2147483647, %v1749
      %v1878 = vand.u32 2147483647, %v1750
      %v1879 = vand.u32 2147483647, %v1751
      %v1880 = vand.u32 2147483647, %v1752
      %v1881 = vand.u32 2147483647, %v1753
      %v1882 = vand.u32 2147483647, %v1754
      %v1883 = vand.u32 2147483647, %v1755
      %v1884 = vand.u32 2147483647, %v1756
      %v1885 = vand.u32 2147483647, %v1757
      %v1886 = vand.u32 2147483647, %v1758
      %v1887 = vand.u32 2147483647, %v1759
      %v1888 = vand.u32 2147483647, %v1760
      %v1889 = vand.u32 2147483647, %v1761
      %v1890 = vand.u32 2147483647, %v1762
      %v1891 = vand.u32 2147483647, %v1763
      %v1892 = vand.u32 2147483647, %v1764
      %v1893 = vand.u32 2147483647, %v1765
      %v1894 = vand.u32 2147483647, %v1766
      %v1895 = vand.u32 2147483647, %v1767
      %v1896 = vand.u32 2147483647, %v1768
      %v1897 = vand.u32 2147483647, %v1769
      %v1898 = vand.u32 2147483647, %v1770
      %v1899 = vand.u32 2147483647, %v1771
      %v1900 = vand.u32 2147483647, %v1772
      %v1901 = vand.u32 2147483647, %v1773
      %v1902 = vand.u32 2147483647, %v1774
      %v1903 = vand.u32 2147483647, %v1775
      %v1904 = vand.u32 2147483647, %v1776
      %v1905 = vand.u32 2147483647, %v1777
      %v1906 = vand.u32 2147483647, %v1778
      %v1907 = vand.u32 2147483647, %v1779
      %v1908 = vand.u32 2147483647, %v1780
      %v1909 = vand.u32 2147483647, %v1781
      %v1910 = vand.u32 2147483647, %v1782
      %v1911 = vand.u32 2147483647, %v1783
      %v1912 = vand.u32 2147483647, %v1784
      %v1913 = vand.u32 2147483647, %v1785
      %v1914 = vand.u32 2147483647, %v1786
      %v1915 = vand.u32 2147483647, %v1787
      %v1916 = vand.u32 2147483647, %v1788
      %v1917 = vand.u32 2147483647, %v1789
      %v1918 = vand.u32 2147483647, %v1790
      %v1919 = vand.u32 2147483647, %v1791
      %v1920 = vand.u32 2147483647, %v1792
      %v1921 = vand.u32 2147483647, %v1793
      %v1922 = vand.u32 2147483647, %v1794
      %v1923 = vand.u32 2147483647, %v1795
      %v1924 = vand.u32 2147483647, %v1796
      %v1925 = vand.u32 2147483647, %v1797
      %v1926 = vand.u32 2147483647, %v1798
      %v1927 = vand.u32 2147483647, %v1799
      %v1928 = vand.u32 2147483647, %v1800
      %v1929 = vand.u32 2147483647, %v1801
      %v1930 = vand.u32 2147483647, %v1802
      %v1931 = vand.u32 2147483647, %v1803
      %v1932 = vand.u32 2147483647, %v1804
      %v1933 = vand.u32 2147483647, %v1805
      %v1934 = vand.u32 2147483647, %v1806
      %v1935 = vand.u32 2147483647, %v1807
      %v1936 = vand.u32 2147483647, %v1808
      %v1937 = vand.u32 2147483647, %v1809
      %v1938 = vand.u32 2147483647, %v1810
      %v1939 = vand.u32 2147483647, %v1811
      %v1940 = vand.u32 2147483647, %v1812
      %v1941 = vand.u32 2147483647, %v1813
      %v1942 = vmul.f32 %v1814, 0.3275911
      %v1943 = vmul.f32 %v1815, 0.3275911
      %v1944 = vmul.f32 %v1816, 0.3275911
      %v1945 = vmul.f32 %v1817, 0.3275911
      %v1946 = vmul.f32 %v1818, 0.3275911
      %v1947 = vmul.f32 %v1819, 0.3275911
      %v1948 = vmul.f32 %v1820, 0.3275911
      %v1949 = vmul.f32 %v1821, 0.3275911
      %v1950 = vmul.f32 %v1822, 0.3275911
      %v1951 = vmul.f32 %v1823, 0.3275911
      %v1952 = vmul.f32 %v1824, 0.3275911
      %v1953 = vmul.f32 %v1825, 0.3275911
      %v1954 = vmul.f32 %v1826, 0.3275911
      %v1955 = vmul.f32 %v1827, 0.3275911
      %v1956 = vmul.f32 %v1828, 0.3275911
      %v1957 = vmul.f32 %v1829, 0.3275911
      %v1958 = vmul.f32 %v1830, 0.3275911
      %v1959 = vmul.f32 %v1831, 0.3275911
      %v1960 = vmul.f32 %v1832, 0.3275911
      %v1961 = vmul.f32 %v1833, 0.3275911
      %v1962 = vmul.f32 %v1834, 0.3275911
      %v1963 = vmul.f32 %v1835, 0.3275911
      %v1964 = vmul.f32 %v1836, 0.3275911
      %v1965 = vmul.f32 %v1837, 0.3275911
      %v1966 = vmul.f32 %v1838, 0.3275911
      %v1967 = vmul.f32 %v1839, 0.3275911
      %v1968 = vmul.f32 %v1840, 0.3275911
      %v1969 = vmul.f32 %v1841, 0.3275911
      %v1970 = vmul.f32 %v1842, 0.3275911
      %v1971 = vmul.f32 %v1843, 0.3275911
      %v1972 = vmul.f32 %v1844, 0.3275911
      %v1973 = vmul.f32 %v1845, 0.3275911
      %v1974 = vmul.f32 %v1846, 0.3275911
      %v1975 = vmul.f32 %v1847, 0.3275911
      %v1976 = vmul.f32 %v1848, 0.3275911
      %v1977 = vmul.f32 %v1849, 0.3275911
      %v1978 = vmul.f32 %v1850, 0.3275911
      %v1979 = vmul.f32 %v1851, 0.3275911
      %v1980 = vmul.f32 %v1852, 0.3275911
      %v1981 = vmul.f32 %v1853, 0.3275911
      %v1982 = vmul.f32 %v1854, 0.3275911
      %v1983 = vmul.f32 %v1855, 0.3275911
      %v1984 = vmul.f32 %v1856, 0.3275911
      %v1985 = vmul.f32 %v1857, 0.3275911
      %v1986 = vmul.f32 %v1858, 0.3275911
      %v1987 = vmul.f32 %v1859, 0.3275911
      %v1988 = vmul.f32 %v1860, 0.3275911
      %v1989 = vmul.f32 %v1861, 0.3275911
      %v1990 = vmul.f32 %v1862, 0.3275911
      %v1991 = vmul.f32 %v1863, 0.3275911
      %v1992 = vmul.f32 %v1864, 0.3275911
      %v1993 = vmul.f32 %v1865, 0.3275911
      %v1994 = vmul.f32 %v1866, 0.3275911
      %v1995 = vmul.f32 %v1867, 0.3275911
      %v1996 = vmul.f32 %v1868, 0.3275911
      %v1997 = vmul.f32 %v1869, 0.3275911
      %v1998 = vmul.f32 %v1870, 0.3275911
      %v1999 = vmul.f32 %v1871, 0.3275911
      %v2000 = vmul.f32 %v1872, 0.3275911
      %v2001 = vmul.f32 %v1873, 0.3275911
      %v2002 = vmul.f32 %v1874, 0.3275911
      %v2003 = vmul.f32 %v1875, 0.3275911
      %v2004 = vmul.f32 %v1876, 0.3275911
      %v2005 = vmul.f32 %v1877, 0.3275911
      %v2006 = vmul.f32 %v1878, 0.3275911
      %v2007 = vmul.f32 %v1879, 0.3275911
      %v2008 = vmul.f32 %v1880, 0.3275911
      %v2009 = vmul.f32 %v1881, 0.3275911
      %v2010 = vmul.f32 %v1882, 0.3275911
      %v2011 = vmul.f32 %v1883, 0.3275911
      %v2012 = vmul.f32 %v1884, 0.3275911
      %v2013 = vmul.f32 %v1885, 0.3275911
      %v2014 = vmul.f32 %v1886, 0.3275911
      %v2015 = vmul.f32 %v1887, 0.3275911
      %v2016 = vmul.f32 %v1888, 0.3275911
      %v2017 = vmul.f32 %v1889, 0.3275911
      %v2018 = vmul.f32 %v1890, 0.3275911
      %v2019 = vmul.f32 %v1891, 0.3275911
      %v2020 = vmul.f32 %v1892, 0.3275911
      %v2021 = vmul.f32 %v1893, 0.3275911
      %v2022 = vmul.f32 %v1894, 0.3275911
      %v2023 = vmul.f32 %v1895, 0.3275911
      %v2024 = vmul.f32 %v1896, 0.3275911
      %v2025 = vmul.f32 %v1897, 0.3275911
      %v2026 = vmul.f32 %v1898, 0.3275911
      %v2027 = vmul.f32 %v1899, 0.3275911
      %v2028 = vmul.f32 %v1900, 0.3275911
      %v2029 = vmul.f32 %v1901, 0.3275911
      %v2030 = vmul.f32 %v1902, 0.3275911
      %v2031 = vmul.f32 %v1903, 0.3275911
      %v2032 = vmul.f32 %v1904, 0.3275911
      %v2033 = vmul.f32 %v1905, 0.3275911
      %v2034 = vmul.f32 %v1906, 0.3275911
      %v2035 = vmul.f32 %v1907, 0.3275911
      %v2036 = vmul.f32 %v1908, 0.3275911
      %v2037 = vmul.f32 %v1909, 0.3275911
      %v2038 = vmul.f32 %v1910, 0.3275911
      %v2039 = vmul.f32 %v1911, 0.3275911
      %v2040 = vmul.f32 %v1912, 0.3275911
      %v2041 = vmul.f32 %v1913, 0.3275911
      %v2042 = vmul.f32 %v1914, 0.3275911
      %v2043 = vmul.f32 %v1915, 0.3275911
      %v2044 = vmul.f32 %v1916, 0.3275911
      %v2045 = vmul.f32 %v1917, 0.3275911
      %v2046 = vmul.f32 %v1918, 0.3275911
      %v2047 = vmul.f32 %v1919, 0.3275911
      %v2048 = vmul.f32 %v1920, 0.3275911
      %v2049 = vmul.f32 %v1921, 0.3275911
      %v2050 = vmul.f32 %v1922, 0.3275911
      %v2051 = vmul.f32 %v1923, 0.3275911
      %v2052 = vmul.f32 %v1924, 0.3275911
      %v2053 = vmul.f32 %v1925, 0.3275911
      %v2054 = vmul.f32 %v1926, 0.3275911
      %v2055 = vmul.f32 %v1927, 0.3275911
      %v2056 = vmul.f32 %v1928, 0.3275911
      %v2057 = vmul.f32 %v1929, 0.3275911
      %v2058 = vmul.f32 %v1930, 0.3275911
      %v2059 = vmul.f32 %v1931, 0.3275911
      %v2060 = vmul.f32 %v1932, 0.3275911
      %v2061 = vmul.f32 %v1933, 0.3275911
      %v2062 = vmul.f32 %v1934, 0.3275911
      %v2063 = vmul.f32 %v1935, 0.3275911
      %v2064 = vmul.f32 %v1936, 0.3275911
      %v2065 = vmul.f32 %v1937, 0.3275911
      %v2066 = vmul.f32 %v1938, 0.3275911
      %v2067 = vmul.f32 %v1939, 0.3275911
      %v2068 = vmul.f32 %v1940, 0.3275911
      %v2069 = vmul.f32 %v1941, 0.3275911
      %v2070 = vadd.f32 %v1942, 1.0
      %v2071 = vadd.f32 %v1943, 1.0
      %v2072 = vadd.f32 %v1944, 1.0
      %v2073 = vadd.f32 %v1945, 1.0
      %v2074 = vadd.f32 %v1946, 1.0
      %v2075 = vadd.f32 %v1947, 1.0
      %v2076 = vadd.f32 %v1948, 1.0
      %v2077 = vadd.f32 %v1949, 1.0
      %v2078 = vadd.f32 %v1950, 1.0
      %v2079 = vadd.f32 %v1951, 1.0
      %v2080 = vadd.f32 %v1952, 1.0
      %v2081 = vadd.f32 %v1953, 1.0
      %v2082 = vadd.f32 %v1954, 1.0
      %v2083 = vadd.f32 %v1955, 1.0
      %v2084 = vadd.f32 %v1956, 1.0
      %v2085 = vadd.f32 %v1957, 1.0
      %v2086 = vadd.f32 %v1958, 1.0
      %v2087 = vadd.f32 %v1959, 1.0
      %v2088 = vadd.f32 %v1960, 1.0
      %v2089 = vadd.f32 %v1961, 1.0
      %v2090 = vadd.f32 %v1962, 1.0
      %v2091 = vadd.f32 %v1963, 1.0
      %v2092 = vadd.f32 %v1964, 1.0
      %v2093 = vadd.f32 %v1965, 1.0
      %v2094 = vadd.f32 %v1966, 1.0
      %v2095 = vadd.f32 %v1967, 1.0
      %v2096 = vadd.f32 %v1968, 1.0
      %v2097 = vadd.f32 %v1969, 1.0
      %v2098 = vadd.f32 %v1970, 1.0
      %v2099 = vadd.f32 %v1971, 1.0
      %v2100 = vadd.f32 %v1972, 1.0
      %v2101 = vadd.f32 %v1973, 1.0
      %v2102 = vadd.f32 %v1974, 1.0
      %v2103 = vadd.f32 %v1975, 1.0
      %v2104 = vadd.f32 %v1976, 1.0
      %v2105 = vadd.f32 %v1977, 1.0
      %v2106 = vadd.f32 %v1978, 1.0
      %v2107 = vadd.f32 %v1979, 1.0
      %v2108 = vadd.f32 %v1980, 1.0
      %v2109 = vadd.f32 %v1981, 1.0
      %v2110 = vadd.f32 %v1982, 1.0
      %v2111 = vadd.f32 %v1983, 1.0
      %v2112 = vadd.f32 %v1984, 1.0
      %v2113 = vadd.f32 %v1985, 1.0
      %v2114 = vadd.f32 %v1986, 1.0
      %v2115 = vadd.f32 %v1987, 1.0
      %v2116 = vadd.f32 %v1988, 1.0
      %v2117 = vadd.f32 %v1989, 1.0
      %v2118 = vadd.f32 %v1990, 1.0
      %v2119 = vadd.f32 %v1991, 1.0
      %v2120 = vadd.f32 %v1992, 1.0
      %v2121 = vadd.f32 %v1993, 1.0
      %v2122 = vadd.f32 %v1994, 1.0
      %v2123 = vadd.f32 %v1995, 1.0
      %v2124 = vadd.f32 %v1996, 1.0
      %v2125 = vadd.f32 %v1997, 1.0
      %v2126 = vadd.f32 %v1998, 1.0
      %v2127 = vadd.f32 %v1999, 1.0
      %v2128 = vadd.f32 %v2000, 1.0
      %v2129 = vadd.f32 %v2001, 1.0
      %v2130 = vadd.f32 %v2002, 1.0
      %v2131 = vadd.f32 %v2003, 1.0
      %v2132 = vadd.f32 %v2004, 1.0
      %v2133 = vadd.f32 %v2005, 1.0
      %v2134 = vadd.f32 %v2006, 1.0
      %v2135 = vadd.f32 %v2007, 1.0
      %v2136 = vadd.f32 %v2008, 1.0
      %v2137 = vadd.f32 %v2009, 1.0
      %v2138 = vadd.f32 %v2010, 1.0
      %v2139 = vadd.f32 %v2011, 1.0
      %v2140 = vadd.f32 %v2012, 1.0
      %v2141 = vadd.f32 %v2013, 1.0
      %v2142 = vadd.f32 %v2014, 1.0
      %v2143 = vadd.f32 %v2015, 1.0
      %v2144 = vadd.f32 %v2016, 1.0
      %v2145 = vadd.f32 %v2017, 1.0
      %v2146 = vadd.f32 %v2018, 1.0
      %v2147 = vadd.f32 %v2019, 1.0
      %v2148 = vadd.f32 %v2020, 1.0
      %v2149 = vadd.f32 %v2021, 1.0
      %v2150 = vadd.f32 %v2022, 1.0
      %v2151 = vadd.f32 %v2023, 1.0
      %v2152 = vadd.f32 %v2024, 1.0
      %v2153 = vadd.f32 %v2025, 1.0
      %v2154 = vadd.f32 %v2026, 1.0
      %v2155 = vadd.f32 %v2027, 1.0
      %v2156 = vadd.f32 %v2028, 1.0
      %v2157 = vadd.f32 %v2029, 1.0
      %v2158 = vadd.f32 %v2030, 1.0
      %v2159 = vadd.f32 %v2031, 1.0
      %v2160 = vadd.f32 %v2032, 1.0
      %v2161 = vadd.f32 %v2033, 1.0
      %v2162 = vadd.f32 %v2034, 1.0
      %v2163 = vadd.f32 %v2035, 1.0
      %v2164 = vadd.f32 %v2036, 1.0
      %v2165 = vadd.f32 %v2037, 1.0
      %v2166 = vadd.f32 %v2038, 1.0
      %v2167 = vadd.f32 %v2039, 1.0
      %v2168 = vadd.f32 %v2040, 1.0
      %v2169 = vadd.f32 %v2041, 1.0
      %v2170 = vadd.f32 %v2042, 1.0
      %v2171 = vadd.f32 %v2043, 1.0
      %v2172 = vadd.f32 %v2044, 1.0
      %v2173 = vadd.f32 %v2045, 1.0
      %v2174 = vadd.f32 %v2046, 1.0
      %v2175 = vadd.f32 %v2047, 1.0
      %v2176 = vadd.f32 %v2048, 1.0
      %v2177 = vadd.f32 %v2049, 1.0
      %v2178 = vadd.f32 %v2050, 1.0
      %v2179 = vadd.f32 %v2051, 1.0
      %v2180 = vadd.f32 %v2052, 1.0
      %v2181 = vadd.f32 %v2053, 1.0
      %v2182 = vadd.f32 %v2054, 1.0
      %v2183 = vadd.f32 %v2055, 1.0
      %v2184 = vadd.f32 %v2056, 1.0
      %v2185 = vadd.f32 %v2057, 1.0
      %v2186 = vadd.f32 %v2058, 1.0
      %v2187 = vadd.f32 %v2059, 1.0
      %v2188 = vadd.f32 %v2060, 1.0
      %v2189 = vadd.f32 %v2061, 1.0
      %v2190 = vadd.f32 %v2062, 1.0
      %v2191 = vadd.f32 %v2063, 1.0
      %v2192 = vadd.f32 %v2064, 1.0
      %v2193 = vadd.f32 %v2065, 1.0
      %v2194 = vadd.f32 %v2066, 1.0
      %v2195 = vadd.f32 %v2067, 1.0
      %v2196 = vadd.f32 %v2068, 1.0
      %v2197 = vadd.f32 %v2069, 1.0
      %v2198 = vrcp.pop %v2070
      %v2199 = vmul.f32 1.0, %v2198
      %v2200 = vrcp.pop %v2071
      %v2201 = vmul.f32 1.0, %v2200
      %v2202 = vrcp.pop %v2072
      %v2203 = vmul.f32 1.0, %v2202
      %v2204 = vrcp.pop %v2073
      %v2205 = vmul.f32 1.0, %v2204
      %v2206 = vrcp.pop %v2074
      %v2207 = vmul.f32 1.0, %v2206
      %v2208 = vrcp.pop %v2075
      %v2209 = vmul.f32 1.0, %v2208
      %v2210 = vrcp.pop %v2076
      %v2211 = vmul.f32 1.0, %v2210
      %v2212 = vrcp.pop %v2077
      %v2213 = vmul.f32 1.0, %v2212
      %v2214 = vrcp.pop %v2078
      %v2215 = vmul.f32 1.0, %v2214
      %v2216 = vrcp.pop %v2079
      %v2217 = vmul.f32 1.0, %v2216
      %v2218 = vrcp.pop %v2080
      %v2219 = vmul.f32 1.0, %v2218
      %v2220 = vrcp.pop %v2081
      %v2221 = vmul.f32 1.0, %v2220
      %v2222 = vrcp.pop %v2082
      %v2223 = vmul.f32 1.0, %v2222
      %v2224 = vrcp.pop %v2083
      %v2225 = vmul.f32 1.0, %v2224
      %v2226 = vrcp.pop %v2084
      %v2227 = vmul.f32 1.0, %v2226
      %v2228 = vrcp.pop %v2085
      %v2229 = vmul.f32 1.0, %v2228
      %v2230 = vrcp.pop %v2086
      %v2231 = vmul.f32 1.0, %v2230
      %v2232 = vrcp.pop %v2087
      %v2233 = vmul.f32 1.0, %v2232
      %v2234 = vrcp.pop %v2088
      %v2235 = vmul.f32 1.0, %v2234
      %v2236 = vrcp.pop %v2089
      %v2237 = vmul.f32 1.0, %v2236
      %v2238 = vrcp.pop %v2090
      %v2239 = vmul.f32 1.0, %v2238
      %v2240 = vrcp.pop %v2091
      %v2241 = vmul.f32 1.0, %v2240
      %v2242 = vrcp.pop %v2092
      %v2243 = vmul.f32 1.0, %v2242
      %v2244 = vrcp.pop %v2093
      %v2245 = vmul.f32 1.0, %v2244
      %v2246 = vrcp.pop %v2094
      %v2247 = vmul.f32 1.0, %v2246
      %v2248 = vrcp.pop %v2095
      %v2249 = vmul.f32 1.0, %v2248
      %v2250 = vrcp.pop %v2096
      %v2251 = vmul.f32 1.0, %v2250
      %v2252 = vrcp.pop %v2097
      %v2253 = vmul.f32 1.0, %v2252
      %v2254 = vrcp.pop %v2098
      %v2255 = vmul.f32 1.0, %v2254
      %v2256 = vrcp.pop %v2099
      %v2257 = vmul.f32 1.0, %v2256
      %v2258 = vrcp.pop %v2100
      %v2259 = vmul.f32 1.0, %v2258
      %v2260 = vrcp.pop %v2101
      %v2261 = vmul.f32 1.0, %v2260
      %v2262 = vrcp.pop %v2102
      %v2263 = vmul.f32 1.0, %v2262
      %v2264 = vrcp.pop %v2103
      %v2265 = vmul.f32 1.0, %v2264
      %v2266 = vrcp.pop %v2104
      %v2267 = vmul.f32 1.0, %v2266
      %v2268 = vrcp.pop %v2105
      %v2269 = vmul.f32 1.0, %v2268
      %v2270 = vrcp.pop %v2106
      %v2271 = vmul.f32 1.0, %v2270
      %v2272 = vrcp.pop %v2107
      %v2273 = vmul.f32 1.0, %v2272
      %v2274 = vrcp.pop %v2108
      %v2275 = vmul.f32 1.0, %v2274
      %v2276 = vrcp.pop %v2109
      %v2277 = vmul.f32 1.0, %v2276
      %v2278 = vrcp.pop %v2110
      %v2279 = vmul.f32 1.0, %v2278
      %v2280 = vrcp.pop %v2111
      %v2281 = vmul.f32 1.0, %v2280
      %v2282 = vrcp.pop %v2112
      %v2283 = vmul.f32 1.0, %v2282
      %v2284 = vrcp.pop %v2113
      %v2285 = vmul.f32 1.0, %v2284
      %v2286 = vrcp.pop %v2114
      %v2287 = vmul.f32 1.0, %v2286
      %v2288 = vrcp.pop %v2115
      %v2289 = vmul.f32 1.0, %v2288
      %v2290 = vrcp.pop %v2116
      %v2291 = vmul.f32 1.0, %v2290
      %v2292 = vrcp.pop %v2117
      %v2293 = vmul.f32 1.0, %v2292
      %v2294 = vrcp.pop %v2118
      %v2295 = vmul.f32 1.0, %v2294
      %v2296 = vrcp.pop %v2119
      %v2297 = vmul.f32 1.0, %v2296
      %v2298 = vrcp.pop %v2120
      %v2299 = vmul.f32 1.0, %v2298
      %v2300 = vrcp.pop %v2121
      %v2301 = vmul.f32 1.0, %v2300
      %v2302 = vrcp.pop %v2122
      %v2303 = vmul.f32 1.0, %v2302
      %v2304 = vrcp.pop %v2123
      %v2305 = vmul.f32 1.0, %v2304
      %v2306 = vrcp.pop %v2124
      %v2307 = vmul.f32 1.0, %v2306
      %v2308 = vrcp.pop %v2125
      %v2309 = vmul.f32 1.0, %v2308
      %v2310 = vrcp.pop %v2126
      %v2311 = vmul.f32 1.0, %v2310
      %v2312 = vrcp.pop %v2127
      %v2313 = vmul.f32 1.0, %v2312
      %v2314 = vrcp.pop %v2128
      %v2315 = vmul.f32 1.0, %v2314
      %v2316 = vrcp.pop %v2129
      %v2317 = vmul.f32 1.0, %v2316
      %v2318 = vrcp.pop %v2130
      %v2319 = vmul.f32 1.0, %v2318
      %v2320 = vrcp.pop %v2131
      %v2321 = vmul.f32 1.0, %v2320
      %v2322 = vrcp.pop %v2132
      %v2323 = vmul.f32 1.0, %v2322
      %v2324 = vrcp.pop %v2133
      %v2325 = vmul.f32 1.0, %v2324
      %v2326 = vrcp.pop %v2134
      %v2327 = vmul.f32 1.0, %v2326
      %v2328 = vrcp.pop %v2135
      %v2329 = vmul.f32 1.0, %v2328
      %v2330 = vrcp.pop %v2136
      %v2331 = vmul.f32 1.0, %v2330
      %v2332 = vrcp.pop %v2137
      %v2333 = vmul.f32 1.0, %v2332
      %v2334 = vrcp.pop %v2138
      %v2335 = vmul.f32 1.0, %v2334
      %v2336 = vrcp.pop %v2139
      %v2337 = vmul.f32 1.0, %v2336
      %v2338 = vrcp.pop %v2140
      %v2339 = vmul.f32 1.0, %v2338
      %v2340 = vrcp.pop %v2141
      %v2341 = vmul.f32 1.0, %v2340
      %v2342 = vrcp.pop %v2142
      %v2343 = vmul.f32 1.0, %v2342
      %v2344 = vrcp.pop %v2143
      %v2345 = vmul.f32 1.0, %v2344
      %v2346 = vrcp.pop %v2144
      %v2347 = vmul.f32 1.0, %v2346
      %v2348 = vrcp.pop %v2145
      %v2349 = vmul.f32 1.0, %v2348
      %v2350 = vrcp.pop %v2146
      %v2351 = vmul.f32 1.0, %v2350
      %v2352 = vrcp.pop %v2147
      %v2353 = vmul.f32 1.0, %v2352
      %v2354 = vrcp.pop %v2148
      %v2355 = vmul.f32 1.0, %v2354
      %v2356 = vrcp.pop %v2149
      %v2357 = vmul.f32 1.0, %v2356
      %v2358 = vrcp.pop %v2150
      %v2359 = vmul.f32 1.0, %v2358
      %v2360 = vrcp.pop %v2151
      %v2361 = vmul.f32 1.0, %v2360
      %v2362 = vrcp.pop %v2152
      %v2363 = vmul.f32 1.0, %v2362
      %v2364 = vrcp.pop %v2153
      %v2365 = vmul.f32 1.0, %v2364
      %v2366 = vrcp.pop %v2154
      %v2367 = vmul.f32 1.0, %v2366
      %v2368 = vrcp.pop %v2155
      %v2369 = vmul.f32 1.0, %v2368
      %v2370 = vrcp.pop %v2156
      %v2371 = vmul.f32 1.0, %v2370
      %v2372 = vrcp.pop %v2157
      %v2373 = vmul.f32 1.0, %v2372
      %v2374 = vrcp.pop %v2158
      %v2375 = vmul.f32 1.0, %v2374
      %v2376 = vrcp.pop %v2159
      %v2377 = vmul.f32 1.0, %v2376
      %v2378 = vrcp.pop %v2160
      %v2379 = vmul.f32 1.0, %v2378
      %v2380 = vrcp.pop %v2161
      %v2381 = vmul.f32 1.0, %v2380
      %v2382 = vrcp.pop %v2162
      %v2383 = vmul.f32 1.0, %v2382
      %v2384 = vrcp.pop %v2163
      %v2385 = vmul.f32 1.0, %v2384
      %v2386 = vrcp.pop %v2164
      %v2387 = vmul.f32 1.0, %v2386
      %v2388 = vrcp.pop %v2165
      %v2389 = vmul.f32 1.0, %v2388
      %v2390 = vrcp.pop %v2166
      %v2391 = vmul.f32 1.0, %v2390
      %v2392 = vrcp.pop %v2167
      %v2393 = vmul.f32 1.0, %v2392
      %v2394 = vrcp.pop %v2168
      %v2395 = vmul.f32 1.0, %v2394
      %v2396 = vrcp.pop %v2169
      %v2397 = vmul.f32 1.0, %v2396
      %v2398 = vrcp.pop %v2170
      %v2399 = vmul.f32 1.0, %v2398
      %v2400 = vrcp.pop %v2171
      %v2401 = vmul.f32 1.0, %v2400
      %v2402 = vrcp.pop %v2172
      %v2403 = vmul.f32 1.0, %v2402
      %v2404 = vrcp.pop %v2173
      %v2405 = vmul.f32 1.0, %v2404
      %v2406 = vrcp.pop %v2174
      %v2407 = vmul.f32 1.0, %v2406
      %v2408 = vrcp.pop %v2175
      %v2409 = vmul.f32 1.0, %v2408
      %v2410 = vrcp.pop %v2176
      %v2411 = vmul.f32 1.0, %v2410
      %v2412 = vrcp.pop %v2177
      %v2413 = vmul.f32 1.0, %v2412
      %v2414 = vrcp.pop %v2178
      %v2415 = vmul.f32 1.0, %v2414
      %v2416 = vrcp.pop %v2179
      %v2417 = vmul.f32 1.0, %v2416
      %v2418 = vrcp.pop %v2180
      %v2419 = vmul.f32 1.0, %v2418
      %v2420 = vrcp.pop %v2181
      %v2421 = vmul.f32 1.0, %v2420
      %v2422 = vrcp.pop %v2182
      %v2423 = vmul.f32 1.0, %v2422
      %v2424 = vrcp.pop %v2183
      %v2425 = vmul.f32 1.0, %v2424
      %v2426 = vrcp.pop %v2184
      %v2427 = vmul.f32 1.0, %v2426
      %v2428 = vrcp.pop %v2185
      %v2429 = vmul.f32 1.0, %v2428
      %v2430 = vrcp.pop %v2186
      %v2431 = vmul.f32 1.0, %v2430
      %v2432 = vrcp.pop %v2187
      %v2433 = vmul.f32 1.0, %v2432
      %v2434 = vrcp.pop %v2188
      %v2435 = vmul.f32 1.0, %v2434
      %v2436 = vrcp.pop %v2189
      %v2437 = vmul.f32 1.0, %v2436
      %v2438 = vrcp.pop %v2190
      %v2439 = vmul.f32 1.0, %v2438
      %v2440 = vrcp.pop %v2191
      %v2441 = vmul.f32 1.0, %v2440
      %v2442 = vrcp.pop %v2192
      %v2443 = vmul.f32 1.0, %v2442
      %v2444 = vrcp.pop %v2193
      %v2445 = vmul.f32 1.0, %v2444
      %v2446 = vrcp.pop %v2194
      %v2447 = vmul.f32 1.0, %v2446
      %v2448 = vrcp.pop %v2195
      %v2449 = vmul.f32 1.0, %v2448
      %v2450 = vrcp.pop %v2196
      %v2451 = vmul.f32 1.0, %v2450
      %v2452 = vrcp.pop %v2197
      %v2453 = vmul.f32 1.0, %v2452
      %v2454 = vmul.f32 %v2199, 1.0614054
      %v2455 = vmul.f32 %v2201, 1.0614054
      %v2456 = vmul.f32 %v2203, 1.0614054
      %v2457 = vmul.f32 %v2205, 1.0614054
      %v2458 = vmul.f32 %v2207, 1.0614054
      %v2459 = vmul.f32 %v2209, 1.0614054
      %v2460 = vmul.f32 %v2211, 1.0614054
      %v2461 = vmul.f32 %v2213, 1.0614054
      %v2462 = vmul.f32 %v2215, 1.0614054
      %v2463 = vmul.f32 %v2217, 1.0614054
      %v2464 = vmul.f32 %v2219, 1.0614054
      %v2465 = vmul.f32 %v2221, 1.0614054
      %v2466 = vmul.f32 %v2223, 1.0614054
      %v2467 = vmul.f32 %v2225, 1.0614054
      %v2468 = vmul.f32 %v2227, 1.0614054
      %v2469 = vmul.f32 %v2229, 1.0614054
      %v2470 = vmul.f32 %v2231, 1.0614054
      %v2471 = vmul.f32 %v2233, 1.0614054
      %v2472 = vmul.f32 %v2235, 1.0614054
      %v2473 = vmul.f32 %v2237, 1.0614054
      %v2474 = vmul.f32 %v2239, 1.0614054
      %v2475 = vmul.f32 %v2241, 1.0614054
      %v2476 = vmul.f32 %v2243, 1.0614054
      %v2477 = vmul.f32 %v2245, 1.0614054
      %v2478 = vmul.f32 %v2247, 1.0614054
      %v2479 = vmul.f32 %v2249, 1.0614054
      %v2480 = vmul.f32 %v2251, 1.0614054
      %v2481 = vmul.f32 %v2253, 1.0614054
      %v2482 = vmul.f32 %v2255, 1.0614054
      %v2483 = vmul.f32 %v2257, 1.0614054
      %v2484 = vmul.f32 %v2259, 1.0614054
      %v2485 = vmul.f32 %v2261, 1.0614054
      %v2486 = vmul.f32 %v2263, 1.0614054
      %v2487 = vmul.f32 %v2265, 1.0614054
      %v2488 = vmul.f32 %v2267, 1.0614054
      %v2489 = vmul.f32 %v2269, 1.0614054
      %v2490 = vmul.f32 %v2271, 1.0614054
      %v2491 = vmul.f32 %v2273, 1.0614054
      %v2492 = vmul.f32 %v2275, 1.0614054
      %v2493 = vmul.f32 %v2277, 1.0614054
      %v2494 = vmul.f32 %v2279, 1.0614054
      %v2495 = vmul.f32 %v2281, 1.0614054
      %v2496 = vmul.f32 %v2283, 1.0614054
      %v2497 = vmul.f32 %v2285, 1.0614054
      %v2498 = vmul.f32 %v2287, 1.0614054
      %v2499 = vmul.f32 %v2289, 1.0614054
      %v2500 = vmul.f32 %v2291, 1.0614054
      %v2501 = vmul.f32 %v2293, 1.0614054
      %v2502 = vmul.f32 %v2295, 1.0614054
      %v2503 = vmul.f32 %v2297, 1.0614054
      %v2504 = vmul.f32 %v2299, 1.0614054
      %v2505 = vmul.f32 %v2301, 1.0614054
      %v2506 = vmul.f32 %v2303, 1.0614054
      %v2507 = vmul.f32 %v2305, 1.0614054
      %v2508 = vmul.f32 %v2307, 1.0614054
      %v2509 = vmul.f32 %v2309, 1.0614054
      %v2510 = vmul.f32 %v2311, 1.0614054
      %v2511 = vmul.f32 %v2313, 1.0614054
      %v2512 = vmul.f32 %v2315, 1.0614054
      %v2513 = vmul.f32 %v2317, 1.0614054
      %v2514 = vmul.f32 %v2319, 1.0614054
      %v2515 = vmul.f32 %v2321, 1.0614054
      %v2516 = vmul.f32 %v2323, 1.0614054
      %v2517 = vmul.f32 %v2325, 1.0614054
      %v2518 = vmul.f32 %v2327, 1.0614054
      %v2519 = vmul.f32 %v2329, 1.0614054
      %v2520 = vmul.f32 %v2331, 1.0614054
      %v2521 = vmul.f32 %v2333, 1.0614054
      %v2522 = vmul.f32 %v2335, 1.0614054
      %v2523 = vmul.f32 %v2337, 1.0614054
      %v2524 = vmul.f32 %v2339, 1.0614054
      %v2525 = vmul.f32 %v2341, 1.0614054
      %v2526 = vmul.f32 %v2343, 1.0614054
      %v2527 = vmul.f32 %v2345, 1.0614054
      %v2528 = vmul.f32 %v2347, 1.0614054
      %v2529 = vmul.f32 %v2349, 1.0614054
      %v2530 = vmul.f32 %v2351, 1.0614054
      %v2531 = vmul.f32 %v2353, 1.0614054
      %v2532 = vmul.f32 %v2355, 1.0614054
      %v2533 = vmul.f32 %v2357, 1.0614054
      %v2534 = vmul.f32 %v2359, 1.0614054
      %v2535 = vmul.f32 %v2361, 1.0614054
      %v2536 = vmul.f32 %v2363, 1.0614054
      %v2537 = vmul.f32 %v2365, 1.0614054
      %v2538 = vmul.f32 %v2367, 1.0614054
      %v2539 = vmul.f32 %v2369, 1.0614054
      %v2540 = vmul.f32 %v2371, 1.0614054
      %v2541 = vmul.f32 %v2373, 1.0614054
      %v2542 = vmul.f32 %v2375, 1.0614054
      %v2543 = vmul.f32 %v2377, 1.0614054
      %v2544 = vmul.f32 %v2379, 1.0614054
      %v2545 = vmul.f32 %v2381, 1.0614054
      %v2546 = vmul.f32 %v2383, 1.0614054
      %v2547 = vmul.f32 %v2385, 1.0614054
      %v2548 = vmul.f32 %v2387, 1.0614054
      %v2549 = vmul.f32 %v2389, 1.0614054
      %v2550 = vmul.f32 %v2391, 1.0614054
      %v2551 = vmul.f32 %v2393, 1.0614054
      %v2552 = vmul.f32 %v2395, 1.0614054
      %v2553 = vmul.f32 %v2397, 1.0614054
      %v2554 = vmul.f32 %v2399, 1.0614054
      %v2555 = vmul.f32 %v2401, 1.0614054
      %v2556 = vmul.f32 %v2403, 1.0614054
      %v2557 = vmul.f32 %v2405, 1.0614054
      %v2558 = vmul.f32 %v2407, 1.0614054
      %v2559 = vmul.f32 %v2409, 1.0614054
      %v2560 = vmul.f32 %v2411, 1.0614054
      %v2561 = vmul.f32 %v2413, 1.0614054
      %v2562 = vmul.f32 %v2415, 1.0614054
      %v2563 = vmul.f32 %v2417, 1.0614054
      %v2564 = vmul.f32 %v2419, 1.0614054
      %v2565 = vmul.f32 %v2421, 1.0614054
      %v2566 = vmul.f32 %v2423, 1.0614054
      %v2567 = vmul.f32 %v2425, 1.0614054
      %v2568 = vmul.f32 %v2427, 1.0614054
      %v2569 = vmul.f32 %v2429, 1.0614054
      %v2570 = vmul.f32 %v2431, 1.0614054
      %v2571 = vmul.f32 %v2433, 1.0614054
      %v2572 = vmul.f32 %v2435, 1.0614054
      %v2573 = vmul.f32 %v2437, 1.0614054
      %v2574 = vmul.f32 %v2439, 1.0614054
      %v2575 = vmul.f32 %v2441, 1.0614054
      %v2576 = vmul.f32 %v2443, 1.0614054
      %v2577 = vmul.f32 %v2445, 1.0614054
      %v2578 = vmul.f32 %v2447, 1.0614054
      %v2579 = vmul.f32 %v2449, 1.0614054
      %v2580 = vmul.f32 %v2451, 1.0614054
      %v2581 = vmul.f32 %v2453, 1.0614054
      %v2582 = vadd.f32 %v2454, -1.4531521
      %v2583 = vadd.f32 %v2455, -1.4531521
      %v2584 = vadd.f32 %v2456, -1.4531521
      %v2585 = vadd.f32 %v2457, -1.4531521
      %v2586 = vadd.f32 %v2458, -1.4531521
      %v2587 = vadd.f32 %v2459, -1.4531521
      %v2588 = vadd.f32 %v2460, -1.4531521
      %v2589 = vadd.f32 %v2461, -1.4531521
      %v2590 = vadd.f32 %v2462, -1.4531521
      %v2591 = vadd.f32 %v2463, -1.4531521
      %v2592 = vadd.f32 %v2464, -1.4531521
      %v2593 = vadd.f32 %v2465, -1.4531521
      %v2594 = vadd.f32 %v2466, -1.4531521
      %v2595 = vadd.f32 %v2467, -1.4531521
      %v2596 = vadd.f32 %v2468, -1.4531521
      %v2597 = vadd.f32 %v2469, -1.4531521
      %v2598 = vadd.f32 %v2470, -1.4531521
      %v2599 = vadd.f32 %v2471, -1.4531521
      %v2600 = vadd.f32 %v2472, -1.4531521
      %v2601 = vadd.f32 %v2473, -1.4531521
      %v2602 = vadd.f32 %v2474, -1.4531521
      %v2603 = vadd.f32 %v2475, -1.4531521
      %v2604 = vadd.f32 %v2476, -1.4531521
      %v2605 = vadd.f32 %v2477, -1.4531521
      %v2606 = vadd.f32 %v2478, -1.4531521
      %v2607 = vadd.f32 %v2479, -1.4531521
      %v2608 = vadd.f32 %v2480, -1.4531521
      %v2609 = vadd.f32 %v2481, -1.4531521
      %v2610 = vadd.f32 %v2482, -1.4531521
      %v2611 = vadd.f32 %v2483, -1.4531521
      %v2612 = vadd.f32 %v2484, -1.4531521
      %v2613 = vadd.f32 %v2485, -1.4531521
      %v2614 = vadd.f32 %v2486, -1.4531521
      %v2615 = vadd.f32 %v2487, -1.4531521
      %v2616 = vadd.f32 %v2488, -1.4531521
      %v2617 = vadd.f32 %v2489, -1.4531521
      %v2618 = vadd.f32 %v2490, -1.4531521
      %v2619 = vadd.f32 %v2491, -1.4531521
      %v2620 = vadd.f32 %v2492, -1.4531521
      %v2621 = vadd.f32 %v2493, -1.4531521
      %v2622 = vadd.f32 %v2494, -1.4531521
      %v2623 = vadd.f32 %v2495, -1.4531521
      %v2624 = vadd.f32 %v2496, -1.4531521
      %v2625 = vadd.f32 %v2497, -1.4531521
      %v2626 = vadd.f32 %v2498, -1.4531521
      %v2627 = vadd.f32 %v2499, -1.4531521
      %v2628 = vadd.f32 %v2500, -1.4531521
      %v2629 = vadd.f32 %v2501, -1.4531521
      %v2630 = vadd.f32 %v2502, -1.4531521
      %v2631 = vadd.f32 %v2503, -1.4531521
      %v2632 = vadd.f32 %v2504, -1.4531521
      %v2633 = vadd.f32 %v2505, -1.4531521
      %v2634 = vadd.f32 %v2506, -1.4531521
      %v2635 = vadd.f32 %v2507, -1.4531521
      %v2636 = vadd.f32 %v2508, -1.4531521
      %v2637 = vadd.f32 %v2509, -1.4531521
      %v2638 = vadd.f32 %v2510, -1.4531521
      %v2639 = vadd.f32 %v2511, -1.4531521
      %v2640 = vadd.f32 %v2512, -1.4531521
      %v2641 = vadd.f32 %v2513, -1.4531521
      %v2642 = vadd.f32 %v2514, -1.4531521
      %v2643 = vadd.f32 %v2515, -1.4531521
      %v2644 = vadd.f32 %v2516, -1.4531521
      %v2645 = vadd.f32 %v2517, -1.4531521
      %v2646 = vadd.f32 %v2518, -1.4531521
      %v2647 = vadd.f32 %v2519, -1.4531521
      %v2648 = vadd.f32 %v2520, -1.4531521
      %v2649 = vadd.f32 %v2521, -1.4531521
      %v2650 = vadd.f32 %v2522, -1.4531521
      %v2651 = vadd.f32 %v2523, -1.4531521
      %v2652 = vadd.f32 %v2524, -1.4531521
      %v2653 = vadd.f32 %v2525, -1.4531521
      %v2654 = vadd.f32 %v2526, -1.4531521
      %v2655 = vadd.f32 %v2527, -1.4531521
      %v2656 = vadd.f32 %v2528, -1.4531521
      %v2657 = vadd.f32 %v2529, -1.4531521
      %v2658 = vadd.f32 %v2530, -1.4531521
      %v2659 = vadd.f32 %v2531, -1.4531521
      %v2660 = vadd.f32 %v2532, -1.4531521
      %v2661 = vadd.f32 %v2533, -1.4531521
      %v2662 = vadd.f32 %v2534, -1.4531521
      %v2663 = vadd.f32 %v2535, -1.4531521
      %v2664 = vadd.f32 %v2536, -1.4531521
      %v2665 = vadd.f32 %v2537, -1.4531521
      %v2666 = vadd.f32 %v2538, -1.4531521
      %v2667 = vadd.f32 %v2539, -1.4531521
      %v2668 = vadd.f32 %v2540, -1.4531521
      %v2669 = vadd.f32 %v2541, -1.4531521
      %v2670 = vadd.f32 %v2542, -1.4531521
      %v2671 = vadd.f32 %v2543, -1.4531521
      %v2672 = vadd.f32 %v2544, -1.4531521
      %v2673 = vadd.f32 %v2545, -1.4531521
      %v2674 = vadd.f32 %v2546, -1.4531521
      %v2675 = vadd.f32 %v2547, -1.4531521
      %v2676 = vadd.f32 %v2548, -1.4531521
      %v2677 = vadd.f32 %v2549, -1.4531521
      %v2678 = vadd.f32 %v2550, -1.4531521
      %v2679 = vadd.f32 %v2551, -1.4531521
      %v2680 = vadd.f32 %v2552, -1.4531521
      %v2681 = vadd.f32 %v2553, -1.4531521
      %v2682 = vadd.f32 %v2554, -1.4531521
      %v2683 = vadd.f32 %v2555, -1.4531521
      %v2684 = vadd.f32 %v2556, -1.4531521
      %v2685 = vadd.f32 %v2557, -1.4531521
      %v2686 = vadd.f32 %v2558, -1.4531521
      %v2687 = vadd.f32 %v2559, -1.4531521
      %v2688 = vadd.f32 %v2560, -1.4531521
      %v2689 = vadd.f32 %v2561, -1.4531521
      %v2690 = vadd.f32 %v2562, -1.4531521
      %v2691 = vadd.f32 %v2563, -1.4531521
      %v2692 = vadd.f32 %v2564, -1.4531521
      %v2693 = vadd.f32 %v2565, -1.4531521
      %v2694 = vadd.f32 %v2566, -1.4531521
      %v2695 = vadd.f32 %v2567, -1.4531521
      %v2696 = vadd.f32 %v2568, -1.4531521
      %v2697 = vadd.f32 %v2569, -1.4531521
      %v2698 = vadd.f32 %v2570, -1.4531521
      %v2699 = vadd.f32 %v2571, -1.4531521
      %v2700 = vadd.f32 %v2572, -1.4531521
      %v2701 = vadd.f32 %v2573, -1.4531521
      %v2702 = vadd.f32 %v2574, -1.4531521
      %v2703 = vadd.f32 %v2575, -1.4531521
      %v2704 = vadd.f32 %v2576, -1.4531521
      %v2705 = vadd.f32 %v2577, -1.4531521
      %v2706 = vadd.f32 %v2578, -1.4531521
      %v2707 = vadd.f32 %v2579, -1.4531521
      %v2708 = vadd.f32 %v2580, -1.4531521
      %v2709 = vadd.f32 %v2581, -1.4531521
      %v2710 = vmul.f32 %v2582, %v2199
      %v2711 = vmul.f32 %v2583, %v2201
      %v2712 = vmul.f32 %v2584, %v2203
      %v2713 = vmul.f32 %v2585, %v2205
      %v2714 = vmul.f32 %v2586, %v2207
      %v2715 = vmul.f32 %v2587, %v2209
      %v2716 = vmul.f32 %v2588, %v2211
      %v2717 = vmul.f32 %v2589, %v2213
      %v2718 = vmul.f32 %v2590, %v2215
      %v2719 = vmul.f32 %v2591, %v2217
      %v2720 = vmul.f32 %v2592, %v2219
      %v2721 = vmul.f32 %v2593, %v2221
      %v2722 = vmul.f32 %v2594, %v2223
      %v2723 = vmul.f32 %v2595, %v2225
      %v2724 = vmul.f32 %v2596, %v2227
      %v2725 = vmul.f32 %v2597, %v2229
      %v2726 = vmul.f32 %v2598, %v2231
      %v2727 = vmul.f32 %v2599, %v2233
      %v2728 = vmul.f32 %v2600, %v2235
      %v2729 = vmul.f32 %v2601, %v2237
      %v2730 = vmul.f32 %v2602, %v2239
      %v2731 = vmul.f32 %v2603, %v2241
      %v2732 = vmul.f32 %v2604, %v2243
      %v2733 = vmul.f32 %v2605, %v2245
      %v2734 = vmul.f32 %v2606, %v2247
      %v2735 = vmul.f32 %v2607, %v2249
      %v2736 = vmul.f32 %v2608, %v2251
      %v2737 = vmul.f32 %v2609, %v2253
      %v2738 = vmul.f32 %v2610, %v2255
      %v2739 = vmul.f32 %v2611, %v2257
      %v2740 = vmul.f32 %v2612, %v2259
      %v2741 = vmul.f32 %v2613, %v2261
      %v2742 = vmul.f32 %v2614, %v2263
      %v2743 = vmul.f32 %v2615, %v2265
      %v2744 = vmul.f32 %v2616, %v2267
      %v2745 = vmul.f32 %v2617, %v2269
      %v2746 = vmul.f32 %v2618, %v2271
      %v2747 = vmul.f32 %v2619, %v2273
      %v2748 = vmul.f32 %v2620, %v2275
      %v2749 = vmul.f32 %v2621, %v2277
      %v2750 = vmul.f32 %v2622, %v2279
      %v2751 = vmul.f32 %v2623, %v2281
      %v2752 = vmul.f32 %v2624, %v2283
      %v2753 = vmul.f32 %v2625, %v2285
      %v2754 = vmul.f32 %v2626, %v2287
      %v2755 = vmul.f32 %v2627, %v2289
      %v2756 = vmul.f32 %v2628, %v2291
      %v2757 = vmul.f32 %v2629, %v2293
      %v2758 = vmul.f32 %v2630, %v2295
      %v2759 = vmul.f32 %v2631, %v2297
      %v2760 = vmul.f32 %v2632, %v2299
      %v2761 = vmul.f32 %v2633, %v2301
      %v2762 = vmul.f32 %v2634, %v2303
      %v2763 = vmul.f32 %v2635, %v2305
      %v2764 = vmul.f32 %v2636, %v2307
      %v2765 = vmul.f32 %v2637, %v2309
      %v2766 = vmul.f32 %v2638, %v2311
      %v2767 = vmul.f32 %v2639, %v2313
      %v2768 = vmul.f32 %v2640, %v2315
      %v2769 = vmul.f32 %v2641, %v2317
      %v2770 = vmul.f32 %v2642, %v2319
      %v2771 = vmul.f32 %v2643, %v2321
      %v2772 = vmul.f32 %v2644, %v2323
      %v2773 = vmul.f32 %v2645, %v2325
      %v2774 = vmul.f32 %v2646, %v2327
      %v2775 = vmul.f32 %v2647, %v2329
      %v2776 = vmul.f32 %v2648, %v2331
      %v2777 = vmul.f32 %v2649, %v2333
      %v2778 = vmul.f32 %v2650, %v2335
      %v2779 = vmul.f32 %v2651, %v2337
      %v2780 = vmul.f32 %v2652, %v2339
      %v2781 = vmul.f32 %v2653, %v2341
      %v2782 = vmul.f32 %v2654, %v2343
      %v2783 = vmul.f32 %v2655, %v2345
      %v2784 = vmul.f32 %v2656, %v2347
      %v2785 = vmul.f32 %v2657, %v2349
      %v2786 = vmul.f32 %v2658, %v2351
      %v2787 = vmul.f32 %v2659, %v2353
      %v2788 = vmul.f32 %v2660, %v2355
      %v2789 = vmul.f32 %v2661, %v2357
      %v2790 = vmul.f32 %v2662, %v2359
      %v2791 = vmul.f32 %v2663, %v2361
      %v2792 = vmul.f32 %v2664, %v2363
      %v2793 = vmul.f32 %v2665, %v2365
      %v2794 = vmul.f32 %v2666, %v2367
      %v2795 = vmul.f32 %v2667, %v2369
      %v2796 = vmul.f32 %v2668, %v2371
      %v2797 = vmul.f32 %v2669, %v2373
      %v2798 = vmul.f32 %v2670, %v2375
      %v2799 = vmul.f32 %v2671, %v2377
      %v2800 = vmul.f32 %v2672, %v2379
      %v2801 = vmul.f32 %v2673, %v2381
      %v2802 = vmul.f32 %v2674, %v2383
      %v2803 = vmul.f32 %v2675, %v2385
      %v2804 = vmul.f32 %v2676, %v2387
      %v2805 = vmul.f32 %v2677, %v2389
      %v2806 = vmul.f32 %v2678, %v2391
      %v2807 = vmul.f32 %v2679, %v2393
      %v2808 = vmul.f32 %v2680, %v2395
      %v2809 = vmul.f32 %v2681, %v2397
      %v2810 = vmul.f32 %v2682, %v2399
      %v2811 = vmul.f32 %v2683, %v2401
      %v2812 = vmul.f32 %v2684, %v2403
      %v2813 = vmul.f32 %v2685, %v2405
      %v2814 = vmul.f32 %v2686, %v2407
      %v2815 = vmul.f32 %v2687, %v2409
      %v2816 = vmul.f32 %v2688, %v2411
      %v2817 = vmul.f32 %v2689, %v2413
      %v2818 = vmul.f32 %v2690, %v2415
      %v2819 = vmul.f32 %v2691, %v2417
      %v2820 = vmul.f32 %v2692, %v2419
      %v2821 = vmul.f32 %v2693, %v2421
      %v2822 = vmul.f32 %v2694, %v2423
      %v2823 = vmul.f32 %v2695, %v2425
      %v2824 = vmul.f32 %v2696, %v2427
      %v2825 = vmul.f32 %v2697, %v2429
      %v2826 = vmul.f32 %v2698, %v2431
      %v2827 = vmul.f32 %v2699, %v2433
      %v2828 = vmul.f32 %v2700, %v2435
      %v2829 = vmul.f32 %v2701, %v2437
      %v2830 = vmul.f32 %v2702, %v2439
      %v2831 = vmul.f32 %v2703, %v2441
      %v2832 = vmul.f32 %v2704, %v2443
      %v2833 = vmul.f32 %v2705, %v2445
      %v2834 = vmul.f32 %v2706, %v2447
      %v2835 = vmul.f32 %v2707, %v2449
      %v2836 = vmul.f32 %v2708, %v2451
      %v2837 = vmul.f32 %v2709, %v2453
      %v2838 = vadd.f32 %v2710, 1.4214138
      %v2839 = vadd.f32 %v2711, 1.4214138
      %v2840 = vadd.f32 %v2712, 1.4214138
      %v2841 = vadd.f32 %v2713, 1.4214138
      %v2842 = vadd.f32 %v2714, 1.4214138
      %v2843 = vadd.f32 %v2715, 1.4214138
      %v2844 = vadd.f32 %v2716, 1.4214138
      %v2845 = vadd.f32 %v2717, 1.4214138
      %v2846 = vadd.f32 %v2718, 1.4214138
      %v2847 = vadd.f32 %v2719, 1.4214138
      %v2848 = vadd.f32 %v2720, 1.4214138
      %v2849 = vadd.f32 %v2721, 1.4214138
      %v2850 = vadd.f32 %v2722, 1.4214138
      %v2851 = vadd.f32 %v2723, 1.4214138
      %v2852 = vadd.f32 %v2724, 1.4214138
      %v2853 = vadd.f32 %v2725, 1.4214138
      %v2854 = vadd.f32 %v2726, 1.4214138
      %v2855 = vadd.f32 %v2727, 1.4214138
      %v2856 = vadd.f32 %v2728, 1.4214138
      %v2857 = vadd.f32 %v2729, 1.4214138
      %v2858 = vadd.f32 %v2730, 1.4214138
      %v2859 = vadd.f32 %v2731, 1.4214138
      %v2860 = vadd.f32 %v2732, 1.4214138
      %v2861 = vadd.f32 %v2733, 1.4214138
      %v2862 = vadd.f32 %v2734, 1.4214138
      %v2863 = vadd.f32 %v2735, 1.4214138
      %v2864 = vadd.f32 %v2736, 1.4214138
      %v2865 = vadd.f32 %v2737, 1.4214138
      %v2866 = vadd.f32 %v2738, 1.4214138
      %v2867 = vadd.f32 %v2739, 1.4214138
      %v2868 = vadd.f32 %v2740, 1.4214138
      %v2869 = vadd.f32 %v2741, 1.4214138
      %v2870 = vadd.f32 %v2742, 1.4214138
      %v2871 = vadd.f32 %v2743, 1.4214138
      %v2872 = vadd.f32 %v2744, 1.4214138
      %v2873 = vadd.f32 %v2745, 1.4214138
      %v2874 = vadd.f32 %v2746, 1.4214138
      %v2875 = vadd.f32 %v2747, 1.4214138
      %v2876 = vadd.f32 %v2748, 1.4214138
      %v2877 = vadd.f32 %v2749, 1.4214138
      %v2878 = vadd.f32 %v2750, 1.4214138
      %v2879 = vadd.f32 %v2751, 1.4214138
      %v2880 = vadd.f32 %v2752, 1.4214138
      %v2881 = vadd.f32 %v2753, 1.4214138
      %v2882 = vadd.f32 %v2754, 1.4214138
      %v2883 = vadd.f32 %v2755, 1.4214138
      %v2884 = vadd.f32 %v2756, 1.4214138
      %v2885 = vadd.f32 %v2757, 1.4214138
      %v2886 = vadd.f32 %v2758, 1.4214138
      %v2887 = vadd.f32 %v2759, 1.4214138
      %v2888 = vadd.f32 %v2760, 1.4214138
      %v2889 = vadd.f32 %v2761, 1.4214138
      %v2890 = vadd.f32 %v2762, 1.4214138
      %v2891 = vadd.f32 %v2763, 1.4214138
      %v2892 = vadd.f32 %v2764, 1.4214138
      %v2893 = vadd.f32 %v2765, 1.4214138
      %v2894 = vadd.f32 %v2766, 1.4214138
      %v2895 = vadd.f32 %v2767, 1.4214138
      %v2896 = vadd.f32 %v2768, 1.4214138
      %v2897 = vadd.f32 %v2769, 1.4214138
      %v2898 = vadd.f32 %v2770, 1.4214138
      %v2899 = vadd.f32 %v2771, 1.4214138
      %v2900 = vadd.f32 %v2772, 1.4214138
      %v2901 = vadd.f32 %v2773, 1.4214138
      %v2902 = vadd.f32 %v2774, 1.4214138
      %v2903 = vadd.f32 %v2775, 1.4214138
      %v2904 = vadd.f32 %v2776, 1.4214138
      %v2905 = vadd.f32 %v2777, 1.4214138
      %v2906 = vadd.f32 %v2778, 1.4214138
      %v2907 = vadd.f32 %v2779, 1.4214138
      %v2908 = vadd.f32 %v2780, 1.4214138
      %v2909 = vadd.f32 %v2781, 1.4214138
      %v2910 = vadd.f32 %v2782, 1.4214138
      %v2911 = vadd.f32 %v2783, 1.4214138
      %v2912 = vadd.f32 %v2784, 1.4214138
      %v2913 = vadd.f32 %v2785, 1.4214138
      %v2914 = vadd.f32 %v2786, 1.4214138
      %v2915 = vadd.f32 %v2787, 1.4214138
      %v2916 = vadd.f32 %v2788, 1.4214138
      %v2917 = vadd.f32 %v2789, 1.4214138
      %v2918 = vadd.f32 %v2790, 1.4214138
      %v2919 = vadd.f32 %v2791, 1.4214138
      %v2920 = vadd.f32 %v2792, 1.4214138
      %v2921 = vadd.f32 %v2793, 1.4214138
      %v2922 = vadd.f32 %v2794, 1.4214138
      %v2923 = vadd.f32 %v2795, 1.4214138
      %v2924 = vadd.f32 %v2796, 1.4214138
      %v2925 = vadd.f32 %v2797, 1.4214138
      %v2926 = vadd.f32 %v2798, 1.4214138
      %v2927 = vadd.f32 %v2799, 1.4214138
      %v2928 = vadd.f32 %v2800, 1.4214138
      %v2929 = vadd.f32 %v2801, 1.4214138
      %v2930 = vadd.f32 %v2802, 1.4214138
      %v2931 = vadd.f32 %v2803, 1.4214138
      %v2932 = vadd.f32 %v2804, 1.4214138
      %v2933 = vadd.f32 %v2805, 1.4214138
      %v2934 = vadd.f32 %v2806, 1.4214138
      %v2935 = vadd.f32 %v2807, 1.4214138
      %v2936 = vadd.f32 %v2808, 1.4214138
      %v2937 = vadd.f32 %v2809, 1.4214138
      %v2938 = vadd.f32 %v2810, 1.4214138
      %v2939 = vadd.f32 %v2811, 1.4214138
      %v2940 = vadd.f32 %v2812, 1.4214138
      %v2941 = vadd.f32 %v2813, 1.4214138
      %v2942 = vadd.f32 %v2814, 1.4214138
      %v2943 = vadd.f32 %v2815, 1.4214138
      %v2944 = vadd.f32 %v2816, 1.4214138
      %v2945 = vadd.f32 %v2817, 1.4214138
      %v2946 = vadd.f32 %v2818, 1.4214138
      %v2947 = vadd.f32 %v2819, 1.4214138
      %v2948 = vadd.f32 %v2820, 1.4214138
      %v2949 = vadd.f32 %v2821, 1.4214138
      %v2950 = vadd.f32 %v2822, 1.4214138
      %v2951 = vadd.f32 %v2823, 1.4214138
      %v2952 = vadd.f32 %v2824, 1.4214138
      %v2953 = vadd.f32 %v2825, 1.4214138
      %v2954 = vadd.f32 %v2826, 1.4214138
      %v2955 = vadd.f32 %v2827, 1.4214138
      %v2956 = vadd.f32 %v2828, 1.4214138
      %v2957 = vadd.f32 %v2829, 1.4214138
      %v2958 = vadd.f32 %v2830, 1.4214138
      %v2959 = vadd.f32 %v2831, 1.4214138
      %v2960 = vadd.f32 %v2832, 1.4214138
      %v2961 = vadd.f32 %v2833, 1.4214138
      %v2962 = vadd.f32 %v2834, 1.4214138
      %v2963 = vadd.f32 %v2835, 1.4214138
      %v2964 = vadd.f32 %v2836, 1.4214138
      %v2965 = vadd.f32 %v2837, 1.4214138
      %v2966 = vmul.f32 %v2838, %v2199
      %v2967 = vmul.f32 %v2839, %v2201
      %v2968 = vmul.f32 %v2840, %v2203
      %v2969 = vmul.f32 %v2841, %v2205
      %v2970 = vmul.f32 %v2842, %v2207
      %v2971 = vmul.f32 %v2843, %v2209
      %v2972 = vmul.f32 %v2844, %v2211
      %v2973 = vmul.f32 %v2845, %v2213
      %v2974 = vmul.f32 %v2846, %v2215
      %v2975 = vmul.f32 %v2847, %v2217
      %v2976 = vmul.f32 %v2848, %v2219
      %v2977 = vmul.f32 %v2849, %v2221
      %v2978 = vmul.f32 %v2850, %v2223
      %v2979 = vmul.f32 %v2851, %v2225
      %v2980 = vmul.f32 %v2852, %v2227
      %v2981 = vmul.f32 %v2853, %v2229
      %v2982 = vmul.f32 %v2854, %v2231
      %v2983 = vmul.f32 %v2855, %v2233
      %v2984 = vmul.f32 %v2856, %v2235
      %v2985 = vmul.f32 %v2857, %v2237
      %v2986 = vmul.f32 %v2858, %v2239
      %v2987 = vmul.f32 %v2859, %v2241
      %v2988 = vmul.f32 %v2860, %v2243
      %v2989 = vmul.f32 %v2861, %v2245
      %v2990 = vmul.f32 %v2862, %v2247
      %v2991 = vmul.f32 %v2863, %v2249
      %v2992 = vmul.f32 %v2864, %v2251
      %v2993 = vmul.f32 %v2865, %v2253
      %v2994 = vmul.f32 %v2866, %v2255
      %v2995 = vmul.f32 %v2867, %v2257
      %v2996 = vmul.f32 %v2868, %v2259
      %v2997 = vmul.f32 %v2869, %v2261
      %v2998 = vmul.f32 %v2870, %v2263
      %v2999 = vmul.f32 %v2871, %v2265
      %v3000 = vmul.f32 %v2872, %v2267
      %v3001 = vmul.f32 %v2873, %v2269
      %v3002 = vmul.f32 %v2874, %v2271
      %v3003 = vmul.f32 %v2875, %v2273
      %v3004 = vmul.f32 %v2876, %v2275
      %v3005 = vmul.f32 %v2877, %v2277
      %v3006 = vmul.f32 %v2878, %v2279
      %v3007 = vmul.f32 %v2879, %v2281
      %v3008 = vmul.f32 %v2880, %v2283
      %v3009 = vmul.f32 %v2881, %v2285
      %v3010 = vmul.f32 %v2882, %v2287
      %v3011 = vmul.f32 %v2883, %v2289
      %v3012 = vmul.f32 %v2884, %v2291
      %v3013 = vmul.f32 %v2885, %v2293
      %v3014 = vmul.f32 %v2886, %v2295
      %v3015 = vmul.f32 %v2887, %v2297
      %v3016 = vmul.f32 %v2888, %v2299
      %v3017 = vmul.f32 %v2889, %v2301
      %v3018 = vmul.f32 %v2890, %v2303
      %v3019 = vmul.f32 %v2891, %v2305
      %v3020 = vmul.f32 %v2892, %v2307
      %v3021 = vmul.f32 %v2893, %v2309
      %v3022 = vmul.f32 %v2894, %v2311
      %v3023 = vmul.f32 %v2895, %v2313
      %v3024 = vmul.f32 %v2896, %v2315
      %v3025 = vmul.f32 %v2897, %v2317
      %v3026 = vmul.f32 %v2898, %v2319
      %v3027 = vmul.f32 %v2899, %v2321
      %v3028 = vmul.f32 %v2900, %v2323
      %v3029 = vmul.f32 %v2901, %v2325
      %v3030 = vmul.f32 %v2902, %v2327
      %v3031 = vmul.f32 %v2903, %v2329
      %v3032 = vmul.f32 %v2904, %v2331
      %v3033 = vmul.f32 %v2905, %v2333
      %v3034 = vmul.f32 %v2906, %v2335
      %v3035 = vmul.f32 %v2907, %v2337
      %v3036 = vmul.f32 %v2908, %v2339
      %v3037 = vmul.f32 %v2909, %v2341
      %v3038 = vmul.f32 %v2910, %v2343
      %v3039 = vmul.f32 %v2911, %v2345
      %v3040 = vmul.f32 %v2912, %v2347
      %v3041 = vmul.f32 %v2913, %v2349
      %v3042 = vmul.f32 %v2914, %v2351
      %v3043 = vmul.f32 %v2915, %v2353
      %v3044 = vmul.f32 %v2916, %v2355
      %v3045 = vmul.f32 %v2917, %v2357
      %v3046 = vmul.f32 %v2918, %v2359
      %v3047 = vmul.f32 %v2919, %v2361
      %v3048 = vmul.f32 %v2920, %v2363
      %v3049 = vmul.f32 %v2921, %v2365
      %v3050 = vmul.f32 %v2922, %v2367
      %v3051 = vmul.f32 %v2923, %v2369
      %v3052 = vmul.f32 %v2924, %v2371
      %v3053 = vmul.f32 %v2925, %v2373
      %v3054 = vmul.f32 %v2926, %v2375
      %v3055 = vmul.f32 %v2927, %v2377
      %v3056 = vmul.f32 %v2928, %v2379
      %v3057 = vmul.f32 %v2929, %v2381
      %v3058 = vmul.f32 %v2930, %v2383
      %v3059 = vmul.f32 %v2931, %v2385
      %v3060 = vmul.f32 %v2932, %v2387
      %v3061 = vmul.f32 %v2933, %v2389
      %v3062 = vmul.f32 %v2934, %v2391
      %v3063 = vmul.f32 %v2935, %v2393
      %v3064 = vmul.f32 %v2936, %v2395
      %v3065 = vmul.f32 %v2937, %v2397
      %v3066 = vmul.f32 %v2938, %v2399
      %v3067 = vmul.f32 %v2939, %v2401
      %v3068 = vmul.f32 %v2940, %v2403
      %v3069 = vmul.f32 %v2941, %v2405
      %v3070 = vmul.f32 %v2942, %v2407
      %v3071 = vmul.f32 %v2943, %v2409
      %v3072 = vmul.f32 %v2944, %v2411
      %v3073 = vmul.f32 %v2945, %v2413
      %v3074 = vmul.f32 %v2946, %v2415
      %v3075 = vmul.f32 %v2947, %v2417
      %v3076 = vmul.f32 %v2948, %v2419
      %v3077 = vmul.f32 %v2949, %v2421
      %v3078 = vmul.f32 %v2950, %v2423
      %v3079 = vmul.f32 %v2951, %v2425
      %v3080 = vmul.f32 %v2952, %v2427
      %v3081 = vmul.f32 %v2953, %v2429
      %v3082 = vmul.f32 %v2954, %v2431
      %v3083 = vmul.f32 %v2955, %v2433
      %v3084 = vmul.f32 %v2956, %v2435
      %v3085 = vmul.f32 %v2957, %v2437
      %v3086 = vmul.f32 %v2958, %v2439
      %v3087 = vmul.f32 %v2959, %v2441
      %v3088 = vmul.f32 %v2960, %v2443
      %v3089 = vmul.f32 %v2961, %v2445
      %v3090 = vmul.f32 %v2962, %v2447
      %v3091 = vmul.f32 %v2963, %v2449
      %v3092 = vmul.f32 %v2964, %v2451
      %v3093 = vmul.f32 %v2965, %v2453
      %v3094 = vadd.f32 %v2966, -0.28449672
      %v3095 = vadd.f32 %v2967, -0.28449672
      %v3096 = vadd.f32 %v2968, -0.28449672
      %v3097 = vadd.f32 %v2969, -0.28449672
      %v3098 = vadd.f32 %v2970, -0.28449672
      %v3099 = vadd.f32 %v2971, -0.28449672
      %v3100 = vadd.f32 %v2972, -0.28449672
      %v3101 = vadd.f32 %v2973, -0.28449672
      %v3102 = vadd.f32 %v2974, -0.28449672
      %v3103 = vadd.f32 %v2975, -0.28449672
      %v3104 = vadd.f32 %v2976, -0.28449672
      %v3105 = vadd.f32 %v2977, -0.28449672
      %v3106 = vadd.f32 %v2978, -0.28449672
      %v3107 = vadd.f32 %v2979, -0.28449672
      %v3108 = vadd.f32 %v2980, -0.28449672
      %v3109 = vadd.f32 %v2981, -0.28449672
      %v3110 = vadd.f32 %v2982, -0.28449672
      %v3111 = vadd.f32 %v2983, -0.28449672
      %v3112 = vadd.f32 %v2984, -0.28449672
      %v3113 = vadd.f32 %v2985, -0.28449672
      %v3114 = vadd.f32 %v2986, -0.28449672
      %v3115 = vadd.f32 %v2987, -0.28449672
      %v3116 = vadd.f32 %v2988, -0.28449672
      %v3117 = vadd.f32 %v2989, -0.28449672
      %v3118 = vadd.f32 %v2990, -0.28449672
      %v3119 = vadd.f32 %v2991, -0.28449672
      %v3120 = vadd.f32 %v2992, -0.28449672
      %v3121 = vadd.f32 %v2993, -0.28449672
      %v3122 = vadd.f32 %v2994, -0.28449672
      %v3123 = vadd.f32 %v2995, -0.28449672
      %v3124 = vadd.f32 %v2996, -0.28449672
      %v3125 = vadd.f32 %v2997, -0.28449672
      %v3126 = vadd.f32 %v2998, -0.28449672
      %v3127 = vadd.f32 %v2999, -0.28449672
      %v3128 = vadd.f32 %v3000, -0.28449672
      %v3129 = vadd.f32 %v3001, -0.28449672
      %v3130 = vadd.f32 %v3002, -0.28449672
      %v3131 = vadd.f32 %v3003, -0.28449672
      %v3132 = vadd.f32 %v3004, -0.28449672
      %v3133 = vadd.f32 %v3005, -0.28449672
      %v3134 = vadd.f32 %v3006, -0.28449672
      %v3135 = vadd.f32 %v3007, -0.28449672
      %v3136 = vadd.f32 %v3008, -0.28449672
      %v3137 = vadd.f32 %v3009, -0.28449672
      %v3138 = vadd.f32 %v3010, -0.28449672
      %v3139 = vadd.f32 %v3011, -0.28449672
      %v3140 = vadd.f32 %v3012, -0.28449672
      %v3141 = vadd.f32 %v3013, -0.28449672
      %v3142 = vadd.f32 %v3014, -0.28449672
      %v3143 = vadd.f32 %v3015, -0.28449672
      %v3144 = vadd.f32 %v3016, -0.28449672
      %v3145 = vadd.f32 %v3017, -0.28449672
      %v3146 = vadd.f32 %v3018, -0.28449672
      %v3147 = vadd.f32 %v3019, -0.28449672
      %v3148 = vadd.f32 %v3020, -0.28449672
      %v3149 = vadd.f32 %v3021, -0.28449672
      %v3150 = vadd.f32 %v3022, -0.28449672
      %v3151 = vadd.f32 %v3023, -0.28449672
      %v3152 = vadd.f32 %v3024, -0.28449672
      %v3153 = vadd.f32 %v3025, -0.28449672
      %v3154 = vadd.f32 %v3026, -0.28449672
      %v3155 = vadd.f32 %v3027, -0.28449672
      %v3156 = vadd.f32 %v3028, -0.28449672
      %v3157 = vadd.f32 %v3029, -0.28449672
      %v3158 = vadd.f32 %v3030, -0.28449672
      %v3159 = vadd.f32 %v3031, -0.28449672
      %v3160 = vadd.f32 %v3032, -0.28449672
      %v3161 = vadd.f32 %v3033, -0.28449672
      %v3162 = vadd.f32 %v3034, -0.28449672
      %v3163 = vadd.f32 %v3035, -0.28449672
      %v3164 = vadd.f32 %v3036, -0.28449672
      %v3165 = vadd.f32 %v3037, -0.28449672
      %v3166 = vadd.f32 %v3038, -0.28449672
      %v3167 = vadd.f32 %v3039, -0.28449672
      %v3168 = vadd.f32 %v3040, -0.28449672
      %v3169 = vadd.f32 %v3041, -0.28449672
      %v3170 = vadd.f32 %v3042, -0.28449672
      %v3171 = vadd.f32 %v3043, -0.28449672
      %v3172 = vadd.f32 %v3044, -0.28449672
      %v3173 = vadd.f32 %v3045, -0.28449672
      %v3174 = vadd.f32 %v3046, -0.28449672
      %v3175 = vadd.f32 %v3047, -0.28449672
      %v3176 = vadd.f32 %v3048, -0.28449672
      %v3177 = vadd.f32 %v3049, -0.28449672
      %v3178 = vadd.f32 %v3050, -0.28449672
      %v3179 = vadd.f32 %v3051, -0.28449672
      %v3180 = vadd.f32 %v3052, -0.28449672
      %v3181 = vadd.f32 %v3053, -0.28449672
      %v3182 = vadd.f32 %v3054, -0.28449672
      %v3183 = vadd.f32 %v3055, -0.28449672
      %v3184 = vadd.f32 %v3056, -0.28449672
      %v3185 = vadd.f32 %v3057, -0.28449672
      %v3186 = vadd.f32 %v3058, -0.28449672
      %v3187 = vadd.f32 %v3059, -0.28449672
      %v3188 = vadd.f32 %v3060, -0.28449672
      %v3189 = vadd.f32 %v3061, -0.28449672
      %v3190 = vadd.f32 %v3062, -0.28449672
      %v3191 = vadd.f32 %v3063, -0.28449672
      %v3192 = vadd.f32 %v3064, -0.28449672
      %v3193 = vadd.f32 %v3065, -0.28449672
      %v3194 = vadd.f32 %v3066, -0.28449672
      %v3195 = vadd.f32 %v3067, -0.28449672
      %v3196 = vadd.f32 %v3068, -0.28449672
      %v3197 = vadd.f32 %v3069, -0.28449672
      %v3198 = vadd.f32 %v3070, -0.28449672
      %v3199 = vadd.f32 %v3071, -0.28449672
      %v3200 = vadd.f32 %v3072, -0.28449672
      %v3201 = vadd.f32 %v3073, -0.28449672
      %v3202 = vadd.f32 %v3074, -0.28449672
      %v3203 = vadd.f32 %v3075, -0.28449672
      %v3204 = vadd.f32 %v3076, -0.28449672
      %v3205 = vadd.f32 %v3077, -0.28449672
      %v3206 = vadd.f32 %v3078, -0.28449672
      %v3207 = vadd.f32 %v3079, -0.28449672
      %v3208 = vadd.f32 %v3080, -0.28449672
      %v3209 = vadd.f32 %v3081, -0.28449672
      %v3210 = vadd.f32 %v3082, -0.28449672
      %v3211 = vadd.f32 %v3083, -0.28449672
      %v3212 = vadd.f32 %v3084, -0.28449672
      %v3213 = vadd.f32 %v3085, -0.28449672
      %v3214 = vadd.f32 %v3086, -0.28449672
      %v3215 = vadd.f32 %v3087, -0.28449672
      %v3216 = vadd.f32 %v3088, -0.28449672
      %v3217 = vadd.f32 %v3089, -0.28449672
      %v3218 = vadd.f32 %v3090, -0.28449672
      %v3219 = vadd.f32 %v3091, -0.28449672
      %v3220 = vadd.f32 %v3092, -0.28449672
      %v3221 = vadd.f32 %v3093, -0.28449672
      %v3222 = vmul.f32 %v3094, %v2199
      %v3223 = vmul.f32 %v3095, %v2201
      %v3224 = vmul.f32 %v3096, %v2203
      %v3225 = vmul.f32 %v3097, %v2205
      %v3226 = vmul.f32 %v3098, %v2207
      %v3227 = vmul.f32 %v3099, %v2209
      %v3228 = vmul.f32 %v3100, %v2211
      %v3229 = vmul.f32 %v3101, %v2213
      %v3230 = vmul.f32 %v3102, %v2215
      %v3231 = vmul.f32 %v3103, %v2217
      %v3232 = vmul.f32 %v3104, %v2219
      %v3233 = vmul.f32 %v3105, %v2221
      %v3234 = vmul.f32 %v3106, %v2223
      %v3235 = vmul.f32 %v3107, %v2225
      %v3236 = vmul.f32 %v3108, %v2227
      %v3237 = vmul.f32 %v3109, %v2229
      %v3238 = vmul.f32 %v3110, %v2231
      %v3239 = vmul.f32 %v3111, %v2233
      %v3240 = vmul.f32 %v3112, %v2235
      %v3241 = vmul.f32 %v3113, %v2237
      %v3242 = vmul.f32 %v3114, %v2239
      %v3243 = vmul.f32 %v3115, %v2241
      %v3244 = vmul.f32 %v3116, %v2243
      %v3245 = vmul.f32 %v3117, %v2245
      %v3246 = vmul.f32 %v3118, %v2247
      %v3247 = vmul.f32 %v3119, %v2249
      %v3248 = vmul.f32 %v3120, %v2251
      %v3249 = vmul.f32 %v3121, %v2253
      %v3250 = vmul.f32 %v3122, %v2255
      %v3251 = vmul.f32 %v3123, %v2257
      %v3252 = vmul.f32 %v3124, %v2259
      %v3253 = vmul.f32 %v3125, %v2261
      %v3254 = vmul.f32 %v3126, %v2263
      %v3255 = vmul.f32 %v3127, %v2265
      %v3256 = vmul.f32 %v3128, %v2267
      %v3257 = vmul.f32 %v3129, %v2269
      %v3258 = vmul.f32 %v3130, %v2271
      %v3259 = vmul.f32 %v3131, %v2273
      %v3260 = vmul.f32 %v3132, %v2275
      %v3261 = vmul.f32 %v3133, %v2277
      %v3262 = vmul.f32 %v3134, %v2279
      %v3263 = vmul.f32 %v3135, %v2281
      %v3264 = vmul.f32 %v3136, %v2283
      %v3265 = vmul.f32 %v3137, %v2285
      %v3266 = vmul.f32 %v3138, %v2287
      %v3267 = vmul.f32 %v3139, %v2289
      %v3268 = vmul.f32 %v3140, %v2291
      %v3269 = vmul.f32 %v3141, %v2293
      %v3270 = vmul.f32 %v3142, %v2295
      %v3271 = vmul.f32 %v3143, %v2297
      %v3272 = vmul.f32 %v3144, %v2299
      %v3273 = vmul.f32 %v3145, %v2301
      %v3274 = vmul.f32 %v3146, %v2303
      %v3275 = vmul.f32 %v3147, %v2305
      %v3276 = vmul.f32 %v3148, %v2307
      %v3277 = vmul.f32 %v3149, %v2309
      %v3278 = vmul.f32 %v3150, %v2311
      %v3279 = vmul.f32 %v3151, %v2313
      %v3280 = vmul.f32 %v3152, %v2315
      %v3281 = vmul.f32 %v3153, %v2317
      %v3282 = vmul.f32 %v3154, %v2319
      %v3283 = vmul.f32 %v3155, %v2321
      %v3284 = vmul.f32 %v3156, %v2323
      %v3285 = vmul.f32 %v3157, %v2325
      %v3286 = vmul.f32 %v3158, %v2327
      %v3287 = vmul.f32 %v3159, %v2329
      %v3288 = vmul.f32 %v3160, %v2331
      %v3289 = vmul.f32 %v3161, %v2333
      %v3290 = vmul.f32 %v3162, %v2335
      %v3291 = vmul.f32 %v3163, %v2337
      %v3292 = vmul.f32 %v3164, %v2339
      %v3293 = vmul.f32 %v3165, %v2341
      %v3294 = vmul.f32 %v3166, %v2343
      %v3295 = vmul.f32 %v3167, %v2345
      %v3296 = vmul.f32 %v3168, %v2347
      %v3297 = vmul.f32 %v3169, %v2349
      %v3298 = vmul.f32 %v3170, %v2351
      %v3299 = vmul.f32 %v3171, %v2353
      %v3300 = vmul.f32 %v3172, %v2355
      %v3301 = vmul.f32 %v3173, %v2357
      %v3302 = vmul.f32 %v3174, %v2359
      %v3303 = vmul.f32 %v3175, %v2361
      %v3304 = vmul.f32 %v3176, %v2363
      %v3305 = vmul.f32 %v3177, %v2365
      %v3306 = vmul.f32 %v3178, %v2367
      %v3307 = vmul.f32 %v3179, %v2369
      %v3308 = vmul.f32 %v3180, %v2371
      %v3309 = vmul.f32 %v3181, %v2373
      %v3310 = vmul.f32 %v3182, %v2375
      %v3311 = vmul.f32 %v3183, %v2377
      %v3312 = vmul.f32 %v3184, %v2379
      %v3313 = vmul.f32 %v3185, %v2381
      %v3314 = vmul.f32 %v3186, %v2383
      %v3315 = vmul.f32 %v3187, %v2385
      %v3316 = vmul.f32 %v3188, %v2387
      %v3317 = vmul.f32 %v3189, %v2389
      %v3318 = vmul.f32 %v3190, %v2391
      %v3319 = vmul.f32 %v3191, %v2393
      %v3320 = vmul.f32 %v3192, %v2395
      %v3321 = vmul.f32 %v3193, %v2397
      %v3322 = vmul.f32 %v3194, %v2399
      %v3323 = vmul.f32 %v3195, %v2401
      %v3324 = vmul.f32 %v3196, %v2403
      %v3325 = vmul.f32 %v3197, %v2405
      %v3326 = vmul.f32 %v3198, %v2407
      %v3327 = vmul.f32 %v3199, %v2409
      %v3328 = vmul.f32 %v3200, %v2411
      %v3329 = vmul.f32 %v3201, %v2413
      %v3330 = vmul.f32 %v3202, %v2415
      %v3331 = vmul.f32 %v3203, %v2417
      %v3332 = vmul.f32 %v3204, %v2419
      %v3333 = vmul.f32 %v3205, %v2421
      %v3334 = vmul.f32 %v3206, %v2423
      %v3335 = vmul.f32 %v3207, %v2425
      %v3336 = vmul.f32 %v3208, %v2427
      %v3337 = vmul.f32 %v3209, %v2429
      %v3338 = vmul.f32 %v3210, %v2431
      %v3339 = vmul.f32 %v3211, %v2433
      %v3340 = vmul.f32 %v3212, %v2435
      %v3341 = vmul.f32 %v3213, %v2437
      %v3342 = vmul.f32 %v3214, %v2439
      %v3343 = vmul.f32 %v3215, %v2441
      %v3344 = vmul.f32 %v3216, %v2443
      %v3345 = vmul.f32 %v3217, %v2445
      %v3346 = vmul.f32 %v3218, %v2447
      %v3347 = vmul.f32 %v3219, %v2449
      %v3348 = vmul.f32 %v3220, %v2451
      %v3349 = vmul.f32 %v3221, %v2453
      %v3350 = vadd.f32 %v3222, 0.2548296
      %v3351 = vadd.f32 %v3223, 0.2548296
      %v3352 = vadd.f32 %v3224, 0.2548296
      %v3353 = vadd.f32 %v3225, 0.2548296
      %v3354 = vadd.f32 %v3226, 0.2548296
      %v3355 = vadd.f32 %v3227, 0.2548296
      %v3356 = vadd.f32 %v3228, 0.2548296
      %v3357 = vadd.f32 %v3229, 0.2548296
      %v3358 = vadd.f32 %v3230, 0.2548296
      %v3359 = vadd.f32 %v3231, 0.2548296
      %v3360 = vadd.f32 %v3232, 0.2548296
      %v3361 = vadd.f32 %v3233, 0.2548296
      %v3362 = vadd.f32 %v3234, 0.2548296
      %v3363 = vadd.f32 %v3235, 0.2548296
      %v3364 = vadd.f32 %v3236, 0.2548296
      %v3365 = vadd.f32 %v3237, 0.2548296
      %v3366 = vadd.f32 %v3238, 0.2548296
      %v3367 = vadd.f32 %v3239, 0.2548296
      %v3368 = vadd.f32 %v3240, 0.2548296
      %v3369 = vadd.f32 %v3241, 0.2548296
      %v3370 = vadd.f32 %v3242, 0.2548296
      %v3371 = vadd.f32 %v3243, 0.2548296
      %v3372 = vadd.f32 %v3244, 0.2548296
      %v3373 = vadd.f32 %v3245, 0.2548296
      %v3374 = vadd.f32 %v3246, 0.2548296
      %v3375 = vadd.f32 %v3247, 0.2548296
      %v3376 = vadd.f32 %v3248, 0.2548296
      %v3377 = vadd.f32 %v3249, 0.2548296
      %v3378 = vadd.f32 %v3250, 0.2548296
      %v3379 = vadd.f32 %v3251, 0.2548296
      %v3380 = vadd.f32 %v3252, 0.2548296
      %v3381 = vadd.f32 %v3253, 0.2548296
      %v3382 = vadd.f32 %v3254, 0.2548296
      %v3383 = vadd.f32 %v3255, 0.2548296
      %v3384 = vadd.f32 %v3256, 0.2548296
      %v3385 = vadd.f32 %v3257, 0.2548296
      %v3386 = vadd.f32 %v3258, 0.2548296
      %v3387 = vadd.f32 %v3259, 0.2548296
      %v3388 = vadd.f32 %v3260, 0.2548296
      %v3389 = vadd.f32 %v3261, 0.2548296
      %v3390 = vadd.f32 %v3262, 0.2548296
      %v3391 = vadd.f32 %v3263, 0.2548296
      %v3392 = vadd.f32 %v3264, 0.2548296
      %v3393 = vadd.f32 %v3265, 0.2548296
      %v3394 = vadd.f32 %v3266, 0.2548296
      %v3395 = vadd.f32 %v3267, 0.2548296
      %v3396 = vadd.f32 %v3268, 0.2548296
      %v3397 = vadd.f32 %v3269, 0.2548296
      %v3398 = vadd.f32 %v3270, 0.2548296
      %v3399 = vadd.f32 %v3271, 0.2548296
      %v3400 = vadd.f32 %v3272, 0.2548296
      %v3401 = vadd.f32 %v3273, 0.2548296
      %v3402 = vadd.f32 %v3274, 0.2548296
      %v3403 = vadd.f32 %v3275, 0.2548296
      %v3404 = vadd.f32 %v3276, 0.2548296
      %v3405 = vadd.f32 %v3277, 0.2548296
      %v3406 = vadd.f32 %v3278, 0.2548296
      %v3407 = vadd.f32 %v3279, 0.2548296
      %v3408 = vadd.f32 %v3280, 0.2548296
      %v3409 = vadd.f32 %v3281, 0.2548296
      %v3410 = vadd.f32 %v3282, 0.2548296
      %v3411 = vadd.f32 %v3283, 0.2548296
      %v3412 = vadd.f32 %v3284, 0.2548296
      %v3413 = vadd.f32 %v3285, 0.2548296
      %v3414 = vadd.f32 %v3286, 0.2548296
      %v3415 = vadd.f32 %v3287, 0.2548296
      %v3416 = vadd.f32 %v3288, 0.2548296
      %v3417 = vadd.f32 %v3289, 0.2548296
      %v3418 = vadd.f32 %v3290, 0.2548296
      %v3419 = vadd.f32 %v3291, 0.2548296
      %v3420 = vadd.f32 %v3292, 0.2548296
      %v3421 = vadd.f32 %v3293, 0.2548296
      %v3422 = vadd.f32 %v3294, 0.2548296
      %v3423 = vadd.f32 %v3295, 0.2548296
      %v3424 = vadd.f32 %v3296, 0.2548296
      %v3425 = vadd.f32 %v3297, 0.2548296
      %v3426 = vadd.f32 %v3298, 0.2548296
      %v3427 = vadd.f32 %v3299, 0.2548296
      %v3428 = vadd.f32 %v3300, 0.2548296
      %v3429 = vadd.f32 %v3301, 0.2548296
      %v3430 = vadd.f32 %v3302, 0.2548296
      %v3431 = vadd.f32 %v3303, 0.2548296
      %v3432 = vadd.f32 %v3304, 0.2548296
      %v3433 = vadd.f32 %v3305, 0.2548296
      %v3434 = vadd.f32 %v3306, 0.2548296
      %v3435 = vadd.f32 %v3307, 0.2548296
      %v3436 = vadd.f32 %v3308, 0.2548296
      %v3437 = vadd.f32 %v3309, 0.2548296
      %v3438 = vadd.f32 %v3310, 0.2548296
      %v3439 = vadd.f32 %v3311, 0.2548296
      %v3440 = vadd.f32 %v3312, 0.2548296
      %v3441 = vadd.f32 %v3313, 0.2548296
      %v3442 = vadd.f32 %v3314, 0.2548296
      %v3443 = vadd.f32 %v3315, 0.2548296
      %v3444 = vadd.f32 %v3316, 0.2548296
      %v3445 = vadd.f32 %v3317, 0.2548296
      %v3446 = vadd.f32 %v3318, 0.2548296
      %v3447 = vadd.f32 %v3319, 0.2548296
      %v3448 = vadd.f32 %v3320, 0.2548296
      %v3449 = vadd.f32 %v3321, 0.2548296
      %v3450 = vadd.f32 %v3322, 0.2548296
      %v3451 = vadd.f32 %v3323, 0.2548296
      %v3452 = vadd.f32 %v3324, 0.2548296
      %v3453 = vadd.f32 %v3325, 0.2548296
      %v3454 = vadd.f32 %v3326, 0.2548296
      %v3455 = vadd.f32 %v3327, 0.2548296
      %v3456 = vadd.f32 %v3328, 0.2548296
      %v3457 = vadd.f32 %v3329, 0.2548296
      %v3458 = vadd.f32 %v3330, 0.2548296
      %v3459 = vadd.f32 %v3331, 0.2548296
      %v3460 = vadd.f32 %v3332, 0.2548296
      %v3461 = vadd.f32 %v3333, 0.2548296
      %v3462 = vadd.f32 %v3334, 0.2548296
      %v3463 = vadd.f32 %v3335, 0.2548296
      %v3464 = vadd.f32 %v3336, 0.2548296
      %v3465 = vadd.f32 %v3337, 0.2548296
      %v3466 = vadd.f32 %v3338, 0.2548296
      %v3467 = vadd.f32 %v3339, 0.2548296
      %v3468 = vadd.f32 %v3340, 0.2548296
      %v3469 = vadd.f32 %v3341, 0.2548296
      %v3470 = vadd.f32 %v3342, 0.2548296
      %v3471 = vadd.f32 %v3343, 0.2548296
      %v3472 = vadd.f32 %v3344, 0.2548296
      %v3473 = vadd.f32 %v3345, 0.2548296
      %v3474 = vadd.f32 %v3346, 0.2548296
      %v3475 = vadd.f32 %v3347, 0.2548296
      %v3476 = vadd.f32 %v3348, 0.2548296
      %v3477 = vadd.f32 %v3349, 0.2548296
      %v3478 = vmul.f32 %v3350, %v2199
      %v3479 = vmul.f32 %v3351, %v2201
      %v3480 = vmul.f32 %v3352, %v2203
      %v3481 = vmul.f32 %v3353, %v2205
      %v3482 = vmul.f32 %v3354, %v2207
      %v3483 = vmul.f32 %v3355, %v2209
      %v3484 = vmul.f32 %v3356, %v2211
      %v3485 = vmul.f32 %v3357, %v2213
      %v3486 = vmul.f32 %v3358, %v2215
      %v3487 = vmul.f32 %v3359, %v2217
      %v3488 = vmul.f32 %v3360, %v2219
      %v3489 = vmul.f32 %v3361, %v2221
      %v3490 = vmul.f32 %v3362, %v2223
      %v3491 = vmul.f32 %v3363, %v2225
      %v3492 = vmul.f32 %v3364, %v2227
      %v3493 = vmul.f32 %v3365, %v2229
      %v3494 = vmul.f32 %v3366, %v2231
      %v3495 = vmul.f32 %v3367, %v2233
      %v3496 = vmul.f32 %v3368, %v2235
      %v3497 = vmul.f32 %v3369, %v2237
      %v3498 = vmul.f32 %v3370, %v2239
      %v3499 = vmul.f32 %v3371, %v2241
      %v3500 = vmul.f32 %v3372, %v2243
      %v3501 = vmul.f32 %v3373, %v2245
      %v3502 = vmul.f32 %v3374, %v2247
      %v3503 = vmul.f32 %v3375, %v2249
      %v3504 = vmul.f32 %v3376, %v2251
      %v3505 = vmul.f32 %v3377, %v2253
      %v3506 = vmul.f32 %v3378, %v2255
      %v3507 = vmul.f32 %v3379, %v2257
      %v3508 = vmul.f32 %v3380, %v2259
      %v3509 = vmul.f32 %v3381, %v2261
      %v3510 = vmul.f32 %v3382, %v2263
      %v3511 = vmul.f32 %v3383, %v2265
      %v3512 = vmul.f32 %v3384, %v2267
      %v3513 = vmul.f32 %v3385, %v2269
      %v3514 = vmul.f32 %v3386, %v2271
      %v3515 = vmul.f32 %v3387, %v2273
      %v3516 = vmul.f32 %v3388, %v2275
      %v3517 = vmul.f32 %v3389, %v2277
      %v3518 = vmul.f32 %v3390, %v2279
      %v3519 = vmul.f32 %v3391, %v2281
      %v3520 = vmul.f32 %v3392, %v2283
      %v3521 = vmul.f32 %v3393, %v2285
      %v3522 = vmul.f32 %v3394, %v2287
      %v3523 = vmul.f32 %v3395, %v2289
      %v3524 = vmul.f32 %v3396, %v2291
      %v3525 = vmul.f32 %v3397, %v2293
      %v3526 = vmul.f32 %v3398, %v2295
      %v3527 = vmul.f32 %v3399, %v2297
      %v3528 = vmul.f32 %v3400, %v2299
      %v3529 = vmul.f32 %v3401, %v2301
      %v3530 = vmul.f32 %v3402, %v2303
      %v3531 = vmul.f32 %v3403, %v2305
      %v3532 = vmul.f32 %v3404, %v2307
      %v3533 = vmul.f32 %v3405, %v2309
      %v3534 = vmul.f32 %v3406, %v2311
      %v3535 = vmul.f32 %v3407, %v2313
      %v3536 = vmul.f32 %v3408, %v2315
      %v3537 = vmul.f32 %v3409, %v2317
      %v3538 = vmul.f32 %v3410, %v2319
      %v3539 = vmul.f32 %v3411, %v2321
      %v3540 = vmul.f32 %v3412, %v2323
      %v3541 = vmul.f32 %v3413, %v2325
      %v3542 = vmul.f32 %v3414, %v2327
      %v3543 = vmul.f32 %v3415, %v2329
      %v3544 = vmul.f32 %v3416, %v2331
      %v3545 = vmul.f32 %v3417, %v2333
      %v3546 = vmul.f32 %v3418, %v2335
      %v3547 = vmul.f32 %v3419, %v2337
      %v3548 = vmul.f32 %v3420, %v2339
      %v3549 = vmul.f32 %v3421, %v2341
      %v3550 = vmul.f32 %v3422, %v2343
      %v3551 = vmul.f32 %v3423, %v2345
      %v3552 = vmul.f32 %v3424, %v2347
      %v3553 = vmul.f32 %v3425, %v2349
      %v3554 = vmul.f32 %v3426, %v2351
      %v3555 = vmul.f32 %v3427, %v2353
      %v3556 = vmul.f32 %v3428, %v2355
      %v3557 = vmul.f32 %v3429, %v2357
      %v3558 = vmul.f32 %v3430, %v2359
      %v3559 = vmul.f32 %v3431, %v2361
      %v3560 = vmul.f32 %v3432, %v2363
      %v3561 = vmul.f32 %v3433, %v2365
      %v3562 = vmul.f32 %v3434, %v2367
      %v3563 = vmul.f32 %v3435, %v2369
      %v3564 = vmul.f32 %v3436, %v2371
      %v3565 = vmul.f32 %v3437, %v2373
      %v3566 = vmul.f32 %v3438, %v2375
      %v3567 = vmul.f32 %v3439, %v2377
      %v3568 = vmul.f32 %v3440, %v2379
      %v3569 = vmul.f32 %v3441, %v2381
      %v3570 = vmul.f32 %v3442, %v2383
      %v3571 = vmul.f32 %v3443, %v2385
      %v3572 = vmul.f32 %v3444, %v2387
      %v3573 = vmul.f32 %v3445, %v2389
      %v3574 = vmul.f32 %v3446, %v2391
      %v3575 = vmul.f32 %v3447, %v2393
      %v3576 = vmul.f32 %v3448, %v2395
      %v3577 = vmul.f32 %v3449, %v2397
      %v3578 = vmul.f32 %v3450, %v2399
      %v3579 = vmul.f32 %v3451, %v2401
      %v3580 = vmul.f32 %v3452, %v2403
      %v3581 = vmul.f32 %v3453, %v2405
      %v3582 = vmul.f32 %v3454, %v2407
      %v3583 = vmul.f32 %v3455, %v2409
      %v3584 = vmul.f32 %v3456, %v2411
      %v3585 = vmul.f32 %v3457, %v2413
      %v3586 = vmul.f32 %v3458, %v2415
      %v3587 = vmul.f32 %v3459, %v2417
      %v3588 = vmul.f32 %v3460, %v2419
      %v3589 = vmul.f32 %v3461, %v2421
      %v3590 = vmul.f32 %v3462, %v2423
      %v3591 = vmul.f32 %v3463, %v2425
      %v3592 = vmul.f32 %v3464, %v2427
      %v3593 = vmul.f32 %v3465, %v2429
      %v3594 = vmul.f32 %v3466, %v2431
      %v3595 = vmul.f32 %v3467, %v2433
      %v3596 = vmul.f32 %v3468, %v2435
      %v3597 = vmul.f32 %v3469, %v2437
      %v3598 = vmul.f32 %v3470, %v2439
      %v3599 = vmul.f32 %v3471, %v2441
      %v3600 = vmul.f32 %v3472, %v2443
      %v3601 = vmul.f32 %v3473, %v2445
      %v3602 = vmul.f32 %v3474, %v2447
      %v3603 = vmul.f32 %v3475, %v2449
      %v3604 = vmul.f32 %v3476, %v2451
      %v3605 = vmul.f32 %v3477, %v2453
      %v3606 = vsub.f32 0.0, %v1814
      %v3607 = vsub.f32 0.0, %v1815
      %v3608 = vsub.f32 0.0, %v1816
      %v3609 = vsub.f32 0.0, %v1817
      %v3610 = vsub.f32 0.0, %v1818
      %v3611 = vsub.f32 0.0, %v1819
      %v3612 = vsub.f32 0.0, %v1820
      %v3613 = vsub.f32 0.0, %v1821
      %v3614 = vsub.f32 0.0, %v1822
      %v3615 = vsub.f32 0.0, %v1823
      %v3616 = vsub.f32 0.0, %v1824
      %v3617 = vsub.f32 0.0, %v1825
      %v3618 = vsub.f32 0.0, %v1826
      %v3619 = vsub.f32 0.0, %v1827
      %v3620 = vsub.f32 0.0, %v1828
      %v3621 = vsub.f32 0.0, %v1829
      %v3622 = vsub.f32 0.0, %v1830
      %v3623 = vsub.f32 0.0, %v1831
      %v3624 = vsub.f32 0.0, %v1832
      %v3625 = vsub.f32 0.0, %v1833
      %v3626 = vsub.f32 0.0, %v1834
      %v3627 = vsub.f32 0.0, %v1835
      %v3628 = vsub.f32 0.0, %v1836
      %v3629 = vsub.f32 0.0, %v1837
      %v3630 = vsub.f32 0.0, %v1838
      %v3631 = vsub.f32 0.0, %v1839
      %v3632 = vsub.f32 0.0, %v1840
      %v3633 = vsub.f32 0.0, %v1841
      %v3634 = vsub.f32 0.0, %v1842
      %v3635 = vsub.f32 0.0, %v1843
      %v3636 = vsub.f32 0.0, %v1844
      %v3637 = vsub.f32 0.0, %v1845
      %v3638 = vsub.f32 0.0, %v1846
      %v3639 = vsub.f32 0.0, %v1847
      %v3640 = vsub.f32 0.0, %v1848
      %v3641 = vsub.f32 0.0, %v1849
      %v3642 = vsub.f32 0.0, %v1850
      %v3643 = vsub.f32 0.0, %v1851
      %v3644 = vsub.f32 0.0, %v1852
      %v3645 = vsub.f32 0.0, %v1853
      %v3646 = vsub.f32 0.0, %v1854
      %v3647 = vsub.f32 0.0, %v1855
      %v3648 = vsub.f32 0.0, %v1856
      %v3649 = vsub.f32 0.0, %v1857
      %v3650 = vsub.f32 0.0, %v1858
      %v3651 = vsub.f32 0.0, %v1859
      %v3652 = vsub.f32 0.0, %v1860
      %v3653 = vsub.f32 0.0, %v1861
      %v3654 = vsub.f32 0.0, %v1862
      %v3655 = vsub.f32 0.0, %v1863
      %v3656 = vsub.f32 0.0, %v1864
      %v3657 = vsub.f32 0.0, %v1865
      %v3658 = vsub.f32 0.0, %v1866
      %v3659 = vsub.f32 0.0, %v1867
      %v3660 = vsub.f32 0.0, %v1868
      %v3661 = vsub.f32 0.0, %v1869
      %v3662 = vsub.f32 0.0, %v1870
      %v3663 = vsub.f32 0.0, %v1871
      %v3664 = vsub.f32 0.0, %v1872
      %v3665 = vsub.f32 0.0, %v1873
      %v3666 = vsub.f32 0.0, %v1874
      %v3667 = vsub.f32 0.0, %v1875
      %v3668 = vsub.f32 0.0, %v1876
      %v3669 = vsub.f32 0.0, %v1877
      %v3670 = vsub.f32 0.0, %v1878
      %v3671 = vsub.f32 0.0, %v1879
      %v3672 = vsub.f32 0.0, %v1880
      %v3673 = vsub.f32 0.0, %v1881
      %v3674 = vsub.f32 0.0, %v1882
      %v3675 = vsub.f32 0.0, %v1883
      %v3676 = vsub.f32 0.0, %v1884
      %v3677 = vsub.f32 0.0, %v1885
      %v3678 = vsub.f32 0.0, %v1886
      %v3679 = vsub.f32 0.0, %v1887
      %v3680 = vsub.f32 0.0, %v1888
      %v3681 = vsub.f32 0.0, %v1889
      %v3682 = vsub.f32 0.0, %v1890
      %v3683 = vsub.f32 0.0, %v1891
      %v3684 = vsub.f32 0.0, %v1892
      %v3685 = vsub.f32 0.0, %v1893
      %v3686 = vsub.f32 0.0, %v1894
      %v3687 = vsub.f32 0.0, %v1895
      %v3688 = vsub.f32 0.0, %v1896
      %v3689 = vsub.f32 0.0, %v1897
      %v3690 = vsub.f32 0.0, %v1898
      %v3691 = vsub.f32 0.0, %v1899
      %v3692 = vsub.f32 0.0, %v1900
      %v3693 = vsub.f32 0.0, %v1901
      %v3694 = vsub.f32 0.0, %v1902
      %v3695 = vsub.f32 0.0, %v1903
      %v3696 = vsub.f32 0.0, %v1904
      %v3697 = vsub.f32 0.0, %v1905
      %v3698 = vsub.f32 0.0, %v1906
      %v3699 = vsub.f32 0.0, %v1907
      %v3700 = vsub.f32 0.0, %v1908
      %v3701 = vsub.f32 0.0, %v1909
      %v3702 = vsub.f32 0.0, %v1910
      %v3703 = vsub.f32 0.0, %v1911
      %v3704 = vsub.f32 0.0, %v1912
      %v3705 = vsub.f32 0.0, %v1913
      %v3706 = vsub.f32 0.0, %v1914
      %v3707 = vsub.f32 0.0, %v1915
      %v3708 = vsub.f32 0.0, %v1916
      %v3709 = vsub.f32 0.0, %v1917
      %v3710 = vsub.f32 0.0, %v1918
      %v3711 = vsub.f32 0.0, %v1919
      %v3712 = vsub.f32 0.0, %v1920
      %v3713 = vsub.f32 0.0, %v1921
      %v3714 = vsub.f32 0.0, %v1922
      %v3715 = vsub.f32 0.0, %v1923
      %v3716 = vsub.f32 0.0, %v1924
      %v3717 = vsub.f32 0.0, %v1925
      %v3718 = vsub.f32 0.0, %v1926
      %v3719 = vsub.f32 0.0, %v1927
      %v3720 = vsub.f32 0.0, %v1928
      %v3721 = vsub.f32 0.0, %v1929
      %v3722 = vsub.f32 0.0, %v1930
      %v3723 = vsub.f32 0.0, %v1931
      %v3724 = vsub.f32 0.0, %v1932
      %v3725 = vsub.f32 0.0, %v1933
      %v3726 = vsub.f32 0.0, %v1934
      %v3727 = vsub.f32 0.0, %v1935
      %v3728 = vsub.f32 0.0, %v1936
      %v3729 = vsub.f32 0.0, %v1937
      %v3730 = vsub.f32 0.0, %v1938
      %v3731 = vsub.f32 0.0, %v1939
      %v3732 = vsub.f32 0.0, %v1940
      %v3733 = vsub.f32 0.0, %v1941
      %v3734 = vmul.f32 %v3606, %v1814
      %v3735 = vmul.f32 %v3607, %v1815
      %v3736 = vmul.f32 %v3608, %v1816
      %v3737 = vmul.f32 %v3609, %v1817
      %v3738 = vmul.f32 %v3610, %v1818
      %v3739 = vmul.f32 %v3611, %v1819
      %v3740 = vmul.f32 %v3612, %v1820
      %v3741 = vmul.f32 %v3613, %v1821
      %v3742 = vmul.f32 %v3614, %v1822
      %v3743 = vmul.f32 %v3615, %v1823
      %v3744 = vmul.f32 %v3616, %v1824
      %v3745 = vmul.f32 %v3617, %v1825
      %v3746 = vmul.f32 %v3618, %v1826
      %v3747 = vmul.f32 %v3619, %v1827
      %v3748 = vmul.f32 %v3620, %v1828
      %v3749 = vmul.f32 %v3621, %v1829
      %v3750 = vmul.f32 %v3622, %v1830
      %v3751 = vmul.f32 %v3623, %v1831
      %v3752 = vmul.f32 %v3624, %v1832
      %v3753 = vmul.f32 %v3625, %v1833
      %v3754 = vmul.f32 %v3626, %v1834
      %v3755 = vmul.f32 %v3627, %v1835
      %v3756 = vmul.f32 %v3628, %v1836
      %v3757 = vmul.f32 %v3629, %v1837
      %v3758 = vmul.f32 %v3630, %v1838
      %v3759 = vmul.f32 %v3631, %v1839
      %v3760 = vmul.f32 %v3632, %v1840
      %v3761 = vmul.f32 %v3633, %v1841
      %v3762 = vmul.f32 %v3634, %v1842
      %v3763 = vmul.f32 %v3635, %v1843
      %v3764 = vmul.f32 %v3636, %v1844
      %v3765 = vmul.f32 %v3637, %v1845
      %v3766 = vmul.f32 %v3638, %v1846
      %v3767 = vmul.f32 %v3639, %v1847
      %v3768 = vmul.f32 %v3640, %v1848
      %v3769 = vmul.f32 %v3641, %v1849
      %v3770 = vmul.f32 %v3642, %v1850
      %v3771 = vmul.f32 %v3643, %v1851
      %v3772 = vmul.f32 %v3644, %v1852
      %v3773 = vmul.f32 %v3645, %v1853
      %v3774 = vmul.f32 %v3646, %v1854
      %v3775 = vmul.f32 %v3647, %v1855
      %v3776 = vmul.f32 %v3648, %v1856
      %v3777 = vmul.f32 %v3649, %v1857
      %v3778 = vmul.f32 %v3650, %v1858
      %v3779 = vmul.f32 %v3651, %v1859
      %v3780 = vmul.f32 %v3652, %v1860
      %v3781 = vmul.f32 %v3653, %v1861
      %v3782 = vmul.f32 %v3654, %v1862
      %v3783 = vmul.f32 %v3655, %v1863
      %v3784 = vmul.f32 %v3656, %v1864
      %v3785 = vmul.f32 %v3657, %v1865
      %v3786 = vmul.f32 %v3658, %v1866
      %v3787 = vmul.f32 %v3659, %v1867
      %v3788 = vmul.f32 %v3660, %v1868
      %v3789 = vmul.f32 %v3661, %v1869
      %v3790 = vmul.f32 %v3662, %v1870
      %v3791 = vmul.f32 %v3663, %v1871
      %v3792 = vmul.f32 %v3664, %v1872
      %v3793 = vmul.f32 %v3665, %v1873
      %v3794 = vmul.f32 %v3666, %v1874
      %v3795 = vmul.f32 %v3667, %v1875
      %v3796 = vmul.f32 %v3668, %v1876
      %v3797 = vmul.f32 %v3669, %v1877
      %v3798 = vmul.f32 %v3670, %v1878
      %v3799 = vmul.f32 %v3671, %v1879
      %v3800 = vmul.f32 %v3672, %v1880
      %v3801 = vmul.f32 %v3673, %v1881
      %v3802 = vmul.f32 %v3674, %v1882
      %v3803 = vmul.f32 %v3675, %v1883
      %v3804 = vmul.f32 %v3676, %v1884
      %v3805 = vmul.f32 %v3677, %v1885
      %v3806 = vmul.f32 %v3678, %v1886
      %v3807 = vmul.f32 %v3679, %v1887
      %v3808 = vmul.f32 %v3680, %v1888
      %v3809 = vmul.f32 %v3681, %v1889
      %v3810 = vmul.f32 %v3682, %v1890
      %v3811 = vmul.f32 %v3683, %v1891
      %v3812 = vmul.f32 %v3684, %v1892
      %v3813 = vmul.f32 %v3685, %v1893
      %v3814 = vmul.f32 %v3686, %v1894
      %v3815 = vmul.f32 %v3687, %v1895
      %v3816 = vmul.f32 %v3688, %v1896
      %v3817 = vmul.f32 %v3689, %v1897
      %v3818 = vmul.f32 %v3690, %v1898
      %v3819 = vmul.f32 %v3691, %v1899
      %v3820 = vmul.f32 %v3692, %v1900
      %v3821 = vmul.f32 %v3693, %v1901
      %v3822 = vmul.f32 %v3694, %v1902
      %v3823 = vmul.f32 %v3695, %v1903
      %v3824 = vmul.f32 %v3696, %v1904
      %v3825 = vmul.f32 %v3697, %v1905
      %v3826 = vmul.f32 %v3698, %v1906
      %v3827 = vmul.f32 %v3699, %v1907
      %v3828 = vmul.f32 %v3700, %v1908
      %v3829 = vmul.f32 %v3701, %v1909
      %v3830 = vmul.f32 %v3702, %v1910
      %v3831 = vmul.f32 %v3703, %v1911
      %v3832 = vmul.f32 %v3704, %v1912
      %v3833 = vmul.f32 %v3705, %v1913
      %v3834 = vmul.f32 %v3706, %v1914
      %v3835 = vmul.f32 %v3707, %v1915
      %v3836 = vmul.f32 %v3708, %v1916
      %v3837 = vmul.f32 %v3709, %v1917
      %v3838 = vmul.f32 %v3710, %v1918
      %v3839 = vmul.f32 %v3711, %v1919
      %v3840 = vmul.f32 %v3712, %v1920
      %v3841 = vmul.f32 %v3713, %v1921
      %v3842 = vmul.f32 %v3714, %v1922
      %v3843 = vmul.f32 %v3715, %v1923
      %v3844 = vmul.f32 %v3716, %v1924
      %v3845 = vmul.f32 %v3717, %v1925
      %v3846 = vmul.f32 %v3718, %v1926
      %v3847 = vmul.f32 %v3719, %v1927
      %v3848 = vmul.f32 %v3720, %v1928
      %v3849 = vmul.f32 %v3721, %v1929
      %v3850 = vmul.f32 %v3722, %v1930
      %v3851 = vmul.f32 %v3723, %v1931
      %v3852 = vmul.f32 %v3724, %v1932
      %v3853 = vmul.f32 %v3725, %v1933
      %v3854 = vmul.f32 %v3726, %v1934
      %v3855 = vmul.f32 %v3727, %v1935
      %v3856 = vmul.f32 %v3728, %v1936
      %v3857 = vmul.f32 %v3729, %v1937
      %v3858 = vmul.f32 %v3730, %v1938
      %v3859 = vmul.f32 %v3731, %v1939
      %v3860 = vmul.f32 %v3732, %v1940
      %v3861 = vmul.f32 %v3733, %v1941
      %v3862 = vmul.f32 %v3734, 1.442695
      %v3863 = vpow.pop %v3862
      %v3864 = vmul.f32 %v3735, 1.442695
      %v3865 = vpow.pop %v3864
      %v3866 = vmul.f32 %v3736, 1.442695
      %v3867 = vpow.pop %v3866
      %v3868 = vmul.f32 %v3737, 1.442695
      %v3869 = vpow.pop %v3868
      %v3870 = vmul.f32 %v3738, 1.442695
      %v3871 = vpow.pop %v3870
      %v3872 = vmul.f32 %v3739, 1.442695
      %v3873 = vpow.pop %v3872
      %v3874 = vmul.f32 %v3740, 1.442695
      %v3875 = vpow.pop %v3874
      %v3876 = vmul.f32 %v3741, 1.442695
      %v3877 = vpow.pop %v3876
      %v3878 = vmul.f32 %v3742, 1.442695
      %v3879 = vpow.pop %v3878
      %v3880 = vmul.f32 %v3743, 1.442695
      %v3881 = vpow.pop %v3880
      %v3882 = vmul.f32 %v3744, 1.442695
      %v3883 = vpow.pop %v3882
      %v3884 = vmul.f32 %v3745, 1.442695
      %v3885 = vpow.pop %v3884
      %v3886 = vmul.f32 %v3746, 1.442695
      %v3887 = vpow.pop %v3886
      %v3888 = vmul.f32 %v3747, 1.442695
      %v3889 = vpow.pop %v3888
      %v3890 = vmul.f32 %v3748, 1.442695
      %v3891 = vpow.pop %v3890
      %v3892 = vmul.f32 %v3749, 1.442695
      %v3893 = vpow.pop %v3892
      %v3894 = vmul.f32 %v3750, 1.442695
      %v3895 = vpow.pop %v3894
      %v3896 = vmul.f32 %v3751, 1.442695
      %v3897 = vpow.pop %v3896
      %v3898 = vmul.f32 %v3752, 1.442695
      %v3899 = vpow.pop %v3898
      %v3900 = vmul.f32 %v3753, 1.442695
      %v3901 = vpow.pop %v3900
      %v3902 = vmul.f32 %v3754, 1.442695
      %v3903 = vpow.pop %v3902
      %v3904 = vmul.f32 %v3755, 1.442695
      %v3905 = vpow.pop %v3904
      %v3906 = vmul.f32 %v3756, 1.442695
      %v3907 = vpow.pop %v3906
      %v3908 = vmul.f32 %v3757, 1.442695
      %v3909 = vpow.pop %v3908
      %v3910 = vmul.f32 %v3758, 1.442695
      %v3911 = vpow.pop %v3910
      %v3912 = vmul.f32 %v3759, 1.442695
      %v3913 = vpow.pop %v3912
      %v3914 = vmul.f32 %v3760, 1.442695
      %v3915 = vpow.pop %v3914
      %v3916 = vmul.f32 %v3761, 1.442695
      %v3917 = vpow.pop %v3916
      %v3918 = vmul.f32 %v3762, 1.442695
      %v3919 = vpow.pop %v3918
      %v3920 = vmul.f32 %v3763, 1.442695
      %v3921 = vpow.pop %v3920
      %v3922 = vmul.f32 %v3764, 1.442695
      %v3923 = vpow.pop %v3922
      %v3924 = vmul.f32 %v3765, 1.442695
      %v3925 = vpow.pop %v3924
      %v3926 = vmul.f32 %v3766, 1.442695
      %v3927 = vpow.pop %v3926
      %v3928 = vmul.f32 %v3767, 1.442695
      %v3929 = vpow.pop %v3928
      %v3930 = vmul.f32 %v3768, 1.442695
      %v3931 = vpow.pop %v3930
      %v3932 = vmul.f32 %v3769, 1.442695
      %v3933 = vpow.pop %v3932
      %v3934 = vmul.f32 %v3770, 1.442695
      %v3935 = vpow.pop %v3934
      %v3936 = vmul.f32 %v3771, 1.442695
      %v3937 = vpow.pop %v3936
      %v3938 = vmul.f32 %v3772, 1.442695
      %v3939 = vpow.pop %v3938
      %v3940 = vmul.f32 %v3773, 1.442695
      %v3941 = vpow.pop %v3940
      %v3942 = vmul.f32 %v3774, 1.442695
      %v3943 = vpow.pop %v3942
      %v3944 = vmul.f32 %v3775, 1.442695
      %v3945 = vpow.pop %v3944
      %v3946 = vmul.f32 %v3776, 1.442695
      %v3947 = vpow.pop %v3946
      %v3948 = vmul.f32 %v3777, 1.442695
      %v3949 = vpow.pop %v3948
      %v3950 = vmul.f32 %v3778, 1.442695
      %v3951 = vpow.pop %v3950
      %v3952 = vmul.f32 %v3779, 1.442695
      %v3953 = vpow.pop %v3952
      %v3954 = vmul.f32 %v3780, 1.442695
      %v3955 = vpow.pop %v3954
      %v3956 = vmul.f32 %v3781, 1.442695
      %v3957 = vpow.pop %v3956
      %v3958 = vmul.f32 %v3782, 1.442695
      %v3959 = vpow.pop %v3958
      %v3960 = vmul.f32 %v3783, 1.442695
      %v3961 = vpow.pop %v3960
      %v3962 = vmul.f32 %v3784, 1.442695
      %v3963 = vpow.pop %v3962
      %v3964 = vmul.f32 %v3785, 1.442695
      %v3965 = vpow.pop %v3964
      %v3966 = vmul.f32 %v3786, 1.442695
      %v3967 = vpow.pop %v3966
      %v3968 = vmul.f32 %v3787, 1.442695
      %v3969 = vpow.pop %v3968
      %v3970 = vmul.f32 %v3788, 1.442695
      %v3971 = vpow.pop %v3970
      %v3972 = vmul.f32 %v3789, 1.442695
      %v3973 = vpow.pop %v3972
      %v3974 = vmul.f32 %v3790, 1.442695
      %v3975 = vpow.pop %v3974
      %v3976 = vmul.f32 %v3791, 1.442695
      %v3977 = vpow.pop %v3976
      %v3978 = vmul.f32 %v3792, 1.442695
      %v3979 = vpow.pop %v3978
      %v3980 = vmul.f32 %v3793, 1.442695
      %v3981 = vpow.pop %v3980
      %v3982 = vmul.f32 %v3794, 1.442695
      %v3983 = vpow.pop %v3982
      %v3984 = vmul.f32 %v3795, 1.442695
      %v3985 = vpow.pop %v3984
      %v3986 = vmul.f32 %v3796, 1.442695
      %v3987 = vpow.pop %v3986
      %v3988 = vmul.f32 %v3797, 1.442695
      %v3989 = vpow.pop %v3988
      %v3990 = vmul.f32 %v3798, 1.442695
      %v3991 = vpow.pop %v3990
      %v3992 = vmul.f32 %v3799, 1.442695
      %v3993 = vpow.pop %v3992
      %v3994 = vmul.f32 %v3800, 1.442695
      %v3995 = vpow.pop %v3994
      %v3996 = vmul.f32 %v3801, 1.442695
      %v3997 = vpow.pop %v3996
      %v3998 = vmul.f32 %v3802, 1.442695
      %v3999 = vpow.pop %v3998
      %v4000 = vmul.f32 %v3803, 1.442695
      %v4001 = vpow.pop %v4000
      %v4002 = vmul.f32 %v3804, 1.442695
      %v4003 = vpow.pop %v4002
      %v4004 = vmul.f32 %v3805, 1.442695
      %v4005 = vpow.pop %v4004
      %v4006 = vmul.f32 %v3806, 1.442695
      %v4007 = vpow.pop %v4006
      %v4008 = vmul.f32 %v3807, 1.442695
      %v4009 = vpow.pop %v4008
      %v4010 = vmul.f32 %v3808, 1.442695
      %v4011 = vpow.pop %v4010
      %v4012 = vmul.f32 %v3809, 1.442695
      %v4013 = vpow.pop %v4012
      %v4014 = vmul.f32 %v3810, 1.442695
      %v4015 = vpow.pop %v4014
      %v4016 = vmul.f32 %v3811, 1.442695
      %v4017 = vpow.pop %v4016
      %v4018 = vmul.f32 %v3812, 1.442695
      %v4019 = vpow.pop %v4018
      %v4020 = vmul.f32 %v3813, 1.442695
      %v4021 = vpow.pop %v4020
      %v4022 = vmul.f32 %v3814, 1.442695
      %v4023 = vpow.pop %v4022
      %v4024 = vmul.f32 %v3815, 1.442695
      %v4025 = vpow.pop %v4024
      %v4026 = vmul.f32 %v3816, 1.442695
      %v4027 = vpow.pop %v4026
      %v4028 = vmul.f32 %v3817, 1.442695
      %v4029 = vpow.pop %v4028
      %v4030 = vmul.f32 %v3818, 1.442695
      %v4031 = vpow.pop %v4030
      %v4032 = vmul.f32 %v3819, 1.442695
      %v4033 = vpow.pop %v4032
      %v4034 = vmul.f32 %v3820, 1.442695
      %v4035 = vpow.pop %v4034
      %v4036 = vmul.f32 %v3821, 1.442695
      %v4037 = vpow.pop %v4036
      %v4038 = vmul.f32 %v3822, 1.442695
      %v4039 = vpow.pop %v4038
      %v4040 = vmul.f32 %v3823, 1.442695
      %v4041 = vpow.pop %v4040
      %v4042 = vmul.f32 %v3824, 1.442695
      %v4043 = vpow.pop %v4042
      %v4044 = vmul.f32 %v3825, 1.442695
      %v4045 = vpow.pop %v4044
      %v4046 = vmul.f32 %v3826, 1.442695
      %v4047 = vpow.pop %v4046
      %v4048 = vmul.f32 %v3827, 1.442695
      %v4049 = vpow.pop %v4048
      %v4050 = vmul.f32 %v3828, 1.442695
      %v4051 = vpow.pop %v4050
      %v4052 = vmul.f32 %v3829, 1.442695
      %v4053 = vpow.pop %v4052
      %v4054 = vmul.f32 %v3830, 1.442695
      %v4055 = vpow.pop %v4054
      %v4056 = vmul.f32 %v3831, 1.442695
      %v4057 = vpow.pop %v4056
      %v4058 = vmul.f32 %v3832, 1.442695
      %v4059 = vpow.pop %v4058
      %v4060 = vmul.f32 %v3833, 1.442695
      %v4061 = vpow.pop %v4060
      %v4062 = vmul.f32 %v3834, 1.442695
      %v4063 = vpow.pop %v4062
      %v4064 = vmul.f32 %v3835, 1.442695
      %v4065 = vpow.pop %v4064
      %v4066 = vmul.f32 %v3836, 1.442695
      %v4067 = vpow.pop %v4066
      %v4068 = vmul.f32 %v3837, 1.442695
      %v4069 = vpow.pop %v4068
      %v4070 = vmul.f32 %v3838, 1.442695
      %v4071 = vpow.pop %v4070
      %v4072 = vmul.f32 %v3839, 1.442695
      %v4073 = vpow.pop %v4072
      %v4074 = vmul.f32 %v3840, 1.442695
      %v4075 = vpow.pop %v4074
      %v4076 = vmul.f32 %v3841, 1.442695
      %v4077 = vpow.pop %v4076
      %v4078 = vmul.f32 %v3842, 1.442695
      %v4079 = vpow.pop %v4078
      %v4080 = vmul.f32 %v3843, 1.442695
      %v4081 = vpow.pop %v4080
      %v4082 = vmul.f32 %v3844, 1.442695
      %v4083 = vpow.pop %v4082
      %v4084 = vmul.f32 %v3845, 1.442695
      %v4085 = vpow.pop %v4084
      %v4086 = vmul.f32 %v3846, 1.442695
      %v4087 = vpow.pop %v4086
      %v4088 = vmul.f32 %v3847, 1.442695
      %v4089 = vpow.pop %v4088
      %v4090 = vmul.f32 %v3848, 1.442695
      %v4091 = vpow.pop %v4090
      %v4092 = vmul.f32 %v3849, 1.442695
      %v4093 = vpow.pop %v4092
      %v4094 = vmul.f32 %v3850, 1.442695
      %v4095 = vpow.pop %v4094
      %v4096 = vmul.f32 %v3851, 1.442695
      %v4097 = vpow.pop %v4096
      %v4098 = vmul.f32 %v3852, 1.442695
      %v4099 = vpow.pop %v4098
      %v4100 = vmul.f32 %v3853, 1.442695
      %v4101 = vpow.pop %v4100
      %v4102 = vmul.f32 %v3854, 1.442695
      %v4103 = vpow.pop %v4102
      %v4104 = vmul.f32 %v3855, 1.442695
      %v4105 = vpow.pop %v4104
      %v4106 = vmul.f32 %v3856, 1.442695
      %v4107 = vpow.pop %v4106
      %v4108 = vmul.f32 %v3857, 1.442695
      %v4109 = vpow.pop %v4108
      %v4110 = vmul.f32 %v3858, 1.442695
      %v4111 = vpow.pop %v4110
      %v4112 = vmul.f32 %v3859, 1.442695
      %v4113 = vpow.pop %v4112
      %v4114 = vmul.f32 %v3860, 1.442695
      %v4115 = vpow.pop %v4114
      %v4116 = vmul.f32 %v3861, 1.442695
      %v4117 = vpow.pop %v4116
      %v4118 = vmul.f32 %v3478, %v3863
      %v4119 = vmul.f32 %v3479, %v3865
      %v4120 = vmul.f32 %v3480, %v3867
      %v4121 = vmul.f32 %v3481, %v3869
      %v4122 = vmul.f32 %v3482, %v3871
      %v4123 = vmul.f32 %v3483, %v3873
      %v4124 = vmul.f32 %v3484, %v3875
      %v4125 = vmul.f32 %v3485, %v3877
      %v4126 = vmul.f32 %v3486, %v3879
      %v4127 = vmul.f32 %v3487, %v3881
      %v4128 = vmul.f32 %v3488, %v3883
      %v4129 = vmul.f32 %v3489, %v3885
      %v4130 = vmul.f32 %v3490, %v3887
      %v4131 = vmul.f32 %v3491, %v3889
      %v4132 = vmul.f32 %v3492, %v3891
      %v4133 = vmul.f32 %v3493, %v3893
      %v4134 = vmul.f32 %v3494, %v3895
      %v4135 = vmul.f32 %v3495, %v3897
      %v4136 = vmul.f32 %v3496, %v3899
      %v4137 = vmul.f32 %v3497, %v3901
      %v4138 = vmul.f32 %v3498, %v3903
      %v4139 = vmul.f32 %v3499, %v3905
      %v4140 = vmul.f32 %v3500, %v3907
      %v4141 = vmul.f32 %v3501, %v3909
      %v4142 = vmul.f32 %v3502, %v3911
      %v4143 = vmul.f32 %v3503, %v3913
      %v4144 = vmul.f32 %v3504, %v3915
      %v4145 = vmul.f32 %v3505, %v3917
      %v4146 = vmul.f32 %v3506, %v3919
      %v4147 = vmul.f32 %v3507, %v3921
      %v4148 = vmul.f32 %v3508, %v3923
      %v4149 = vmul.f32 %v3509, %v3925
      %v4150 = vmul.f32 %v3510, %v3927
      %v4151 = vmul.f32 %v3511, %v3929
      %v4152 = vmul.f32 %v3512, %v3931
      %v4153 = vmul.f32 %v3513, %v3933
      %v4154 = vmul.f32 %v3514, %v3935
      %v4155 = vmul.f32 %v3515, %v3937
      %v4156 = vmul.f32 %v3516, %v3939
      %v4157 = vmul.f32 %v3517, %v3941
      %v4158 = vmul.f32 %v3518, %v3943
      %v4159 = vmul.f32 %v3519, %v3945
      %v4160 = vmul.f32 %v3520, %v3947
      %v4161 = vmul.f32 %v3521, %v3949
      %v4162 = vmul.f32 %v3522, %v3951
      %v4163 = vmul.f32 %v3523, %v3953
      %v4164 = vmul.f32 %v3524, %v3955
      %v4165 = vmul.f32 %v3525, %v3957
      %v4166 = vmul.f32 %v3526, %v3959
      %v4167 = vmul.f32 %v3527, %v3961
      %v4168 = vmul.f32 %v3528, %v3963
      %v4169 = vmul.f32 %v3529, %v3965
      %v4170 = vmul.f32 %v3530, %v3967
      %v4171 = vmul.f32 %v3531, %v3969
      %v4172 = vmul.f32 %v3532, %v3971
      %v4173 = vmul.f32 %v3533, %v3973
      %v4174 = vmul.f32 %v3534, %v3975
      %v4175 = vmul.f32 %v3535, %v3977
      %v4176 = vmul.f32 %v3536, %v3979
      %v4177 = vmul.f32 %v3537, %v3981
      %v4178 = vmul.f32 %v3538, %v3983
      %v4179 = vmul.f32 %v3539, %v3985
      %v4180 = vmul.f32 %v3540, %v3987
      %v4181 = vmul.f32 %v3541, %v3989
      %v4182 = vmul.f32 %v3542, %v3991
      %v4183 = vmul.f32 %v3543, %v3993
      %v4184 = vmul.f32 %v3544, %v3995
      %v4185 = vmul.f32 %v3545, %v3997
      %v4186 = vmul.f32 %v3546, %v3999
      %v4187 = vmul.f32 %v3547, %v4001
      %v4188 = vmul.f32 %v3548, %v4003
      %v4189 = vmul.f32 %v3549, %v4005
      %v4190 = vmul.f32 %v3550, %v4007
      %v4191 = vmul.f32 %v3551, %v4009
      %v4192 = vmul.f32 %v3552, %v4011
      %v4193 = vmul.f32 %v3553, %v4013
      %v4194 = vmul.f32 %v3554, %v4015
      %v4195 = vmul.f32 %v3555, %v4017
      %v4196 = vmul.f32 %v3556, %v4019
      %v4197 = vmul.f32 %v3557, %v4021
      %v4198 = vmul.f32 %v3558, %v4023
      %v4199 = vmul.f32 %v3559, %v4025
      %v4200 = vmul.f32 %v3560, %v4027
      %v4201 = vmul.f32 %v3561, %v4029
      %v4202 = vmul.f32 %v3562, %v4031
      %v4203 = vmul.f32 %v3563, %v4033
      %v4204 = vmul.f32 %v3564, %v4035
      %v4205 = vmul.f32 %v3565, %v4037
      %v4206 = vmul.f32 %v3566, %v4039
      %v4207 = vmul.f32 %v3567, %v4041
      %v4208 = vmul.f32 %v3568, %v4043
      %v4209 = vmul.f32 %v3569, %v4045
      %v4210 = vmul.f32 %v3570, %v4047
      %v4211 = vmul.f32 %v3571, %v4049
      %v4212 = vmul.f32 %v3572, %v4051
      %v4213 = vmul.f32 %v3573, %v4053
      %v4214 = vmul.f32 %v3574, %v4055
      %v4215 = vmul.f32 %v3575, %v4057
      %v4216 = vmul.f32 %v3576, %v4059
      %v4217 = vmul.f32 %v3577, %v4061
      %v4218 = vmul.f32 %v3578, %v4063
      %v4219 = vmul.f32 %v3579, %v4065
      %v4220 = vmul.f32 %v3580, %v4067
      %v4221 = vmul.f32 %v3581, %v4069
      %v4222 = vmul.f32 %v3582, %v4071
      %v4223 = vmul.f32 %v3583, %v4073
      %v4224 = vmul.f32 %v3584, %v4075
      %v4225 = vmul.f32 %v3585, %v4077
      %v4226 = vmul.f32 %v3586, %v4079
      %v4227 = vmul.f32 %v3587, %v4081
      %v4228 = vmul.f32 %v3588, %v4083
      %v4229 = vmul.f32 %v3589, %v4085
      %v4230 = vmul.f32 %v3590, %v4087
      %v4231 = vmul.f32 %v3591, %v4089
      %v4232 = vmul.f32 %v3592, %v4091
      %v4233 = vmul.f32 %v3593, %v4093
      %v4234 = vmul.f32 %v3594, %v4095
      %v4235 = vmul.f32 %v3595, %v4097
      %v4236 = vmul.f32 %v3596, %v4099
      %v4237 = vmul.f32 %v3597, %v4101
      %v4238 = vmul.f32 %v3598, %v4103
      %v4239 = vmul.f32 %v3599, %v4105
      %v4240 = vmul.f32 %v3600, %v4107
      %v4241 = vmul.f32 %v3601, %v4109
      %v4242 = vmul.f32 %v3602, %v4111
      %v4243 = vmul.f32 %v3603, %v4113
      %v4244 = vmul.f32 %v3604, %v4115
      %v4245 = vmul.f32 %v3605, %v4117
      %v4246 = vsub.f32 1.0, %v4118
      %v4247 = vsub.f32 1.0, %v4119
      %v4248 = vsub.f32 1.0, %v4120
      %v4249 = vsub.f32 1.0, %v4121
      %v4250 = vsub.f32 1.0, %v4122
      %v4251 = vsub.f32 1.0, %v4123
      %v4252 = vsub.f32 1.0, %v4124
      %v4253 = vsub.f32 1.0, %v4125
      %v4254 = vsub.f32 1.0, %v4126
      %v4255 = vsub.f32 1.0, %v4127
      %v4256 = vsub.f32 1.0, %v4128
      %v4257 = vsub.f32 1.0, %v4129
      %v4258 = vsub.f32 1.0, %v4130
      %v4259 = vsub.f32 1.0, %v4131
      %v4260 = vsub.f32 1.0, %v4132
      %v4261 = vsub.f32 1.0, %v4133
      %v4262 = vsub.f32 1.0, %v4134
      %v4263 = vsub.f32 1.0, %v4135
      %v4264 = vsub.f32 1.0, %v4136
      %v4265 = vsub.f32 1.0, %v4137
      %v4266 = vsub.f32 1.0, %v4138
      %v4267 = vsub.f32 1.0, %v4139
      %v4268 = vsub.f32 1.0, %v4140
      %v4269 = vsub.f32 1.0, %v4141
      %v4270 = vsub.f32 1.0, %v4142
      %v4271 = vsub.f32 1.0, %v4143
      %v4272 = vsub.f32 1.0, %v4144
      %v4273 = vsub.f32 1.0, %v4145
      %v4274 = vsub.f32 1.0, %v4146
      %v4275 = vsub.f32 1.0, %v4147
      %v4276 = vsub.f32 1.0, %v4148
      %v4277 = vsub.f32 1.0, %v4149
      %v4278 = vsub.f32 1.0, %v4150
      %v4279 = vsub.f32 1.0, %v4151
      %v4280 = vsub.f32 1.0, %v4152
      %v4281 = vsub.f32 1.0, %v4153
      %v4282 = vsub.f32 1.0, %v4154
      %v4283 = vsub.f32 1.0, %v4155
      %v4284 = vsub.f32 1.0, %v4156
      %v4285 = vsub.f32 1.0, %v4157
      %v4286 = vsub.f32 1.0, %v4158
      %v4287 = vsub.f32 1.0, %v4159
      %v4288 = vsub.f32 1.0, %v4160
      %v4289 = vsub.f32 1.0, %v4161
      %v4290 = vsub.f32 1.0, %v4162
      %v4291 = vsub.f32 1.0, %v4163
      %v4292 = vsub.f32 1.0, %v4164
      %v4293 = vsub.f32 1.0, %v4165
      %v4294 = vsub.f32 1.0, %v4166
      %v4295 = vsub.f32 1.0, %v4167
      %v4296 = vsub.f32 1.0, %v4168
      %v4297 = vsub.f32 1.0, %v4169
      %v4298 = vsub.f32 1.0, %v4170
      %v4299 = vsub.f32 1.0, %v4171
      %v4300 = vsub.f32 1.0, %v4172
      %v4301 = vsub.f32 1.0, %v4173
      %v4302 = vsub.f32 1.0, %v4174
      %v4303 = vsub.f32 1.0, %v4175
      %v4304 = vsub.f32 1.0, %v4176
      %v4305 = vsub.f32 1.0, %v4177
      %v4306 = vsub.f32 1.0, %v4178
      %v4307 = vsub.f32 1.0, %v4179
      %v4308 = vsub.f32 1.0, %v4180
      %v4309 = vsub.f32 1.0, %v4181
      %v4310 = vsub.f32 1.0, %v4182
      %v4311 = vsub.f32 1.0, %v4183
      %v4312 = vsub.f32 1.0, %v4184
      %v4313 = vsub.f32 1.0, %v4185
      %v4314 = vsub.f32 1.0, %v4186
      %v4315 = vsub.f32 1.0, %v4187
      %v4316 = vsub.f32 1.0, %v4188
      %v4317 = vsub.f32 1.0, %v4189
      %v4318 = vsub.f32 1.0, %v4190
      %v4319 = vsub.f32 1.0, %v4191
      %v4320 = vsub.f32 1.0, %v4192
      %v4321 = vsub.f32 1.0, %v4193
      %v4322 = vsub.f32 1.0, %v4194
      %v4323 = vsub.f32 1.0, %v4195
      %v4324 = vsub.f32 1.0, %v4196
      %v4325 = vsub.f32 1.0, %v4197
      %v4326 = vsub.f32 1.0, %v4198
      %v4327 = vsub.f32 1.0, %v4199
      %v4328 = vsub.f32 1.0, %v4200
      %v4329 = vsub.f32 1.0, %v4201
      %v4330 = vsub.f32 1.0, %v4202
      %v4331 = vsub.f32 1.0, %v4203
      %v4332 = vsub.f32 1.0, %v4204
      %v4333 = vsub.f32 1.0, %v4205
      %v4334 = vsub.f32 1.0, %v4206
      %v4335 = vsub.f32 1.0, %v4207
      %v4336 = vsub.f32 1.0, %v4208
      %v4337 = vsub.f32 1.0, %v4209
      %v4338 = vsub.f32 1.0, %v4210
      %v4339 = vsub.f32 1.0, %v4211
      %v4340 = vsub.f32 1.0, %v4212
      %v4341 = vsub.f32 1.0, %v4213
      %v4342 = vsub.f32 1.0, %v4214
      %v4343 = vsub.f32 1.0, %v4215
      %v4344 = vsub.f32 1.0, %v4216
      %v4345 = vsub.f32 1.0, %v4217
      %v4346 = vsub.f32 1.0, %v4218
      %v4347 = vsub.f32 1.0, %v4219
      %v4348 = vsub.f32 1.0, %v4220
      %v4349 = vsub.f32 1.0, %v4221
      %v4350 = vsub.f32 1.0, %v4222
      %v4351 = vsub.f32 1.0, %v4223
      %v4352 = vsub.f32 1.0, %v4224
      %v4353 = vsub.f32 1.0, %v4225
      %v4354 = vsub.f32 1.0, %v4226
      %v4355 = vsub.f32 1.0, %v4227
      %v4356 = vsub.f32 1.0, %v4228
      %v4357 = vsub.f32 1.0, %v4229
      %v4358 = vsub.f32 1.0, %v4230
      %v4359 = vsub.f32 1.0, %v4231
      %v4360 = vsub.f32 1.0, %v4232
      %v4361 = vsub.f32 1.0, %v4233
      %v4362 = vsub.f32 1.0, %v4234
      %v4363 = vsub.f32 1.0, %v4235
      %v4364 = vsub.f32 1.0, %v4236
      %v4365 = vsub.f32 1.0, %v4237
      %v4366 = vsub.f32 1.0, %v4238
      %v4367 = vsub.f32 1.0, %v4239
      %v4368 = vsub.f32 1.0, %v4240
      %v4369 = vsub.f32 1.0, %v4241
      %v4370 = vsub.f32 1.0, %v4242
      %v4371 = vsub.f32 1.0, %v4243
      %v4372 = vsub.f32 1.0, %v4244
      %v4373 = vsub.f32 1.0, %v4245
      %vm4374 = vcmp.ge.f32.partialorder %v1686, 0.0
      %vm4375 = vcmp.ge.f32.partialorder %v1687, 0.0
      %vm4376 = vcmp.ge.f32.partialorder %v1688, 0.0
      %vm4377 = vcmp.ge.f32.partialorder %v1689, 0.0
      %vm4378 = vcmp.ge.f32.partialorder %v1690, 0.0
      %vm4379 = vcmp.ge.f32.partialorder %v1691, 0.0
      %vm4380 = vcmp.ge.f32.partialorder %v1692, 0.0
      %vm4381 = vcmp.ge.f32.partialorder %v1693, 0.0
      %vm4382 = vcmp.ge.f32.partialorder %v1694, 0.0
      %vm4383 = vcmp.ge.f32.partialorder %v1695, 0.0
      %vm4384 = vcmp.ge.f32.partialorder %v1696, 0.0
      %vm4385 = vcmp.ge.f32.partialorder %v1697, 0.0
      %vm4386 = vcmp.ge.f32.partialorder %v1698, 0.0
      %vm4387 = vcmp.ge.f32.partialorder %v1699, 0.0
      %vm4388 = vcmp.ge.f32.partialorder %v1700, 0.0
      %vm4389 = vcmp.ge.f32.partialorder %v1701, 0.0
      %vm4390 = vcmp.ge.f32.partialorder %v1702, 0.0
      %vm4391 = vcmp.ge.f32.partialorder %v1703, 0.0
      %vm4392 = vcmp.ge.f32.partialorder %v1704, 0.0
      %vm4393 = vcmp.ge.f32.partialorder %v1705, 0.0
      %vm4394 = vcmp.ge.f32.partialorder %v1706, 0.0
      %vm4395 = vcmp.ge.f32.partialorder %v1707, 0.0
      %vm4396 = vcmp.ge.f32.partialorder %v1708, 0.0
      %vm4397 = vcmp.ge.f32.partialorder %v1709, 0.0
      %vm4398 = vcmp.ge.f32.partialorder %v1710, 0.0
      %vm4399 = vcmp.ge.f32.partialorder %v1711, 0.0
      %vm4400 = vcmp.ge.f32.partialorder %v1712, 0.0
      %vm4401 = vcmp.ge.f32.partialorder %v1713, 0.0
      %vm4402 = vcmp.ge.f32.partialorder %v1714, 0.0
      %vm4403 = vcmp.ge.f32.partialorder %v1715, 0.0
      %vm4404 = vcmp.ge.f32.partialorder %v1716, 0.0
      %vm4405 = vcmp.ge.f32.partialorder %v1717, 0.0
      %vm4406 = vcmp.ge.f32.partialorder %v1718, 0.0
      %vm4407 = vcmp.ge.f32.partialorder %v1719, 0.0
      %vm4408 = vcmp.ge.f32.partialorder %v1720, 0.0
      %vm4409 = vcmp.ge.f32.partialorder %v1721, 0.0
      %vm4410 = vcmp.ge.f32.partialorder %v1722, 0.0
      %vm4411 = vcmp.ge.f32.partialorder %v1723, 0.0
      %vm4412 = vcmp.ge.f32.partialorder %v1724, 0.0
      %vm4413 = vcmp.ge.f32.partialorder %v1725, 0.0
      %vm4414 = vcmp.ge.f32.partialorder %v1726, 0.0
      %vm4415 = vcmp.ge.f32.partialorder %v1727, 0.0
      %vm4416 = vcmp.ge.f32.partialorder %v1728, 0.0
      %vm4417 = vcmp.ge.f32.partialorder %v1729, 0.0
      %vm4418 = vcmp.ge.f32.partialorder %v1730, 0.0
      %vm4419 = vcmp.ge.f32.partialorder %v1731, 0.0
      %vm4420 = vcmp.ge.f32.partialorder %v1732, 0.0
      %vm4421 = vcmp.ge.f32.partialorder %v1733, 0.0
      %vm4422 = vcmp.ge.f32.partialorder %v1734, 0.0
      %vm4423 = vcmp.ge.f32.partialorder %v1735, 0.0
      %vm4424 = vcmp.ge.f32.partialorder %v1736, 0.0
      %vm4425 = vcmp.ge.f32.partialorder %v1737, 0.0
      %vm4426 = vcmp.ge.f32.partialorder %v1738, 0.0
      %vm4427 = vcmp.ge.f32.partialorder %v1739, 0.0
      %vm4428 = vcmp.ge.f32.partialorder %v1740, 0.0
      %vm4429 = vcmp.ge.f32.partialorder %v1741, 0.0
      %vm4430 = vcmp.ge.f32.partialorder %v1742, 0.0
      %vm4431 = vcmp.ge.f32.partialorder %v1743, 0.0
      %vm4432 = vcmp.ge.f32.partialorder %v1744, 0.0
      %vm4433 = vcmp.ge.f32.partialorder %v1745, 0.0
      %vm4434 = vcmp.ge.f32.partialorder %v1746, 0.0
      %vm4435 = vcmp.ge.f32.partialorder %v1747, 0.0
      %vm4436 = vcmp.ge.f32.partialorder %v1748, 0.0
      %vm4437 = vcmp.ge.f32.partialorder %v1749, 0.0
      %vm4438 = vcmp.ge.f32.partialorder %v1750, 0.0
      %vm4439 = vcmp.ge.f32.partialorder %v1751, 0.0
      %vm4440 = vcmp.ge.f32.partialorder %v1752, 0.0
      %vm4441 = vcmp.ge.f32.partialorder %v1753, 0.0
      %vm4442 = vcmp.ge.f32.partialorder %v1754, 0.0
      %vm4443 = vcmp.ge.f32.partialorder %v1755, 0.0
      %vm4444 = vcmp.ge.f32.partialorder %v1756, 0.0
      %vm4445 = vcmp.ge.f32.partialorder %v1757, 0.0
      %vm4446 = vcmp.ge.f32.partialorder %v1758, 0.0
      %vm4447 = vcmp.ge.f32.partialorder %v1759, 0.0
      %vm4448 = vcmp.ge.f32.partialorder %v1760, 0.0
      %vm4449 = vcmp.ge.f32.partialorder %v1761, 0.0
      %vm4450 = vcmp.ge.f32.partialorder %v1762, 0.0
      %vm4451 = vcmp.ge.f32.partialorder %v1763, 0.0
      %vm4452 = vcmp.ge.f32.partialorder %v1764, 0.0
      %vm4453 = vcmp.ge.f32.partialorder %v1765, 0.0
      %vm4454 = vcmp.ge.f32.partialorder %v1766, 0.0
      %vm4455 = vcmp.ge.f32.partialorder %v1767, 0.0
      %vm4456 = vcmp.ge.f32.partialorder %v1768, 0.0
      %vm4457 = vcmp.ge.f32.partialorder %v1769, 0.0
      %vm4458 = vcmp.ge.f32.partialorder %v1770, 0.0
      %vm4459 = vcmp.ge.f32.partialorder %v1771, 0.0
      %vm4460 = vcmp.ge.f32.partialorder %v1772, 0.0
      %vm4461 = vcmp.ge.f32.partialorder %v1773, 0.0
      %vm4462 = vcmp.ge.f32.partialorder %v1774, 0.0
      %vm4463 = vcmp.ge.f32.partialorder %v1775, 0.0
      %vm4464 = vcmp.ge.f32.partialorder %v1776, 0.0
      %vm4465 = vcmp.ge.f32.partialorder %v1777, 0.0
      %vm4466 = vcmp.ge.f32.partialorder %v1778, 0.0
      %vm4467 = vcmp.ge.f32.partialorder %v1779, 0.0
      %vm4468 = vcmp.ge.f32.partialorder %v1780, 0.0
      %vm4469 = vcmp.ge.f32.partialorder %v1781, 0.0
      %vm4470 = vcmp.ge.f32.partialorder %v1782, 0.0
      %vm4471 = vcmp.ge.f32.partialorder %v1783, 0.0
      %vm4472 = vcmp.ge.f32.partialorder %v1784, 0.0
      %vm4473 = vcmp.ge.f32.partialorder %v1785, 0.0
      %vm4474 = vcmp.ge.f32.partialorder %v1786, 0.0
      %vm4475 = vcmp.ge.f32.partialorder %v1787, 0.0
      %vm4476 = vcmp.ge.f32.partialorder %v1788, 0.0
      %vm4477 = vcmp.ge.f32.partialorder %v1789, 0.0
      %vm4478 = vcmp.ge.f32.partialorder %v1790, 0.0
      %vm4479 = vcmp.ge.f32.partialorder %v1791, 0.0
      %vm4480 = vcmp.ge.f32.partialorder %v1792, 0.0
      %vm4481 = vcmp.ge.f32.partialorder %v1793, 0.0
      %vm4482 = vcmp.ge.f32.partialorder %v1794, 0.0
      %vm4483 = vcmp.ge.f32.partialorder %v1795, 0.0
      %vm4484 = vcmp.ge.f32.partialorder %v1796, 0.0
      %vm4485 = vcmp.ge.f32.partialorder %v1797, 0.0
      %vm4486 = vcmp.ge.f32.partialorder %v1798, 0.0
      %vm4487 = vcmp.ge.f32.partialorder %v1799, 0.0
      %vm4488 = vcmp.ge.f32.partialorder %v1800, 0.0
      %vm4489 = vcmp.ge.f32.partialorder %v1801, 0.0
      %vm4490 = vcmp.ge.f32.partialorder %v1802, 0.0
      %vm4491 = vcmp.ge.f32.partialorder %v1803, 0.0
      %vm4492 = vcmp.ge.f32.partialorder %v1804, 0.0
      %vm4493 = vcmp.ge.f32.partialorder %v1805, 0.0
      %vm4494 = vcmp.ge.f32.partialorder %v1806, 0.0
      %vm4495 = vcmp.ge.f32.partialorder %v1807, 0.0
      %vm4496 = vcmp.ge.f32.partialorder %v1808, 0.0
      %vm4497 = vcmp.ge.f32.partialorder %v1809, 0.0
      %vm4498 = vcmp.ge.f32.partialorder %v1810, 0.0
      %vm4499 = vcmp.ge.f32.partialorder %v1811, 0.0
      %vm4500 = vcmp.ge.f32.partialorder %v1812, 0.0
      %vm4501 = vcmp.ge.f32.partialorder %v1813, 0.0
      %v4502 = vsub.f32 0.0, %v4246
      %v4503 = vsub.f32 0.0, %v4247
      %v4504 = vsub.f32 0.0, %v4248
      %v4505 = vsub.f32 0.0, %v4249
      %v4506 = vsub.f32 0.0, %v4250
      %v4507 = vsub.f32 0.0, %v4251
      %v4508 = vsub.f32 0.0, %v4252
      %v4509 = vsub.f32 0.0, %v4253
      %v4510 = vsub.f32 0.0, %v4254
      %v4511 = vsub.f32 0.0, %v4255
      %v4512 = vsub.f32 0.0, %v4256
      %v4513 = vsub.f32 0.0, %v4257
      %v4514 = vsub.f32 0.0, %v4258
      %v4515 = vsub.f32 0.0, %v4259
      %v4516 = vsub.f32 0.0, %v4260
      %v4517 = vsub.f32 0.0, %v4261
      %v4518 = vsub.f32 0.0, %v4262
      %v4519 = vsub.f32 0.0, %v4263
      %v4520 = vsub.f32 0.0, %v4264
      %v4521 = vsub.f32 0.0, %v4265
      %v4522 = vsub.f32 0.0, %v4266
      %v4523 = vsub.f32 0.0, %v4267
      %v4524 = vsub.f32 0.0, %v4268
      %v4525 = vsub.f32 0.0, %v4269
      %v4526 = vsub.f32 0.0, %v4270
      %v4527 = vsub.f32 0.0, %v4271
      %v4528 = vsub.f32 0.0, %v4272
      %v4529 = vsub.f32 0.0, %v4273
      %v4530 = vsub.f32 0.0, %v4274
      %v4531 = vsub.f32 0.0, %v4275
      %v4532 = vsub.f32 0.0, %v4276
      %v4533 = vsub.f32 0.0, %v4277
      %v4534 = vsub.f32 0.0, %v4278
      %v4535 = vsub.f32 0.0, %v4279
      %v4536 = vsub.f32 0.0, %v4280
      %v4537 = vsub.f32 0.0, %v4281
      %v4538 = vsub.f32 0.0, %v4282
      %v4539 = vsub.f32 0.0, %v4283
      %v4540 = vsub.f32 0.0, %v4284
      %v4541 = vsub.f32 0.0, %v4285
      %v4542 = vsub.f32 0.0, %v4286
      %v4543 = vsub.f32 0.0, %v4287
      %v4544 = vsub.f32 0.0, %v4288
      %v4545 = vsub.f32 0.0, %v4289
      %v4546 = vsub.f32 0.0, %v4290
      %v4547 = vsub.f32 0.0, %v4291
      %v4548 = vsub.f32 0.0, %v4292
      %v4549 = vsub.f32 0.0, %v4293
      %v4550 = vsub.f32 0.0, %v4294
      %v4551 = vsub.f32 0.0, %v4295
      %v4552 = vsub.f32 0.0, %v4296
      %v4553 = vsub.f32 0.0, %v4297
      %v4554 = vsub.f32 0.0, %v4298
      %v4555 = vsub.f32 0.0, %v4299
      %v4556 = vsub.f32 0.0, %v4300
      %v4557 = vsub.f32 0.0, %v4301
      %v4558 = vsub.f32 0.0, %v4302
      %v4559 = vsub.f32 0.0, %v4303
      %v4560 = vsub.f32 0.0, %v4304
      %v4561 = vsub.f32 0.0, %v4305
      %v4562 = vsub.f32 0.0, %v4306
      %v4563 = vsub.f32 0.0, %v4307
      %v4564 = vsub.f32 0.0, %v4308
      %v4565 = vsub.f32 0.0, %v4309
      %v4566 = vsub.f32 0.0, %v4310
      %v4567 = vsub.f32 0.0, %v4311
      %v4568 = vsub.f32 0.0, %v4312
      %v4569 = vsub.f32 0.0, %v4313
      %v4570 = vsub.f32 0.0, %v4314
      %v4571 = vsub.f32 0.0, %v4315
      %v4572 = vsub.f32 0.0, %v4316
      %v4573 = vsub.f32 0.0, %v4317
      %v4574 = vsub.f32 0.0, %v4318
      %v4575 = vsub.f32 0.0, %v4319
      %v4576 = vsub.f32 0.0, %v4320
      %v4577 = vsub.f32 0.0, %v4321
      %v4578 = vsub.f32 0.0, %v4322
      %v4579 = vsub.f32 0.0, %v4323
      %v4580 = vsub.f32 0.0, %v4324
      %v4581 = vsub.f32 0.0, %v4325
      %v4582 = vsub.f32 0.0, %v4326
      %v4583 = vsub.f32 0.0, %v4327
      %v4584 = vsub.f32 0.0, %v4328
      %v4585 = vsub.f32 0.0, %v4329
      %v4586 = vsub.f32 0.0, %v4330
      %v4587 = vsub.f32 0.0, %v4331
      %v4588 = vsub.f32 0.0, %v4332
      %v4589 = vsub.f32 0.0, %v4333
      %v4590 = vsub.f32 0.0, %v4334
      %v4591 = vsub.f32 0.0, %v4335
      %v4592 = vsub.f32 0.0, %v4336
      %v4593 = vsub.f32 0.0, %v4337
      %v4594 = vsub.f32 0.0, %v4338
      %v4595 = vsub.f32 0.0, %v4339
      %v4596 = vsub.f32 0.0, %v4340
      %v4597 = vsub.f32 0.0, %v4341
      %v4598 = vsub.f32 0.0, %v4342
      %v4599 = vsub.f32 0.0, %v4343
      %v4600 = vsub.f32 0.0, %v4344
      %v4601 = vsub.f32 0.0, %v4345
      %v4602 = vsub.f32 0.0, %v4346
      %v4603 = vsub.f32 0.0, %v4347
      %v4604 = vsub.f32 0.0, %v4348
      %v4605 = vsub.f32 0.0, %v4349
      %v4606 = vsub.f32 0.0, %v4350
      %v4607 = vsub.f32 0.0, %v4351
      %v4608 = vsub.f32 0.0, %v4352
      %v4609 = vsub.f32 0.0, %v4353
      %v4610 = vsub.f32 0.0, %v4354
      %v4611 = vsub.f32 0.0, %v4355
      %v4612 = vsub.f32 0.0, %v4356
      %v4613 = vsub.f32 0.0, %v4357
      %v4614 = vsub.f32 0.0, %v4358
      %v4615 = vsub.f32 0.0, %v4359
      %v4616 = vsub.f32 0.0, %v4360
      %v4617 = vsub.f32 0.0, %v4361
      %v4618 = vsub.f32 0.0, %v4362
      %v4619 = vsub.f32 0.0, %v4363
      %v4620 = vsub.f32 0.0, %v4364
      %v4621 = vsub.f32 0.0, %v4365
      %v4622 = vsub.f32 0.0, %v4366
      %v4623 = vsub.f32 0.0, %v4367
      %v4624 = vsub.f32 0.0, %v4368
      %v4625 = vsub.f32 0.0, %v4369
      %v4626 = vsub.f32 0.0, %v4370
      %v4627 = vsub.f32 0.0, %v4371
      %v4628 = vsub.f32 0.0, %v4372
      %v4629 = vsub.f32 0.0, %v4373
      %v4630 = vsel %vm4374, %v4246, %v4502
      %v4631 = vsel %vm4375, %v4247, %v4503
      %v4632 = vsel %vm4376, %v4248, %v4504
      %v4633 = vsel %vm4377, %v4249, %v4505
      %v4634 = vsel %vm4378, %v4250, %v4506
      %v4635 = vsel %vm4379, %v4251, %v4507
      %v4636 = vsel %vm4380, %v4252, %v4508
      %v4637 = vsel %vm4381, %v4253, %v4509
      %v4638 = vsel %vm4382, %v4254, %v4510
      %v4639 = vsel %vm4383, %v4255, %v4511
      %v4640 = vsel %vm4384, %v4256, %v4512
      %v4641 = vsel %vm4385, %v4257, %v4513
      %v4642 = vsel %vm4386, %v4258, %v4514
      %v4643 = vsel %vm4387, %v4259, %v4515
      %v4644 = vsel %vm4388, %v4260, %v4516
      %v4645 = vsel %vm4389, %v4261, %v4517
      %v4646 = vsel %vm4390, %v4262, %v4518
      %v4647 = vsel %vm4391, %v4263, %v4519
      %v4648 = vsel %vm4392, %v4264, %v4520
      %v4649 = vsel %vm4393, %v4265, %v4521
      %v4650 = vsel %vm4394, %v4266, %v4522
      %v4651 = vsel %vm4395, %v4267, %v4523
      %v4652 = vsel %vm4396, %v4268, %v4524
      %v4653 = vsel %vm4397, %v4269, %v4525
      %v4654 = vsel %vm4398, %v4270, %v4526
      %v4655 = vsel %vm4399, %v4271, %v4527
      %v4656 = vsel %vm4400, %v4272, %v4528
      %v4657 = vsel %vm4401, %v4273, %v4529
      %v4658 = vsel %vm4402, %v4274, %v4530
      %v4659 = vsel %vm4403, %v4275, %v4531
      %v4660 = vsel %vm4404, %v4276, %v4532
      %v4661 = vsel %vm4405, %v4277, %v4533
      %v4662 = vsel %vm4406, %v4278, %v4534
      %v4663 = vsel %vm4407, %v4279, %v4535
      %v4664 = vsel %vm4408, %v4280, %v4536
      %v4665 = vsel %vm4409, %v4281, %v4537
      %v4666 = vsel %vm4410, %v4282, %v4538
      %v4667 = vsel %vm4411, %v4283, %v4539
      %v4668 = vsel %vm4412, %v4284, %v4540
      %v4669 = vsel %vm4413, %v4285, %v4541
      %v4670 = vsel %vm4414, %v4286, %v4542
      %v4671 = vsel %vm4415, %v4287, %v4543
      %v4672 = vsel %vm4416, %v4288, %v4544
      %v4673 = vsel %vm4417, %v4289, %v4545
      %v4674 = vsel %vm4418, %v4290, %v4546
      %v4675 = vsel %vm4419, %v4291, %v4547
      %v4676 = vsel %vm4420, %v4292, %v4548
      %v4677 = vsel %vm4421, %v4293, %v4549
      %v4678 = vsel %vm4422, %v4294, %v4550
      %v4679 = vsel %vm4423, %v4295, %v4551
      %v4680 = vsel %vm4424, %v4296, %v4552
      %v4681 = vsel %vm4425, %v4297, %v4553
      %v4682 = vsel %vm4426, %v4298, %v4554
      %v4683 = vsel %vm4427, %v4299, %v4555
      %v4684 = vsel %vm4428, %v4300, %v4556
      %v4685 = vsel %vm4429, %v4301, %v4557
      %v4686 = vsel %vm4430, %v4302, %v4558
      %v4687 = vsel %vm4431, %v4303, %v4559
      %v4688 = vsel %vm4432, %v4304, %v4560
      %v4689 = vsel %vm4433, %v4305, %v4561
      %v4690 = vsel %vm4434, %v4306, %v4562
      %v4691 = vsel %vm4435, %v4307, %v4563
      %v4692 = vsel %vm4436, %v4308, %v4564
      %v4693 = vsel %vm4437, %v4309, %v4565
      %v4694 = vsel %vm4438, %v4310, %v4566
      %v4695 = vsel %vm4439, %v4311, %v4567
      %v4696 = vsel %vm4440, %v4312, %v4568
      %v4697 = vsel %vm4441, %v4313, %v4569
      %v4698 = vsel %vm4442, %v4314, %v4570
      %v4699 = vsel %vm4443, %v4315, %v4571
      %v4700 = vsel %vm4444, %v4316, %v4572
      %v4701 = vsel %vm4445, %v4317, %v4573
      %v4702 = vsel %vm4446, %v4318, %v4574
      %v4703 = vsel %vm4447, %v4319, %v4575
      %v4704 = vsel %vm4448, %v4320, %v4576
      %v4705 = vsel %vm4449, %v4321, %v4577
      %v4706 = vsel %vm4450, %v4322, %v4578
      %v4707 = vsel %vm4451, %v4323, %v4579
      %v4708 = vsel %vm4452, %v4324, %v4580
      %v4709 = vsel %vm4453, %v4325, %v4581
      %v4710 = vsel %vm4454, %v4326, %v4582
      %v4711 = vsel %vm4455, %v4327, %v4583
      %v4712 = vsel %vm4456, %v4328, %v4584
      %v4713 = vsel %vm4457, %v4329, %v4585
      %v4714 = vsel %vm4458, %v4330, %v4586
      %v4715 = vsel %vm4459, %v4331, %v4587
      %v4716 = vsel %vm4460, %v4332, %v4588
      %v4717 = vsel %vm4461, %v4333, %v4589
      %v4718 = vsel %vm4462, %v4334, %v4590
      %v4719 = vsel %vm4463, %v4335, %v4591
      %v4720 = vsel %vm4464, %v4336, %v4592
      %v4721 = vsel %vm4465, %v4337, %v4593
      %v4722 = vsel %vm4466, %v4338, %v4594
      %v4723 = vsel %vm4467, %v4339, %v4595
      %v4724 = vsel %vm4468, %v4340, %v4596
      %v4725 = vsel %vm4469, %v4341, %v4597
      %v4726 = vsel %vm4470, %v4342, %v4598
      %v4727 = vsel %vm4471, %v4343, %v4599
      %v4728 = vsel %vm4472, %v4344, %v4600
      %v4729 = vsel %vm4473, %v4345, %v4601
      %v4730 = vsel %vm4474, %v4346, %v4602
      %v4731 = vsel %vm4475, %v4347, %v4603
      %v4732 = vsel %vm4476, %v4348, %v4604
      %v4733 = vsel %vm4477, %v4349, %v4605
      %v4734 = vsel %vm4478, %v4350, %v4606
      %v4735 = vsel %vm4479, %v4351, %v4607
      %v4736 = vsel %vm4480, %v4352, %v4608
      %v4737 = vsel %vm4481, %v4353, %v4609
      %v4738 = vsel %vm4482, %v4354, %v4610
      %v4739 = vsel %vm4483, %v4355, %v4611
      %v4740 = vsel %vm4484, %v4356, %v4612
      %v4741 = vsel %vm4485, %v4357, %v4613
      %v4742 = vsel %vm4486, %v4358, %v4614
      %v4743 = vsel %vm4487, %v4359, %v4615
      %v4744 = vsel %vm4488, %v4360, %v4616
      %v4745 = vsel %vm4489, %v4361, %v4617
      %v4746 = vsel %vm4490, %v4362, %v4618
      %v4747 = vsel %vm4491, %v4363, %v4619
      %v4748 = vsel %vm4492, %v4364, %v4620
      %v4749 = vsel %vm4493, %v4365, %v4621
      %v4750 = vsel %vm4494, %v4366, %v4622
      %v4751 = vsel %vm4495, %v4367, %v4623
      %v4752 = vsel %vm4496, %v4368, %v4624
      %v4753 = vsel %vm4497, %v4369, %v4625
      %v4754 = vsel %vm4498, %v4370, %v4626
      %v4755 = vsel %vm4499, %v4371, %v4627
      %v4756 = vsel %vm4500, %v4372, %v4628
      %v4757 = vsel %vm4501, %v4373, %v4629
      %v4758 = vadd.f32 %v4630, 1.0
      %v4759 = vadd.f32 %v4631, 1.0
      %v4760 = vadd.f32 %v4632, 1.0
      %v4761 = vadd.f32 %v4633, 1.0
      %v4762 = vadd.f32 %v4634, 1.0
      %v4763 = vadd.f32 %v4635, 1.0
      %v4764 = vadd.f32 %v4636, 1.0
      %v4765 = vadd.f32 %v4637, 1.0
      %v4766 = vadd.f32 %v4638, 1.0
      %v4767 = vadd.f32 %v4639, 1.0
      %v4768 = vadd.f32 %v4640, 1.0
      %v4769 = vadd.f32 %v4641, 1.0
      %v4770 = vadd.f32 %v4642, 1.0
      %v4771 = vadd.f32 %v4643, 1.0
      %v4772 = vadd.f32 %v4644, 1.0
      %v4773 = vadd.f32 %v4645, 1.0
      %v4774 = vadd.f32 %v4646, 1.0
      %v4775 = vadd.f32 %v4647, 1.0
      %v4776 = vadd.f32 %v4648, 1.0
      %v4777 = vadd.f32 %v4649, 1.0
      %v4778 = vadd.f32 %v4650, 1.0
      %v4779 = vadd.f32 %v4651, 1.0
      %v4780 = vadd.f32 %v4652, 1.0
      %v4781 = vadd.f32 %v4653, 1.0
      %v4782 = vadd.f32 %v4654, 1.0
      %v4783 = vadd.f32 %v4655, 1.0
      %v4784 = vadd.f32 %v4656, 1.0
      %v4785 = vadd.f32 %v4657, 1.0
      %v4786 = vadd.f32 %v4658, 1.0
      %v4787 = vadd.f32 %v4659, 1.0
      %v4788 = vadd.f32 %v4660, 1.0
      %v4789 = vadd.f32 %v4661, 1.0
      %v4790 = vadd.f32 %v4662, 1.0
      %v4791 = vadd.f32 %v4663, 1.0
      %v4792 = vadd.f32 %v4664, 1.0
      %v4793 = vadd.f32 %v4665, 1.0
      %v4794 = vadd.f32 %v4666, 1.0
      %v4795 = vadd.f32 %v4667, 1.0
      %v4796 = vadd.f32 %v4668, 1.0
      %v4797 = vadd.f32 %v4669, 1.0
      %v4798 = vadd.f32 %v4670, 1.0
      %v4799 = vadd.f32 %v4671, 1.0
      %v4800 = vadd.f32 %v4672, 1.0
      %v4801 = vadd.f32 %v4673, 1.0
      %v4802 = vadd.f32 %v4674, 1.0
      %v4803 = vadd.f32 %v4675, 1.0
      %v4804 = vadd.f32 %v4676, 1.0
      %v4805 = vadd.f32 %v4677, 1.0
      %v4806 = vadd.f32 %v4678, 1.0
      %v4807 = vadd.f32 %v4679, 1.0
      %v4808 = vadd.f32 %v4680, 1.0
      %v4809 = vadd.f32 %v4681, 1.0
      %v4810 = vadd.f32 %v4682, 1.0
      %v4811 = vadd.f32 %v4683, 1.0
      %v4812 = vadd.f32 %v4684, 1.0
      %v4813 = vadd.f32 %v4685, 1.0
      %v4814 = vadd.f32 %v4686, 1.0
      %v4815 = vadd.f32 %v4687, 1.0
      %v4816 = vadd.f32 %v4688, 1.0
      %v4817 = vadd.f32 %v4689, 1.0
      %v4818 = vadd.f32 %v4690, 1.0
      %v4819 = vadd.f32 %v4691, 1.0
      %v4820 = vadd.f32 %v4692, 1.0
      %v4821 = vadd.f32 %v4693, 1.0
      %v4822 = vadd.f32 %v4694, 1.0
      %v4823 = vadd.f32 %v4695, 1.0
      %v4824 = vadd.f32 %v4696, 1.0
      %v4825 = vadd.f32 %v4697, 1.0
      %v4826 = vadd.f32 %v4698, 1.0
      %v4827 = vadd.f32 %v4699, 1.0
      %v4828 = vadd.f32 %v4700, 1.0
      %v4829 = vadd.f32 %v4701, 1.0
      %v4830 = vadd.f32 %v4702, 1.0
      %v4831 = vadd.f32 %v4703, 1.0
      %v4832 = vadd.f32 %v4704, 1.0
      %v4833 = vadd.f32 %v4705, 1.0
      %v4834 = vadd.f32 %v4706, 1.0
      %v4835 = vadd.f32 %v4707, 1.0
      %v4836 = vadd.f32 %v4708, 1.0
      %v4837 = vadd.f32 %v4709, 1.0
      %v4838 = vadd.f32 %v4710, 1.0
      %v4839 = vadd.f32 %v4711, 1.0
      %v4840 = vadd.f32 %v4712, 1.0
      %v4841 = vadd.f32 %v4713, 1.0
      %v4842 = vadd.f32 %v4714, 1.0
      %v4843 = vadd.f32 %v4715, 1.0
      %v4844 = vadd.f32 %v4716, 1.0
      %v4845 = vadd.f32 %v4717, 1.0
      %v4846 = vadd.f32 %v4718, 1.0
      %v4847 = vadd.f32 %v4719, 1.0
      %v4848 = vadd.f32 %v4720, 1.0
      %v4849 = vadd.f32 %v4721, 1.0
      %v4850 = vadd.f32 %v4722, 1.0
      %v4851 = vadd.f32 %v4723, 1.0
      %v4852 = vadd.f32 %v4724, 1.0
      %v4853 = vadd.f32 %v4725, 1.0
      %v4854 = vadd.f32 %v4726, 1.0
      %v4855 = vadd.f32 %v4727, 1.0
      %v4856 = vadd.f32 %v4728, 1.0
      %v4857 = vadd.f32 %v4729, 1.0
      %v4858 = vadd.f32 %v4730, 1.0
      %v4859 = vadd.f32 %v4731, 1.0
      %v4860 = vadd.f32 %v4732, 1.0
      %v4861 = vadd.f32 %v4733, 1.0
      %v4862 = vadd.f32 %v4734, 1.0
      %v4863 = vadd.f32 %v4735, 1.0
      %v4864 = vadd.f32 %v4736, 1.0
      %v4865 = vadd.f32 %v4737, 1.0
      %v4866 = vadd.f32 %v4738, 1.0
      %v4867 = vadd.f32 %v4739, 1.0
      %v4868 = vadd.f32 %v4740, 1.0
      %v4869 = vadd.f32 %v4741, 1.0
      %v4870 = vadd.f32 %v4742, 1.0
      %v4871 = vadd.f32 %v4743, 1.0
      %v4872 = vadd.f32 %v4744, 1.0
      %v4873 = vadd.f32 %v4745, 1.0
      %v4874 = vadd.f32 %v4746, 1.0
      %v4875 = vadd.f32 %v4747, 1.0
      %v4876 = vadd.f32 %v4748, 1.0
      %v4877 = vadd.f32 %v4749, 1.0
      %v4878 = vadd.f32 %v4750, 1.0
      %v4879 = vadd.f32 %v4751, 1.0
      %v4880 = vadd.f32 %v4752, 1.0
      %v4881 = vadd.f32 %v4753, 1.0
      %v4882 = vadd.f32 %v4754, 1.0
      %v4883 = vadd.f32 %v4755, 1.0
      %v4884 = vadd.f32 %v4756, 1.0
      %v4885 = vadd.f32 %v4757, 1.0
      %v4886 = vmul.f32 %v1558, %v4758
      %v4887 = vmul.f32 %v1559, %v4759
      %v4888 = vmul.f32 %v1560, %v4760
      %v4889 = vmul.f32 %v1561, %v4761
      %v4890 = vmul.f32 %v1562, %v4762
      %v4891 = vmul.f32 %v1563, %v4763
      %v4892 = vmul.f32 %v1564, %v4764
      %v4893 = vmul.f32 %v1565, %v4765
      %v4894 = vmul.f32 %v1566, %v4766
      %v4895 = vmul.f32 %v1567, %v4767
      %v4896 = vmul.f32 %v1568, %v4768
      %v4897 = vmul.f32 %v1569, %v4769
      %v4898 = vmul.f32 %v1570, %v4770
      %v4899 = vmul.f32 %v1571, %v4771
      %v4900 = vmul.f32 %v1572, %v4772
      %v4901 = vmul.f32 %v1573, %v4773
      %v4902 = vmul.f32 %v1574, %v4774
      %v4903 = vmul.f32 %v1575, %v4775
      %v4904 = vmul.f32 %v1576, %v4776
      %v4905 = vmul.f32 %v1577, %v4777
      %v4906 = vmul.f32 %v1578, %v4778
      %v4907 = vmul.f32 %v1579, %v4779
      %v4908 = vmul.f32 %v1580, %v4780
      %v4909 = vmul.f32 %v1581, %v4781
      %v4910 = vmul.f32 %v1582, %v4782
      %v4911 = vmul.f32 %v1583, %v4783
      %v4912 = vmul.f32 %v1584, %v4784
      %v4913 = vmul.f32 %v1585, %v4785
      %v4914 = vmul.f32 %v1586, %v4786
      %v4915 = vmul.f32 %v1587, %v4787
      %v4916 = vmul.f32 %v1588, %v4788
      %v4917 = vmul.f32 %v1589, %v4789
      %v4918 = vmul.f32 %v1590, %v4790
      %v4919 = vmul.f32 %v1591, %v4791
      %v4920 = vmul.f32 %v1592, %v4792
      %v4921 = vmul.f32 %v1593, %v4793
      %v4922 = vmul.f32 %v1594, %v4794
      %v4923 = vmul.f32 %v1595, %v4795
      %v4924 = vmul.f32 %v1596, %v4796
      %v4925 = vmul.f32 %v1597, %v4797
      %v4926 = vmul.f32 %v1598, %v4798
      %v4927 = vmul.f32 %v1599, %v4799
      %v4928 = vmul.f32 %v1600, %v4800
      %v4929 = vmul.f32 %v1601, %v4801
      %v4930 = vmul.f32 %v1602, %v4802
      %v4931 = vmul.f32 %v1603, %v4803
      %v4932 = vmul.f32 %v1604, %v4804
      %v4933 = vmul.f32 %v1605, %v4805
      %v4934 = vmul.f32 %v1606, %v4806
      %v4935 = vmul.f32 %v1607, %v4807
      %v4936 = vmul.f32 %v1608, %v4808
      %v4937 = vmul.f32 %v1609, %v4809
      %v4938 = vmul.f32 %v1610, %v4810
      %v4939 = vmul.f32 %v1611, %v4811
      %v4940 = vmul.f32 %v1612, %v4812
      %v4941 = vmul.f32 %v1613, %v4813
      %v4942 = vmul.f32 %v1614, %v4814
      %v4943 = vmul.f32 %v1615, %v4815
      %v4944 = vmul.f32 %v1616, %v4816
      %v4945 = vmul.f32 %v1617, %v4817
      %v4946 = vmul.f32 %v1618, %v4818
      %v4947 = vmul.f32 %v1619, %v4819
      %v4948 = vmul.f32 %v1620, %v4820
      %v4949 = vmul.f32 %v1621, %v4821
      %v4950 = vmul.f32 %v1622, %v4822
      %v4951 = vmul.f32 %v1623, %v4823
      %v4952 = vmul.f32 %v1624, %v4824
      %v4953 = vmul.f32 %v1625, %v4825
      %v4954 = vmul.f32 %v1626, %v4826
      %v4955 = vmul.f32 %v1627, %v4827
      %v4956 = vmul.f32 %v1628, %v4828
      %v4957 = vmul.f32 %v1629, %v4829
      %v4958 = vmul.f32 %v1630, %v4830
      %v4959 = vmul.f32 %v1631, %v4831
      %v4960 = vmul.f32 %v1632, %v4832
      %v4961 = vmul.f32 %v1633, %v4833
      %v4962 = vmul.f32 %v1634, %v4834
      %v4963 = vmul.f32 %v1635, %v4835
      %v4964 = vmul.f32 %v1636, %v4836
      %v4965 = vmul.f32 %v1637, %v4837
      %v4966 = vmul.f32 %v1638, %v4838
      %v4967 = vmul.f32 %v1639, %v4839
      %v4968 = vmul.f32 %v1640, %v4840
      %v4969 = vmul.f32 %v1641, %v4841
      %v4970 = vmul.f32 %v1642, %v4842
      %v4971 = vmul.f32 %v1643, %v4843
      %v4972 = vmul.f32 %v1644, %v4844
      %v4973 = vmul.f32 %v1645, %v4845
      %v4974 = vmul.f32 %v1646, %v4846
      %v4975 = vmul.f32 %v1647, %v4847
      %v4976 = vmul.f32 %v1648, %v4848
      %v4977 = vmul.f32 %v1649, %v4849
      %v4978 = vmul.f32 %v1650, %v4850
      %v4979 = vmul.f32 %v1651, %v4851
      %v4980 = vmul.f32 %v1652, %v4852
      %v4981 = vmul.f32 %v1653, %v4853
      %v4982 = vmul.f32 %v1654, %v4854
      %v4983 = vmul.f32 %v1655, %v4855
      %v4984 = vmul.f32 %v1656, %v4856
      %v4985 = vmul.f32 %v1657, %v4857
      %v4986 = vmul.f32 %v1658, %v4858
      %v4987 = vmul.f32 %v1659, %v4859
      %v4988 = vmul.f32 %v1660, %v4860
      %v4989 = vmul.f32 %v1661, %v4861
      %v4990 = vmul.f32 %v1662, %v4862
      %v4991 = vmul.f32 %v1663, %v4863
      %v4992 = vmul.f32 %v1664, %v4864
      %v4993 = vmul.f32 %v1665, %v4865
      %v4994 = vmul.f32 %v1666, %v4866
      %v4995 = vmul.f32 %v1667, %v4867
      %v4996 = vmul.f32 %v1668, %v4868
      %v4997 = vmul.f32 %v1669, %v4869
      %v4998 = vmul.f32 %v1670, %v4870
      %v4999 = vmul.f32 %v1671, %v4871
      %v5000 = vmul.f32 %v1672, %v4872
      %v5001 = vmul.f32 %v1673, %v4873
      %v5002 = vmul.f32 %v1674, %v4874
      %v5003 = vmul.f32 %v1675, %v4875
      %v5004 = vmul.f32 %v1676, %v4876
      %v5005 = vmul.f32 %v1677, %v4877
      %v5006 = vmul.f32 %v1678, %v4878
      %v5007 = vmul.f32 %v1679, %v4879
      %v5008 = vmul.f32 %v1680, %v4880
      %v5009 = vmul.f32 %v1681, %v4881
      %v5010 = vmul.f32 %v1682, %v4882
      %v5011 = vmul.f32 %v1683, %v4883
      %v5012 = vmul.f32 %v1684, %v4884
      %v5013 = vmul.f32 %v1685, %v4885
      %v5014 = vmax.f32 %v4886, %v4890
      %v5015 = vmax.f32 %v4887, %v4891
      %v5016 = vmax.f32 %v4888, %v4892
      %v5017 = vmax.f32 %v4889, %v4893
      %v5018 = vmax.f32 %v4894, %v4898
      %v5019 = vmax.f32 %v4895, %v4899
      %v5020 = vmax.f32 %v4896, %v4900
      %v5021 = vmax.f32 %v4897, %v4901
      %v5022 = vmax.f32 %v4902, %v4906
      %v5023 = vmax.f32 %v4903, %v4907
      %v5024 = vmax.f32 %v4904, %v4908
      %v5025 = vmax.f32 %v4905, %v4909
      %v5026 = vmax.f32 %v4910, %v4914
      %v5027 = vmax.f32 %v4911, %v4915
      %v5028 = vmax.f32 %v4912, %v4916
      %v5029 = vmax.f32 %v4913, %v4917
      %v5030 = vmax.f32 %v4918, %v4922
      %v5031 = vmax.f32 %v4919, %v4923
      %v5032 = vmax.f32 %v4920, %v4924
      %v5033 = vmax.f32 %v4921, %v4925
      %v5034 = vmax.f32 %v4926, %v4930
      %v5035 = vmax.f32 %v4927, %v4931
      %v5036 = vmax.f32 %v4928, %v4932
      %v5037 = vmax.f32 %v4929, %v4933
      %v5038 = vmax.f32 %v4934, %v4938
      %v5039 = vmax.f32 %v4935, %v4939
      %v5040 = vmax.f32 %v4936, %v4940
      %v5041 = vmax.f32 %v4937, %v4941
      %v5042 = vmax.f32 %v4942, %v4946
      %v5043 = vmax.f32 %v4943, %v4947
      %v5044 = vmax.f32 %v4944, %v4948
      %v5045 = vmax.f32 %v4945, %v4949
      %v5046 = vmax.f32 %v4950, %v4954
      %v5047 = vmax.f32 %v4951, %v4955
      %v5048 = vmax.f32 %v4952, %v4956
      %v5049 = vmax.f32 %v4953, %v4957
      %v5050 = vmax.f32 %v4958, %v4962
      %v5051 = vmax.f32 %v4959, %v4963
      %v5052 = vmax.f32 %v4960, %v4964
      %v5053 = vmax.f32 %v4961, %v4965
      %v5054 = vmax.f32 %v4966, %v4970
      %v5055 = vmax.f32 %v4967, %v4971
      %v5056 = vmax.f32 %v4968, %v4972
      %v5057 = vmax.f32 %v4969, %v4973
      %v5058 = vmax.f32 %v4974, %v4978
      %v5059 = vmax.f32 %v4975, %v4979
      %v5060 = vmax.f32 %v4976, %v4980
      %v5061 = vmax.f32 %v4977, %v4981
      %v5062 = vmax.f32 %v4982, %v4986
      %v5063 = vmax.f32 %v4983, %v4987
      %v5064 = vmax.f32 %v4984, %v4988
      %v5065 = vmax.f32 %v4985, %v4989
      %v5066 = vmax.f32 %v4990, %v4994
      %v5067 = vmax.f32 %v4991, %v4995
      %v5068 = vmax.f32 %v4992, %v4996
      %v5069 = vmax.f32 %v4993, %v4997
      %v5070 = vmax.f32 %v4998, %v5002
      %v5071 = vmax.f32 %v4999, %v5003
      %v5072 = vmax.f32 %v5000, %v5004
      %v5073 = vmax.f32 %v5001, %v5005
      %v5074 = vmax.f32 %v5006, %v5010
      %v5075 = vmax.f32 %v5007, %v5011
      %v5076 = vmax.f32 %v5008, %v5012
      %v5077 = vmax.f32 %v5009, %v5013
      %v5078 = vmax.f32 %v5018, %v4890
      %v5079 = vmax.f32 %v5019, %v4891
      %v5080 = vmax.f32 %v5020, %v4892
      %v5081 = vmax.f32 %v5021, %v4893
      %v5082 = vmax.f32 %v5022, %v4898
      %v5083 = vmax.f32 %v5023, %v4899
      %v5084 = vmax.f32 %v5024, %v4900
      %v5085 = vmax.f32 %v5025, %v4901
      %v5086 = vmax.f32 %v5026, %v4906
      %v5087 = vmax.f32 %v5027, %v4907
      %v5088 = vmax.f32 %v5028, %v4908
      %v5089 = vmax.f32 %v5029, %v4909
      %v5090 = vmax.f32 %v5030, %v4914
      %v5091 = vmax.f32 %v5031, %v4915
      %v5092 = vmax.f32 %v5032, %v4916
      %v5093 = vmax.f32 %v5033, %v4917
      %v5094 = vmax.f32 %v5034, %v4922
      %v5095 = vmax.f32 %v5035, %v4923
      %v5096 = vmax.f32 %v5036, %v4924
      %v5097 = vmax.f32 %v5037, %v4925
      %v5098 = vmax.f32 %v5038, %v4930
      %v5099 = vmax.f32 %v5039, %v4931
      %v5100 = vmax.f32 %v5040, %v4932
      %v5101 = vmax.f32 %v5041, %v4933
      %v5102 = vmax.f32 %v5042, %v4938
      %v5103 = vmax.f32 %v5043, %v4939
      %v5104 = vmax.f32 %v5044, %v4940
      %v5105 = vmax.f32 %v5045, %v4941
      %v5106 = vmax.f32 %v5046, %v4946
      %v5107 = vmax.f32 %v5047, %v4947
      %v5108 = vmax.f32 %v5048, %v4948
      %v5109 = vmax.f32 %v5049, %v4949
      %v5110 = vmax.f32 %v5050, %v4954
      %v5111 = vmax.f32 %v5051, %v4955
      %v5112 = vmax.f32 %v5052, %v4956
      %v5113 = vmax.f32 %v5053, %v4957
      %v5114 = vmax.f32 %v5054, %v4962
      %v5115 = vmax.f32 %v5055, %v4963
      %v5116 = vmax.f32 %v5056, %v4964
      %v5117 = vmax.f32 %v5057, %v4965
      %v5118 = vmax.f32 %v5058, %v4970
      %v5119 = vmax.f32 %v5059, %v4971
      %v5120 = vmax.f32 %v5060, %v4972
      %v5121 = vmax.f32 %v5061, %v4973
      %v5122 = vmax.f32 %v5062, %v4978
      %v5123 = vmax.f32 %v5063, %v4979
      %v5124 = vmax.f32 %v5064, %v4980
      %v5125 = vmax.f32 %v5065, %v4981
      %v5126 = vmax.f32 %v5066, %v4986
      %v5127 = vmax.f32 %v5067, %v4987
      %v5128 = vmax.f32 %v5068, %v4988
      %v5129 = vmax.f32 %v5069, %v4989
      %v5130 = vmax.f32 %v5070, %v4994
      %v5131 = vmax.f32 %v5071, %v4995
      %v5132 = vmax.f32 %v5072, %v4996
      %v5133 = vmax.f32 %v5073, %v4997
      %v5134 = vmax.f32 %v5074, %v5002
      %v5135 = vmax.f32 %v5075, %v5003
      %v5136 = vmax.f32 %v5076, %v5004
      %v5137 = vmax.f32 %v5077, %v5005
      %vm5138 = vcmask 130048
      %5139 = vst.msk [vmem:[#allocation2] sm:$0xff] %vm5138, %v5014
      %5140 = vst.msk [vmem:[#allocation2 + $0x8] sm:$0xff] %vm5138, %v5015
      %5141 = vst.msk [vmem:[#allocation2 + $0x10] sm:$0xff] %vm5138, %v5016
      %5142 = vst.msk [vmem:[#allocation2 + $0x18] sm:$0xff] %vm5138, %v5017
      %5143 = vst.msk [vmem:[#allocation2 + $0x20] sm:$0xff] %vm5138, %v5078
      %5144 = vst.msk [vmem:[#allocation2 + $0x28] sm:$0xff] %vm5138, %v5079
      %5145 = vst.msk [vmem:[#allocation2 + $0x30] sm:$0xff] %vm5138, %v5080
      %5146 = vst.msk [vmem:[#allocation2 + $0x38] sm:$0xff] %vm5138, %v5081
      %5147 = vst.msk [vmem:[#allocation2 + $0x40] sm:$0xff] %vm5138, %v5082
      %5148 = vst.msk [vmem:[#allocation2 + $0x48] sm:$0xff] %vm5138, %v5083
      %5149 = vst.msk [vmem:[#allocation2 + $0x50] sm:$0xff] %vm5138, %v5084
      %5150 = vst.msk [vmem:[#allocation2 + $0x58] sm:$0xff] %vm5138, %v5085
      %5151 = vst.msk [vmem:[#allocation2 + $0x60] sm:$0xff] %vm5138, %v5086
      %5152 = vst.msk [vmem:[#allocation2 + $0x68] sm:$0xff] %vm5138, %v5087
      %5153 = vst.msk [vmem:[#allocation2 + $0x70] sm:$0xff] %vm5138, %v5088
      %5154 = vst.msk [vmem:[#allocation2 + $0x78] sm:$0xff] %vm5138, %v5089
      %5155 = vst.msk [vmem:[#allocation2 + $0x80] sm:$0xff] %vm5138, %v5090
      %5156 = vst.msk [vmem:[#allocation2 + $0x88] sm:$0xff] %vm5138, %v5091
      %5157 = vst.msk [vmem:[#allocation2 + $0x90] sm:$0xff] %vm5138, %v5092
      %5158 = vst.msk [vmem:[#allocation2 + $0x98] sm:$0xff] %vm5138, %v5093
      %5159 = vst.msk [vmem:[#allocation2 + $0xa0] sm:$0xff] %vm5138, %v5094
      %5160 = vst.msk [vmem:[#allocation2 + $0xa8] sm:$0xff] %vm5138, %v5095
      %5161 = vst.msk [vmem:[#allocation2 + $0xb0] sm:$0xff] %vm5138, %v5096
      %5162 = vst.msk [vmem:[#allocation2 + $0xb8] sm:$0xff] %vm5138, %v5097
      %5163 = vst.msk [vmem:[#allocation2 + $0xc0] sm:$0xff] %vm5138, %v5098
      %5164 = vst.msk [vmem:[#allocation2 + $0xc8] sm:$0xff] %vm5138, %v5099
      %5165 = vst.msk [vmem:[#allocation2 + $0xd0] sm:$0xff] %vm5138, %v5100
      %5166 = vst.msk [vmem:[#allocation2 + $0xd8] sm:$0xff] %vm5138, %v5101
      %5167 = vst.msk [vmem:[#allocation2 + $0xe0] sm:$0xff] %vm5138, %v5102
      %5168 = vst.msk [vmem:[#allocation2 + $0xe8] sm:$0xff] %vm5138, %v5103
      %5169 = vst.msk [vmem:[#allocation2 + $0xf0] sm:$0xff] %vm5138, %v5104
      %5170 = vst.msk [vmem:[#allocation2 + $0xf8] sm:$0xff] %vm5138, %v5105
      %5171 = vst.msk [vmem:[#allocation2 + $0x100] sm:$0xff] %vm5138, %v5106
      %5172 = vst.msk [vmem:[#allocation2 + $0x108] sm:$0xff] %vm5138, %v5107
      %5173 = vst.msk [vmem:[#allocation2 + $0x110] sm:$0xff] %vm5138, %v5108
      %5174 = vst.msk [vmem:[#allocation2 + $0x118] sm:$0xff] %vm5138, %v5109
      %5175 = vst.msk [vmem:[#allocation2 + $0x120] sm:$0xff] %vm5138, %v5110
      %5176 = vst.msk [vmem:[#allocation2 + $0x128] sm:$0xff] %vm5138, %v5111
      %5177 = vst.msk [vmem:[#allocation2 + $0x130] sm:$0xff] %vm5138, %v5112
      %5178 = vst.msk [vmem:[#allocation2 + $0x138] sm:$0xff] %vm5138, %v5113
      %5179 = vst.msk [vmem:[#allocation2 + $0x140] sm:$0xff] %vm5138, %v5114
      %5180 = vst.msk [vmem:[#allocation2 + $0x148] sm:$0xff] %vm5138, %v5115
      %5181 = vst.msk [vmem:[#allocation2 + $0x150] sm:$0xff] %vm5138, %v5116
      %5182 = vst.msk [vmem:[#allocation2 + $0x158] sm:$0xff] %vm5138, %v5117
      %5183 = vst.msk [vmem:[#allocation2 + $0x160] sm:$0xff] %vm5138, %v5118
      %5184 = vst.msk [vmem:[#allocation2 + $0x168] sm:$0xff] %vm5138, %v5119
      %5185 = vst.msk [vmem:[#allocation2 + $0x170] sm:$0xff] %vm5138, %v5120
      %5186 = vst.msk [vmem:[#allocation2 + $0x178] sm:$0xff] %vm5138, %v5121
      %5187 = vst.msk [vmem:[#allocation2 + $0x180] sm:$0xff] %vm5138, %v5122
      %5188 = vst.msk [vmem:[#allocation2 + $0x188] sm:$0xff] %vm5138, %v5123
      %5189 = vst.msk [vmem:[#allocation2 + $0x190] sm:$0xff] %vm5138, %v5124
      %5190 = vst.msk [vmem:[#allocation2 + $0x198] sm:$0xff] %vm5138, %v5125
      %5191 = vst.msk [vmem:[#allocation2 + $0x1a0] sm:$0xff] %vm5138, %v5126
      %5192 = vst.msk [vmem:[#allocation2 + $0x1a8] sm:$0xff] %vm5138, %v5127
      %5193 = vst.msk [vmem:[#allocation2 + $0x1b0] sm:$0xff] %vm5138, %v5128
      %5194 = vst.msk [vmem:[#allocation2 + $0x1b8] sm:$0xff] %vm5138, %v5129
      %5195 = vst.msk [vmem:[#allocation2 + $0x1c0] sm:$0xff] %vm5138, %v5130
      %5196 = vst.msk [vmem:[#allocation2 + $0x1c8] sm:$0xff] %vm5138, %v5131
      %5197 = vst.msk [vmem:[#allocation2 + $0x1d0] sm:$0xff] %vm5138, %v5132
      %5198 = vst.msk [vmem:[#allocation2 + $0x1d8] sm:$0xff] %vm5138, %v5133
      %5199 = vst.msk [vmem:[#allocation2 + $0x1e0] sm:$0xff] %vm5138, %v5134
      %5200 = vst.msk [vmem:[#allocation2 + $0x1e8] sm:$0xff] %vm5138, %v5135
      %5201 = vst.msk [vmem:[#allocation2 + $0x1f0] sm:$0xff] %vm5138, %v5136
      %5202 = vst.msk [vmem:[#allocation2 + $0x1f8] sm:$0xff] %vm5138, %v5137
      %v5203 = vld [vmem:[#allocation2] sm:$0x1]
      %v5204 = vld [vmem:[#allocation2 + $0x20] sm:$0x1]
      %v5205 = vld [vmem:[#allocation2 + $0x40] sm:$0x1]
      %v5206 = vld [vmem:[#allocation2 + $0x60] sm:$0x1]
      %v5207 = vld [vmem:[#allocation2 + $0x80] sm:$0x1]
      %v5208 = vld [vmem:[#allocation2 + $0xa0] sm:$0x1]
      %v5209 = vld [vmem:[#allocation2 + $0xc0] sm:$0x1]
      %v5210 = vld [vmem:[#allocation2 + $0xe0] sm:$0x1]
      %v5211 = vld [vmem:[#allocation2 + $0x100] sm:$0x1]
      %v5212 = vld [vmem:[#allocation2 + $0x120] sm:$0x1]
      %v5213 = vld [vmem:[#allocation2 + $0x140] sm:$0x1]
      %v5214 = vld [vmem:[#allocation2 + $0x160] sm:$0x1]
      %v5215 = vld [vmem:[#allocation2 + $0x180] sm:$0x1]
      %v5216 = vld [vmem:[#allocation2 + $0x1a0] sm:$0x1]
      %v5217 = vld [vmem:[#allocation2 + $0x1c0] sm:$0x1]
      %v5218 = vld [vmem:[#allocation2 + $0x1e0] sm:$0x1]
      %v5219 = vld [vmem:[#allocation2 + $0x1] sm:$0x1]
      %v5220 = vld [vmem:[#allocation2 + $0x21] sm:$0x1]
      %v5221 = vld [vmem:[#allocation2 + $0x41] sm:$0x1]
      %v5222 = vld [vmem:[#allocation2 + $0x61] sm:$0x1]
      %v5223 = vld [vmem:[#allocation2 + $0x81] sm:$0x1]
      %v5224 = vld [vmem:[#allocation2 + $0xa1] sm:$0x1]
      %v5225 = vld [vmem:[#allocation2 + $0xc1] sm:$0x1]
      %v5226 = vld [vmem:[#allocation2 + $0xe1] sm:$0x1]
      %v5227 = vld [vmem:[#allocation2 + $0x101] sm:$0x1]
      %v5228 = vld [vmem:[#allocation2 + $0x121] sm:$0x1]
      %v5229 = vld [vmem:[#allocation2 + $0x141] sm:$0x1]
      %v5230 = vld [vmem:[#allocation2 + $0x161] sm:$0x1]
      %v5231 = vld [vmem:[#allocation2 + $0x181] sm:$0x1]
      %v5232 = vld [vmem:[#allocation2 + $0x1a1] sm:$0x1]
      %v5233 = vld [vmem:[#allocation2 + $0x1c1] sm:$0x1]
      %v5234 = vld [vmem:[#allocation2 + $0x1e1] sm:$0x1]
      %v5235 = vmax.f32 %v5203, %v5219
      %v5236 = vmax.f32 %v5204, %v5220
      %v5237 = vmax.f32 %v5205, %v5221
      %v5238 = vmax.f32 %v5206, %v5222
      %v5239 = vmax.f32 %v5207, %v5223
      %v5240 = vmax.f32 %v5208, %v5224
      %v5241 = vmax.f32 %v5209, %v5225
      %v5242 = vmax.f32 %v5210, %v5226
      %v5243 = vmax.f32 %v5211, %v5227
      %v5244 = vmax.f32 %v5212, %v5228
      %v5245 = vmax.f32 %v5213, %v5229
      %v5246 = vmax.f32 %v5214, %v5230
      %v5247 = vmax.f32 %v5215, %v5231
      %v5248 = vmax.f32 %v5216, %v5232
      %v5249 = vmax.f32 %v5217, %v5233
      %v5250 = vmax.f32 %v5218, %v5234
      %vm5251 = vcmask 122880
      %5252 = vst.msk [vmem:[%s175] sm:$0x1] %vm5251, %v5235
      %5253 = vst.msk [vmem:[%s175 + $0x10] sm:$0x1] %vm5251, %v5236
      %5254 = vst.msk [vmem:[%s175 + $0x20] sm:$0x1] %vm5251, %v5237
      %5255 = vst.msk [vmem:[%s175 + $0x30] sm:$0x1] %vm5251, %v5238
      %5256 = vst.msk [vmem:[%s175 + $0x40] sm:$0x1] %vm5251, %v5239
      %5257 = vst.msk [vmem:[%s175 + $0x50] sm:$0x1] %vm5251, %v5240
      %5258 = vst.msk [vmem:[%s175 + $0x60] sm:$0x1] %vm5251, %v5241
      %5259 = vst.msk [vmem:[%s175 + $0x70] sm:$0x1] %vm5251, %v5242
      %5260 = vst.msk [vmem:[%s175 + $0x80] sm:$0x1] %vm5251, %v5243
      %5261 = vst.msk [vmem:[%s175 + $0x90] sm:$0x1] %vm5251, %v5244
      %5262 = vst.msk [vmem:[%s175 + $0xa0] sm:$0x1] %vm5251, %v5245
      %5263 = vst.msk [vmem:[%s175 + $0xb0] sm:$0x1] %vm5251, %v5246
      %5264 = vst.msk [vmem:[%s175 + $0xc0] sm:$0x1] %vm5251, %v5247
      %5265 = vst.msk [vmem:[%s175 + $0xd0] sm:$0x1] %vm5251, %v5248
      %5266 = vst.msk [vmem:[%s175 + $0xe0] sm:$0x1] %vm5251, %v5249
      %5267 = vst.msk [vmem:[%s175 + $0xf0] sm:$0x1] %vm5251, %v5250
      %v5268 = vld [vmem:[#allocation2 + $0x2] sm:$0x1]
      %v5269 = vld [vmem:[#allocation2 + $0x22] sm:$0x1]
      %v5270 = vld [vmem:[#allocation2 + $0x42] sm:$0x1]
      %v5271 = vld [vmem:[#allocation2 + $0x62] sm:$0x1]
      %v5272 = vld [vmem:[#allocation2 + $0x82] sm:$0x1]
      %v5273 = vld [vmem:[#allocation2 + $0xa2] sm:$0x1]
      %v5274 = vld [vmem:[#allocation2 + $0xc2] sm:$0x1]
      %v5275 = vld [vmem:[#allocation2 + $0xe2] sm:$0x1]
      %v5276 = vld [vmem:[#allocation2 + $0x102] sm:$0x1]
      %v5277 = vld [vmem:[#allocation2 + $0x122] sm:$0x1]
      %v5278 = vld [vmem:[#allocation2 + $0x142] sm:$0x1]
      %v5279 = vld [vmem:[#allocation2 + $0x162] sm:$0x1]
      %v5280 = vld [vmem:[#allocation2 + $0x182] sm:$0x1]
      %v5281 = vld [vmem:[#allocation2 + $0x1a2] sm:$0x1]
      %v5282 = vld [vmem:[#allocation2 + $0x1c2] sm:$0x1]
      %v5283 = vld [vmem:[#allocation2 + $0x1e2] sm:$0x1]
      %v5284 = vld [vmem:[#allocation2 + $0x3] sm:$0x1]
      %v5285 = vld [vmem:[#allocation2 + $0x23] sm:$0x1]
      %v5286 = vld [vmem:[#allocation2 + $0x43] sm:$0x1]
      %v5287 = vld [vmem:[#allocation2 + $0x63] sm:$0x1]
      %v5288 = vld [vmem:[#allocation2 + $0x83] sm:$0x1]
      %v5289 = vld [vmem:[#allocation2 + $0xa3] sm:$0x1]
      %v5290 = vld [vmem:[#allocation2 + $0xc3] sm:$0x1]
      %v5291 = vld [vmem:[#allocation2 + $0xe3] sm:$0x1]
      %v5292 = vld [vmem:[#allocation2 + $0x103] sm:$0x1]
      %v5293 = vld [vmem:[#allocation2 + $0x123] sm:$0x1]
      %v5294 = vld [vmem:[#allocation2 + $0x143] sm:$0x1]
      %v5295 = vld [vmem:[#allocation2 + $0x163] sm:$0x1]
      %v5296 = vld [vmem:[#allocation2 + $0x183] sm:$0x1]
      %v5297 = vld [vmem:[#allocation2 + $0x1a3] sm:$0x1]
      %v5298 = vld [vmem:[#allocation2 + $0x1c3] sm:$0x1]
      %v5299 = vld [vmem:[#allocation2 + $0x1e3] sm:$0x1]
      %v5300 = vmax.f32 %v5268, %v5284
      %v5301 = vmax.f32 %v5269, %v5285
      %v5302 = vmax.f32 %v5270, %v5286
      %v5303 = vmax.f32 %v5271, %v5287
      %v5304 = vmax.f32 %v5272, %v5288
      %v5305 = vmax.f32 %v5273, %v5289
      %v5306 = vmax.f32 %v5274, %v5290
      %v5307 = vmax.f32 %v5275, %v5291
      %v5308 = vmax.f32 %v5276, %v5292
      %v5309 = vmax.f32 %v5277, %v5293
      %v5310 = vmax.f32 %v5278, %v5294
      %v5311 = vmax.f32 %v5279, %v5295
      %v5312 = vmax.f32 %v5280, %v5296
      %v5313 = vmax.f32 %v5281, %v5297
      %v5314 = vmax.f32 %v5282, %v5298
      %v5315 = vmax.f32 %v5283, %v5299
      %v5316 = vld [vmem:[#allocation2 + $0x1] sm:$0x1]
      %v5317 = vld [vmem:[#allocation2 + $0x21] sm:$0x1]
      %v5318 = vld [vmem:[#allocation2 + $0x41] sm:$0x1]
      %v5319 = vld [vmem:[#allocation2 + $0x61] sm:$0x1]
      %v5320 = vld [vmem:[#allocation2 + $0x81] sm:$0x1]
      %v5321 = vld [vmem:[#allocation2 + $0xa1] sm:$0x1]
      %v5322 = vld [vmem:[#allocation2 + $0xc1] sm:$0x1]
      %v5323 = vld [vmem:[#allocation2 + $0xe1] sm:$0x1]
      %v5324 = vld [vmem:[#allocation2 + $0x101] sm:$0x1]
      %v5325 = vld [vmem:[#allocation2 + $0x121] sm:$0x1]
      %v5326 = vld [vmem:[#allocation2 + $0x141] sm:$0x1]
      %v5327 = vld [vmem:[#allocation2 + $0x161] sm:$0x1]
      %v5328 = vld [vmem:[#allocation2 + $0x181] sm:$0x1]
      %v5329 = vld [vmem:[#allocation2 + $0x1a1] sm:$0x1]
      %v5330 = vld [vmem:[#allocation2 + $0x1c1] sm:$0x1]
      %v5331 = vld [vmem:[#allocation2 + $0x1e1] sm:$0x1]
      %v5332 = vmax.f32 %v5300, %v5316
      %v5333 = vmax.f32 %v5301, %v5317
      %v5334 = vmax.f32 %v5302, %v5318
      %v5335 = vmax.f32 %v5303, %v5319
      %v5336 = vmax.f32 %v5304, %v5320
      %v5337 = vmax.f32 %v5305, %v5321
      %v5338 = vmax.f32 %v5306, %v5322
      %v5339 = vmax.f32 %v5307, %v5323
      %v5340 = vmax.f32 %v5308, %v5324
      %v5341 = vmax.f32 %v5309, %v5325
      %v5342 = vmax.f32 %v5310, %v5326
      %v5343 = vmax.f32 %v5311, %v5327
      %v5344 = vmax.f32 %v5312, %v5328
      %v5345 = vmax.f32 %v5313, %v5329
      %v5346 = vmax.f32 %v5314, %v5330
      %v5347 = vmax.f32 %v5315, %v5331
      %5348 = vst.msk [vmem:[%s175 + $0x1] sm:$0x1] %vm5251, %v5332
      %5349 = vst.msk [vmem:[%s175 + $0x11] sm:$0x1] %vm5251, %v5333
      %5350 = vst.msk [vmem:[%s175 + $0x21] sm:$0x1] %vm5251, %v5334
      %5351 = vst.msk [vmem:[%s175 + $0x31] sm:$0x1] %vm5251, %v5335
      %5352 = vst.msk [vmem:[%s175 + $0x41] sm:$0x1] %vm5251, %v5336
      %5353 = vst.msk [vmem:[%s175 + $0x51] sm:$0x1] %vm5251, %v5337
      %5354 = vst.msk [vmem:[%s175 + $0x61] sm:$0x1] %vm5251, %v5338
      %5355 = vst.msk [vmem:[%s175 + $0x71] sm:$0x1] %vm5251, %v5339
      %5356 = vst.msk [vmem:[%s175 + $0x81] sm:$0x1] %vm5251, %v5340
      %5357 = vst.msk [vmem:[%s175 + $0x91] sm:$0x1] %vm5251, %v5341
      %5358 = vst.msk [vmem:[%s175 + $0xa1] sm:$0x1] %vm5251, %v5342
      %5359 = vst.msk [vmem:[%s175 + $0xb1] sm:$0x1] %vm5251, %v5343
      %5360 = vst.msk [vmem:[%s175 + $0xc1] sm:$0x1] %vm5251, %v5344
      %5361 = vst.msk [vmem:[%s175 + $0xd1] sm:$0x1] %vm5251, %v5345
      %5362 = vst.msk [vmem:[%s175 + $0xe1] sm:$0x1] %vm5251, %v5346
      %5363 = vst.msk [vmem:[%s175 + $0xf1] sm:$0x1] %vm5251, %v5347
      %v5364 = vld [vmem:[#allocation2 + $0x4] sm:$0x1]
      %v5365 = vld [vmem:[#allocation2 + $0x24] sm:$0x1]
      %v5366 = vld [vmem:[#allocation2 + $0x44] sm:$0x1]
      %v5367 = vld [vmem:[#allocation2 + $0x64] sm:$0x1]
      %v5368 = vld [vmem:[#allocation2 + $0x84] sm:$0x1]
      %v5369 = vld [vmem:[#allocation2 + $0xa4] sm:$0x1]
      %v5370 = vld [vmem:[#allocation2 + $0xc4] sm:$0x1]
      %v5371 = vld [vmem:[#allocation2 + $0xe4] sm:$0x1]
      %v5372 = vld [vmem:[#allocation2 + $0x104] sm:$0x1]
      %v5373 = vld [vmem:[#allocation2 + $0x124] sm:$0x1]
      %v5374 = vld [vmem:[#allocation2 + $0x144] sm:$0x1]
      %v5375 = vld [vmem:[#allocation2 + $0x164] sm:$0x1]
      %v5376 = vld [vmem:[#allocation2 + $0x184] sm:$0x1]
      %v5377 = vld [vmem:[#allocation2 + $0x1a4] sm:$0x1]
      %v5378 = vld [vmem:[#allocation2 + $0x1c4] sm:$0x1]
      %v5379 = vld [vmem:[#allocation2 + $0x1e4] sm:$0x1]
      %v5380 = vld [vmem:[#allocation2 + $0x5] sm:$0x1]
      %v5381 = vld [vmem:[#allocation2 + $0x25] sm:$0x1]
      %v5382 = vld [vmem:[#allocation2 + $0x45] sm:$0x1]
      %v5383 = vld [vmem:[#allocation2 + $0x65] sm:$0x1]
      %v5384 = vld [vmem:[#allocation2 + $0x85] sm:$0x1]
      %v5385 = vld [vmem:[#allocation2 + $0xa5] sm:$0x1]
      %v5386 = vld [vmem:[#allocation2 + $0xc5] sm:$0x1]
      %v5387 = vld [vmem:[#allocation2 + $0xe5] sm:$0x1]
      %v5388 = vld [vmem:[#allocation2 + $0x105] sm:$0x1]
      %v5389 = vld [vmem:[#allocation2 + $0x125] sm:$0x1]
      %v5390 = vld [vmem:[#allocation2 + $0x145] sm:$0x1]
      %v5391 = vld [vmem:[#allocation2 + $0x165] sm:$0x1]
      %v5392 = vld [vmem:[#allocation2 + $0x185] sm:$0x1]
      %v5393 = vld [vmem:[#allocation2 + $0x1a5] sm:$0x1]
      %v5394 = vld [vmem:[#allocation2 + $0x1c5] sm:$0x1]
      %v5395 = vld [vmem:[#allocation2 + $0x1e5] sm:$0x1]
      %v5396 = vmax.f32 %v5364, %v5380
      %v5397 = vmax.f32 %v5365, %v5381
      %v5398 = vmax.f32 %v5366, %v5382
      %v5399 = vmax.f32 %v5367, %v5383
      %v5400 = vmax.f32 %v5368, %v5384
      %v5401 = vmax.f32 %v5369, %v5385
      %v5402 = vmax.f32 %v5370, %v5386
      %v5403 = vmax.f32 %v5371, %v5387
      %v5404 = vmax.f32 %v5372, %v5388
      %v5405 = vmax.f32 %v5373, %v5389
      %v5406 = vmax.f32 %v5374, %v5390
      %v5407 = vmax.f32 %v5375, %v5391
      %v5408 = vmax.f32 %v5376, %v5392
      %v5409 = vmax.f32 %v5377, %v5393
      %v5410 = vmax.f32 %v5378, %v5394
      %v5411 = vmax.f32 %v5379, %v5395
      %v5412 = vld [vmem:[#allocation2 + $0x3] sm:$0x1]
      %v5413 = vld [vmem:[#allocation2 + $0x23] sm:$0x1]
      %v5414 = vld [vmem:[#allocation2 + $0x43] sm:$0x1]
      %v5415 = vld [vmem:[#allocation2 + $0x63] sm:$0x1]
      %v5416 = vld [vmem:[#allocation2 + $0x83] sm:$0x1]
      %v5417 = vld [vmem:[#allocation2 + $0xa3] sm:$0x1]
      %v5418 = vld [vmem:[#allocation2 + $0xc3] sm:$0x1]
      %v5419 = vld [vmem:[#allocation2 + $0xe3] sm:$0x1]
      %v5420 = vld [vmem:[#allocation2 + $0x103] sm:$0x1]
      %v5421 = vld [vmem:[#allocation2 + $0x123] sm:$0x1]
      %v5422 = vld [vmem:[#allocation2 + $0x143] sm:$0x1]
      %v5423 = vld [vmem:[#allocation2 + $0x163] sm:$0x1]
      %v5424 = vld [vmem:[#allocation2 + $0x183] sm:$0x1]
      %v5425 = vld [vmem:[#allocation2 + $0x1a3] sm:$0x1]
      %v5426 = vld [vmem:[#allocation2 + $0x1c3] sm:$0x1]
      %v5427 = vld [vmem:[#allocation2 + $0x1e3] sm:$0x1]
      %v5428 = vmax.f32 %v5396, %v5412
      %v5429 = vmax.f32 %v5397, %v5413
      %v5430 = vmax.f32 %v5398, %v5414
      %v5431 = vmax.f32 %v5399, %v5415
      %v5432 = vmax.f32 %v5400, %v5416
      %v5433 = vmax.f32 %v5401, %v5417
      %v5434 = vmax.f32 %v5402, %v5418
      %v5435 = vmax.f32 %v5403, %v5419
      %v5436 = vmax.f32 %v5404, %v5420
      %v5437 = vmax.f32 %v5405, %v5421
      %v5438 = vmax.f32 %v5406, %v5422
      %v5439 = vmax.f32 %v5407, %v5423
      %v5440 = vmax.f32 %v5408, %v5424
      %v5441 = vmax.f32 %v5409, %v5425
      %v5442 = vmax.f32 %v5410, %v5426
      %v5443 = vmax.f32 %v5411, %v5427
      %5444 = vst.msk [vmem:[%s175 + $0x2] sm:$0x1] %vm5251, %v5428
      %5445 = vst.msk [vmem:[%s175 + $0x12] sm:$0x1] %vm5251, %v5429
      %5446 = vst.msk [vmem:[%s175 + $0x22] sm:$0x1] %vm5251, %v5430
      %5447 = vst.msk [vmem:[%s175 + $0x32] sm:$0x1] %vm5251, %v5431
      %5448 = vst.msk [vmem:[%s175 + $0x42] sm:$0x1] %vm5251, %v5432
      %5449 = vst.msk [vmem:[%s175 + $0x52] sm:$0x1] %vm5251, %v5433
      %5450 = vst.msk [vmem:[%s175 + $0x62] sm:$0x1] %vm5251, %v5434
      %5451 = vst.msk [vmem:[%s175 + $0x72] sm:$0x1] %vm5251, %v5435
      %5452 = vst.msk [vmem:[%s175 + $0x82] sm:$0x1] %vm5251, %v5436
      %5453 = vst.msk [vmem:[%s175 + $0x92] sm:$0x1] %vm5251, %v5437
      %5454 = vst.msk [vmem:[%s175 + $0xa2] sm:$0x1] %vm5251, %v5438
      %5455 = vst.msk [vmem:[%s175 + $0xb2] sm:$0x1] %vm5251, %v5439
      %5456 = vst.msk [vmem:[%s175 + $0xc2] sm:$0x1] %vm5251, %v5440
      %5457 = vst.msk [vmem:[%s175 + $0xd2] sm:$0x1] %vm5251, %v5441
      %5458 = vst.msk [vmem:[%s175 + $0xe2] sm:$0x1] %vm5251, %v5442
      %5459 = vst.msk [vmem:[%s175 + $0xf2] sm:$0x1] %vm5251, %v5443
      %v5460 = vld [vmem:[#allocation2 + $0x6] sm:$0x1]
      %v5461 = vld [vmem:[#allocation2 + $0x26] sm:$0x1]
      %v5462 = vld [vmem:[#allocation2 + $0x46] sm:$0x1]
      %v5463 = vld [vmem:[#allocation2 + $0x66] sm:$0x1]
      %v5464 = vld [vmem:[#allocation2 + $0x86] sm:$0x1]
      %v5465 = vld [vmem:[#allocation2 + $0xa6] sm:$0x1]
      %v5466 = vld [vmem:[#allocation2 + $0xc6] sm:$0x1]
      %v5467 = vld [vmem:[#allocation2 + $0xe6] sm:$0x1]
      %v5468 = vld [vmem:[#allocation2 + $0x106] sm:$0x1]
      %v5469 = vld [vmem:[#allocation2 + $0x126] sm:$0x1]
      %v5470 = vld [vmem:[#allocation2 + $0x146] sm:$0x1]
      %v5471 = vld [vmem:[#allocation2 + $0x166] sm:$0x1]
      %v5472 = vld [vmem:[#allocation2 + $0x186] sm:$0x1]
      %v5473 = vld [vmem:[#allocation2 + $0x1a6] sm:$0x1]
      %v5474 = vld [vmem:[#allocation2 + $0x1c6] sm:$0x1]
      %v5475 = vld [vmem:[#allocation2 + $0x1e6] sm:$0x1]
      %v5476 = vld [vmem:[#allocation2 + $0x7] sm:$0x1]
      %v5477 = vld [vmem:[#allocation2 + $0x27] sm:$0x1]
      %v5478 = vld [vmem:[#allocation2 + $0x47] sm:$0x1]
      %v5479 = vld [vmem:[#allocation2 + $0x67] sm:$0x1]
      %v5480 = vld [vmem:[#allocation2 + $0x87] sm:$0x1]
      %v5481 = vld [vmem:[#allocation2 + $0xa7] sm:$0x1]
      %v5482 = vld [vmem:[#allocation2 + $0xc7] sm:$0x1]
      %v5483 = vld [vmem:[#allocation2 + $0xe7] sm:$0x1]
      %v5484 = vld [vmem:[#allocation2 + $0x107] sm:$0x1]
      %v5485 = vld [vmem:[#allocation2 + $0x127] sm:$0x1]
      %v5486 = vld [vmem:[#allocation2 + $0x147] sm:$0x1]
      %v5487 = vld [vmem:[#allocation2 + $0x167] sm:$0x1]
      %v5488 = vld [vmem:[#allocation2 + $0x187] sm:$0x1]
      %v5489 = vld [vmem:[#allocation2 + $0x1a7] sm:$0x1]
      %v5490 = vld [vmem:[#allocation2 + $0x1c7] sm:$0x1]
      %v5491 = vld [vmem:[#allocation2 + $0x1e7] sm:$0x1]
      %v5492 = vmax.f32 %v5460, %v5476
      %v5493 = vmax.f32 %v5461, %v5477
      %v5494 = vmax.f32 %v5462, %v5478
      %v5495 = vmax.f32 %v5463, %v5479
      %v5496 = vmax.f32 %v5464, %v5480
      %v5497 = vmax.f32 %v5465, %v5481
      %v5498 = vmax.f32 %v5466, %v5482
      %v5499 = vmax.f32 %v5467, %v5483
      %v5500 = vmax.f32 %v5468, %v5484
      %v5501 = vmax.f32 %v5469, %v5485
      %v5502 = vmax.f32 %v5470, %v5486
      %v5503 = vmax.f32 %v5471, %v5487
      %v5504 = vmax.f32 %v5472, %v5488
      %v5505 = vmax.f32 %v5473, %v5489
      %v5506 = vmax.f32 %v5474, %v5490
      %v5507 = vmax.f32 %v5475, %v5491
      %v5508 = vld [vmem:[#allocation2 + $0x5] sm:$0x1]
      %v5509 = vld [vmem:[#allocation2 + $0x25] sm:$0x1]
      %v5510 = vld [vmem:[#allocation2 + $0x45] sm:$0x1]
      %v5511 = vld [vmem:[#allocation2 + $0x65] sm:$0x1]
      %v5512 = vld [vmem:[#allocation2 + $0x85] sm:$0x1]
      %v5513 = vld [vmem:[#allocation2 + $0xa5] sm:$0x1]
      %v5514 = vld [vmem:[#allocation2 + $0xc5] sm:$0x1]
      %v5515 = vld [vmem:[#allocation2 + $0xe5] sm:$0x1]
      %v5516 = vld [vmem:[#allocation2 + $0x105] sm:$0x1]
      %v5517 = vld [vmem:[#allocation2 + $0x125] sm:$0x1]
      %v5518 = vld [vmem:[#allocation2 + $0x145] sm:$0x1]
      %v5519 = vld [vmem:[#allocation2 + $0x165] sm:$0x1]
      %v5520 = vld [vmem:[#allocation2 + $0x185] sm:$0x1]
      %v5521 = vld [vmem:[#allocation2 + $0x1a5] sm:$0x1]
      %v5522 = vld [vmem:[#allocation2 + $0x1c5] sm:$0x1]
      %v5523 = vld [vmem:[#allocation2 + $0x1e5] sm:$0x1]
      %v5524 = vmax.f32 %v5492, %v5508
      %v5525 = vmax.f32 %v5493, %v5509
      %v5526 = vmax.f32 %v5494, %v5510
      %v5527 = vmax.f32 %v5495, %v5511
      %v5528 = vmax.f32 %v5496, %v5512
      %v5529 = vmax.f32 %v5497, %v5513
      %v5530 = vmax.f32 %v5498, %v5514
      %v5531 = vmax.f32 %v5499, %v5515
      %v5532 = vmax.f32 %v5500, %v5516
      %v5533 = vmax.f32 %v5501, %v5517
      %v5534 = vmax.f32 %v5502, %v5518
      %v5535 = vmax.f32 %v5503, %v5519
      %v5536 = vmax.f32 %v5504, %v5520
      %v5537 = vmax.f32 %v5505, %v5521
      %v5538 = vmax.f32 %v5506, %v5522
      %v5539 = vmax.f32 %v5507, %v5523
      %5540 = vst.msk [vmem:[%s175 + $0x3] sm:$0x1] %vm5251, %v5524
      %5541 = vst.msk [vmem:[%s175 + $0x13] sm:$0x1] %vm5251, %v5525
      %5542 = vst.msk [vmem:[%s175 + $0x23] sm:$0x1] %vm5251, %v5526
      %5543 = vst.msk [vmem:[%s175 + $0x33] sm:$0x1] %vm5251, %v5527
      %5544 = vst.msk [vmem:[%s175 + $0x43] sm:$0x1] %vm5251, %v5528
      %5545 = vst.msk [vmem:[%s175 + $0x53] sm:$0x1] %vm5251, %v5529
      %5546 = vst.msk [vmem:[%s175 + $0x63] sm:$0x1] %vm5251, %v5530
      %5547 = vst.msk [vmem:[%s175 + $0x73] sm:$0x1] %vm5251, %v5531
      %5548 = vst.msk [vmem:[%s175 + $0x83] sm:$0x1] %vm5251, %v5532
      %5549 = vst.msk [vmem:[%s175 + $0x93] sm:$0x1] %vm5251, %v5533
      %5550 = vst.msk [vmem:[%s175 + $0xa3] sm:$0x1] %vm5251, %v5534
      %5551 = vst.msk [vmem:[%s175 + $0xb3] sm:$0x1] %vm5251, %v5535
      %5552 = vst.msk [vmem:[%s175 + $0xc3] sm:$0x1] %vm5251, %v5536
      %5553 = vst.msk [vmem:[%s175 + $0xd3] sm:$0x1] %vm5251, %v5537
      %5554 = vst.msk [vmem:[%s175 + $0xe3] sm:$0x1] %vm5251, %v5538
      %5555 = vst.msk [vmem:[%s175 + $0xf3] sm:$0x1] %vm5251, %v5539
      %v5556 = vld [vmem:[#allocation2 + $0x8] sm:$0x1]
      %v5557 = vld [vmem:[#allocation2 + $0x28] sm:$0x1]
      %v5558 = vld [vmem:[#allocation2 + $0x48] sm:$0x1]
      %v5559 = vld [vmem:[#allocation2 + $0x68] sm:$0x1]
      %v5560 = vld [vmem:[#allocation2 + $0x88] sm:$0x1]
      %v5561 = vld [vmem:[#allocation2 + $0xa8] sm:$0x1]
      %v5562 = vld [vmem:[#allocation2 + $0xc8] sm:$0x1]
      %v5563 = vld [vmem:[#allocation2 + $0xe8] sm:$0x1]
      %v5564 = vld [vmem:[#allocation2 + $0x108] sm:$0x1]
      %v5565 = vld [vmem:[#allocation2 + $0x128] sm:$0x1]
      %v5566 = vld [vmem:[#allocation2 + $0x148] sm:$0x1]
      %v5567 = vld [vmem:[#allocation2 + $0x168] sm:$0x1]
      %v5568 = vld [vmem:[#allocation2 + $0x188] sm:$0x1]
      %v5569 = vld [vmem:[#allocation2 + $0x1a8] sm:$0x1]
      %v5570 = vld [vmem:[#allocation2 + $0x1c8] sm:$0x1]
      %v5571 = vld [vmem:[#allocation2 + $0x1e8] sm:$0x1]
      %v5572 = vld [vmem:[#allocation2 + $0x9] sm:$0x1]
      %v5573 = vld [vmem:[#allocation2 + $0x29] sm:$0x1]
      %v5574 = vld [vmem:[#allocation2 + $0x49] sm:$0x1]
      %v5575 = vld [vmem:[#allocation2 + $0x69] sm:$0x1]
      %v5576 = vld [vmem:[#allocation2 + $0x89] sm:$0x1]
      %v5577 = vld [vmem:[#allocation2 + $0xa9] sm:$0x1]
      %v5578 = vld [vmem:[#allocation2 + $0xc9] sm:$0x1]
      %v5579 = vld [vmem:[#allocation2 + $0xe9] sm:$0x1]
      %v5580 = vld [vmem:[#allocation2 + $0x109] sm:$0x1]
      %v5581 = vld [vmem:[#allocation2 + $0x129] sm:$0x1]
      %v5582 = vld [vmem:[#allocation2 + $0x149] sm:$0x1]
      %v5583 = vld [vmem:[#allocation2 + $0x169] sm:$0x1]
      %v5584 = vld [vmem:[#allocation2 + $0x189] sm:$0x1]
      %v5585 = vld [vmem:[#allocation2 + $0x1a9] sm:$0x1]
      %v5586 = vld [vmem:[#allocation2 + $0x1c9] sm:$0x1]
      %v5587 = vld [vmem:[#allocation2 + $0x1e9] sm:$0x1]
      %v5588 = vmax.f32 %v5556, %v5572
      %v5589 = vmax.f32 %v5557, %v5573
      %v5590 = vmax.f32 %v5558, %v5574
      %v5591 = vmax.f32 %v5559, %v5575
      %v5592 = vmax.f32 %v5560, %v5576
      %v5593 = vmax.f32 %v5561, %v5577
      %v5594 = vmax.f32 %v5562, %v5578
      %v5595 = vmax.f32 %v5563, %v5579
      %v5596 = vmax.f32 %v5564, %v5580
      %v5597 = vmax.f32 %v5565, %v5581
      %v5598 = vmax.f32 %v5566, %v5582
      %v5599 = vmax.f32 %v5567, %v5583
      %v5600 = vmax.f32 %v5568, %v5584
      %v5601 = vmax.f32 %v5569, %v5585
      %v5602 = vmax.f32 %v5570, %v5586
      %v5603 = vmax.f32 %v5571, %v5587
      %v5604 = vld [vmem:[#allocation2 + $0x7] sm:$0x1]
      %v5605 = vld [vmem:[#allocation2 + $0x27] sm:$0x1]
      %v5606 = vld [vmem:[#allocation2 + $0x47] sm:$0x1]
      %v5607 = vld [vmem:[#allocation2 + $0x67] sm:$0x1]
      %v5608 = vld [vmem:[#allocation2 + $0x87] sm:$0x1]
      %v5609 = vld [vmem:[#allocation2 + $0xa7] sm:$0x1]
      %v5610 = vld [vmem:[#allocation2 + $0xc7] sm:$0x1]
      %v5611 = vld [vmem:[#allocation2 + $0xe7] sm:$0x1]
      %v5612 = vld [vmem:[#allocation2 + $0x107] sm:$0x1]
      %v5613 = vld [vmem:[#allocation2 + $0x127] sm:$0x1]
      %v5614 = vld [vmem:[#allocation2 + $0x147] sm:$0x1]
      %v5615 = vld [vmem:[#allocation2 + $0x167] sm:$0x1]
      %v5616 = vld [vmem:[#allocation2 + $0x187] sm:$0x1]
      %v5617 = vld [vmem:[#allocation2 + $0x1a7] sm:$0x1]
      %v5618 = vld [vmem:[#allocation2 + $0x1c7] sm:$0x1]
      %v5619 = vld [vmem:[#allocation2 + $0x1e7] sm:$0x1]
      %v5620 = vmax.f32 %v5588, %v5604
      %v5621 = vmax.f32 %v5589, %v5605
      %v5622 = vmax.f32 %v5590, %v5606
      %v5623 = vmax.f32 %v5591, %v5607
      %v5624 = vmax.f32 %v5592, %v5608
      %v5625 = vmax.f32 %v5593, %v5609
      %v5626 = vmax.f32 %v5594, %v5610
      %v5627 = vmax.f32 %v5595, %v5611
      %v5628 = vmax.f32 %v5596, %v5612
      %v5629 = vmax.f32 %v5597, %v5613
      %v5630 = vmax.f32 %v5598, %v5614
      %v5631 = vmax.f32 %v5599, %v5615
      %v5632 = vmax.f32 %v5600, %v5616
      %v5633 = vmax.f32 %v5601, %v5617
      %v5634 = vmax.f32 %v5602, %v5618
      %v5635 = vmax.f32 %v5603, %v5619
      %5636 = vst.msk [vmem:[%s175 + $0x4] sm:$0x1] %vm5251, %v5620
      %5637 = vst.msk [vmem:[%s175 + $0x14] sm:$0x1] %vm5251, %v5621
      %5638 = vst.msk [vmem:[%s175 + $0x24] sm:$0x1] %vm5251, %v5622
      %5639 = vst.msk [vmem:[%s175 + $0x34] sm:$0x1] %vm5251, %v5623
      %5640 = vst.msk [vmem:[%s175 + $0x44] sm:$0x1] %vm5251, %v5624
      %5641 = vst.msk [vmem:[%s175 + $0x54] sm:$0x1] %vm5251, %v5625
      %5642 = vst.msk [vmem:[%s175 + $0x64] sm:$0x1] %vm5251, %v5626
      %5643 = vst.msk [vmem:[%s175 + $0x74] sm:$0x1] %vm5251, %v5627
      %5644 = vst.msk [vmem:[%s175 + $0x84] sm:$0x1] %vm5251, %v5628
      %5645 = vst.msk [vmem:[%s175 + $0x94] sm:$0x1] %vm5251, %v5629
      %5646 = vst.msk [vmem:[%s175 + $0xa4] sm:$0x1] %vm5251, %v5630
      %5647 = vst.msk [vmem:[%s175 + $0xb4] sm:$0x1] %vm5251, %v5631
      %5648 = vst.msk [vmem:[%s175 + $0xc4] sm:$0x1] %vm5251, %v5632
      %5649 = vst.msk [vmem:[%s175 + $0xd4] sm:$0x1] %vm5251, %v5633
      %5650 = vst.msk [vmem:[%s175 + $0xe4] sm:$0x1] %vm5251, %v5634
      %5651 = vst.msk [vmem:[%s175 + $0xf4] sm:$0x1] %vm5251, %v5635
      %v5652 = vld [vmem:[#allocation2 + $0xa] sm:$0x1]
      %v5653 = vld [vmem:[#allocation2 + $0x2a] sm:$0x1]
      %v5654 = vld [vmem:[#allocation2 + $0x4a] sm:$0x1]
      %v5655 = vld [vmem:[#allocation2 + $0x6a] sm:$0x1]
      %v5656 = vld [vmem:[#allocation2 + $0x8a] sm:$0x1]
      %v5657 = vld [vmem:[#allocation2 + $0xaa] sm:$0x1]
      %v5658 = vld [vmem:[#allocation2 + $0xca] sm:$0x1]
      %v5659 = vld [vmem:[#allocation2 + $0xea] sm:$0x1]
      %v5660 = vld [vmem:[#allocation2 + $0x10a] sm:$0x1]
      %v5661 = vld [vmem:[#allocation2 + $0x12a] sm:$0x1]
      %v5662 = vld [vmem:[#allocation2 + $0x14a] sm:$0x1]
      %v5663 = vld [vmem:[#allocation2 + $0x16a] sm:$0x1]
      %v5664 = vld [vmem:[#allocation2 + $0x18a] sm:$0x1]
      %v5665 = vld [vmem:[#allocation2 + $0x1aa] sm:$0x1]
      %v5666 = vld [vmem:[#allocation2 + $0x1ca] sm:$0x1]
      %v5667 = vld [vmem:[#allocation2 + $0x1ea] sm:$0x1]
      %v5668 = vld [vmem:[#allocation2 + $0xb] sm:$0x1]
      %v5669 = vld [vmem:[#allocation2 + $0x2b] sm:$0x1]
      %v5670 = vld [vmem:[#allocation2 + $0x4b] sm:$0x1]
      %v5671 = vld [vmem:[#allocation2 + $0x6b] sm:$0x1]
      %v5672 = vld [vmem:[#allocation2 + $0x8b] sm:$0x1]
      %v5673 = vld [vmem:[#allocation2 + $0xab] sm:$0x1]
      %v5674 = vld [vmem:[#allocation2 + $0xcb] sm:$0x1]
      %v5675 = vld [vmem:[#allocation2 + $0xeb] sm:$0x1]
      %v5676 = vld [vmem:[#allocation2 + $0x10b] sm:$0x1]
      %v5677 = vld [vmem:[#allocation2 + $0x12b] sm:$0x1]
      %v5678 = vld [vmem:[#allocation2 + $0x14b] sm:$0x1]
      %v5679 = vld [vmem:[#allocation2 + $0x16b] sm:$0x1]
      %v5680 = vld [vmem:[#allocation2 + $0x18b] sm:$0x1]
      %v5681 = vld [vmem:[#allocation2 + $0x1ab] sm:$0x1]
      %v5682 = vld [vmem:[#allocation2 + $0x1cb] sm:$0x1]
      %v5683 = vld [vmem:[#allocation2 + $0x1eb] sm:$0x1]
      %v5684 = vmax.f32 %v5652, %v5668
      %v5685 = vmax.f32 %v5653, %v5669
      %v5686 = vmax.f32 %v5654, %v5670
      %v5687 = vmax.f32 %v5655, %v5671
      %v5688 = vmax.f32 %v5656, %v5672
      %v5689 = vmax.f32 %v5657, %v5673
      %v5690 = vmax.f32 %v5658, %v5674
      %v5691 = vmax.f32 %v5659, %v5675
      %v5692 = vmax.f32 %v5660, %v5676
      %v5693 = vmax.f32 %v5661, %v5677
      %v5694 = vmax.f32 %v5662, %v5678
      %v5695 = vmax.f32 %v5663, %v5679
      %v5696 = vmax.f32 %v5664, %v5680
      %v5697 = vmax.f32 %v5665, %v5681
      %v5698 = vmax.f32 %v5666, %v5682
      %v5699 = vmax.f32 %v5667, %v5683
      %v5700 = vld [vmem:[#allocation2 + $0x9] sm:$0x1]
      %v5701 = vld [vmem:[#allocation2 + $0x29] sm:$0x1]
      %v5702 = vld [vmem:[#allocation2 + $0x49] sm:$0x1]
      %v5703 = vld [vmem:[#allocation2 + $0x69] sm:$0x1]
      %v5704 = vld [vmem:[#allocation2 + $0x89] sm:$0x1]
      %v5705 = vld [vmem:[#allocation2 + $0xa9] sm:$0x1]
      %v5706 = vld [vmem:[#allocation2 + $0xc9] sm:$0x1]
      %v5707 = vld [vmem:[#allocation2 + $0xe9] sm:$0x1]
      %v5708 = vld [vmem:[#allocation2 + $0x109] sm:$0x1]
      %v5709 = vld [vmem:[#allocation2 + $0x129] sm:$0x1]
      %v5710 = vld [vmem:[#allocation2 + $0x149] sm:$0x1]
      %v5711 = vld [vmem:[#allocation2 + $0x169] sm:$0x1]
      %v5712 = vld [vmem:[#allocation2 + $0x189] sm:$0x1]
      %v5713 = vld [vmem:[#allocation2 + $0x1a9] sm:$0x1]
      %v5714 = vld [vmem:[#allocation2 + $0x1c9] sm:$0x1]
      %v5715 = vld [vmem:[#allocation2 + $0x1e9] sm:$0x1]
      %v5716 = vmax.f32 %v5684, %v5700
      %v5717 = vmax.f32 %v5685, %v5701
      %v5718 = vmax.f32 %v5686, %v5702
      %v5719 = vmax.f32 %v5687, %v5703
      %v5720 = vmax.f32 %v5688, %v5704
      %v5721 = vmax.f32 %v5689, %v5705
      %v5722 = vmax.f32 %v5690, %v5706
      %v5723 = vmax.f32 %v5691, %v5707
      %v5724 = vmax.f32 %v5692, %v5708
      %v5725 = vmax.f32 %v5693, %v5709
      %v5726 = vmax.f32 %v5694, %v5710
      %v5727 = vmax.f32 %v5695, %v5711
      %v5728 = vmax.f32 %v5696, %v5712
      %v5729 = vmax.f32 %v5697, %v5713
      %v5730 = vmax.f32 %v5698, %v5714
      %v5731 = vmax.f32 %v5699, %v5715
      %5732 = vst.msk [vmem:[%s175 + $0x5] sm:$0x1] %vm5251, %v5716
      %5733 = vst.msk [vmem:[%s175 + $0x15] sm:$0x1] %vm5251, %v5717
      %5734 = vst.msk [vmem:[%s175 + $0x25] sm:$0x1] %vm5251, %v5718
      %5735 = vst.msk [vmem:[%s175 + $0x35] sm:$0x1] %vm5251, %v5719
      %5736 = vst.msk [vmem:[%s175 + $0x45] sm:$0x1] %vm5251, %v5720
      %5737 = vst.msk [vmem:[%s175 + $0x55] sm:$0x1] %vm5251, %v5721
      %5738 = vst.msk [vmem:[%s175 + $0x65] sm:$0x1] %vm5251, %v5722
      %5739 = vst.msk [vmem:[%s175 + $0x75] sm:$0x1] %vm5251, %v5723
      %5740 = vst.msk [vmem:[%s175 + $0x85] sm:$0x1] %vm5251, %v5724
      %5741 = vst.msk [vmem:[%s175 + $0x95] sm:$0x1] %vm5251, %v5725
      %5742 = vst.msk [vmem:[%s175 + $0xa5] sm:$0x1] %vm5251, %v5726
      %5743 = vst.msk [vmem:[%s175 + $0xb5] sm:$0x1] %vm5251, %v5727
      %5744 = vst.msk [vmem:[%s175 + $0xc5] sm:$0x1] %vm5251, %v5728
      %5745 = vst.msk [vmem:[%s175 + $0xd5] sm:$0x1] %vm5251, %v5729
      %5746 = vst.msk [vmem:[%s175 + $0xe5] sm:$0x1] %vm5251, %v5730
      %5747 = vst.msk [vmem:[%s175 + $0xf5] sm:$0x1] %vm5251, %v5731
      %v5748 = vld [vmem:[#allocation2 + $0xc] sm:$0x1]
      %v5749 = vld [vmem:[#allocation2 + $0x2c] sm:$0x1]
      %v5750 = vld [vmem:[#allocation2 + $0x4c] sm:$0x1]
      %v5751 = vld [vmem:[#allocation2 + $0x6c] sm:$0x1]
      %v5752 = vld [vmem:[#allocation2 + $0x8c] sm:$0x1]
      %v5753 = vld [vmem:[#allocation2 + $0xac] sm:$0x1]
      %v5754 = vld [vmem:[#allocation2 + $0xcc] sm:$0x1]
      %v5755 = vld [vmem:[#allocation2 + $0xec] sm:$0x1]
      %v5756 = vld [vmem:[#allocation2 + $0x10c] sm:$0x1]
      %v5757 = vld [vmem:[#allocation2 + $0x12c] sm:$0x1]
      %v5758 = vld [vmem:[#allocation2 + $0x14c] sm:$0x1]
      %v5759 = vld [vmem:[#allocation2 + $0x16c] sm:$0x1]
      %v5760 = vld [vmem:[#allocation2 + $0x18c] sm:$0x1]
      %v5761 = vld [vmem:[#allocation2 + $0x1ac] sm:$0x1]
      %v5762 = vld [vmem:[#allocation2 + $0x1cc] sm:$0x1]
      %v5763 = vld [vmem:[#allocation2 + $0x1ec] sm:$0x1]
      %v5764 = vld [vmem:[#allocation2 + $0xd] sm:$0x1]
      %v5765 = vld [vmem:[#allocation2 + $0x2d] sm:$0x1]
      %v5766 = vld [vmem:[#allocation2 + $0x4d] sm:$0x1]
      %v5767 = vld [vmem:[#allocation2 + $0x6d] sm:$0x1]
      %v5768 = vld [vmem:[#allocation2 + $0x8d] sm:$0x1]
      %v5769 = vld [vmem:[#allocation2 + $0xad] sm:$0x1]
      %v5770 = vld [vmem:[#allocation2 + $0xcd] sm:$0x1]
      %v5771 = vld [vmem:[#allocation2 + $0xed] sm:$0x1]
      %v5772 = vld [vmem:[#allocation2 + $0x10d] sm:$0x1]
      %v5773 = vld [vmem:[#allocation2 + $0x12d] sm:$0x1]
      %v5774 = vld [vmem:[#allocation2 + $0x14d] sm:$0x1]
      %v5775 = vld [vmem:[#allocation2 + $0x16d] sm:$0x1]
      %v5776 = vld [vmem:[#allocation2 + $0x18d] sm:$0x1]
      %v5777 = vld [vmem:[#allocation2 + $0x1ad] sm:$0x1]
      %v5778 = vld [vmem:[#allocation2 + $0x1cd] sm:$0x1]
      %v5779 = vld [vmem:[#allocation2 + $0x1ed] sm:$0x1]
      %v5780 = vmax.f32 %v5748, %v5764
      %v5781 = vmax.f32 %v5749, %v5765
      %v5782 = vmax.f32 %v5750, %v5766
      %v5783 = vmax.f32 %v5751, %v5767
      %v5784 = vmax.f32 %v5752, %v5768
      %v5785 = vmax.f32 %v5753, %v5769
      %v5786 = vmax.f32 %v5754, %v5770
      %v5787 = vmax.f32 %v5755, %v5771
      %v5788 = vmax.f32 %v5756, %v5772
      %v5789 = vmax.f32 %v5757, %v5773
      %v5790 = vmax.f32 %v5758, %v5774
      %v5791 = vmax.f32 %v5759, %v5775
      %v5792 = vmax.f32 %v5760, %v5776
      %v5793 = vmax.f32 %v5761, %v5777
      %v5794 = vmax.f32 %v5762, %v5778
      %v5795 = vmax.f32 %v5763, %v5779
      %v5796 = vld [vmem:[#allocation2 + $0xb] sm:$0x1]
      %v5797 = vld [vmem:[#allocation2 + $0x2b] sm:$0x1]
      %v5798 = vld [vmem:[#allocation2 + $0x4b] sm:$0x1]
      %v5799 = vld [vmem:[#allocation2 + $0x6b] sm:$0x1]
      %v5800 = vld [vmem:[#allocation2 + $0x8b] sm:$0x1]
      %v5801 = vld [vmem:[#allocation2 + $0xab] sm:$0x1]
      %v5802 = vld [vmem:[#allocation2 + $0xcb] sm:$0x1]
      %v5803 = vld [vmem:[#allocation2 + $0xeb] sm:$0x1]
      %v5804 = vld [vmem:[#allocation2 + $0x10b] sm:$0x1]
      %v5805 = vld [vmem:[#allocation2 + $0x12b] sm:$0x1]
      %v5806 = vld [vmem:[#allocation2 + $0x14b] sm:$0x1]
      %v5807 = vld [vmem:[#allocation2 + $0x16b] sm:$0x1]
      %v5808 = vld [vmem:[#allocation2 + $0x18b] sm:$0x1]
      %v5809 = vld [vmem:[#allocation2 + $0x1ab] sm:$0x1]
      %v5810 = vld [vmem:[#allocation2 + $0x1cb] sm:$0x1]
      %v5811 = vld [vmem:[#allocation2 + $0x1eb] sm:$0x1]
      %v5812 = vmax.f32 %v5780, %v5796
      %v5813 = vmax.f32 %v5781, %v5797
      %v5814 = vmax.f32 %v5782, %v5798
      %v5815 = vmax.f32 %v5783, %v5799
      %v5816 = vmax.f32 %v5784, %v5800
      %v5817 = vmax.f32 %v5785, %v5801
      %v5818 = vmax.f32 %v5786, %v5802
      %v5819 = vmax.f32 %v5787, %v5803
      %v5820 = vmax.f32 %v5788, %v5804
      %v5821 = vmax.f32 %v5789, %v5805
      %v5822 = vmax.f32 %v5790, %v5806
      %v5823 = vmax.f32 %v5791, %v5807
      %v5824 = vmax.f32 %v5792, %v5808
      %v5825 = vmax.f32 %v5793, %v5809
      %v5826 = vmax.f32 %v5794, %v5810
      %v5827 = vmax.f32 %v5795, %v5811
      %5828 = vst.msk [vmem:[%s175 + $0x6] sm:$0x1] %vm5251, %v5812
      %5829 = vst.msk [vmem:[%s175 + $0x16] sm:$0x1] %vm5251, %v5813
      %5830 = vst.msk [vmem:[%s175 + $0x26] sm:$0x1] %vm5251, %v5814
      %5831 = vst.msk [vmem:[%s175 + $0x36] sm:$0x1] %vm5251, %v5815
      %5832 = vst.msk [vmem:[%s175 + $0x46] sm:$0x1] %vm5251, %v5816
      %5833 = vst.msk [vmem:[%s175 + $0x56] sm:$0x1] %vm5251, %v5817
      %5834 = vst.msk [vmem:[%s175 + $0x66] sm:$0x1] %vm5251, %v5818
      %5835 = vst.msk [vmem:[%s175 + $0x76] sm:$0x1] %vm5251, %v5819
      %5836 = vst.msk [vmem:[%s175 + $0x86] sm:$0x1] %vm5251, %v5820
      %5837 = vst.msk [vmem:[%s175 + $0x96] sm:$0x1] %vm5251, %v5821
      %5838 = vst.msk [vmem:[%s175 + $0xa6] sm:$0x1] %vm5251, %v5822
      %5839 = vst.msk [vmem:[%s175 + $0xb6] sm:$0x1] %vm5251, %v5823
      %5840 = vst.msk [vmem:[%s175 + $0xc6] sm:$0x1] %vm5251, %v5824
      %5841 = vst.msk [vmem:[%s175 + $0xd6] sm:$0x1] %vm5251, %v5825
      %5842 = vst.msk [vmem:[%s175 + $0xe6] sm:$0x1] %vm5251, %v5826
      %5843 = vst.msk [vmem:[%s175 + $0xf6] sm:$0x1] %vm5251, %v5827
      %v5844 = vld [vmem:[#allocation2 + $0xe] sm:$0x1]
      %v5845 = vld [vmem:[#allocation2 + $0x2e] sm:$0x1]
      %v5846 = vld [vmem:[#allocation2 + $0x4e] sm:$0x1]
      %v5847 = vld [vmem:[#allocation2 + $0x6e] sm:$0x1]
      %v5848 = vld [vmem:[#allocation2 + $0x8e] sm:$0x1]
      %v5849 = vld [vmem:[#allocation2 + $0xae] sm:$0x1]
      %v5850 = vld [vmem:[#allocation2 + $0xce] sm:$0x1]
      %v5851 = vld [vmem:[#allocation2 + $0xee] sm:$0x1]
      %v5852 = vld [vmem:[#allocation2 + $0x10e] sm:$0x1]
      %v5853 = vld [vmem:[#allocation2 + $0x12e] sm:$0x1]
      %v5854 = vld [vmem:[#allocation2 + $0x14e] sm:$0x1]
      %v5855 = vld [vmem:[#allocation2 + $0x16e] sm:$0x1]
      %v5856 = vld [vmem:[#allocation2 + $0x18e] sm:$0x1]
      %v5857 = vld [vmem:[#allocation2 + $0x1ae] sm:$0x1]
      %v5858 = vld [vmem:[#allocation2 + $0x1ce] sm:$0x1]
      %v5859 = vld [vmem:[#allocation2 + $0x1ee] sm:$0x1]
      %v5860 = vld [vmem:[#allocation2 + $0xf] sm:$0x1]
      %v5861 = vld [vmem:[#allocation2 + $0x2f] sm:$0x1]
      %v5862 = vld [vmem:[#allocation2 + $0x4f] sm:$0x1]
      %v5863 = vld [vmem:[#allocation2 + $0x6f] sm:$0x1]
      %v5864 = vld [vmem:[#allocation2 + $0x8f] sm:$0x1]
      %v5865 = vld [vmem:[#allocation2 + $0xaf] sm:$0x1]
      %v5866 = vld [vmem:[#allocation2 + $0xcf] sm:$0x1]
      %v5867 = vld [vmem:[#allocation2 + $0xef] sm:$0x1]
      %v5868 = vld [vmem:[#allocation2 + $0x10f] sm:$0x1]
      %v5869 = vld [vmem:[#allocation2 + $0x12f] sm:$0x1]
      %v5870 = vld [vmem:[#allocation2 + $0x14f] sm:$0x1]
      %v5871 = vld [vmem:[#allocation2 + $0x16f] sm:$0x1]
      %v5872 = vld [vmem:[#allocation2 + $0x18f] sm:$0x1]
      %v5873 = vld [vmem:[#allocation2 + $0x1af] sm:$0x1]
      %v5874 = vld [vmem:[#allocation2 + $0x1cf] sm:$0x1]
      %v5875 = vld [vmem:[#allocation2 + $0x1ef] sm:$0x1]
      %v5876 = vmax.f32 %v5844, %v5860
      %v5877 = vmax.f32 %v5845, %v5861
      %v5878 = vmax.f32 %v5846, %v5862
      %v5879 = vmax.f32 %v5847, %v5863
      %v5880 = vmax.f32 %v5848, %v5864
      %v5881 = vmax.f32 %v5849, %v5865
      %v5882 = vmax.f32 %v5850, %v5866
      %v5883 = vmax.f32 %v5851, %v5867
      %v5884 = vmax.f32 %v5852, %v5868
      %v5885 = vmax.f32 %v5853, %v5869
      %v5886 = vmax.f32 %v5854, %v5870
      %v5887 = vmax.f32 %v5855, %v5871
      %v5888 = vmax.f32 %v5856, %v5872
      %v5889 = vmax.f32 %v5857, %v5873
      %v5890 = vmax.f32 %v5858, %v5874
      %v5891 = vmax.f32 %v5859, %v5875
      %v5892 = vld [vmem:[#allocation2 + $0xd] sm:$0x1]
      %v5893 = vld [vmem:[#allocation2 + $0x2d] sm:$0x1]
      %v5894 = vld [vmem:[#allocation2 + $0x4d] sm:$0x1]
      %v5895 = vld [vmem:[#allocation2 + $0x6d] sm:$0x1]
      %v5896 = vld [vmem:[#allocation2 + $0x8d] sm:$0x1]
      %v5897 = vld [vmem:[#allocation2 + $0xad] sm:$0x1]
      %v5898 = vld [vmem:[#allocation2 + $0xcd] sm:$0x1]
      %v5899 = vld [vmem:[#allocation2 + $0xed] sm:$0x1]
      %v5900 = vld [vmem:[#allocation2 + $0x10d] sm:$0x1]
      %v5901 = vld [vmem:[#allocation2 + $0x12d] sm:$0x1]
      %v5902 = vld [vmem:[#allocation2 + $0x14d] sm:$0x1]
      %v5903 = vld [vmem:[#allocation2 + $0x16d] sm:$0x1]
      %v5904 = vld [vmem:[#allocation2 + $0x18d] sm:$0x1]
      %v5905 = vld [vmem:[#allocation2 + $0x1ad] sm:$0x1]
      %v5906 = vld [vmem:[#allocation2 + $0x1cd] sm:$0x1]
      %v5907 = vld [vmem:[#allocation2 + $0x1ed] sm:$0x1]
      %v5908 = vmax.f32 %v5876, %v5892
      %v5909 = vmax.f32 %v5877, %v5893
      %v5910 = vmax.f32 %v5878, %v5894
      %v5911 = vmax.f32 %v5879, %v5895
      %v5912 = vmax.f32 %v5880, %v5896
      %v5913 = vmax.f32 %v5881, %v5897
      %v5914 = vmax.f32 %v5882, %v5898
      %v5915 = vmax.f32 %v5883, %v5899
      %v5916 = vmax.f32 %v5884, %v5900
      %v5917 = vmax.f32 %v5885, %v5901
      %v5918 = vmax.f32 %v5886, %v5902
      %v5919 = vmax.f32 %v5887, %v5903
      %v5920 = vmax.f32 %v5888, %v5904
      %v5921 = vmax.f32 %v5889, %v5905
      %v5922 = vmax.f32 %v5890, %v5906
      %v5923 = vmax.f32 %v5891, %v5907
      %5924 = vst.msk [vmem:[%s175 + $0x7] sm:$0x1] %vm5251, %v5908
      %5925 = vst.msk [vmem:[%s175 + $0x17] sm:$0x1] %vm5251, %v5909
      %5926 = vst.msk [vmem:[%s175 + $0x27] sm:$0x1] %vm5251, %v5910
      %5927 = vst.msk [vmem:[%s175 + $0x37] sm:$0x1] %vm5251, %v5911
      %5928 = vst.msk [vmem:[%s175 + $0x47] sm:$0x1] %vm5251, %v5912
      %5929 = vst.msk [vmem:[%s175 + $0x57] sm:$0x1] %vm5251, %v5913
      %5930 = vst.msk [vmem:[%s175 + $0x67] sm:$0x1] %vm5251, %v5914
      %5931 = vst.msk [vmem:[%s175 + $0x77] sm:$0x1] %vm5251, %v5915
      %5932 = vst.msk [vmem:[%s175 + $0x87] sm:$0x1] %vm5251, %v5916
      %5933 = vst.msk [vmem:[%s175 + $0x97] sm:$0x1] %vm5251, %v5917
      %5934 = vst.msk [vmem:[%s175 + $0xa7] sm:$0x1] %vm5251, %v5918
      %5935 = vst.msk [vmem:[%s175 + $0xb7] sm:$0x1] %vm5251, %v5919
      %5936 = vst.msk [vmem:[%s175 + $0xc7] sm:$0x1] %vm5251, %v5920
      %5937 = vst.msk [vmem:[%s175 + $0xd7] sm:$0x1] %vm5251, %v5921
      %5938 = vst.msk [vmem:[%s175 + $0xe7] sm:$0x1] %vm5251, %v5922
      %5939 = vst.msk [vmem:[%s175 + $0xf7] sm:$0x1] %vm5251, %v5923
      %v5940 = vld [vmem:[#allocation2 + $0x10] sm:$0x1]
      %v5941 = vld [vmem:[#allocation2 + $0x30] sm:$0x1]
      %v5942 = vld [vmem:[#allocation2 + $0x50] sm:$0x1]
      %v5943 = vld [vmem:[#allocation2 + $0x70] sm:$0x1]
      %v5944 = vld [vmem:[#allocation2 + $0x90] sm:$0x1]
      %v5945 = vld [vmem:[#allocation2 + $0xb0] sm:$0x1]
      %v5946 = vld [vmem:[#allocation2 + $0xd0] sm:$0x1]
      %v5947 = vld [vmem:[#allocation2 + $0xf0] sm:$0x1]
      %v5948 = vld [vmem:[#allocation2 + $0x110] sm:$0x1]
      %v5949 = vld [vmem:[#allocation2 + $0x130] sm:$0x1]
      %v5950 = vld [vmem:[#allocation2 + $0x150] sm:$0x1]
      %v5951 = vld [vmem:[#allocation2 + $0x170] sm:$0x1]
      %v5952 = vld [vmem:[#allocation2 + $0x190] sm:$0x1]
      %v5953 = vld [vmem:[#allocation2 + $0x1b0] sm:$0x1]
      %v5954 = vld [vmem:[#allocation2 + $0x1d0] sm:$0x1]
      %v5955 = vld [vmem:[#allocation2 + $0x1f0] sm:$0x1]
      %v5956 = vld [vmem:[#allocation2 + $0x11] sm:$0x1]
      %v5957 = vld [vmem:[#allocation2 + $0x31] sm:$0x1]
      %v5958 = vld [vmem:[#allocation2 + $0x51] sm:$0x1]
      %v5959 = vld [vmem:[#allocation2 + $0x71] sm:$0x1]
      %v5960 = vld [vmem:[#allocation2 + $0x91] sm:$0x1]
      %v5961 = vld [vmem:[#allocation2 + $0xb1] sm:$0x1]
      %v5962 = vld [vmem:[#allocation2 + $0xd1] sm:$0x1]
      %v5963 = vld [vmem:[#allocation2 + $0xf1] sm:$0x1]
      %v5964 = vld [vmem:[#allocation2 + $0x111] sm:$0x1]
      %v5965 = vld [vmem:[#allocation2 + $0x131] sm:$0x1]
      %v5966 = vld [vmem:[#allocation2 + $0x151] sm:$0x1]
      %v5967 = vld [vmem:[#allocation2 + $0x171] sm:$0x1]
      %v5968 = vld [vmem:[#allocation2 + $0x191] sm:$0x1]
      %v5969 = vld [vmem:[#allocation2 + $0x1b1] sm:$0x1]
      %v5970 = vld [vmem:[#allocation2 + $0x1d1] sm:$0x1]
      %v5971 = vld [vmem:[#allocation2 + $0x1f1] sm:$0x1]
      %v5972 = vmax.f32 %v5940, %v5956
      %v5973 = vmax.f32 %v5941, %v5957
      %v5974 = vmax.f32 %v5942, %v5958
      %v5975 = vmax.f32 %v5943, %v5959
      %v5976 = vmax.f32 %v5944, %v5960
      %v5977 = vmax.f32 %v5945, %v5961
      %v5978 = vmax.f32 %v5946, %v5962
      %v5979 = vmax.f32 %v5947, %v5963
      %v5980 = vmax.f32 %v5948, %v5964
      %v5981 = vmax.f32 %v5949, %v5965
      %v5982 = vmax.f32 %v5950, %v5966
      %v5983 = vmax.f32 %v5951, %v5967
      %v5984 = vmax.f32 %v5952, %v5968
      %v5985 = vmax.f32 %v5953, %v5969
      %v5986 = vmax.f32 %v5954, %v5970
      %v5987 = vmax.f32 %v5955, %v5971
      %v5988 = vld [vmem:[#allocation2 + $0xf] sm:$0x1]
      %v5989 = vld [vmem:[#allocation2 + $0x2f] sm:$0x1]
      %v5990 = vld [vmem:[#allocation2 + $0x4f] sm:$0x1]
      %v5991 = vld [vmem:[#allocation2 + $0x6f] sm:$0x1]
      %v5992 = vld [vmem:[#allocation2 + $0x8f] sm:$0x1]
      %v5993 = vld [vmem:[#allocation2 + $0xaf] sm:$0x1]
      %v5994 = vld [vmem:[#allocation2 + $0xcf] sm:$0x1]
      %v5995 = vld [vmem:[#allocation2 + $0xef] sm:$0x1]
      %v5996 = vld [vmem:[#allocation2 + $0x10f] sm:$0x1]
      %v5997 = vld [vmem:[#allocation2 + $0x12f] sm:$0x1]
      %v5998 = vld [vmem:[#allocation2 + $0x14f] sm:$0x1]
      %v5999 = vld [vmem:[#allocation2 + $0x16f] sm:$0x1]
      %v6000 = vld [vmem:[#allocation2 + $0x18f] sm:$0x1]
      %v6001 = vld [vmem:[#allocation2 + $0x1af] sm:$0x1]
      %v6002 = vld [vmem:[#allocation2 + $0x1cf] sm:$0x1]
      %v6003 = vld [vmem:[#allocation2 + $0x1ef] sm:$0x1]
      %v6004 = vmax.f32 %v5972, %v5988
      %v6005 = vmax.f32 %v5973, %v5989
      %v6006 = vmax.f32 %v5974, %v5990
      %v6007 = vmax.f32 %v5975, %v5991
      %v6008 = vmax.f32 %v5976, %v5992
      %v6009 = vmax.f32 %v5977, %v5993
      %v6010 = vmax.f32 %v5978, %v5994
      %v6011 = vmax.f32 %v5979, %v5995
      %v6012 = vmax.f32 %v5980, %v5996
      %v6013 = vmax.f32 %v5981, %v5997
      %v6014 = vmax.f32 %v5982, %v5998
      %v6015 = vmax.f32 %v5983, %v5999
      %v6016 = vmax.f32 %v5984, %v6000
      %v6017 = vmax.f32 %v5985, %v6001
      %v6018 = vmax.f32 %v5986, %v6002
      %v6019 = vmax.f32 %v5987, %v6003
      %6020 = vst.msk [vmem:[%s175 + $0x8] sm:$0x1] %vm5251, %v6004
      %6021 = vst.msk [vmem:[%s175 + $0x18] sm:$0x1] %vm5251, %v6005
      %6022 = vst.msk [vmem:[%s175 + $0x28] sm:$0x1] %vm5251, %v6006
      %6023 = vst.msk [vmem:[%s175 + $0x38] sm:$0x1] %vm5251, %v6007
      %6024 = vst.msk [vmem:[%s175 + $0x48] sm:$0x1] %vm5251, %v6008
      %6025 = vst.msk [vmem:[%s175 + $0x58] sm:$0x1] %vm5251, %v6009
      %6026 = vst.msk [vmem:[%s175 + $0x68] sm:$0x1] %vm5251, %v6010
      %6027 = vst.msk [vmem:[%s175 + $0x78] sm:$0x1] %vm5251, %v6011
      %6028 = vst.msk [vmem:[%s175 + $0x88] sm:$0x1] %vm5251, %v6012
      %6029 = vst.msk [vmem:[%s175 + $0x98] sm:$0x1] %vm5251, %v6013
      %6030 = vst.msk [vmem:[%s175 + $0xa8] sm:$0x1] %vm5251, %v6014
      %6031 = vst.msk [vmem:[%s175 + $0xb8] sm:$0x1] %vm5251, %v6015
      %6032 = vst.msk [vmem:[%s175 + $0xc8] sm:$0x1] %vm5251, %v6016
      %6033 = vst.msk [vmem:[%s175 + $0xd8] sm:$0x1] %vm5251, %v6017
      %6034 = vst.msk [vmem:[%s175 + $0xe8] sm:$0x1] %vm5251, %v6018
      %6035 = vst.msk [vmem:[%s175 + $0xf8] sm:$0x1] %vm5251, %v6019
      %v6036 = vld [vmem:[#allocation2 + $0x12] sm:$0x1]
      %v6037 = vld [vmem:[#allocation2 + $0x32] sm:$0x1]
      %v6038 = vld [vmem:[#allocation2 + $0x52] sm:$0x1]
      %v6039 = vld [vmem:[#allocation2 + $0x72] sm:$0x1]
      %v6040 = vld [vmem:[#allocation2 + $0x92] sm:$0x1]
      %v6041 = vld [vmem:[#allocation2 + $0xb2] sm:$0x1]
      %v6042 = vld [vmem:[#allocation2 + $0xd2] sm:$0x1]
      %v6043 = vld [vmem:[#allocation2 + $0xf2] sm:$0x1]
      %v6044 = vld [vmem:[#allocation2 + $0x112] sm:$0x1]
      %v6045 = vld [vmem:[#allocation2 + $0x132] sm:$0x1]
      %v6046 = vld [vmem:[#allocation2 + $0x152] sm:$0x1]
      %v6047 = vld [vmem:[#allocation2 + $0x172] sm:$0x1]
      %v6048 = vld [vmem:[#allocation2 + $0x192] sm:$0x1]
      %v6049 = vld [vmem:[#allocation2 + $0x1b2] sm:$0x1]
      %v6050 = vld [vmem:[#allocation2 + $0x1d2] sm:$0x1]
      %v6051 = vld [vmem:[#allocation2 + $0x1f2] sm:$0x1]
      %v6052 = vld [vmem:[#allocation2 + $0x13] sm:$0x1]
      %v6053 = vld [vmem:[#allocation2 + $0x33] sm:$0x1]
      %v6054 = vld [vmem:[#allocation2 + $0x53] sm:$0x1]
      %v6055 = vld [vmem:[#allocation2 + $0x73] sm:$0x1]
      %v6056 = vld [vmem:[#allocation2 + $0x93] sm:$0x1]
      %v6057 = vld [vmem:[#allocation2 + $0xb3] sm:$0x1]
      %v6058 = vld [vmem:[#allocation2 + $0xd3] sm:$0x1]
      %v6059 = vld [vmem:[#allocation2 + $0xf3] sm:$0x1]
      %v6060 = vld [vmem:[#allocation2 + $0x113] sm:$0x1]
      %v6061 = vld [vmem:[#allocation2 + $0x133] sm:$0x1]
      %v6062 = vld [vmem:[#allocation2 + $0x153] sm:$0x1]
      %v6063 = vld [vmem:[#allocation2 + $0x173] sm:$0x1]
      %v6064 = vld [vmem:[#allocation2 + $0x193] sm:$0x1]
      %v6065 = vld [vmem:[#allocation2 + $0x1b3] sm:$0x1]
      %v6066 = vld [vmem:[#allocation2 + $0x1d3] sm:$0x1]
      %v6067 = vld [vmem:[#allocation2 + $0x1f3] sm:$0x1]
      %v6068 = vmax.f32 %v6036, %v6052
      %v6069 = vmax.f32 %v6037, %v6053
      %v6070 = vmax.f32 %v6038, %v6054
      %v6071 = vmax.f32 %v6039, %v6055
      %v6072 = vmax.f32 %v6040, %v6056
      %v6073 = vmax.f32 %v6041, %v6057
      %v6074 = vmax.f32 %v6042, %v6058
      %v6075 = vmax.f32 %v6043, %v6059
      %v6076 = vmax.f32 %v6044, %v6060
      %v6077 = vmax.f32 %v6045, %v6061
      %v6078 = vmax.f32 %v6046, %v6062
      %v6079 = vmax.f32 %v6047, %v6063
      %v6080 = vmax.f32 %v6048, %v6064
      %v6081 = vmax.f32 %v6049, %v6065
      %v6082 = vmax.f32 %v6050, %v6066
      %v6083 = vmax.f32 %v6051, %v6067
      %v6084 = vld [vmem:[#allocation2 + $0x11] sm:$0x1]
      %v6085 = vld [vmem:[#allocation2 + $0x31] sm:$0x1]
      %v6086 = vld [vmem:[#allocation2 + $0x51] sm:$0x1]
      %v6087 = vld [vmem:[#allocation2 + $0x71] sm:$0x1]
      %v6088 = vld [vmem:[#allocation2 + $0x91] sm:$0x1]
      %v6089 = vld [vmem:[#allocation2 + $0xb1] sm:$0x1]
      %v6090 = vld [vmem:[#allocation2 + $0xd1] sm:$0x1]
      %v6091 = vld [vmem:[#allocation2 + $0xf1] sm:$0x1]
      %v6092 = vld [vmem:[#allocation2 + $0x111] sm:$0x1]
      %v6093 = vld [vmem:[#allocation2 + $0x131] sm:$0x1]
      %v6094 = vld [vmem:[#allocation2 + $0x151] sm:$0x1]
      %v6095 = vld [vmem:[#allocation2 + $0x171] sm:$0x1]
      %v6096 = vld [vmem:[#allocation2 + $0x191] sm:$0x1]
      %v6097 = vld [vmem:[#allocation2 + $0x1b1] sm:$0x1]
      %v6098 = vld [vmem:[#allocation2 + $0x1d1] sm:$0x1]
      %v6099 = vld [vmem:[#allocation2 + $0x1f1] sm:$0x1]
      %v6100 = vmax.f32 %v6068, %v6084
      %v6101 = vmax.f32 %v6069, %v6085
      %v6102 = vmax.f32 %v6070, %v6086
      %v6103 = vmax.f32 %v6071, %v6087
      %v6104 = vmax.f32 %v6072, %v6088
      %v6105 = vmax.f32 %v6073, %v6089
      %v6106 = vmax.f32 %v6074, %v6090
      %v6107 = vmax.f32 %v6075, %v6091
      %v6108 = vmax.f32 %v6076, %v6092
      %v6109 = vmax.f32 %v6077, %v6093
      %v6110 = vmax.f32 %v6078, %v6094
      %v6111 = vmax.f32 %v6079, %v6095
      %v6112 = vmax.f32 %v6080, %v6096
      %v6113 = vmax.f32 %v6081, %v6097
      %v6114 = vmax.f32 %v6082, %v6098
      %v6115 = vmax.f32 %v6083, %v6099
      %6116 = vst.msk [vmem:[%s175 + $0x9] sm:$0x1] %vm5251, %v6100
      %6117 = vst.msk [vmem:[%s175 + $0x19] sm:$0x1] %vm5251, %v6101
      %6118 = vst.msk [vmem:[%s175 + $0x29] sm:$0x1] %vm5251, %v6102
      %6119 = vst.msk [vmem:[%s175 + $0x39] sm:$0x1] %vm5251, %v6103
      %6120 = vst.msk [vmem:[%s175 + $0x49] sm:$0x1] %vm5251, %v6104
      %6121 = vst.msk [vmem:[%s175 + $0x59] sm:$0x1] %vm5251, %v6105
      %6122 = vst.msk [vmem:[%s175 + $0x69] sm:$0x1] %vm5251, %v6106
      %6123 = vst.msk [vmem:[%s175 + $0x79] sm:$0x1] %vm5251, %v6107
      %6124 = vst.msk [vmem:[%s175 + $0x89] sm:$0x1] %vm5251, %v6108
      %6125 = vst.msk [vmem:[%s175 + $0x99] sm:$0x1] %vm5251, %v6109
      %6126 = vst.msk [vmem:[%s175 + $0xa9] sm:$0x1] %vm5251, %v6110
      %6127 = vst.msk [vmem:[%s175 + $0xb9] sm:$0x1] %vm5251, %v6111
      %6128 = vst.msk [vmem:[%s175 + $0xc9] sm:$0x1] %vm5251, %v6112
      %6129 = vst.msk [vmem:[%s175 + $0xd9] sm:$0x1] %vm5251, %v6113
      %6130 = vst.msk [vmem:[%s175 + $0xe9] sm:$0x1] %vm5251, %v6114
      %6131 = vst.msk [vmem:[%s175 + $0xf9] sm:$0x1] %vm5251, %v6115
      %v6132 = vld [vmem:[#allocation2 + $0x14] sm:$0x1]
      %v6133 = vld [vmem:[#allocation2 + $0x34] sm:$0x1]
      %v6134 = vld [vmem:[#allocation2 + $0x54] sm:$0x1]
      %v6135 = vld [vmem:[#allocation2 + $0x74] sm:$0x1]
      %v6136 = vld [vmem:[#allocation2 + $0x94] sm:$0x1]
      %v6137 = vld [vmem:[#allocation2 + $0xb4] sm:$0x1]
      %v6138 = vld [vmem:[#allocation2 + $0xd4] sm:$0x1]
      %v6139 = vld [vmem:[#allocation2 + $0xf4] sm:$0x1]
      %v6140 = vld [vmem:[#allocation2 + $0x114] sm:$0x1]
      %v6141 = vld [vmem:[#allocation2 + $0x134] sm:$0x1]
      %v6142 = vld [vmem:[#allocation2 + $0x154] sm:$0x1]
      %v6143 = vld [vmem:[#allocation2 + $0x174] sm:$0x1]
      %v6144 = vld [vmem:[#allocation2 + $0x194] sm:$0x1]
      %v6145 = vld [vmem:[#allocation2 + $0x1b4] sm:$0x1]
      %v6146 = vld [vmem:[#allocation2 + $0x1d4] sm:$0x1]
      %v6147 = vld [vmem:[#allocation2 + $0x1f4] sm:$0x1]
      %v6148 = vld [vmem:[#allocation2 + $0x15] sm:$0x1]
      %v6149 = vld [vmem:[#allocation2 + $0x35] sm:$0x1]
      %v6150 = vld [vmem:[#allocation2 + $0x55] sm:$0x1]
      %v6151 = vld [vmem:[#allocation2 + $0x75] sm:$0x1]
      %v6152 = vld [vmem:[#allocation2 + $0x95] sm:$0x1]
      %v6153 = vld [vmem:[#allocation2 + $0xb5] sm:$0x1]
      %v6154 = vld [vmem:[#allocation2 + $0xd5] sm:$0x1]
      %v6155 = vld [vmem:[#allocation2 + $0xf5] sm:$0x1]
      %v6156 = vld [vmem:[#allocation2 + $0x115] sm:$0x1]
      %v6157 = vld [vmem:[#allocation2 + $0x135] sm:$0x1]
      %v6158 = vld [vmem:[#allocation2 + $0x155] sm:$0x1]
      %v6159 = vld [vmem:[#allocation2 + $0x175] sm:$0x1]
      %v6160 = vld [vmem:[#allocation2 + $0x195] sm:$0x1]
      %v6161 = vld [vmem:[#allocation2 + $0x1b5] sm:$0x1]
      %v6162 = vld [vmem:[#allocation2 + $0x1d5] sm:$0x1]
      %v6163 = vld [vmem:[#allocation2 + $0x1f5] sm:$0x1]
      %v6164 = vmax.f32 %v6132, %v6148
      %v6165 = vmax.f32 %v6133, %v6149
      %v6166 = vmax.f32 %v6134, %v6150
      %v6167 = vmax.f32 %v6135, %v6151
      %v6168 = vmax.f32 %v6136, %v6152
      %v6169 = vmax.f32 %v6137, %v6153
      %v6170 = vmax.f32 %v6138, %v6154
      %v6171 = vmax.f32 %v6139, %v6155
      %v6172 = vmax.f32 %v6140, %v6156
      %v6173 = vmax.f32 %v6141, %v6157
      %v6174 = vmax.f32 %v6142, %v6158
      %v6175 = vmax.f32 %v6143, %v6159
      %v6176 = vmax.f32 %v6144, %v6160
      %v6177 = vmax.f32 %v6145, %v6161
      %v6178 = vmax.f32 %v6146, %v6162
      %v6179 = vmax.f32 %v6147, %v6163
      %v6180 = vld [vmem:[#allocation2 + $0x13] sm:$0x1]
      %v6181 = vld [vmem:[#allocation2 + $0x33] sm:$0x1]
      %v6182 = vld [vmem:[#allocation2 + $0x53] sm:$0x1]
      %v6183 = vld [vmem:[#allocation2 + $0x73] sm:$0x1]
      %v6184 = vld [vmem:[#allocation2 + $0x93] sm:$0x1]
      %v6185 = vld [vmem:[#allocation2 + $0xb3] sm:$0x1]
      %v6186 = vld [vmem:[#allocation2 + $0xd3] sm:$0x1]
      %v6187 = vld [vmem:[#allocation2 + $0xf3] sm:$0x1]
      %v6188 = vld [vmem:[#allocation2 + $0x113] sm:$0x1]
      %v6189 = vld [vmem:[#allocation2 + $0x133] sm:$0x1]
      %v6190 = vld [vmem:[#allocation2 + $0x153] sm:$0x1]
      %v6191 = vld [vmem:[#allocation2 + $0x173] sm:$0x1]
      %v6192 = vld [vmem:[#allocation2 + $0x193] sm:$0x1]
      %v6193 = vld [vmem:[#allocation2 + $0x1b3] sm:$0x1]
      %v6194 = vld [vmem:[#allocation2 + $0x1d3] sm:$0x1]
      %v6195 = vld [vmem:[#allocation2 + $0x1f3] sm:$0x1]
      %v6196 = vmax.f32 %v6164, %v6180
      %v6197 = vmax.f32 %v6165, %v6181
      %v6198 = vmax.f32 %v6166, %v6182
      %v6199 = vmax.f32 %v6167, %v6183
      %v6200 = vmax.f32 %v6168, %v6184
      %v6201 = vmax.f32 %v6169, %v6185
      %v6202 = vmax.f32 %v6170, %v6186
      %v6203 = vmax.f32 %v6171, %v6187
      %v6204 = vmax.f32 %v6172, %v6188
      %v6205 = vmax.f32 %v6173, %v6189
      %v6206 = vmax.f32 %v6174, %v6190
      %v6207 = vmax.f32 %v6175, %v6191
      %v6208 = vmax.f32 %v6176, %v6192
      %v6209 = vmax.f32 %v6177, %v6193
      %v6210 = vmax.f32 %v6178, %v6194
      %v6211 = vmax.f32 %v6179, %v6195
      %6212 = vst.msk [vmem:[%s175 + $0xa] sm:$0x1] %vm5251, %v6196
      %6213 = vst.msk [vmem:[%s175 + $0x1a] sm:$0x1] %vm5251, %v6197
      %6214 = vst.msk [vmem:[%s175 + $0x2a] sm:$0x1] %vm5251, %v6198
      %6215 = vst.msk [vmem:[%s175 + $0x3a] sm:$0x1] %vm5251, %v6199
      %6216 = vst.msk [vmem:[%s175 + $0x4a] sm:$0x1] %vm5251, %v6200
      %6217 = vst.msk [vmem:[%s175 + $0x5a] sm:$0x1] %vm5251, %v6201
      %6218 = vst.msk [vmem:[%s175 + $0x6a] sm:$0x1] %vm5251, %v6202
      %6219 = vst.msk [vmem:[%s175 + $0x7a] sm:$0x1] %vm5251, %v6203
      %6220 = vst.msk [vmem:[%s175 + $0x8a] sm:$0x1] %vm5251, %v6204
      %6221 = vst.msk [vmem:[%s175 + $0x9a] sm:$0x1] %vm5251, %v6205
      %6222 = vst.msk [vmem:[%s175 + $0xaa] sm:$0x1] %vm5251, %v6206
      %6223 = vst.msk [vmem:[%s175 + $0xba] sm:$0x1] %vm5251, %v6207
      %6224 = vst.msk [vmem:[%s175 + $0xca] sm:$0x1] %vm5251, %v6208
      %6225 = vst.msk [vmem:[%s175 + $0xda] sm:$0x1] %vm5251, %v6209
      %6226 = vst.msk [vmem:[%s175 + $0xea] sm:$0x1] %vm5251, %v6210
      %6227 = vst.msk [vmem:[%s175 + $0xfa] sm:$0x1] %vm5251, %v6211
      %v6228 = vld [vmem:[#allocation2 + $0x16] sm:$0x1]
      %v6229 = vld [vmem:[#allocation2 + $0x36] sm:$0x1]
      %v6230 = vld [vmem:[#allocation2 + $0x56] sm:$0x1]
      %v6231 = vld [vmem:[#allocation2 + $0x76] sm:$0x1]
      %v6232 = vld [vmem:[#allocation2 + $0x96] sm:$0x1]
      %v6233 = vld [vmem:[#allocation2 + $0xb6] sm:$0x1]
      %v6234 = vld [vmem:[#allocation2 + $0xd6] sm:$0x1]
      %v6235 = vld [vmem:[#allocation2 + $0xf6] sm:$0x1]
      %v6236 = vld [vmem:[#allocation2 + $0x116] sm:$0x1]
      %v6237 = vld [vmem:[#allocation2 + $0x136] sm:$0x1]
      %v6238 = vld [vmem:[#allocation2 + $0x156] sm:$0x1]
      %v6239 = vld [vmem:[#allocation2 + $0x176] sm:$0x1]
      %v6240 = vld [vmem:[#allocation2 + $0x196] sm:$0x1]
      %v6241 = vld [vmem:[#allocation2 + $0x1b6] sm:$0x1]
      %v6242 = vld [vmem:[#allocation2 + $0x1d6] sm:$0x1]
      %v6243 = vld [vmem:[#allocation2 + $0x1f6] sm:$0x1]
      %v6244 = vld [vmem:[#allocation2 + $0x17] sm:$0x1]
      %v6245 = vld [vmem:[#allocation2 + $0x37] sm:$0x1]
      %v6246 = vld [vmem:[#allocation2 + $0x57] sm:$0x1]
      %v6247 = vld [vmem:[#allocation2 + $0x77] sm:$0x1]
      %v6248 = vld [vmem:[#allocation2 + $0x97] sm:$0x1]
      %v6249 = vld [vmem:[#allocation2 + $0xb7] sm:$0x1]
      %v6250 = vld [vmem:[#allocation2 + $0xd7] sm:$0x1]
      %v6251 = vld [vmem:[#allocation2 + $0xf7] sm:$0x1]
      %v6252 = vld [vmem:[#allocation2 + $0x117] sm:$0x1]
      %v6253 = vld [vmem:[#allocation2 + $0x137] sm:$0x1]
      %v6254 = vld [vmem:[#allocation2 + $0x157] sm:$0x1]
      %v6255 = vld [vmem:[#allocation2 + $0x177] sm:$0x1]
      %v6256 = vld [vmem:[#allocation2 + $0x197] sm:$0x1]
      %v6257 = vld [vmem:[#allocation2 + $0x1b7] sm:$0x1]
      %v6258 = vld [vmem:[#allocation2 + $0x1d7] sm:$0x1]
      %v6259 = vld [vmem:[#allocation2 + $0x1f7] sm:$0x1]
      %v6260 = vmax.f32 %v6228, %v6244
      %v6261 = vmax.f32 %v6229, %v6245
      %v6262 = vmax.f32 %v6230, %v6246
      %v6263 = vmax.f32 %v6231, %v6247
      %v6264 = vmax.f32 %v6232, %v6248
      %v6265 = vmax.f32 %v6233, %v6249
      %v6266 = vmax.f32 %v6234, %v6250
      %v6267 = vmax.f32 %v6235, %v6251
      %v6268 = vmax.f32 %v6236, %v6252
      %v6269 = vmax.f32 %v6237, %v6253
      %v6270 = vmax.f32 %v6238, %v6254
      %v6271 = vmax.f32 %v6239, %v6255
      %v6272 = vmax.f32 %v6240, %v6256
      %v6273 = vmax.f32 %v6241, %v6257
      %v6274 = vmax.f32 %v6242, %v6258
      %v6275 = vmax.f32 %v6243, %v6259
      %v6276 = vld [vmem:[#allocation2 + $0x15] sm:$0x1]
      %v6277 = vld [vmem:[#allocation2 + $0x35] sm:$0x1]
      %v6278 = vld [vmem:[#allocation2 + $0x55] sm:$0x1]
      %v6279 = vld [vmem:[#allocation2 + $0x75] sm:$0x1]
      %v6280 = vld [vmem:[#allocation2 + $0x95] sm:$0x1]
      %v6281 = vld [vmem:[#allocation2 + $0xb5] sm:$0x1]
      %v6282 = vld [vmem:[#allocation2 + $0xd5] sm:$0x1]
      %v6283 = vld [vmem:[#allocation2 + $0xf5] sm:$0x1]
      %v6284 = vld [vmem:[#allocation2 + $0x115] sm:$0x1]
      %v6285 = vld [vmem:[#allocation2 + $0x135] sm:$0x1]
      %v6286 = vld [vmem:[#allocation2 + $0x155] sm:$0x1]
      %v6287 = vld [vmem:[#allocation2 + $0x175] sm:$0x1]
      %v6288 = vld [vmem:[#allocation2 + $0x195] sm:$0x1]
      %v6289 = vld [vmem:[#allocation2 + $0x1b5] sm:$0x1]
      %v6290 = vld [vmem:[#allocation2 + $0x1d5] sm:$0x1]
      %v6291 = vld [vmem:[#allocation2 + $0x1f5] sm:$0x1]
      %v6292 = vmax.f32 %v6260, %v6276
      %v6293 = vmax.f32 %v6261, %v6277
      %v6294 = vmax.f32 %v6262, %v6278
      %v6295 = vmax.f32 %v6263, %v6279
      %v6296 = vmax.f32 %v6264, %v6280
      %v6297 = vmax.f32 %v6265, %v6281
      %v6298 = vmax.f32 %v6266, %v6282
      %v6299 = vmax.f32 %v6267, %v6283
      %v6300 = vmax.f32 %v6268, %v6284
      %v6301 = vmax.f32 %v6269, %v6285
      %v6302 = vmax.f32 %v6270, %v6286
      %v6303 = vmax.f32 %v6271, %v6287
      %v6304 = vmax.f32 %v6272, %v6288
      %v6305 = vmax.f32 %v6273, %v6289
      %v6306 = vmax.f32 %v6274, %v6290
      %v6307 = vmax.f32 %v6275, %v6291
      %6308 = vst.msk [vmem:[%s175 + $0xb] sm:$0x1] %vm5251, %v6292
      %6309 = vst.msk [vmem:[%s175 + $0x1b] sm:$0x1] %vm5251, %v6293
      %6310 = vst.msk [vmem:[%s175 + $0x2b] sm:$0x1] %vm5251, %v6294
      %6311 = vst.msk [vmem:[%s175 + $0x3b] sm:$0x1] %vm5251, %v6295
      %6312 = vst.msk [vmem:[%s175 + $0x4b] sm:$0x1] %vm5251, %v6296
      %6313 = vst.msk [vmem:[%s175 + $0x5b] sm:$0x1] %vm5251, %v6297
      %6314 = vst.msk [vmem:[%s175 + $0x6b] sm:$0x1] %vm5251, %v6298
      %6315 = vst.msk [vmem:[%s175 + $0x7b] sm:$0x1] %vm5251, %v6299
      %6316 = vst.msk [vmem:[%s175 + $0x8b] sm:$0x1] %vm5251, %v6300
      %6317 = vst.msk [vmem:[%s175 + $0x9b] sm:$0x1] %vm5251, %v6301
      %6318 = vst.msk [vmem:[%s175 + $0xab] sm:$0x1] %vm5251, %v6302
      %6319 = vst.msk [vmem:[%s175 + $0xbb] sm:$0x1] %vm5251, %v6303
      %6320 = vst.msk [vmem:[%s175 + $0xcb] sm:$0x1] %vm5251, %v6304
      %6321 = vst.msk [vmem:[%s175 + $0xdb] sm:$0x1] %vm5251, %v6305
      %6322 = vst.msk [vmem:[%s175 + $0xeb] sm:$0x1] %vm5251, %v6306
      %6323 = vst.msk [vmem:[%s175 + $0xfb] sm:$0x1] %vm5251, %v6307
      %v6324 = vld [vmem:[#allocation2 + $0x18] sm:$0x1]
      %v6325 = vld [vmem:[#allocation2 + $0x38] sm:$0x1]
      %v6326 = vld [vmem:[#allocation2 + $0x58] sm:$0x1]
      %v6327 = vld [vmem:[#allocation2 + $0x78] sm:$0x1]
      %v6328 = vld [vmem:[#allocation2 + $0x98] sm:$0x1]
      %v6329 = vld [vmem:[#allocation2 + $0xb8] sm:$0x1]
      %v6330 = vld [vmem:[#allocation2 + $0xd8] sm:$0x1]
      %v6331 = vld [vmem:[#allocation2 + $0xf8] sm:$0x1]
      %v6332 = vld [vmem:[#allocation2 + $0x118] sm:$0x1]
      %v6333 = vld [vmem:[#allocation2 + $0x138] sm:$0x1]
      %v6334 = vld [vmem:[#allocation2 + $0x158] sm:$0x1]
      %v6335 = vld [vmem:[#allocation2 + $0x178] sm:$0x1]
      %v6336 = vld [vmem:[#allocation2 + $0x198] sm:$0x1]
      %v6337 = vld [vmem:[#allocation2 + $0x1b8] sm:$0x1]
      %v6338 = vld [vmem:[#allocation2 + $0x1d8] sm:$0x1]
      %v6339 = vld [vmem:[#allocation2 + $0x1f8] sm:$0x1]
      %v6340 = vld [vmem:[#allocation2 + $0x19] sm:$0x1]
      %v6341 = vld [vmem:[#allocation2 + $0x39] sm:$0x1]
      %v6342 = vld [vmem:[#allocation2 + $0x59] sm:$0x1]
      %v6343 = vld [vmem:[#allocation2 + $0x79] sm:$0x1]
      %v6344 = vld [vmem:[#allocation2 + $0x99] sm:$0x1]
      %v6345 = vld [vmem:[#allocation2 + $0xb9] sm:$0x1]
      %v6346 = vld [vmem:[#allocation2 + $0xd9] sm:$0x1]
      %v6347 = vld [vmem:[#allocation2 + $0xf9] sm:$0x1]
      %v6348 = vld [vmem:[#allocation2 + $0x119] sm:$0x1]
      %v6349 = vld [vmem:[#allocation2 + $0x139] sm:$0x1]
      %v6350 = vld [vmem:[#allocation2 + $0x159] sm:$0x1]
      %v6351 = vld [vmem:[#allocation2 + $0x179] sm:$0x1]
      %v6352 = vld [vmem:[#allocation2 + $0x199] sm:$0x1]
      %v6353 = vld [vmem:[#allocation2 + $0x1b9] sm:$0x1]
      %v6354 = vld [vmem:[#allocation2 + $0x1d9] sm:$0x1]
      %v6355 = vld [vmem:[#allocation2 + $0x1f9] sm:$0x1]
      %v6356 = vmax.f32 %v6324, %v6340
      %v6357 = vmax.f32 %v6325, %v6341
      %v6358 = vmax.f32 %v6326, %v6342
      %v6359 = vmax.f32 %v6327, %v6343
      %v6360 = vmax.f32 %v6328, %v6344
      %v6361 = vmax.f32 %v6329, %v6345
      %v6362 = vmax.f32 %v6330, %v6346
      %v6363 = vmax.f32 %v6331, %v6347
      %v6364 = vmax.f32 %v6332, %v6348
      %v6365 = vmax.f32 %v6333, %v6349
      %v6366 = vmax.f32 %v6334, %v6350
      %v6367 = vmax.f32 %v6335, %v6351
      %v6368 = vmax.f32 %v6336, %v6352
      %v6369 = vmax.f32 %v6337, %v6353
      %v6370 = vmax.f32 %v6338, %v6354
      %v6371 = vmax.f32 %v6339, %v6355
      %v6372 = vld [vmem:[#allocation2 + $0x17] sm:$0x1]
      %v6373 = vld [vmem:[#allocation2 + $0x37] sm:$0x1]
      %v6374 = vld [vmem:[#allocation2 + $0x57] sm:$0x1]
      %v6375 = vld [vmem:[#allocation2 + $0x77] sm:$0x1]
      %v6376 = vld [vmem:[#allocation2 + $0x97] sm:$0x1]
      %v6377 = vld [vmem:[#allocation2 + $0xb7] sm:$0x1]
      %v6378 = vld [vmem:[#allocation2 + $0xd7] sm:$0x1]
      %v6379 = vld [vmem:[#allocation2 + $0xf7] sm:$0x1]
      %v6380 = vld [vmem:[#allocation2 + $0x117] sm:$0x1]
      %v6381 = vld [vmem:[#allocation2 + $0x137] sm:$0x1]
      %v6382 = vld [vmem:[#allocation2 + $0x157] sm:$0x1]
      %v6383 = vld [vmem:[#allocation2 + $0x177] sm:$0x1]
      %v6384 = vld [vmem:[#allocation2 + $0x197] sm:$0x1]
      %v6385 = vld [vmem:[#allocation2 + $0x1b7] sm:$0x1]
      %v6386 = vld [vmem:[#allocation2 + $0x1d7] sm:$0x1]
      %v6387 = vld [vmem:[#allocation2 + $0x1f7] sm:$0x1]
      %v6388 = vmax.f32 %v6356, %v6372
      %v6389 = vmax.f32 %v6357, %v6373
      %v6390 = vmax.f32 %v6358, %v6374
      %v6391 = vmax.f32 %v6359, %v6375
      %v6392 = vmax.f32 %v6360, %v6376
      %v6393 = vmax.f32 %v6361, %v6377
      %v6394 = vmax.f32 %v6362, %v6378
      %v6395 = vmax.f32 %v6363, %v6379
      %v6396 = vmax.f32 %v6364, %v6380
      %v6397 = vmax.f32 %v6365, %v6381
      %v6398 = vmax.f32 %v6366, %v6382
      %v6399 = vmax.f32 %v6367, %v6383
      %v6400 = vmax.f32 %v6368, %v6384
      %v6401 = vmax.f32 %v6369, %v6385
      %v6402 = vmax.f32 %v6370, %v6386
      %v6403 = vmax.f32 %v6371, %v6387
      %6404 = vst.msk [vmem:[%s175 + $0xc] sm:$0x1] %vm5251, %v6388
      %6405 = vst.msk [vmem:[%s175 + $0x1c] sm:$0x1] %vm5251, %v6389
      %6406 = vst.msk [vmem:[%s175 + $0x2c] sm:$0x1] %vm5251, %v6390
      %6407 = vst.msk [vmem:[%s175 + $0x3c] sm:$0x1] %vm5251, %v6391
      %6408 = vst.msk [vmem:[%s175 + $0x4c] sm:$0x1] %vm5251, %v6392
      %6409 = vst.msk [vmem:[%s175 + $0x5c] sm:$0x1] %vm5251, %v6393
      %6410 = vst.msk [vmem:[%s175 + $0x6c] sm:$0x1] %vm5251, %v6394
      %6411 = vst.msk [vmem:[%s175 + $0x7c] sm:$0x1] %vm5251, %v6395
      %6412 = vst.msk [vmem:[%s175 + $0x8c] sm:$0x1] %vm5251, %v6396
      %6413 = vst.msk [vmem:[%s175 + $0x9c] sm:$0x1] %vm5251, %v6397
      %6414 = vst.msk [vmem:[%s175 + $0xac] sm:$0x1] %vm5251, %v6398
      %6415 = vst.msk [vmem:[%s175 + $0xbc] sm:$0x1] %vm5251, %v6399
      %6416 = vst.msk [vmem:[%s175 + $0xcc] sm:$0x1] %vm5251, %v6400
      %6417 = vst.msk [vmem:[%s175 + $0xdc] sm:$0x1] %vm5251, %v6401
      %6418 = vst.msk [vmem:[%s175 + $0xec] sm:$0x1] %vm5251, %v6402
      %6419 = vst.msk [vmem:[%s175 + $0xfc] sm:$0x1] %vm5251, %v6403
      %v6420 = vld [vmem:[#allocation2 + $0x1a] sm:$0x1]
      %v6421 = vld [vmem:[#allocation2 + $0x3a] sm:$0x1]
      %v6422 = vld [vmem:[#allocation2 + $0x5a] sm:$0x1]
      %v6423 = vld [vmem:[#allocation2 + $0x7a] sm:$0x1]
      %v6424 = vld [vmem:[#allocation2 + $0x9a] sm:$0x1]
      %v6425 = vld [vmem:[#allocation2 + $0xba] sm:$0x1]
      %v6426 = vld [vmem:[#allocation2 + $0xda] sm:$0x1]
      %v6427 = vld [vmem:[#allocation2 + $0xfa] sm:$0x1]
      %v6428 = vld [vmem:[#allocation2 + $0x11a] sm:$0x1]
      %v6429 = vld [vmem:[#allocation2 + $0x13a] sm:$0x1]
      %v6430 = vld [vmem:[#allocation2 + $0x15a] sm:$0x1]
      %v6431 = vld [vmem:[#allocation2 + $0x17a] sm:$0x1]
      %v6432 = vld [vmem:[#allocation2 + $0x19a] sm:$0x1]
      %v6433 = vld [vmem:[#allocation2 + $0x1ba] sm:$0x1]
      %v6434 = vld [vmem:[#allocation2 + $0x1da] sm:$0x1]
      %v6435 = vld [vmem:[#allocation2 + $0x1fa] sm:$0x1]
      %v6436 = vld [vmem:[#allocation2 + $0x1b] sm:$0x1]
      %v6437 = vld [vmem:[#allocation2 + $0x3b] sm:$0x1]
      %v6438 = vld [vmem:[#allocation2 + $0x5b] sm:$0x1]
      %v6439 = vld [vmem:[#allocation2 + $0x7b] sm:$0x1]
      %v6440 = vld [vmem:[#allocation2 + $0x9b] sm:$0x1]
      %v6441 = vld [vmem:[#allocation2 + $0xbb] sm:$0x1]
      %v6442 = vld [vmem:[#allocation2 + $0xdb] sm:$0x1]
      %v6443 = vld [vmem:[#allocation2 + $0xfb] sm:$0x1]
      %v6444 = vld [vmem:[#allocation2 + $0x11b] sm:$0x1]
      %v6445 = vld [vmem:[#allocation2 + $0x13b] sm:$0x1]
      %v6446 = vld [vmem:[#allocation2 + $0x15b] sm:$0x1]
      %v6447 = vld [vmem:[#allocation2 + $0x17b] sm:$0x1]
      %v6448 = vld [vmem:[#allocation2 + $0x19b] sm:$0x1]
      %v6449 = vld [vmem:[#allocation2 + $0x1bb] sm:$0x1]
      %v6450 = vld [vmem:[#allocation2 + $0x1db] sm:$0x1]
      %v6451 = vld [vmem:[#allocation2 + $0x1fb] sm:$0x1]
      %v6452 = vmax.f32 %v6420, %v6436
      %v6453 = vmax.f32 %v6421, %v6437
      %v6454 = vmax.f32 %v6422, %v6438
      %v6455 = vmax.f32 %v6423, %v6439
      %v6456 = vmax.f32 %v6424, %v6440
      %v6457 = vmax.f32 %v6425, %v6441
      %v6458 = vmax.f32 %v6426, %v6442
      %v6459 = vmax.f32 %v6427, %v6443
      %v6460 = vmax.f32 %v6428, %v6444
      %v6461 = vmax.f32 %v6429, %v6445
      %v6462 = vmax.f32 %v6430, %v6446
      %v6463 = vmax.f32 %v6431, %v6447
      %v6464 = vmax.f32 %v6432, %v6448
      %v6465 = vmax.f32 %v6433, %v6449
      %v6466 = vmax.f32 %v6434, %v6450
      %v6467 = vmax.f32 %v6435, %v6451
      %v6468 = vld [vmem:[#allocation2 + $0x19] sm:$0x1]
      %v6469 = vld [vmem:[#allocation2 + $0x39] sm:$0x1]
      %v6470 = vld [vmem:[#allocation2 + $0x59] sm:$0x1]
      %v6471 = vld [vmem:[#allocation2 + $0x79] sm:$0x1]
      %v6472 = vld [vmem:[#allocation2 + $0x99] sm:$0x1]
      %v6473 = vld [vmem:[#allocation2 + $0xb9] sm:$0x1]
      %v6474 = vld [vmem:[#allocation2 + $0xd9] sm:$0x1]
      %v6475 = vld [vmem:[#allocation2 + $0xf9] sm:$0x1]
      %v6476 = vld [vmem:[#allocation2 + $0x119] sm:$0x1]
      %v6477 = vld [vmem:[#allocation2 + $0x139] sm:$0x1]
      %v6478 = vld [vmem:[#allocation2 + $0x159] sm:$0x1]
      %v6479 = vld [vmem:[#allocation2 + $0x179] sm:$0x1]
      %v6480 = vld [vmem:[#allocation2 + $0x199] sm:$0x1]
      %v6481 = vld [vmem:[#allocation2 + $0x1b9] sm:$0x1]
      %v6482 = vld [vmem:[#allocation2 + $0x1d9] sm:$0x1]
      %v6483 = vld [vmem:[#allocation2 + $0x1f9] sm:$0x1]
      %v6484 = vmax.f32 %v6452, %v6468
      %v6485 = vmax.f32 %v6453, %v6469
      %v6486 = vmax.f32 %v6454, %v6470
      %v6487 = vmax.f32 %v6455, %v6471
      %v6488 = vmax.f32 %v6456, %v6472
      %v6489 = vmax.f32 %v6457, %v6473
      %v6490 = vmax.f32 %v6458, %v6474
      %v6491 = vmax.f32 %v6459, %v6475
      %v6492 = vmax.f32 %v6460, %v6476
      %v6493 = vmax.f32 %v6461, %v6477
      %v6494 = vmax.f32 %v6462, %v6478
      %v6495 = vmax.f32 %v6463, %v6479
      %v6496 = vmax.f32 %v6464, %v6480
      %v6497 = vmax.f32 %v6465, %v6481
      %v6498 = vmax.f32 %v6466, %v6482
      %v6499 = vmax.f32 %v6467, %v6483
      %6500 = vst.msk [vmem:[%s175 + $0xd] sm:$0x1] %vm5251, %v6484
      %6501 = vst.msk [vmem:[%s175 + $0x1d] sm:$0x1] %vm5251, %v6485
      %6502 = vst.msk [vmem:[%s175 + $0x2d] sm:$0x1] %vm5251, %v6486
      %6503 = vst.msk [vmem:[%s175 + $0x3d] sm:$0x1] %vm5251, %v6487
      %6504 = vst.msk [vmem:[%s175 + $0x4d] sm:$0x1] %vm5251, %v6488
      %6505 = vst.msk [vmem:[%s175 + $0x5d] sm:$0x1] %vm5251, %v6489
      %6506 = vst.msk [vmem:[%s175 + $0x6d] sm:$0x1] %vm5251, %v6490
      %6507 = vst.msk [vmem:[%s175 + $0x7d] sm:$0x1] %vm5251, %v6491
      %6508 = vst.msk [vmem:[%s175 + $0x8d] sm:$0x1] %vm5251, %v6492
      %6509 = vst.msk [vmem:[%s175 + $0x9d] sm:$0x1] %vm5251, %v6493
      %6510 = vst.msk [vmem:[%s175 + $0xad] sm:$0x1] %vm5251, %v6494
      %6511 = vst.msk [vmem:[%s175 + $0xbd] sm:$0x1] %vm5251, %v6495
      %6512 = vst.msk [vmem:[%s175 + $0xcd] sm:$0x1] %vm5251, %v6496
      %6513 = vst.msk [vmem:[%s175 + $0xdd] sm:$0x1] %vm5251, %v6497
      %6514 = vst.msk [vmem:[%s175 + $0xed] sm:$0x1] %vm5251, %v6498
      %6515 = vst.msk [vmem:[%s175 + $0xfd] sm:$0x1] %vm5251, %v6499
      %v6516 = vld [vmem:[#allocation2 + $0x1c] sm:$0x1]
      %v6517 = vld [vmem:[#allocation2 + $0x3c] sm:$0x1]
      %v6518 = vld [vmem:[#allocation2 + $0x5c] sm:$0x1]
      %v6519 = vld [vmem:[#allocation2 + $0x7c] sm:$0x1]
      %v6520 = vld [vmem:[#allocation2 + $0x9c] sm:$0x1]
      %v6521 = vld [vmem:[#allocation2 + $0xbc] sm:$0x1]
      %v6522 = vld [vmem:[#allocation2 + $0xdc] sm:$0x1]
      %v6523 = vld [vmem:[#allocation2 + $0xfc] sm:$0x1]
      %v6524 = vld [vmem:[#allocation2 + $0x11c] sm:$0x1]
      %v6525 = vld [vmem:[#allocation2 + $0x13c] sm:$0x1]
      %v6526 = vld [vmem:[#allocation2 + $0x15c] sm:$0x1]
      %v6527 = vld [vmem:[#allocation2 + $0x17c] sm:$0x1]
      %v6528 = vld [vmem:[#allocation2 + $0x19c] sm:$0x1]
      %v6529 = vld [vmem:[#allocation2 + $0x1bc] sm:$0x1]
      %v6530 = vld [vmem:[#allocation2 + $0x1dc] sm:$0x1]
      %v6531 = vld [vmem:[#allocation2 + $0x1fc] sm:$0x1]
      %v6532 = vld [vmem:[#allocation2 + $0x1d] sm:$0x1]
      %v6533 = vld [vmem:[#allocation2 + $0x3d] sm:$0x1]
      %v6534 = vld [vmem:[#allocation2 + $0x5d] sm:$0x1]
      %v6535 = vld [vmem:[#allocation2 + $0x7d] sm:$0x1]
      %v6536 = vld [vmem:[#allocation2 + $0x9d] sm:$0x1]
      %v6537 = vld [vmem:[#allocation2 + $0xbd] sm:$0x1]
      %v6538 = vld [vmem:[#allocation2 + $0xdd] sm:$0x1]
      %v6539 = vld [vmem:[#allocation2 + $0xfd] sm:$0x1]
      %v6540 = vld [vmem:[#allocation2 + $0x11d] sm:$0x1]
      %v6541 = vld [vmem:[#allocation2 + $0x13d] sm:$0x1]
      %v6542 = vld [vmem:[#allocation2 + $0x15d] sm:$0x1]
      %v6543 = vld [vmem:[#allocation2 + $0x17d] sm:$0x1]
      %v6544 = vld [vmem:[#allocation2 + $0x19d] sm:$0x1]
      %v6545 = vld [vmem:[#allocation2 + $0x1bd] sm:$0x1]
      %v6546 = vld [vmem:[#allocation2 + $0x1dd] sm:$0x1]
      %v6547 = vld [vmem:[#allocation2 + $0x1fd] sm:$0x1]
      %v6548 = vmax.f32 %v6516, %v6532
      %v6549 = vmax.f32 %v6517, %v6533
      %v6550 = vmax.f32 %v6518, %v6534
      %v6551 = vmax.f32 %v6519, %v6535
      %v6552 = vmax.f32 %v6520, %v6536
      %v6553 = vmax.f32 %v6521, %v6537
      %v6554 = vmax.f32 %v6522, %v6538
      %v6555 = vmax.f32 %v6523, %v6539
      %v6556 = vmax.f32 %v6524, %v6540
      %v6557 = vmax.f32 %v6525, %v6541
      %v6558 = vmax.f32 %v6526, %v6542
      %v6559 = vmax.f32 %v6527, %v6543
      %v6560 = vmax.f32 %v6528, %v6544
      %v6561 = vmax.f32 %v6529, %v6545
      %v6562 = vmax.f32 %v6530, %v6546
      %v6563 = vmax.f32 %v6531, %v6547
      %v6564 = vld [vmem:[#allocation2 + $0x1b] sm:$0x1]
      %v6565 = vld [vmem:[#allocation2 + $0x3b] sm:$0x1]
      %v6566 = vld [vmem:[#allocation2 + $0x5b] sm:$0x1]
      %v6567 = vld [vmem:[#allocation2 + $0x7b] sm:$0x1]
      %v6568 = vld [vmem:[#allocation2 + $0x9b] sm:$0x1]
      %v6569 = vld [vmem:[#allocation2 + $0xbb] sm:$0x1]
      %v6570 = vld [vmem:[#allocation2 + $0xdb] sm:$0x1]
      %v6571 = vld [vmem:[#allocation2 + $0xfb] sm:$0x1]
      %v6572 = vld [vmem:[#allocation2 + $0x11b] sm:$0x1]
      %v6573 = vld [vmem:[#allocation2 + $0x13b] sm:$0x1]
      %v6574 = vld [vmem:[#allocation2 + $0x15b] sm:$0x1]
      %v6575 = vld [vmem:[#allocation2 + $0x17b] sm:$0x1]
      %v6576 = vld [vmem:[#allocation2 + $0x19b] sm:$0x1]
      %v6577 = vld [vmem:[#allocation2 + $0x1bb] sm:$0x1]
      %v6578 = vld [vmem:[#allocation2 + $0x1db] sm:$0x1]
      %v6579 = vld [vmem:[#allocation2 + $0x1fb] sm:$0x1]
      %v6580 = vmax.f32 %v6548, %v6564
      %v6581 = vmax.f32 %v6549, %v6565
      %v6582 = vmax.f32 %v6550, %v6566
      %v6583 = vmax.f32 %v6551, %v6567
      %v6584 = vmax.f32 %v6552, %v6568
      %v6585 = vmax.f32 %v6553, %v6569
      %v6586 = vmax.f32 %v6554, %v6570
      %v6587 = vmax.f32 %v6555, %v6571
      %v6588 = vmax.f32 %v6556, %v6572
      %v6589 = vmax.f32 %v6557, %v6573
      %v6590 = vmax.f32 %v6558, %v6574
      %v6591 = vmax.f32 %v6559, %v6575
      %v6592 = vmax.f32 %v6560, %v6576
      %v6593 = vmax.f32 %v6561, %v6577
      %v6594 = vmax.f32 %v6562, %v6578
      %v6595 = vmax.f32 %v6563, %v6579
      %6596 = vst.msk [vmem:[%s175 + $0xe] sm:$0x1] %vm5251, %v6580
      %6597 = vst.msk [vmem:[%s175 + $0x1e] sm:$0x1] %vm5251, %v6581
      %6598 = vst.msk [vmem:[%s175 + $0x2e] sm:$0x1] %vm5251, %v6582
      %6599 = vst.msk [vmem:[%s175 + $0x3e] sm:$0x1] %vm5251, %v6583
      %6600 = vst.msk [vmem:[%s175 + $0x4e] sm:$0x1] %vm5251, %v6584
      %6601 = vst.msk [vmem:[%s175 + $0x5e] sm:$0x1] %vm5251, %v6585
      %6602 = vst.msk [vmem:[%s175 + $0x6e] sm:$0x1] %vm5251, %v6586
      %6603 = vst.msk [vmem:[%s175 + $0x7e] sm:$0x1] %vm5251, %v6587
      %6604 = vst.msk [vmem:[%s175 + $0x8e] sm:$0x1] %vm5251, %v6588
      %6605 = vst.msk [vmem:[%s175 + $0x9e] sm:$0x1] %vm5251, %v6589
      %6606 = vst.msk [vmem:[%s175 + $0xae] sm:$0x1] %vm5251, %v6590
      %6607 = vst.msk [vmem:[%s175 + $0xbe] sm:$0x1] %vm5251, %v6591
      %6608 = vst.msk [vmem:[%s175 + $0xce] sm:$0x1] %vm5251, %v6592
      %6609 = vst.msk [vmem:[%s175 + $0xde] sm:$0x1] %vm5251, %v6593
      %6610 = vst.msk [vmem:[%s175 + $0xee] sm:$0x1] %vm5251, %v6594
      %6611 = vst.msk [vmem:[%s175 + $0xfe] sm:$0x1] %vm5251, %v6595
      %v6612 = vld [vmem:[#allocation2 + $0x1e] sm:$0x1]
      %v6613 = vld [vmem:[#allocation2 + $0x3e] sm:$0x1]
      %v6614 = vld [vmem:[#allocation2 + $0x5e] sm:$0x1]
      %v6615 = vld [vmem:[#allocation2 + $0x7e] sm:$0x1]
      %v6616 = vld [vmem:[#allocation2 + $0x9e] sm:$0x1]
      %v6617 = vld [vmem:[#allocation2 + $0xbe] sm:$0x1]
      %v6618 = vld [vmem:[#allocation2 + $0xde] sm:$0x1]
      %v6619 = vld [vmem:[#allocation2 + $0xfe] sm:$0x1]
      %v6620 = vld [vmem:[#allocation2 + $0x11e] sm:$0x1]
      %v6621 = vld [vmem:[#allocation2 + $0x13e] sm:$0x1]
      %v6622 = vld [vmem:[#allocation2 + $0x15e] sm:$0x1]
      %v6623 = vld [vmem:[#allocation2 + $0x17e] sm:$0x1]
      %v6624 = vld [vmem:[#allocation2 + $0x19e] sm:$0x1]
      %v6625 = vld [vmem:[#allocation2 + $0x1be] sm:$0x1]
      %v6626 = vld [vmem:[#allocation2 + $0x1de] sm:$0x1]
      %v6627 = vld [vmem:[#allocation2 + $0x1fe] sm:$0x1]
      %v6628 = vld [vmem:[#allocation2 + $0x1f] sm:$0x1]
      %v6629 = vld [vmem:[#allocation2 + $0x3f] sm:$0x1]
      %v6630 = vld [vmem:[#allocation2 + $0x5f] sm:$0x1]
      %v6631 = vld [vmem:[#allocation2 + $0x7f] sm:$0x1]
      %v6632 = vld [vmem:[#allocation2 + $0x9f] sm:$0x1]
      %v6633 = vld [vmem:[#allocation2 + $0xbf] sm:$0x1]
      %v6634 = vld [vmem:[#allocation2 + $0xdf] sm:$0x1]
      %v6635 = vld [vmem:[#allocation2 + $0xff] sm:$0x1]
      %v6636 = vld [vmem:[#allocation2 + $0x11f] sm:$0x1]
      %v6637 = vld [vmem:[#allocation2 + $0x13f] sm:$0x1]
      %v6638 = vld [vmem:[#allocation2 + $0x15f] sm:$0x1]
      %v6639 = vld [vmem:[#allocation2 + $0x17f] sm:$0x1]
      %v6640 = vld [vmem:[#allocation2 + $0x19f] sm:$0x1]
      %v6641 = vld [vmem:[#allocation2 + $0x1bf] sm:$0x1]
      %v6642 = vld [vmem:[#allocation2 + $0x1df] sm:$0x1]
      %v6643 = vld [vmem:[#allocation2 + $0x1ff] sm:$0x1]
      %v6644 = vmax.f32 %v6612, %v6628
      %v6645 = vmax.f32 %v6613, %v6629
      %v6646 = vmax.f32 %v6614, %v6630
      %v6647 = vmax.f32 %v6615, %v6631
      %v6648 = vmax.f32 %v6616, %v6632
      %v6649 = vmax.f32 %v6617, %v6633
      %v6650 = vmax.f32 %v6618, %v6634
      %v6651 = vmax.f32 %v6619, %v6635
      %v6652 = vmax.f32 %v6620, %v6636
      %v6653 = vmax.f32 %v6621, %v6637
      %v6654 = vmax.f32 %v6622, %v6638
      %v6655 = vmax.f32 %v6623, %v6639
      %v6656 = vmax.f32 %v6624, %v6640
      %v6657 = vmax.f32 %v6625, %v6641
      %v6658 = vmax.f32 %v6626, %v6642
      %v6659 = vmax.f32 %v6627, %v6643
      %v6660 = vld [vmem:[#allocation2 + $0x1d] sm:$0x1]
      %v6661 = vld [vmem:[#allocation2 + $0x3d] sm:$0x1]
      %v6662 = vld [vmem:[#allocation2 + $0x5d] sm:$0x1]
      %v6663 = vld [vmem:[#allocation2 + $0x7d] sm:$0x1]
      %v6664 = vld [vmem:[#allocation2 + $0x9d] sm:$0x1]
      %v6665 = vld [vmem:[#allocation2 + $0xbd] sm:$0x1]
      %v6666 = vld [vmem:[#allocation2 + $0xdd] sm:$0x1]
      %v6667 = vld [vmem:[#allocation2 + $0xfd] sm:$0x1]
      %v6668 = vld [vmem:[#allocation2 + $0x11d] sm:$0x1]
      %v6669 = vld [vmem:[#allocation2 + $0x13d] sm:$0x1]
      %v6670 = vld [vmem:[#allocation2 + $0x15d] sm:$0x1]
      %v6671 = vld [vmem:[#allocation2 + $0x17d] sm:$0x1]
      %v6672 = vld [vmem:[#allocation2 + $0x19d] sm:$0x1]
      %v6673 = vld [vmem:[#allocation2 + $0x1bd] sm:$0x1]
      %v6674 = vld [vmem:[#allocation2 + $0x1dd] sm:$0x1]
      %v6675 = vld [vmem:[#allocation2 + $0x1fd] sm:$0x1]
      %v6676 = vmax.f32 %v6644, %v6660
      %v6677 = vmax.f32 %v6645, %v6661
      %v6678 = vmax.f32 %v6646, %v6662
      %v6679 = vmax.f32 %v6647, %v6663
      %v6680 = vmax.f32 %v6648, %v6664
      %v6681 = vmax.f32 %v6649, %v6665
      %v6682 = vmax.f32 %v6650, %v6666
      %v6683 = vmax.f32 %v6651, %v6667
      %v6684 = vmax.f32 %v6652, %v6668
      %v6685 = vmax.f32 %v6653, %v6669
      %v6686 = vmax.f32 %v6654, %v6670
      %v6687 = vmax.f32 %v6655, %v6671
      %v6688 = vmax.f32 %v6656, %v6672
      %v6689 = vmax.f32 %v6657, %v6673
      %v6690 = vmax.f32 %v6658, %v6674
      %v6691 = vmax.f32 %v6659, %v6675
      %6692 = vst.msk [vmem:[%s175 + $0xf] sm:$0x1] %vm5251, %v6676
      %6693 = vst.msk [vmem:[%s175 + $0x1f] sm:$0x1] %vm5251, %v6677
      %6694 = vst.msk [vmem:[%s175 + $0x2f] sm:$0x1] %vm5251, %v6678
      %6695 = vst.msk [vmem:[%s175 + $0x3f] sm:$0x1] %vm5251, %v6679
      %6696 = vst.msk [vmem:[%s175 + $0x4f] sm:$0x1] %vm5251, %v6680
      %6697 = vst.msk [vmem:[%s175 + $0x5f] sm:$0x1] %vm5251, %v6681
      %6698 = vst.msk [vmem:[%s175 + $0x6f] sm:$0x1] %vm5251, %v6682
      %6699 = vst.msk [vmem:[%s175 + $0x7f] sm:$0x1] %vm5251, %v6683
      %6700 = vst.msk [vmem:[%s175 + $0x8f] sm:$0x1] %vm5251, %v6684
      %6701 = vst.msk [vmem:[%s175 + $0x9f] sm:$0x1] %vm5251, %v6685
      %6702 = vst.msk [vmem:[%s175 + $0xaf] sm:$0x1] %vm5251, %v6686
      %6703 = vst.msk [vmem:[%s175 + $0xbf] sm:$0x1] %vm5251, %v6687
      %6704 = vst.msk [vmem:[%s175 + $0xcf] sm:$0x1] %vm5251, %v6688
      %6705 = vst.msk [vmem:[%s175 + $0xdf] sm:$0x1] %vm5251, %v6689
      %6706 = vst.msk [vmem:[%s175 + $0xef] sm:$0x1] %vm5251, %v6690
      %6707 = vst.msk [vmem:[%s175 + $0xff] sm:$0x1] %vm5251, %v6691
      %p6708 = scmp.lt.s32.totalorder %s14, 1
      %s6709 = scalar_select %p6708, %s14, 1
      %s6710 = smul.addr %s6709, 32
      %s6711 = smul.addr %s6710, 8
      %s6712 = scalar_lea.vmem %s3, %s6711
      // Predicated region
      $region33: #{video_encoder_cnn_forward.3} parent=31 // pred_check
        %p6713 = pneg %p100
      $region34: #{video_encoder_cnn_forward.3} parent=31 // pred_check_branch
        %6715 = sbr.rel (%p6713) target = $region36
      $region35: #{video_encoder_cnn_forward.3} parent=31 // pred_region
        _
      $region36: #{video_encoder_cnn_forward.3} parent=31 // pred_fallthru
        _
    $region32: #{video_encoder_cnn_forward.3} parent=5 // pred_fallthru
      _
    %p6716 = scmp.le.s32.totalorder 2, %s9
    // Predicated region
    $region37: #{video_encoder_cnn_forward.3} parent=5 // pred_check
      %p6717 = pneg %p6716
    $region38: #{video_encoder_cnn_forward.3} parent=5 // pred_check_branch
      %6719 = sbr.rel (%p6717) target = $region40
    $region39: #{video_encoder_cnn_forward.3} parent=5 // pred_region
      %s6720 = ssub.s32 %s9, 2
      // Predicated region
      $region41: #{video_encoder_cnn_forward.3} parent=39 // pred_check
        %p6721 = pneg %p106
      $region42: #{video_encoder_cnn_forward.3} parent=39 // pred_check_branch
        %6723 = sbr.rel (%p6721) target = $region44
      $region43: #{video_encoder_cnn_forward.3} parent=39 // pred_region
        %p6724 = scmp.lt.s32.totalorder %s15, 1
        %s6725 = scalar_select %p6724, %s15, 1
        %s6726 = smul.addr %s6725, 32
        %s6727 = smul.addr %s6726, 8
        %s6728 = scalar_lea.vmem %s3, %s6727
      $region44: #{video_encoder_cnn_forward.3} parent=39 // pred_fallthru
        _
    $region40: #{video_encoder_cnn_forward.3} parent=5 // pred_fallthru
      _
  $region6: #{video_encoder_cnn_forward.3} parent=0 // loop_footer
    %s13 = sadd.s32 1, %s9
  $region7: #{video_encoder_cnn_forward.3} parent=0 // loop_footer_branch
    %8 = sbr.rel target = $region3
  $region8: #{video_encoder_cnn_forward.3} parent=0 // loop_exit
    _

</llo_original>
